<compile_context>
chip_gen: v5e
topology: v5e:2x2
jax: 0.10.0
libtpu: 0.0.40
codegen_flags: <defaults>
</compile_context>

<pallas_src>
import functools

import numpy as np
import jax
import jax.numpy as jnp
from jax.experimental import pallas as pl

BN_EPS = 1e-5
K = 4  # every ConvTranspose2d in this model uses a 4x4 kernel


# ---------------------------------------------------------------------------
# Fused kernel: the entire DCGAN_G forward.
# ---------------------------------------------------------------------------
def _dcgan_fused_kernel(z_ref,
                        g1_ref, w1_ref, gam1_ref, bet1_ref,
                        g2_ref, w2_ref, gam2_ref, bet2_ref,
                        g3_ref, w3_ref,
                        out_ref):
    """initial convT+BN+ReLU -> pyramid convT+BN+ReLU -> final convT+tanh.

    Activations are (C, N*H*W) f32 values (position axis on lanes). Matmul
    operands are bf16 with f32 accumulation; BN / tanh stay in f32.
    """

    def conv_transpose(x_t, g_ref, w_ref):
        # x_t  : (C_in, M_in)  f32 activation, transposed layout.
        # w_ref: (k*k, C_out, C_in) bf16   -- per-tap weight  w[ci, co, ky, kx]^T
        # g_ref: (k*k, M_in, M_out) bf16   -- 0/1 placement: in-pos -> out-pos per tap
        taps, c_out, _ = w_ref.shape
        m_out = g_ref.shape[2]
        x_bf = x_t.astype(jnp.bfloat16)
        acc = jnp.zeros((c_out, m_out), jnp.float32)
        for t in range(taps):                                   # static unroll: 16 taps
            tmp = jnp.dot(w_ref[t], x_bf,
                          preferred_element_type=jnp.float32)          # (C_out, M_in)
            acc = acc + jnp.dot(tmp.astype(jnp.bfloat16), g_ref[t],
                                preferred_element_type=jnp.float32)    # (C_out, M_out)
        return acc

    def bn_relu(y, gam_ref, bet_ref):
        # Train-mode BatchNorm2d (batch stats over N*H*W, biased var) + ReLU.
        # Single-pass statistics along the lane axis; all math in f32.
        inv_m = 1.0 / y.shape[1]
        mean = jnp.sum(y, axis=1, keepdims=True) * inv_m
        ex2 = jnp.sum(y * y, axis=1, keepdims=True) * inv_m
        var = jnp.maximum(ex2 - mean * mean, 0.0)
        x_hat = (y - mean) * jax.lax.rsqrt(var + BN_EPS)
        return jnp.maximum(x_hat * gam_ref[...] + bet_ref[...], 0.0)

    x0 = z_ref[...]                                                       # (z_dim, N)
    x1 = bn_relu(conv_transpose(x0, g1_ref, w1_ref), gam1_ref, bet1_ref)  # (32, N*16)
    x2 = bn_relu(conv_transpose(x1, g2_ref, w2_ref), gam2_ref, bet2_ref)  # (16, N*64)
    y3 = jnp.tanh(conv_transpose(x2, g3_ref, w3_ref))                     # (nc, N*256)

    # Lane-dense (nc, 256) stores, already in NCHW order: out[n, c, y*W + x].
    n_batch, _, hw = out_ref.shape
    for n in range(n_batch):
        out_ref[n, :, :] = y3[:, n * hw:(n + 1) * hw]


# ---------------------------------------------------------------------------
# Host-side constant / parameter preparation (tiny, trace-time).
# ---------------------------------------------------------------------------
@functools.lru_cache(maxsize=None)
def _build_placement(n_batch, h_in, w_in, h_out, w_out, stride, pad):
    """0/1 matrices G[t, p_in, p_out]: input position p_in contributes to output
    position p_out under kernel tap t = ky*K + kx of a ConvTranspose2d
    (o = stride*i - pad + tap).  Positions are flattened n-major, row-major."""
    m_in = n_batch * h_in * w_in
    m_out = n_batch * h_out * w_out
    g = np.zeros((K * K, m_in, m_out), np.float32)
    for ky in range(K):
        for kx in range(K):
            t = ky * K + kx
            for n in range(n_batch):
                for iy in range(h_in):
                    oy = stride * iy - pad + ky
                    if oy < 0 or oy >= h_out:
                        continue
                    for ix in range(w_in):
                        ox = stride * ix - pad + kx
                        if ox < 0 or ox >= w_out:
                            continue
                        g[t,
                          n * h_in * w_in + iy * w_in + ix,
                          n * h_out * w_out + oy * w_out + ox] = 1.0
    return g


def _weight_stack_t(w_pt):
    """PyTorch ConvTranspose2d weight (Cin, Cout, kh, kw) ->
    per-tap transposed stack (kh*kw, Cout, Cin), bf16 for the MXU."""
    cin, cout, k, _ = w_pt.shape
    return jnp.transpose(w_pt, (2, 3, 1, 0)).reshape(k * k, cout, cin).astype(jnp.bfloat16)


# ---------------------------------------------------------------------------
# Full DCGAN_G forward (outsize=16, z_dim=8, nc=3, feature_num=16):
#   initial : ConvTranspose2d(8  -> 32, k=4, s=1, p=0) + BN + ReLU  -> (N, 32, 4, 4)
#   pyramid : ConvTranspose2d(32 -> 16, k=4, s=2, p=1) + BN + ReLU  -> (N, 16, 8, 8)
#   final   : ConvTranspose2d(16 -> 3,  k=4, s=2, p=1) + Tanh       -> (N, 3, 16, 16)
# ---------------------------------------------------------------------------
def dcgan_g_forward(x_nchw, params):
    n, z_dim = x_nchw.shape[0], x_nchw.shape[1]
    c1 = params["w1"].shape[1]          # 32
    c2 = params["w2"].shape[1]          # 16
    nc = params["w3"].shape[1]          # 3
    h1 = K                              # 1x1  -> 4x4   (stride 1, pad 0)
    h2 = 2 * h1                         # 4x4  -> 8x8   (stride 2, pad 1)
    h3 = 2 * h2                         # 8x8  -> 16x16 (stride 2, pad 1)

    # Transposed latent: (z_dim, N) -- spatial dims of z are 1x1.
    z_t = jnp.transpose(x_nchw.reshape(n, z_dim)).astype(jnp.float32)

    # Constant 0/1 placement matrices (trace-time numpy constants, bf16).
    g1 = jnp.asarray(_build_placement(n, 1, 1, h1, h1, 1, 0), jnp.bfloat16)
    g2 = jnp.asarray(_build_placement(n, h1, h1, h2, h2, 2, 1), jnp.bfloat16)
    g3 = jnp.asarray(_build_placement(n, h2, h2, h3, h3, 2, 1), jnp.bfloat16)

    w1t = _weight_stack_t(params["w1"])
    w2t = _weight_stack_t(params["w2"])
    w3t = _weight_stack_t(params["w3"])
    gam1 = params["g1"].reshape(c1, 1).astype(jnp.float32)
    bet1 = params["b1"].reshape(c1, 1).astype(jnp.float32)
    gam2 = params["g2"].reshape(c2, 1).astype(jnp.float32)
    bet2 = params["b2"].reshape(c2, 1).astype(jnp.float32)

    # One fused kernel, no grid: every operand / the output is a whole-array
    # VMEM block (total VMEM footprint ~2.3 MiB, well inside default limits).
    out_flat = pl.pallas_call(
        _dcgan_fused_kernel,
        out_shape=jax.ShapeDtypeStruct((n, nc, h3 * h3), jnp.float32),
    )(z_t, g1, w1t, gam1, bet1, g2, w2t, gam2, bet2, g3, w3t)

    return out_flat.reshape(n, nc, h3, h3)      # already NCHW; reshape is free


def init_params(key):
    z_dim, cngf0, cngf1, nc = 8, 32, 16, 3
    ks = jax.random.split(key, 7)
    return {
        "w1": 0.05 * jax.random.normal(ks[0], (z_dim, cngf0, 4, 4), jnp.float32),
        "w2": 0.05 * jax.random.normal(ks[1], (cngf0, cngf1, 4, 4), jnp.float32),
        "w3": 0.05 * jax.random.normal(ks[2], (cngf1, nc, 4, 4), jnp.float32),
        "g1": 1.0 + 0.1 * jax.random.normal(ks[3], (cngf0,), jnp.float32),
        "b1": 0.1 * jax.random.normal(ks[4], (cngf0,), jnp.float32),
        "g2": 1.0 + 0.1 * jax.random.normal(ks[5], (cngf1,), jnp.float32),
        "b2": 0.1 * jax.random.normal(ks[6], (cngf1,), jnp.float32),
    }


if __name__ == "__main__":
    key = jax.random.PRNGKey(0)
    k_x, k_p = jax.random.split(key)
    x = jax.random.normal(k_x, (2, 8, 1, 1), jnp.float32)   # (N, z_dim, 1, 1)
    params = init_params(k_p)

    fwd = jax.jit(dcgan_g_forward)
    out = jax.block_until_ready(fwd(x, params))

    assert out.shape == (2, 3, 16, 16), out.shape
    assert out.dtype == jnp.float32
    assert bool(jnp.all(jnp.isfinite(out)))
    assert bool(jnp.all(jnp.abs(out) <= 1.0))               # tanh output range
    print("KERNEL_OK")
</pallas_src>

<mosaic_0001>
module attributes {stable_mosaic.version = 11 : i64} {
  func.func @_dcgan_fused_kernel(%arg0: memref<8x2xf32, #tpu.memory_space<vmem>>, %arg1: memref<16x2x32xbf16, #tpu.memory_space<vmem>>, %arg2: memref<16x32x8xbf16, #tpu.memory_space<vmem>>, %arg3: memref<32x1xf32, #tpu.memory_space<vmem>>, %arg4: memref<32x1xf32, #tpu.memory_space<vmem>>, %arg5: memref<16x32x128xbf16, #tpu.memory_space<vmem>>, %arg6: memref<16x16x32xbf16, #tpu.memory_space<vmem>>, %arg7: memref<16x1xf32, #tpu.memory_space<vmem>>, %arg8: memref<16x1xf32, #tpu.memory_space<vmem>>, %arg9: memref<16x128x512xbf16, #tpu.memory_space<vmem>>, %arg10: memref<16x3x16xbf16, #tpu.memory_space<vmem>>, %arg11: memref<2x3x256xf32, #tpu.memory_space<vmem>>) attributes {dimension_semantics = [], scalar_prefetch = 0 : i64, scratch_operands = 0 : i64, tpu.core_type = #tpu.core_type<tc>} {
    %c0 = arith.constant 0 : index
    %c0_0 = arith.constant 0 : index
    %0 = vector.load %arg0[%c0, %c0_0] : memref<8x2xf32, #tpu.memory_space<vmem>>, vector<8x2xf32>
    %1 = arith.truncf %0 : vector<8x2xf32> to vector<8x2xbf16>
    %cst = arith.constant 0.000000e+00 : f32
    %2 = vector.broadcast %cst : f32 to vector<32x32xf32>
    %c0_1 = arith.constant 0 : index
    %c0_2 = arith.constant 0 : index
    %c0_3 = arith.constant 0 : index
    %3 = vector.load %arg2[%c0_1, %c0_2, %c0_3] : memref<16x32x8xbf16, #tpu.memory_space<vmem>>, vector<1x32x8xbf16>
    %4 = vector.shape_cast %3 : vector<1x32x8xbf16> to vector<32x8xbf16>
    %cst_4 = arith.constant dense<0.000000e+00> : vector<32x2xf32>
    %5 = tpu.matmul %4, %1, %cst_4 {dimension_numbers = #tpu.dot_dimension_numbers<[1], [0], [0], [1], [0, 0, 1, 1], [], []>} : vector<32x8xbf16>, vector<8x2xbf16>, vector<32x2xf32> -> vector<32x2xf32>
    %6 = arith.truncf %5 : vector<32x2xf32> to vector<32x2xbf16>
    %c0_5 = arith.constant 0 : index
    %c0_6 = arith.constant 0 : index
    %c0_7 = arith.constant 0 : index
    %7 = vector.load %arg1[%c0_5, %c0_6, %c0_7] : memref<16x2x32xbf16, #tpu.memory_space<vmem>>, vector<1x2x32xbf16>
    %8 = vector.shape_cast %7 : vector<1x2x32xbf16> to vector<2x32xbf16>
    %cst_8 = arith.constant dense<0.000000e+00> : vector<32x32xf32>
    %9 = tpu.matmul %6, %8, %cst_8 {dimension_numbers = #tpu.dot_dimension_numbers<[1], [0], [0], [1], [0, 0, 1, 1], [], []>} : vector<32x2xbf16>, vector<2x32xbf16>, vector<32x32xf32> -> vector<32x32xf32>
    %10 = arith.addf %2, %9 : vector<32x32xf32>
    %c1 = arith.constant 1 : index
    %c0_9 = arith.constant 0 : index
    %c0_10 = arith.constant 0 : index
    %11 = vector.load %arg2[%c1, %c0_9, %c0_10] : memref<16x32x8xbf16, #tpu.memory_space<vmem>>, vector<1x32x8xbf16>
    %12 = vector.shape_cast %11 : vector<1x32x8xbf16> to vector<32x8xbf16>
    %cst_11 = arith.constant dense<0.000000e+00> : vector<32x2xf32>
    %13 = tpu.matmul %12, %1, %cst_11 {dimension_numbers = #tpu.dot_dimension_numbers<[1], [0], [0], [1], [0, 0, 1, 1], [], []>} : vector<32x8xbf16>, vector<8x2xbf16>, vector<32x2xf32> -> vector<32x2xf32>
    %14 = arith.truncf %13 : vector<32x2xf32> to vector<32x2xbf16>
    %c1_12 = arith.constant 1 : index
    %c0_13 = arith.constant 0 : index
    %c0_14 = arith.constant 0 : index
    %15 = vector.load %arg1[%c1_12, %c0_13, %c0_14] : memref<16x2x32xbf16, #tpu.memory_space<vmem>>, vector<1x2x32xbf16>
    %16 = vector.shape_cast %15 : vector<1x2x32xbf16> to vector<2x32xbf16>
    %cst_15 = arith.constant dense<0.000000e+00> : vector<32x32xf32>
    %17 = tpu.matmul %14, %16, %cst_15 {dimension_numbers = #tpu.dot_dimension_numbers<[1], [0], [0], [1], [0, 0, 1, 1], [], []>} : vector<32x2xbf16>, vector<2x32xbf16>, vector<32x32xf32> -> vector<32x32xf32>
    %18 = arith.addf %10, %17 : vector<32x32xf32>
    %c2 = arith.constant 2 : index
    %c0_16 = arith.constant 0 : index
    %c0_17 = arith.constant 0 : index
    %19 = vector.load %arg2[%c2, %c0_16, %c0_17] : memref<16x32x8xbf16, #tpu.memory_space<vmem>>, vector<1x32x8xbf16>
    %20 = vector.shape_cast %19 : vector<1x32x8xbf16> to vector<32x8xbf16>
    %cst_18 = arith.constant dense<0.000000e+00> : vector<32x2xf32>
    %21 = tpu.matmul %20, %1, %cst_18 {dimension_numbers = #tpu.dot_dimension_numbers<[1], [0], [0], [1], [0, 0, 1, 1], [], []>} : vector<32x8xbf16>, vector<8x2xbf16>, vector<32x2xf32> -> vector<32x2xf32>
    %22 = arith.truncf %21 : vector<32x2xf32> to vector<32x2xbf16>
    %c2_19 = arith.constant 2 : index
    %c0_20 = arith.constant 0 : index
    %c0_21 = arith.constant 0 : index
    %23 = vector.load %arg1[%c2_19, %c0_20, %c0_21] : memref<16x2x32xbf16, #tpu.memory_space<vmem>>, vector<1x2x32xbf16>
    %24 = vector.shape_cast %23 : vector<1x2x32xbf16> to vector<2x32xbf16>
    %cst_22 = arith.constant dense<0.000000e+00> : vector<32x32xf32>
    %25 = tpu.matmul %22, %24, %cst_22 {dimension_numbers = #tpu.dot_dimension_numbers<[1], [0], [0], [1], [0, 0, 1, 1], [], []>} : vector<32x2xbf16>, vector<2x32xbf16>, vector<32x32xf32> -> vector<32x32xf32>
    %26 = arith.addf %18, %25 : vector<32x32xf32>
    %c3 = arith.constant 3 : index
    %c0_23 = arith.constant 0 : index
    %c0_24 = arith.constant 0 : index
    %27 = vector.load %arg2[%c3, %c0_23, %c0_24] : memref<16x32x8xbf16, #tpu.memory_space<vmem>>, vector<1x32x8xbf16>
    %28 = vector.shape_cast %27 : vector<1x32x8xbf16> to vector<32x8xbf16>
    %cst_25 = arith.constant dense<0.000000e+00> : vector<32x2xf32>
    %29 = tpu.matmul %28, %1, %cst_25 {dimension_numbers = #tpu.dot_dimension_numbers<[1], [0], [0], [1], [0, 0, 1, 1], [], []>} : vector<32x8xbf16>, vector<8x2xbf16>, vector<32x2xf32> -> vector<32x2xf32>
    %30 = arith.truncf %29 : vector<32x2xf32> to vector<32x2xbf16>
    %c3_26 = arith.constant 3 : index
    %c0_27 = arith.constant 0 : index
    %c0_28 = arith.constant 0 : index
    %31 = vector.load %arg1[%c3_26, %c0_27, %c0_28] : memref<16x2x32xbf16, #tpu.memory_space<vmem>>, vector<1x2x32xbf16>
    %32 = vector.shape_cast %31 : vector<1x2x32xbf16> to vector<2x32xbf16>
    %cst_29 = arith.constant dense<0.000000e+00> : vector<32x32xf32>
    %33 = tpu.matmul %30, %32, %cst_29 {dimension_numbers = #tpu.dot_dimension_numbers<[1], [0], [0], [1], [0, 0, 1, 1], [], []>} : vector<32x2xbf16>, vector<2x32xbf16>, vector<32x32xf32> -> vector<32x32xf32>
    %34 = arith.addf %26, %33 : vector<32x32xf32>
    %c4 = arith.constant 4 : index
    %c0_30 = arith.constant 0 : index
    %c0_31 = arith.constant 0 : index
    %35 = vector.load %arg2[%c4, %c0_30, %c0_31] : memref<16x32x8xbf16, #tpu.memory_space<vmem>>, vector<1x32x8xbf16>
    %36 = vector.shape_cast %35 : vector<1x32x8xbf16> to vector<32x8xbf16>
    %cst_32 = arith.constant dense<0.000000e+00> : vector<32x2xf32>
    %37 = tpu.matmul %36, %1, %cst_32 {dimension_numbers = #tpu.dot_dimension_numbers<[1], [0], [0], [1], [0, 0, 1, 1], [], []>} : vector<32x8xbf16>, vector<8x2xbf16>, vector<32x2xf32> -> vector<32x2xf32>
    %38 = arith.truncf %37 : vector<32x2xf32> to vector<32x2xbf16>
    %c4_33 = arith.constant 4 : index
    %c0_34 = arith.constant 0 : index
    %c0_35 = arith.constant 0 : index
    %39 = vector.load %arg1[%c4_33, %c0_34, %c0_35] : memref<16x2x32xbf16, #tpu.memory_space<vmem>>, vector<1x2x32xbf16>
    %40 = vector.shape_cast %39 : vector<1x2x32xbf16> to vector<2x32xbf16>
    %cst_36 = arith.constant dense<0.000000e+00> : vector<32x32xf32>
    %41 = tpu.matmul %38, %40, %cst_36 {dimension_numbers = #tpu.dot_dimension_numbers<[1], [0], [0], [1], [0, 0, 1, 1], [], []>} : vector<32x2xbf16>, vector<2x32xbf16>, vector<32x32xf32> -> vector<32x32xf32>
    %42 = arith.addf %34, %41 : vector<32x32xf32>
    %c5 = arith.constant 5 : index
    %c0_37 = arith.constant 0 : index
    %c0_38 = arith.constant 0 : index
    %43 = vector.load %arg2[%c5, %c0_37, %c0_38] : memref<16x32x8xbf16, #tpu.memory_space<vmem>>, vector<1x32x8xbf16>
    %44 = vector.shape_cast %43 : vector<1x32x8xbf16> to vector<32x8xbf16>
    %cst_39 = arith.constant dense<0.000000e+00> : vector<32x2xf32>
    %45 = tpu.matmul %44, %1, %cst_39 {dimension_numbers = #tpu.dot_dimension_numbers<[1], [0], [0], [1], [0, 0, 1, 1], [], []>} : vector<32x8xbf16>, vector<8x2xbf16>, vector<32x2xf32> -> vector<32x2xf32>
    %46 = arith.truncf %45 : vector<32x2xf32> to vector<32x2xbf16>
    %c5_40 = arith.constant 5 : index
    %c0_41 = arith.constant 0 : index
    %c0_42 = arith.constant 0 : index
    %47 = vector.load %arg1[%c5_40, %c0_41, %c0_42] : memref<16x2x32xbf16, #tpu.memory_space<vmem>>, vector<1x2x32xbf16>
    %48 = vector.shape_cast %47 : vector<1x2x32xbf16> to vector<2x32xbf16>
    %cst_43 = arith.constant dense<0.000000e+00> : vector<32x32xf32>
    %49 = tpu.matmul %46, %48, %cst_43 {dimension_numbers = #tpu.dot_dimension_numbers<[1], [0], [0], [1], [0, 0, 1, 1], [], []>} : vector<32x2xbf16>, vector<2x32xbf16>, vector<32x32xf32> -> vector<32x32xf32>
    %50 = arith.addf %42, %49 : vector<32x32xf32>
    %c6 = arith.constant 6 : index
    %c0_44 = arith.constant 0 : index
    %c0_45 = arith.constant 0 : index
    %51 = vector.load %arg2[%c6, %c0_44, %c0_45] : memref<16x32x8xbf16, #tpu.memory_space<vmem>>, vector<1x32x8xbf16>
    %52 = vector.shape_cast %51 : vector<1x32x8xbf16> to vector<32x8xbf16>
    %cst_46 = arith.constant dense<0.000000e+00> : vector<32x2xf32>
    %53 = tpu.matmul %52, %1, %cst_46 {dimension_numbers = #tpu.dot_dimension_numbers<[1], [0], [0], [1], [0, 0, 1, 1], [], []>} : vector<32x8xbf16>, vector<8x2xbf16>, vector<32x2xf32> -> vector<32x2xf32>
    %54 = arith.truncf %53 : vector<32x2xf32> to vector<32x2xbf16>
    %c6_47 = arith.constant 6 : index
    %c0_48 = arith.constant 0 : index
    %c0_49 = arith.constant 0 : index
    %55 = vector.load %arg1[%c6_47, %c0_48, %c0_49] : memref<16x2x32xbf16, #tpu.memory_space<vmem>>, vector<1x2x32xbf16>
    %56 = vector.shape_cast %55 : vector<1x2x32xbf16> to vector<2x32xbf16>
    %cst_50 = arith.constant dense<0.000000e+00> : vector<32x32xf32>
    %57 = tpu.matmul %54, %56, %cst_50 {dimension_numbers = #tpu.dot_dimension_numbers<[1], [0], [0], [1], [0, 0, 1, 1], [], []>} : vector<32x2xbf16>, vector<2x32xbf16>, vector<32x32xf32> -> vector<32x32xf32>
    %58 = arith.addf %50, %57 : vector<32x32xf32>
    %c7 = arith.constant 7 : index
    %c0_51 = arith.constant 0 : index
    %c0_52 = arith.constant 0 : index
    %59 = vector.load %arg2[%c7, %c0_51, %c0_52] : memref<16x32x8xbf16, #tpu.memory_space<vmem>>, vector<1x32x8xbf16>
    %60 = vector.shape_cast %59 : vector<1x32x8xbf16> to vector<32x8xbf16>
    %cst_53 = arith.constant dense<0.000000e+00> : vector<32x2xf32>
    %61 = tpu.matmul %60, %1, %cst_53 {dimension_numbers = #tpu.dot_dimension_numbers<[1], [0], [0], [1], [0, 0, 1, 1], [], []>} : vector<32x8xbf16>, vector<8x2xbf16>, vector<32x2xf32> -> vector<32x2xf32>
    %62 = arith.truncf %61 : vector<32x2xf32> to vector<32x2xbf16>
    %c7_54 = arith.constant 7 : index
    %c0_55 = arith.constant 0 : index
    %c0_56 = arith.constant 0 : index
    %63 = vector.load %arg1[%c7_54, %c0_55, %c0_56] : memref<16x2x32xbf16, #tpu.memory_space<vmem>>, vector<1x2x32xbf16>
    %64 = vector.shape_cast %63 : vector<1x2x32xbf16> to vector<2x32xbf16>
    %cst_57 = arith.constant dense<0.000000e+00> : vector<32x32xf32>
    %65 = tpu.matmul %62, %64, %cst_57 {dimension_numbers = #tpu.dot_dimension_numbers<[1], [0], [0], [1], [0, 0, 1, 1], [], []>} : vector<32x2xbf16>, vector<2x32xbf16>, vector<32x32xf32> -> vector<32x32xf32>
    %66 = arith.addf %58, %65 : vector<32x32xf32>
    %c8 = arith.constant 8 : index
    %c0_58 = arith.constant 0 : index
    %c0_59 = arith.constant 0 : index
    %67 = vector.load %arg2[%c8, %c0_58, %c0_59] : memref<16x32x8xbf16, #tpu.memory_space<vmem>>, vector<1x32x8xbf16>
    %68 = vector.shape_cast %67 : vector<1x32x8xbf16> to vector<32x8xbf16>
    %cst_60 = arith.constant dense<0.000000e+00> : vector<32x2xf32>
    %69 = tpu.matmul %68, %1, %cst_60 {dimension_numbers = #tpu.dot_dimension_numbers<[1], [0], [0], [1], [0, 0, 1, 1], [], []>} : vector<32x8xbf16>, vector<8x2xbf16>, vector<32x2xf32> -> vector<32x2xf32>
    %70 = arith.truncf %69 : vector<32x2xf32> to vector<32x2xbf16>
    %c8_61 = arith.constant 8 : index
    %c0_62 = arith.constant 0 : index
    %c0_63 = arith.constant 0 : index
    %71 = vector.load %arg1[%c8_61, %c0_62, %c0_63] : memref<16x2x32xbf16, #tpu.memory_space<vmem>>, vector<1x2x32xbf16>
    %72 = vector.shape_cast %71 : vector<1x2x32xbf16> to vector<2x32xbf16>
    %cst_64 = arith.constant dense<0.000000e+00> : vector<32x32xf32>
    %73 = tpu.matmul %70, %72, %cst_64 {dimension_numbers = #tpu.dot_dimension_numbers<[1], [0], [0], [1], [0, 0, 1, 1], [], []>} : vector<32x2xbf16>, vector<2x32xbf16>, vector<32x32xf32> -> vector<32x32xf32>
    %74 = arith.addf %66, %73 : vector<32x32xf32>
    %c9 = arith.constant 9 : index
    %c0_65 = arith.constant 0 : index
    %c0_66 = arith.constant 0 : index
    %75 = vector.load %arg2[%c9, %c0_65, %c0_66] : memref<16x32x8xbf16, #tpu.memory_space<vmem>>, vector<1x32x8xbf16>
    %76 = vector.shape_cast %75 : vector<1x32x8xbf16> to vector<32x8xbf16>
    %cst_67 = arith.constant dense<0.000000e+00> : vector<32x2xf32>
    %77 = tpu.matmul %76, %1, %cst_67 {dimension_numbers = #tpu.dot_dimension_numbers<[1], [0], [0], [1], [0, 0, 1, 1], [], []>} : vector<32x8xbf16>, vector<8x2xbf16>, vector<32x2xf32> -> vector<32x2xf32>
    %78 = arith.truncf %77 : vector<32x2xf32> to vector<32x2xbf16>
    %c9_68 = arith.constant 9 : index
    %c0_69 = arith.constant 0 : index
    %c0_70 = arith.constant 0 : index
    %79 = vector.load %arg1[%c9_68, %c0_69, %c0_70] : memref<16x2x32xbf16, #tpu.memory_space<vmem>>, vector<1x2x32xbf16>
    %80 = vector.shape_cast %79 : vector<1x2x32xbf16> to vector<2x32xbf16>
    %cst_71 = arith.constant dense<0.000000e+00> : vector<32x32xf32>
    %81 = tpu.matmul %78, %80, %cst_71 {dimension_numbers = #tpu.dot_dimension_numbers<[1], [0], [0], [1], [0, 0, 1, 1], [], []>} : vector<32x2xbf16>, vector<2x32xbf16>, vector<32x32xf32> -> vector<32x32xf32>
    %82 = arith.addf %74, %81 : vector<32x32xf32>
    %c10 = arith.constant 10 : index
    %c0_72 = arith.constant 0 : index
    %c0_73 = arith.constant 0 : index
    %83 = vector.load %arg2[%c10, %c0_72, %c0_73] : memref<16x32x8xbf16, #tpu.memory_space<vmem>>, vector<1x32x8xbf16>
    %84 = vector.shape_cast %83 : vector<1x32x8xbf16> to vector<32x8xbf16>
    %cst_74 = arith.constant dense<0.000000e+00> : vector<32x2xf32>
    %85 = tpu.matmul %84, %1, %cst_74 {dimension_numbers = #tpu.dot_dimension_numbers<[1], [0], [0], [1], [0, 0, 1, 1], [], []>} : vector<32x8xbf16>, vector<8x2xbf16>, vector<32x2xf32> -> vector<32x2xf32>
    %86 = arith.truncf %85 : vector<32x2xf32> to vector<32x2xbf16>
    %c10_75 = arith.constant 10 : index
    %c0_76 = arith.constant 0 : index
    %c0_77 = arith.constant 0 : index
    %87 = vector.load %arg1[%c10_75, %c0_76, %c0_77] : memref<16x2x32xbf16, #tpu.memory_space<vmem>>, vector<1x2x32xbf16>
    %88 = vector.shape_cast %87 : vector<1x2x32xbf16> to vector<2x32xbf16>
    %cst_78 = arith.constant dense<0.000000e+00> : vector<32x32xf32>
    %89 = tpu.matmul %86, %88, %cst_78 {dimension_numbers = #tpu.dot_dimension_numbers<[1], [0], [0], [1], [0, 0, 1, 1], [], []>} : vector<32x2xbf16>, vector<2x32xbf16>, vector<32x32xf32> -> vector<32x32xf32>
    %90 = arith.addf %82, %89 : vector<32x32xf32>
    %c11 = arith.constant 11 : index
    %c0_79 = arith.constant 0 : index
    %c0_80 = arith.constant 0 : index
    %91 = vector.load %arg2[%c11, %c0_79, %c0_80] : memref<16x32x8xbf16, #tpu.memory_space<vmem>>, vector<1x32x8xbf16>
    %92 = vector.shape_cast %91 : vector<1x32x8xbf16> to vector<32x8xbf16>
    %cst_81 = arith.constant dense<0.000000e+00> : vector<32x2xf32>
    %93 = tpu.matmul %92, %1, %cst_81 {dimension_numbers = #tpu.dot_dimension_numbers<[1], [0], [0], [1], [0, 0, 1, 1], [], []>} : vector<32x8xbf16>, vector<8x2xbf16>, vector<32x2xf32> -> vector<32x2xf32>
    %94 = arith.truncf %93 : vector<32x2xf32> to vector<32x2xbf16>
    %c11_82 = arith.constant 11 : index
    %c0_83 = arith.constant 0 : index
    %c0_84 = arith.constant 0 : index
    %95 = vector.load %arg1[%c11_82, %c0_83, %c0_84] : memref<16x2x32xbf16, #tpu.memory_space<vmem>>, vector<1x2x32xbf16>
    %96 = vector.shape_cast %95 : vector<1x2x32xbf16> to vector<2x32xbf16>
    %cst_85 = arith.constant dense<0.000000e+00> : vector<32x32xf32>
    %97 = tpu.matmul %94, %96, %cst_85 {dimension_numbers = #tpu.dot_dimension_numbers<[1], [0], [0], [1], [0, 0, 1, 1], [], []>} : vector<32x2xbf16>, vector<2x32xbf16>, vector<32x32xf32> -> vector<32x32xf32>
    %98 = arith.addf %90, %97 : vector<32x32xf32>
    %c12 = arith.constant 12 : index
    %c0_86 = arith.constant 0 : index
    %c0_87 = arith.constant 0 : index
    %99 = vector.load %arg2[%c12, %c0_86, %c0_87] : memref<16x32x8xbf16, #tpu.memory_space<vmem>>, vector<1x32x8xbf16>
    %100 = vector.shape_cast %99 : vector<1x32x8xbf16> to vector<32x8xbf16>
    %cst_88 = arith.constant dense<0.000000e+00> : vector<32x2xf32>
    %101 = tpu.matmul %100, %1, %cst_88 {dimension_numbers = #tpu.dot_dimension_numbers<[1], [0], [0], [1], [0, 0, 1, 1], [], []>} : vector<32x8xbf16>, vector<8x2xbf16>, vector<32x2xf32> -> vector<32x2xf32>
    %102 = arith.truncf %101 : vector<32x2xf32> to vector<32x2xbf16>
    %c12_89 = arith.constant 12 : index
    %c0_90 = arith.constant 0 : index
    %c0_91 = arith.constant 0 : index
    %103 = vector.load %arg1[%c12_89, %c0_90, %c0_91] : memref<16x2x32xbf16, #tpu.memory_space<vmem>>, vector<1x2x32xbf16>
    %104 = vector.shape_cast %103 : vector<1x2x32xbf16> to vector<2x32xbf16>
    %cst_92 = arith.constant dense<0.000000e+00> : vector<32x32xf32>
    %105 = tpu.matmul %102, %104, %cst_92 {dimension_numbers = #tpu.dot_dimension_numbers<[1], [0], [0], [1], [0, 0, 1, 1], [], []>} : vector<32x2xbf16>, vector<2x32xbf16>, vector<32x32xf32> -> vector<32x32xf32>
    %106 = arith.addf %98, %105 : vector<32x32xf32>
    %c13 = arith.constant 13 : index
    %c0_93 = arith.constant 0 : index
    %c0_94 = arith.constant 0 : index
    %107 = vector.load %arg2[%c13, %c0_93, %c0_94] : memref<16x32x8xbf16, #tpu.memory_space<vmem>>, vector<1x32x8xbf16>
    %108 = vector.shape_cast %107 : vector<1x32x8xbf16> to vector<32x8xbf16>
    %cst_95 = arith.constant dense<0.000000e+00> : vector<32x2xf32>
    %109 = tpu.matmul %108, %1, %cst_95 {dimension_numbers = #tpu.dot_dimension_numbers<[1], [0], [0], [1], [0, 0, 1, 1], [], []>} : vector<32x8xbf16>, vector<8x2xbf16>, vector<32x2xf32> -> vector<32x2xf32>
    %110 = arith.truncf %109 : vector<32x2xf32> to vector<32x2xbf16>
    %c13_96 = arith.constant 13 : index
    %c0_97 = arith.constant 0 : index
    %c0_98 = arith.constant 0 : index
    %111 = vector.load %arg1[%c13_96, %c0_97, %c0_98] : memref<16x2x32xbf16, #tpu.memory_space<vmem>>, vector<1x2x32xbf16>
    %112 = vector.shape_cast %111 : vector<1x2x32xbf16> to vector<2x32xbf16>
    %cst_99 = arith.constant dense<0.000000e+00> : vector<32x32xf32>
    %113 = tpu.matmul %110, %112, %cst_99 {dimension_numbers = #tpu.dot_dimension_numbers<[1], [0], [0], [1], [0, 0, 1, 1], [], []>} : vector<32x2xbf16>, vector<2x32xbf16>, vector<32x32xf32> -> vector<32x32xf32>
    %114 = arith.addf %106, %113 : vector<32x32xf32>
    %c14 = arith.constant 14 : index
    %c0_100 = arith.constant 0 : index
    %c0_101 = arith.constant 0 : index
    %115 = vector.load %arg2[%c14, %c0_100, %c0_101] : memref<16x32x8xbf16, #tpu.memory_space<vmem>>, vector<1x32x8xbf16>
    %116 = vector.shape_cast %115 : vector<1x32x8xbf16> to vector<32x8xbf16>
    %cst_102 = arith.constant dense<0.000000e+00> : vector<32x2xf32>
    %117 = tpu.matmul %116, %1, %cst_102 {dimension_numbers = #tpu.dot_dimension_numbers<[1], [0], [0], [1], [0, 0, 1, 1], [], []>} : vector<32x8xbf16>, vector<8x2xbf16>, vector<32x2xf32> -> vector<32x2xf32>
    %118 = arith.truncf %117 : vector<32x2xf32> to vector<32x2xbf16>
    %c14_103 = arith.constant 14 : index
    %c0_104 = arith.constant 0 : index
    %c0_105 = arith.constant 0 : index
    %119 = vector.load %arg1[%c14_103, %c0_104, %c0_105] : memref<16x2x32xbf16, #tpu.memory_space<vmem>>, vector<1x2x32xbf16>
    %120 = vector.shape_cast %119 : vector<1x2x32xbf16> to vector<2x32xbf16>
    %cst_106 = arith.constant dense<0.000000e+00> : vector<32x32xf32>
    %121 = tpu.matmul %118, %120, %cst_106 {dimension_numbers = #tpu.dot_dimension_numbers<[1], [0], [0], [1], [0, 0, 1, 1], [], []>} : vector<32x2xbf16>, vector<2x32xbf16>, vector<32x32xf32> -> vector<32x32xf32>
    %122 = arith.addf %114, %121 : vector<32x32xf32>
    %c15 = arith.constant 15 : index
    %c0_107 = arith.constant 0 : index
    %c0_108 = arith.constant 0 : index
    %123 = vector.load %arg2[%c15, %c0_107, %c0_108] : memref<16x32x8xbf16, #tpu.memory_space<vmem>>, vector<1x32x8xbf16>
    %124 = vector.shape_cast %123 : vector<1x32x8xbf16> to vector<32x8xbf16>
    %cst_109 = arith.constant dense<0.000000e+00> : vector<32x2xf32>
    %125 = tpu.matmul %124, %1, %cst_109 {dimension_numbers = #tpu.dot_dimension_numbers<[1], [0], [0], [1], [0, 0, 1, 1], [], []>} : vector<32x8xbf16>, vector<8x2xbf16>, vector<32x2xf32> -> vector<32x2xf32>
    %126 = arith.truncf %125 : vector<32x2xf32> to vector<32x2xbf16>
    %c15_110 = arith.constant 15 : index
    %c0_111 = arith.constant 0 : index
    %c0_112 = arith.constant 0 : index
    %127 = vector.load %arg1[%c15_110, %c0_111, %c0_112] : memref<16x2x32xbf16, #tpu.memory_space<vmem>>, vector<1x2x32xbf16>
    %128 = vector.shape_cast %127 : vector<1x2x32xbf16> to vector<2x32xbf16>
    %cst_113 = arith.constant dense<0.000000e+00> : vector<32x32xf32>
    %129 = tpu.matmul %126, %128, %cst_113 {dimension_numbers = #tpu.dot_dimension_numbers<[1], [0], [0], [1], [0, 0, 1, 1], [], []>} : vector<32x2xbf16>, vector<2x32xbf16>, vector<32x32xf32> -> vector<32x32xf32>
    %130 = arith.addf %122, %129 : vector<32x32xf32>
    %cst_114 = arith.constant dense<0.000000e+00> : vector<32xf32>
    %131 = vector.multi_reduction <add>, %130, %cst_114 [1] : vector<32x32xf32> to vector<32xf32>
    %132 = vector.shape_cast %131 : vector<32xf32> to vector<32x1xf32>
    %cst_115 = arith.constant 3.125000e-02 : f32
    %133 = vector.broadcast %cst_115 : f32 to vector<32x1xf32>
    %134 = arith.mulf %132, %133 : vector<32x1xf32>
    %135 = arith.mulf %130, %130 : vector<32x32xf32>
    %cst_116 = arith.constant dense<0.000000e+00> : vector<32xf32>
    %136 = vector.multi_reduction <add>, %135, %cst_116 [1] : vector<32x32xf32> to vector<32xf32>
    %137 = vector.shape_cast %136 : vector<32xf32> to vector<32x1xf32>
    %cst_117 = arith.constant 3.125000e-02 : f32
    %138 = vector.broadcast %cst_117 : f32 to vector<32x1xf32>
    %139 = arith.mulf %137, %138 : vector<32x1xf32>
    %140 = arith.mulf %134, %134 : vector<32x1xf32>
    %141 = arith.subf %139, %140 : vector<32x1xf32>
    %cst_118 = arith.constant 0.000000e+00 : f32
    %142 = vector.broadcast %cst_118 : f32 to vector<32x1xf32>
    %143 = arith.maximumf %141, %142 : vector<32x1xf32>
    %144 = vector.broadcast %134 : vector<32x1xf32> to vector<32x32xf32>
    %145 = arith.subf %130, %144 : vector<32x32xf32>
    %cst_119 = arith.constant 9.99999974E-6 : f32
    %146 = vector.broadcast %cst_119 : f32 to vector<32x1xf32>
    %147 = arith.addf %143, %146 : vector<32x1xf32>
    %148 = math.rsqrt %147 : vector<32x1xf32>
    %149 = vector.broadcast %148 : vector<32x1xf32> to vector<32x32xf32>
    %150 = arith.mulf %145, %149 : vector<32x32xf32>
    %c0_120 = arith.constant 0 : index
    %c0_121 = arith.constant 0 : index
    %151 = vector.load %arg3[%c0_120, %c0_121] : memref<32x1xf32, #tpu.memory_space<vmem>>, vector<32x1xf32>
    %152 = vector.broadcast %151 : vector<32x1xf32> to vector<32x32xf32>
    %153 = arith.mulf %150, %152 : vector<32x32xf32>
    %c0_122 = arith.constant 0 : index
    %c0_123 = arith.constant 0 : index
    %154 = vector.load %arg4[%c0_122, %c0_123] : memref<32x1xf32, #tpu.memory_space<vmem>>, vector<32x1xf32>
    %155 = vector.broadcast %154 : vector<32x1xf32> to vector<32x32xf32>
    %156 = arith.addf %153, %155 : vector<32x32xf32>
    %cst_124 = arith.constant 0.000000e+00 : f32
    %157 = vector.broadcast %cst_124 : f32 to vector<32x32xf32>
    %158 = arith.maximumf %156, %157 : vector<32x32xf32>
    %159 = arith.truncf %158 : vector<32x32xf32> to vector<32x32xbf16>
    %cst_125 = arith.constant 0.000000e+00 : f32
    %160 = vector.broadcast %cst_125 : f32 to vector<16x128xf32>
    %c0_126 = arith.constant 0 : index
    %c0_127 = arith.constant 0 : index
    %c0_128 = arith.constant 0 : index
    %161 = vector.load %arg6[%c0_126, %c0_127, %c0_128] : memref<16x16x32xbf16, #tpu.memory_space<vmem>>, vector<1x16x32xbf16>
    %162 = vector.shape_cast %161 : vector<1x16x32xbf16> to vector<16x32xbf16>
    %cst_129 = arith.constant dense<0.000000e+00> : vector<16x32xf32>
    %163 = tpu.matmul %162, %159, %cst_129 {dimension_numbers = #tpu.dot_dimension_numbers<[1], [0], [0], [1], [0, 0, 1, 1], [], []>} : vector<16x32xbf16>, vector<32x32xbf16>, vector<16x32xf32> -> vector<16x32xf32>
    %164 = arith.truncf %163 : vector<16x32xf32> to vector<16x32xbf16>
    %c0_130 = arith.constant 0 : index
    %c0_131 = arith.constant 0 : index
    %c0_132 = arith.constant 0 : index
    %165 = vector.load %arg5[%c0_130, %c0_131, %c0_132] : memref<16x32x128xbf16, #tpu.memory_space<vmem>>, vector<1x32x128xbf16>
    %166 = vector.shape_cast %165 : vector<1x32x128xbf16> to vector<32x128xbf16>
    %cst_133 = arith.constant dense<0.000000e+00> : vector<16x128xf32>
    %167 = tpu.matmul %164, %166, %cst_133 {dimension_numbers = #tpu.dot_dimension_numbers<[1], [0], [0], [1], [0, 0, 1, 1], [], []>} : vector<16x32xbf16>, vector<32x128xbf16>, vector<16x128xf32> -> vector<16x128xf32>
    %168 = arith.addf %160, %167 : vector<16x128xf32>
    %c1_134 = arith.constant 1 : index
    %c0_135 = arith.constant 0 : index
    %c0_136 = arith.constant 0 : index
    %169 = vector.load %arg6[%c1_134, %c0_135, %c0_136] : memref<16x16x32xbf16, #tpu.memory_space<vmem>>, vector<1x16x32xbf16>
    %170 = vector.shape_cast %169 : vector<1x16x32xbf16> to vector<16x32xbf16>
    %cst_137 = arith.constant dense<0.000000e+00> : vector<16x32xf32>
    %171 = tpu.matmul %170, %159, %cst_137 {dimension_numbers = #tpu.dot_dimension_numbers<[1], [0], [0], [1], [0, 0, 1, 1], [], []>} : vector<16x32xbf16>, vector<32x32xbf16>, vector<16x32xf32> -> vector<16x32xf32>
    %172 = arith.truncf %171 : vector<16x32xf32> to vector<16x32xbf16>
    %c1_138 = arith.constant 1 : index
    %c0_139 = arith.constant 0 : index
    %c0_140 = arith.constant 0 : index
    %173 = vector.load %arg5[%c1_138, %c0_139, %c0_140] : memref<16x32x128xbf16, #tpu.memory_space<vmem>>, vector<1x32x128xbf16>
    %174 = vector.shape_cast %173 : vector<1x32x128xbf16> to vector<32x128xbf16>
    %cst_141 = arith.constant dense<0.000000e+00> : vector<16x128xf32>
    %175 = tpu.matmul %172, %174, %cst_141 {dimension_numbers = #tpu.dot_dimension_numbers<[1], [0], [0], [1], [0, 0, 1, 1], [], []>} : vector<16x32xbf16>, vector<32x128xbf16>, vector<16x128xf32> -> vector<16x128xf32>
    %176 = arith.addf %168, %175 : vector<16x128xf32>
    %c2_142 = arith.constant 2 : index
    %c0_143 = arith.constant 0 : index
    %c0_144 = arith.constant 0 : index
    %177 = vector.load %arg6[%c2_142, %c0_143, %c0_144] : memref<16x16x32xbf16, #tpu.memory_space<vmem>>, vector<1x16x32xbf16>
    %178 = vector.shape_cast %177 : vector<1x16x32xbf16> to vector<16x32xbf16>
    %cst_145 = arith.constant dense<0.000000e+00> : vector<16x32xf32>
    %179 = tpu.matmul %178, %159, %cst_145 {dimension_numbers = #tpu.dot_dimension_numbers<[1], [0], [0], [1], [0, 0, 1, 1], [], []>} : vector<16x32xbf16>, vector<32x32xbf16>, vector<16x32xf32> -> vector<16x32xf32>
    %180 = arith.truncf %179 : vector<16x32xf32> to vector<16x32xbf16>
    %c2_146 = arith.constant 2 : index
    %c0_147 = arith.constant 0 : index
    %c0_148 = arith.constant 0 : index
    %181 = vector.load %arg5[%c2_146, %c0_147, %c0_148] : memref<16x32x128xbf16, #tpu.memory_space<vmem>>, vector<1x32x128xbf16>
    %182 = vector.shape_cast %181 : vector<1x32x128xbf16> to vector<32x128xbf16>
    %cst_149 = arith.constant dense<0.000000e+00> : vector<16x128xf32>
    %183 = tpu.matmul %180, %182, %cst_149 {dimension_numbers = #tpu.dot_dimension_numbers<[1], [0], [0], [1], [0, 0, 1, 1], [], []>} : vector<16x32xbf16>, vector<32x128xbf16>, vector<16x128xf32> -> vector<16x128xf32>
    %184 = arith.addf %176, %183 : vector<16x128xf32>
    %c3_150 = arith.constant 3 : index
    %c0_151 = arith.constant 0 : index
    %c0_152 = arith.constant 0 : index
    %185 = vector.load %arg6[%c3_150, %c0_151, %c0_152] : memref<16x16x32xbf16, #tpu.memory_space<vmem>>, vector<1x16x32xbf16>
    %186 = vector.shape_cast %185 : vector<1x16x32xbf16> to vector<16x32xbf16>
    %cst_153 = arith.constant dense<0.000000e+00> : vector<16x32xf32>
    %187 = tpu.matmul %186, %159, %cst_153 {dimension_numbers = #tpu.dot_dimension_numbers<[1], [0], [0], [1], [0, 0, 1, 1], [], []>} : vector<16x32xbf16>, vector<32x32xbf16>, vector<16x32xf32> -> vector<16x32xf32>
    %188 = arith.truncf %187 : vector<16x32xf32> to vector<16x32xbf16>
    %c3_154 = arith.constant 3 : index
    %c0_155 = arith.constant 0 : index
    %c0_156 = arith.constant 0 : index
    %189 = vector.load %arg5[%c3_154, %c0_155, %c0_156] : memref<16x32x128xbf16, #tpu.memory_space<vmem>>, vector<1x32x128xbf16>
    %190 = vector.shape_cast %189 : vector<1x32x128xbf16> to vector<32x128xbf16>
    %cst_157 = arith.constant dense<0.000000e+00> : vector<16x128xf32>
    %191 = tpu.matmul %188, %190, %cst_157 {dimension_numbers = #tpu.dot_dimension_numbers<[1], [0], [0], [1], [0, 0, 1, 1], [], []>} : vector<16x32xbf16>, vector<32x128xbf16>, vector<16x128xf32> -> vector<16x128xf32>
    %192 = arith.addf %184, %191 : vector<16x128xf32>
    %c4_158 = arith.constant 4 : index
    %c0_159 = arith.constant 0 : index
    %c0_160 = arith.constant 0 : index
    %193 = vector.load %arg6[%c4_158, %c0_159, %c0_160] : memref<16x16x32xbf16, #tpu.memory_space<vmem>>, vector<1x16x32xbf16>
    %194 = vector.shape_cast %193 : vector<1x16x32xbf16> to vector<16x32xbf16>
    %cst_161 = arith.constant dense<0.000000e+00> : vector<16x32xf32>
    %195 = tpu.matmul %194, %159, %cst_161 {dimension_numbers = #tpu.dot_dimension_numbers<[1], [0], [0], [1], [0, 0, 1, 1], [], []>} : vector<16x32xbf16>, vector<32x32xbf16>, vector<16x32xf32> -> vector<16x32xf32>
    %196 = arith.truncf %195 : vector<16x32xf32> to vector<16x32xbf16>
    %c4_162 = arith.constant 4 : index
    %c0_163 = arith.constant 0 : index
    %c0_164 = arith.constant 0 : index
    %197 = vector.load %arg5[%c4_162, %c0_163, %c0_164] : memref<16x32x128xbf16, #tpu.memory_space<vmem>>, vector<1x32x128xbf16>
    %198 = vector.shape_cast %197 : vector<1x32x128xbf16> to vector<32x128xbf16>
    %cst_165 = arith.constant dense<0.000000e+00> : vector<16x128xf32>
    %199 = tpu.matmul %196, %198, %cst_165 {dimension_numbers = #tpu.dot_dimension_numbers<[1], [0], [0], [1], [0, 0, 1, 1], [], []>} : vector<16x32xbf16>, vector<32x128xbf16>, vector<16x128xf32> -> vector<16x128xf32>
    %200 = arith.addf %192, %199 : vector<16x128xf32>
    %c5_166 = arith.constant 5 : index
    %c0_167 = arith.constant 0 : index
    %c0_168 = arith.constant 0 : index
    %201 = vector.load %arg6[%c5_166, %c0_167, %c0_168] : memref<16x16x32xbf16, #tpu.memory_space<vmem>>, vector<1x16x32xbf16>
    %202 = vector.shape_cast %201 : vector<1x16x32xbf16> to vector<16x32xbf16>
    %cst_169 = arith.constant dense<0.000000e+00> : vector<16x32xf32>
    %203 = tpu.matmul %202, %159, %cst_169 {dimension_numbers = #tpu.dot_dimension_numbers<[1], [0], [0], [1], [0, 0, 1, 1], [], []>} : vector<16x32xbf16>, vector<32x32xbf16>, vector<16x32xf32> -> vector<16x32xf32>
    %204 = arith.truncf %203 : vector<16x32xf32> to vector<16x32xbf16>
    %c5_170 = arith.constant 5 : index
    %c0_171 = arith.constant 0 : index
    %c0_172 = arith.constant 0 : index
    %205 = vector.load %arg5[%c5_170, %c0_171, %c0_172] : memref<16x32x128xbf16, #tpu.memory_space<vmem>>, vector<1x32x128xbf16>
    %206 = vector.shape_cast %205 : vector<1x32x128xbf16> to vector<32x128xbf16>
    %cst_173 = arith.constant dense<0.000000e+00> : vector<16x128xf32>
    %207 = tpu.matmul %204, %206, %cst_173 {dimension_numbers = #tpu.dot_dimension_numbers<[1], [0], [0], [1], [0, 0, 1, 1], [], []>} : vector<16x32xbf16>, vector<32x128xbf16>, vector<16x128xf32> -> vector<16x128xf32>
    %208 = arith.addf %200, %207 : vector<16x128xf32>
    %c6_174 = arith.constant 6 : index
    %c0_175 = arith.constant 0 : index
    %c0_176 = arith.constant 0 : index
    %209 = vector.load %arg6[%c6_174, %c0_175, %c0_176] : memref<16x16x32xbf16, #tpu.memory_space<vmem>>, vector<1x16x32xbf16>
    %210 = vector.shape_cast %209 : vector<1x16x32xbf16> to vector<16x32xbf16>
    %cst_177 = arith.constant dense<0.000000e+00> : vector<16x32xf32>
    %211 = tpu.matmul %210, %159, %cst_177 {dimension_numbers = #tpu.dot_dimension_numbers<[1], [0], [0], [1], [0, 0, 1, 1], [], []>} : vector<16x32xbf16>, vector<32x32xbf16>, vector<16x32xf32> -> vector<16x32xf32>
    %212 = arith.truncf %211 : vector<16x32xf32> to vector<16x32xbf16>
    %c6_178 = arith.constant 6 : index
    %c0_179 = arith.constant 0 : index
    %c0_180 = arith.constant 0 : index
    %213 = vector.load %arg5[%c6_178, %c0_179, %c0_180] : memref<16x32x128xbf16, #tpu.memory_space<vmem>>, vector<1x32x128xbf16>
    %214 = vector.shape_cast %213 : vector<1x32x128xbf16> to vector<32x128xbf16>
    %cst_181 = arith.constant dense<0.000000e+00> : vector<16x128xf32>
    %215 = tpu.matmul %212, %214, %cst_181 {dimension_numbers = #tpu.dot_dimension_numbers<[1], [0], [0], [1], [0, 0, 1, 1], [], []>} : vector<16x32xbf16>, vector<32x128xbf16>, vector<16x128xf32> -> vector<16x128xf32>
    %216 = arith.addf %208, %215 : vector<16x128xf32>
    %c7_182 = arith.constant 7 : index
    %c0_183 = arith.constant 0 : index
    %c0_184 = arith.constant 0 : index
    %217 = vector.load %arg6[%c7_182, %c0_183, %c0_184] : memref<16x16x32xbf16, #tpu.memory_space<vmem>>, vector<1x16x32xbf16>
    %218 = vector.shape_cast %217 : vector<1x16x32xbf16> to vector<16x32xbf16>
    %cst_185 = arith.constant dense<0.000000e+00> : vector<16x32xf32>
    %219 = tpu.matmul %218, %159, %cst_185 {dimension_numbers = #tpu.dot_dimension_numbers<[1], [0], [0], [1], [0, 0, 1, 1], [], []>} : vector<16x32xbf16>, vector<32x32xbf16>, vector<16x32xf32> -> vector<16x32xf32>
    %220 = arith.truncf %219 : vector<16x32xf32> to vector<16x32xbf16>
    %c7_186 = arith.constant 7 : index
    %c0_187 = arith.constant 0 : index
    %c0_188 = arith.constant 0 : index
    %221 = vector.load %arg5[%c7_186, %c0_187, %c0_188] : memref<16x32x128xbf16, #tpu.memory_space<vmem>>, vector<1x32x128xbf16>
    %222 = vector.shape_cast %221 : vector<1x32x128xbf16> to vector<32x128xbf16>
    %cst_189 = arith.constant dense<0.000000e+00> : vector<16x128xf32>
    %223 = tpu.matmul %220, %222, %cst_189 {dimension_numbers = #tpu.dot_dimension_numbers<[1], [0], [0], [1], [0, 0, 1, 1], [], []>} : vector<16x32xbf16>, vector<32x128xbf16>, vector<16x128xf32> -> vector<16x128xf32>
    %224 = arith.addf %216, %223 : vector<16x128xf32>
    %c8_190 = arith.constant 8 : index
    %c0_191 = arith.constant 0 : index
    %c0_192 = arith.constant 0 : index
    %225 = vector.load %arg6[%c8_190, %c0_191, %c0_192] : memref<16x16x32xbf16, #tpu.memory_space<vmem>>, vector<1x16x32xbf16>
    %226 = vector.shape_cast %225 : vector<1x16x32xbf16> to vector<16x32xbf16>
    %cst_193 = arith.constant dense<0.000000e+00> : vector<16x32xf32>
    %227 = tpu.matmul %226, %159, %cst_193 {dimension_numbers = #tpu.dot_dimension_numbers<[1], [0], [0], [1], [0, 0, 1, 1], [], []>} : vector<16x32xbf16>, vector<32x32xbf16>, vector<16x32xf32> -> vector<16x32xf32>
    %228 = arith.truncf %227 : vector<16x32xf32> to vector<16x32xbf16>
    %c8_194 = arith.constant 8 : index
    %c0_195 = arith.constant 0 : index
    %c0_196 = arith.constant 0 : index
    %229 = vector.load %arg5[%c8_194, %c0_195, %c0_196] : memref<16x32x128xbf16, #tpu.memory_space<vmem>>, vector<1x32x128xbf16>
    %230 = vector.shape_cast %229 : vector<1x32x128xbf16> to vector<32x128xbf16>
    %cst_197 = arith.constant dense<0.000000e+00> : vector<16x128xf32>
    %231 = tpu.matmul %228, %230, %cst_197 {dimension_numbers = #tpu.dot_dimension_numbers<[1], [0], [0], [1], [0, 0, 1, 1], [], []>} : vector<16x32xbf16>, vector<32x128xbf16>, vector<16x128xf32> -> vector<16x128xf32>
    %232 = arith.addf %224, %231 : vector<16x128xf32>
    %c9_198 = arith.constant 9 : index
    %c0_199 = arith.constant 0 : index
    %c0_200 = arith.constant 0 : index
    %233 = vector.load %arg6[%c9_198, %c0_199, %c0_200] : memref<16x16x32xbf16, #tpu.memory_space<vmem>>, vector<1x16x32xbf16>
    %234 = vector.shape_cast %233 : vector<1x16x32xbf16> to vector<16x32xbf16>
    %cst_201 = arith.constant dense<0.000000e+00> : vector<16x32xf32>
    %235 = tpu.matmul %234, %159, %cst_201 {dimension_numbers = #tpu.dot_dimension_numbers<[1], [0], [0], [1], [0, 0, 1, 1], [], []>} : vector<16x32xbf16>, vector<32x32xbf16>, vector<16x32xf32> -> vector<16x32xf32>
    %236 = arith.truncf %235 : vector<16x32xf32> to vector<16x32xbf16>
    %c9_202 = arith.constant 9 : index
    %c0_203 = arith.constant 0 : index
    %c0_204 = arith.constant 0 : index
    %237 = vector.load %arg5[%c9_202, %c0_203, %c0_204] : memref<16x32x128xbf16, #tpu.memory_space<vmem>>, vector<1x32x128xbf16>
    %238 = vector.shape_cast %237 : vector<1x32x128xbf16> to vector<32x128xbf16>
    %cst_205 = arith.constant dense<0.000000e+00> : vector<16x128xf32>
    %239 = tpu.matmul %236, %238, %cst_205 {dimension_numbers = #tpu.dot_dimension_numbers<[1], [0], [0], [1], [0, 0, 1, 1], [], []>} : vector<16x32xbf16>, vector<32x128xbf16>, vector<16x128xf32> -> vector<16x128xf32>
    %240 = arith.addf %232, %239 : vector<16x128xf32>
    %c10_206 = arith.constant 10 : index
    %c0_207 = arith.constant 0 : index
    %c0_208 = arith.constant 0 : index
    %241 = vector.load %arg6[%c10_206, %c0_207, %c0_208] : memref<16x16x32xbf16, #tpu.memory_space<vmem>>, vector<1x16x32xbf16>
    %242 = vector.shape_cast %241 : vector<1x16x32xbf16> to vector<16x32xbf16>
    %cst_209 = arith.constant dense<0.000000e+00> : vector<16x32xf32>
    %243 = tpu.matmul %242, %159, %cst_209 {dimension_numbers = #tpu.dot_dimension_numbers<[1], [0], [0], [1], [0, 0, 1, 1], [], []>} : vector<16x32xbf16>, vector<32x32xbf16>, vector<16x32xf32> -> vector<16x32xf32>
    %244 = arith.truncf %243 : vector<16x32xf32> to vector<16x32xbf16>
    %c10_210 = arith.constant 10 : index
    %c0_211 = arith.constant 0 : index
    %c0_212 = arith.constant 0 : index
    %245 = vector.load %arg5[%c10_210, %c0_211, %c0_212] : memref<16x32x128xbf16, #tpu.memory_space<vmem>>, vector<1x32x128xbf16>
    %246 = vector.shape_cast %245 : vector<1x32x128xbf16> to vector<32x128xbf16>
    %cst_213 = arith.constant dense<0.000000e+00> : vector<16x128xf32>
    %247 = tpu.matmul %244, %246, %cst_213 {dimension_numbers = #tpu.dot_dimension_numbers<[1], [0], [0], [1], [0, 0, 1, 1], [], []>} : vector<16x32xbf16>, vector<32x128xbf16>, vector<16x128xf32> -> vector<16x128xf32>
    %248 = arith.addf %240, %247 : vector<16x128xf32>
    %c11_214 = arith.constant 11 : index
    %c0_215 = arith.constant 0 : index
    %c0_216 = arith.constant 0 : index
    %249 = vector.load %arg6[%c11_214, %c0_215, %c0_216] : memref<16x16x32xbf16, #tpu.memory_space<vmem>>, vector<1x16x32xbf16>
    %250 = vector.shape_cast %249 : vector<1x16x32xbf16> to vector<16x32xbf16>
    %cst_217 = arith.constant dense<0.000000e+00> : vector<16x32xf32>
    %251 = tpu.matmul %250, %159, %cst_217 {dimension_numbers = #tpu.dot_dimension_numbers<[1], [0], [0], [1], [0, 0, 1, 1], [], []>} : vector<16x32xbf16>, vector<32x32xbf16>, vector<16x32xf32> -> vector<16x32xf32>
    %252 = arith.truncf %251 : vector<16x32xf32> to vector<16x32xbf16>
    %c11_218 = arith.constant 11 : index
    %c0_219 = arith.constant 0 : index
    %c0_220 = arith.constant 0 : index
    %253 = vector.load %arg5[%c11_218, %c0_219, %c0_220] : memref<16x32x128xbf16, #tpu.memory_space<vmem>>, vector<1x32x128xbf16>
    %254 = vector.shape_cast %253 : vector<1x32x128xbf16> to vector<32x128xbf16>
    %cst_221 = arith.constant dense<0.000000e+00> : vector<16x128xf32>
    %255 = tpu.matmul %252, %254, %cst_221 {dimension_numbers = #tpu.dot_dimension_numbers<[1], [0], [0], [1], [0, 0, 1, 1], [], []>} : vector<16x32xbf16>, vector<32x128xbf16>, vector<16x128xf32> -> vector<16x128xf32>
    %256 = arith.addf %248, %255 : vector<16x128xf32>
    %c12_222 = arith.constant 12 : index
    %c0_223 = arith.constant 0 : index
    %c0_224 = arith.constant 0 : index
    %257 = vector.load %arg6[%c12_222, %c0_223, %c0_224] : memref<16x16x32xbf16, #tpu.memory_space<vmem>>, vector<1x16x32xbf16>
    %258 = vector.shape_cast %257 : vector<1x16x32xbf16> to vector<16x32xbf16>
    %cst_225 = arith.constant dense<0.000000e+00> : vector<16x32xf32>
    %259 = tpu.matmul %258, %159, %cst_225 {dimension_numbers = #tpu.dot_dimension_numbers<[1], [0], [0], [1], [0, 0, 1, 1], [], []>} : vector<16x32xbf16>, vector<32x32xbf16>, vector<16x32xf32> -> vector<16x32xf32>
    %260 = arith.truncf %259 : vector<16x32xf32> to vector<16x32xbf16>
    %c12_226 = arith.constant 12 : index
    %c0_227 = arith.constant 0 : index
    %c0_228 = arith.constant 0 : index
    %261 = vector.load %arg5[%c12_226, %c0_227, %c0_228] : memref<16x32x128xbf16, #tpu.memory_space<vmem>>, vector<1x32x128xbf16>
    %262 = vector.shape_cast %261 : vector<1x32x128xbf16> to vector<32x128xbf16>
    %cst_229 = arith.constant dense<0.000000e+00> : vector<16x128xf32>
    %263 = tpu.matmul %260, %262, %cst_229 {dimension_numbers = #tpu.dot_dimension_numbers<[1], [0], [0], [1], [0, 0, 1, 1], [], []>} : vector<16x32xbf16>, vector<32x128xbf16>, vector<16x128xf32> -> vector<16x128xf32>
    %264 = arith.addf %256, %263 : vector<16x128xf32>
    %c13_230 = arith.constant 13 : index
    %c0_231 = arith.constant 0 : index
    %c0_232 = arith.constant 0 : index
    %265 = vector.load %arg6[%c13_230, %c0_231, %c0_232] : memref<16x16x32xbf16, #tpu.memory_space<vmem>>, vector<1x16x32xbf16>
    %266 = vector.shape_cast %265 : vector<1x16x32xbf16> to vector<16x32xbf16>
    %cst_233 = arith.constant dense<0.000000e+00> : vector<16x32xf32>
    %267 = tpu.matmul %266, %159, %cst_233 {dimension_numbers = #tpu.dot_dimension_numbers<[1], [0], [0], [1], [0, 0, 1, 1], [], []>} : vector<16x32xbf16>, vector<32x32xbf16>, vector<16x32xf32> -> vector<16x32xf32>
    %268 = arith.truncf %267 : vector<16x32xf32> to vector<16x32xbf16>
    %c13_234 = arith.constant 13 : index
    %c0_235 = arith.constant 0 : index
    %c0_236 = arith.constant 0 : index
    %269 = vector.load %arg5[%c13_234, %c0_235, %c0_236] : memref<16x32x128xbf16, #tpu.memory_space<vmem>>, vector<1x32x128xbf16>
    %270 = vector.shape_cast %269 : vector<1x32x128xbf16> to vector<32x128xbf16>
    %cst_237 = arith.constant dense<0.000000e+00> : vector<16x128xf32>
    %271 = tpu.matmul %268, %270, %cst_237 {dimension_numbers = #tpu.dot_dimension_numbers<[1], [0], [0], [1], [0, 0, 1, 1], [], []>} : vector<16x32xbf16>, vector<32x128xbf16>, vector<16x128xf32> -> vector<16x128xf32>
    %272 = arith.addf %264, %271 : vector<16x128xf32>
    %c14_238 = arith.constant 14 : index
    %c0_239 = arith.constant 0 : index
    %c0_240 = arith.constant 0 : index
    %273 = vector.load %arg6[%c14_238, %c0_239, %c0_240] : memref<16x16x32xbf16, #tpu.memory_space<vmem>>, vector<1x16x32xbf16>
    %274 = vector.shape_cast %273 : vector<1x16x32xbf16> to vector<16x32xbf16>
    %cst_241 = arith.constant dense<0.000000e+00> : vector<16x32xf32>
    %275 = tpu.matmul %274, %159, %cst_241 {dimension_numbers = #tpu.dot_dimension_numbers<[1], [0], [0], [1], [0, 0, 1, 1], [], []>} : vector<16x32xbf16>, vector<32x32xbf16>, vector<16x32xf32> -> vector<16x32xf32>
    %276 = arith.truncf %275 : vector<16x32xf32> to vector<16x32xbf16>
    %c14_242 = arith.constant 14 : index
    %c0_243 = arith.constant 0 : index
    %c0_244 = arith.constant 0 : index
    %277 = vector.load %arg5[%c14_242, %c0_243, %c0_244] : memref<16x32x128xbf16, #tpu.memory_space<vmem>>, vector<1x32x128xbf16>
    %278 = vector.shape_cast %277 : vector<1x32x128xbf16> to vector<32x128xbf16>
    %cst_245 = arith.constant dense<0.000000e+00> : vector<16x128xf32>
    %279 = tpu.matmul %276, %278, %cst_245 {dimension_numbers = #tpu.dot_dimension_numbers<[1], [0], [0], [1], [0, 0, 1, 1], [], []>} : vector<16x32xbf16>, vector<32x128xbf16>, vector<16x128xf32> -> vector<16x128xf32>
    %280 = arith.addf %272, %279 : vector<16x128xf32>
    %c15_246 = arith.constant 15 : index
    %c0_247 = arith.constant 0 : index
    %c0_248 = arith.constant 0 : index
    %281 = vector.load %arg6[%c15_246, %c0_247, %c0_248] : memref<16x16x32xbf16, #tpu.memory_space<vmem>>, vector<1x16x32xbf16>
    %282 = vector.shape_cast %281 : vector<1x16x32xbf16> to vector<16x32xbf16>
    %cst_249 = arith.constant dense<0.000000e+00> : vector<16x32xf32>
    %283 = tpu.matmul %282, %159, %cst_249 {dimension_numbers = #tpu.dot_dimension_numbers<[1], [0], [0], [1], [0, 0, 1, 1], [], []>} : vector<16x32xbf16>, vector<32x32xbf16>, vector<16x32xf32> -> vector<16x32xf32>
    %284 = arith.truncf %283 : vector<16x32xf32> to vector<16x32xbf16>
    %c15_250 = arith.constant 15 : index
    %c0_251 = arith.constant 0 : index
    %c0_252 = arith.constant 0 : index
    %285 = vector.load %arg5[%c15_250, %c0_251, %c0_252] : memref<16x32x128xbf16, #tpu.memory_space<vmem>>, vector<1x32x128xbf16>
    %286 = vector.shape_cast %285 : vector<1x32x128xbf16> to vector<32x128xbf16>
    %cst_253 = arith.constant dense<0.000000e+00> : vector<16x128xf32>
    %287 = tpu.matmul %284, %286, %cst_253 {dimension_numbers = #tpu.dot_dimension_numbers<[1], [0], [0], [1], [0, 0, 1, 1], [], []>} : vector<16x32xbf16>, vector<32x128xbf16>, vector<16x128xf32> -> vector<16x128xf32>
    %288 = arith.addf %280, %287 : vector<16x128xf32>
    %cst_254 = arith.constant dense<0.000000e+00> : vector<16xf32>
    %289 = vector.multi_reduction <add>, %288, %cst_254 [1] : vector<16x128xf32> to vector<16xf32>
    %290 = vector.shape_cast %289 : vector<16xf32> to vector<16x1xf32>
    %cst_255 = arith.constant 7.812500e-03 : f32
    %291 = vector.broadcast %cst_255 : f32 to vector<16x1xf32>
    %292 = arith.mulf %290, %291 : vector<16x1xf32>
    %293 = arith.mulf %288, %288 : vector<16x128xf32>
    %cst_256 = arith.constant dense<0.000000e+00> : vector<16xf32>
    %294 = vector.multi_reduction <add>, %293, %cst_256 [1] : vector<16x128xf32> to vector<16xf32>
    %295 = vector.shape_cast %294 : vector<16xf32> to vector<16x1xf32>
    %cst_257 = arith.constant 7.812500e-03 : f32
    %296 = vector.broadcast %cst_257 : f32 to vector<16x1xf32>
    %297 = arith.mulf %295, %296 : vector<16x1xf32>
    %298 = arith.mulf %292, %292 : vector<16x1xf32>
    %299 = arith.subf %297, %298 : vector<16x1xf32>
    %cst_258 = arith.constant 0.000000e+00 : f32
    %300 = vector.broadcast %cst_258 : f32 to vector<16x1xf32>
    %301 = arith.maximumf %299, %300 : vector<16x1xf32>
    %302 = vector.broadcast %292 : vector<16x1xf32> to vector<16x128xf32>
    %303 = arith.subf %288, %302 : vector<16x128xf32>
    %cst_259 = arith.constant 9.99999974E-6 : f32
    %304 = vector.broadcast %cst_259 : f32 to vector<16x1xf32>
    %305 = arith.addf %301, %304 : vector<16x1xf32>
    %306 = math.rsqrt %305 : vector<16x1xf32>
    %307 = vector.broadcast %306 : vector<16x1xf32> to vector<16x128xf32>
    %308 = arith.mulf %303, %307 : vector<16x128xf32>
    %c0_260 = arith.constant 0 : index
    %c0_261 = arith.constant 0 : index
    %309 = vector.load %arg7[%c0_260, %c0_261] : memref<16x1xf32, #tpu.memory_space<vmem>>, vector<16x1xf32>
    %310 = vector.broadcast %309 : vector<16x1xf32> to vector<16x128xf32>
    %311 = arith.mulf %308, %310 : vector<16x128xf32>
    %c0_262 = arith.constant 0 : index
    %c0_263 = arith.constant 0 : index
    %312 = vector.load %arg8[%c0_262, %c0_263] : memref<16x1xf32, #tpu.memory_space<vmem>>, vector<16x1xf32>
    %313 = vector.broadcast %312 : vector<16x1xf32> to vector<16x128xf32>
    %314 = arith.addf %311, %313 : vector<16x128xf32>
    %cst_264 = arith.constant 0.000000e+00 : f32
    %315 = vector.broadcast %cst_264 : f32 to vector<16x128xf32>
    %316 = arith.maximumf %314, %315 : vector<16x128xf32>
    %317 = arith.truncf %316 : vector<16x128xf32> to vector<16x128xbf16>
    %cst_265 = arith.constant 0.000000e+00 : f32
    %318 = vector.broadcast %cst_265 : f32 to vector<3x512xf32>
    %c0_266 = arith.constant 0 : index
    %c0_267 = arith.constant 0 : index
    %c0_268 = arith.constant 0 : index
    %319 = vector.load %arg10[%c0_266, %c0_267, %c0_268] : memref<16x3x16xbf16, #tpu.memory_space<vmem>>, vector<1x3x16xbf16>
    %320 = vector.shape_cast %319 : vector<1x3x16xbf16> to vector<3x16xbf16>
    %cst_269 = arith.constant dense<0.000000e+00> : vector<3x128xf32>
    %321 = tpu.matmul %320, %317, %cst_269 {dimension_numbers = #tpu.dot_dimension_numbers<[1], [0], [0], [1], [0, 0, 1, 1], [], []>} : vector<3x16xbf16>, vector<16x128xbf16>, vector<3x128xf32> -> vector<3x128xf32>
    %322 = arith.truncf %321 : vector<3x128xf32> to vector<3x128xbf16>
    %c0_270 = arith.constant 0 : index
    %c0_271 = arith.constant 0 : index
    %c0_272 = arith.constant 0 : index
    %323 = vector.load %arg9[%c0_270, %c0_271, %c0_272] : memref<16x128x512xbf16, #tpu.memory_space<vmem>>, vector<1x128x512xbf16>
    %324 = vector.shape_cast %323 : vector<1x128x512xbf16> to vector<128x512xbf16>
    %cst_273 = arith.constant dense<0.000000e+00> : vector<3x512xf32>
    %325 = tpu.matmul %322, %324, %cst_273 {dimension_numbers = #tpu.dot_dimension_numbers<[1], [0], [0], [1], [0, 0, 1, 1], [], []>} : vector<3x128xbf16>, vector<128x512xbf16>, vector<3x512xf32> -> vector<3x512xf32>
    %326 = arith.addf %318, %325 : vector<3x512xf32>
    %c1_274 = arith.constant 1 : index
    %c0_275 = arith.constant 0 : index
    %c0_276 = arith.constant 0 : index
    %327 = vector.load %arg10[%c1_274, %c0_275, %c0_276] : memref<16x3x16xbf16, #tpu.memory_space<vmem>>, vector<1x3x16xbf16>
    %328 = vector.shape_cast %327 : vector<1x3x16xbf16> to vector<3x16xbf16>
    %cst_277 = arith.constant dense<0.000000e+00> : vector<3x128xf32>
    %329 = tpu.matmul %328, %317, %cst_277 {dimension_numbers = #tpu.dot_dimension_numbers<[1], [0], [0], [1], [0, 0, 1, 1], [], []>} : vector<3x16xbf16>, vector<16x128xbf16>, vector<3x128xf32> -> vector<3x128xf32>
    %330 = arith.truncf %329 : vector<3x128xf32> to vector<3x128xbf16>
    %c1_278 = arith.constant 1 : index
    %c0_279 = arith.constant 0 : index
    %c0_280 = arith.constant 0 : index
    %331 = vector.load %arg9[%c1_278, %c0_279, %c0_280] : memref<16x128x512xbf16, #tpu.memory_space<vmem>>, vector<1x128x512xbf16>
    %332 = vector.shape_cast %331 : vector<1x128x512xbf16> to vector<128x512xbf16>
    %cst_281 = arith.constant dense<0.000000e+00> : vector<3x512xf32>
    %333 = tpu.matmul %330, %332, %cst_281 {dimension_numbers = #tpu.dot_dimension_numbers<[1], [0], [0], [1], [0, 0, 1, 1], [], []>} : vector<3x128xbf16>, vector<128x512xbf16>, vector<3x512xf32> -> vector<3x512xf32>
    %334 = arith.addf %326, %333 : vector<3x512xf32>
    %c2_282 = arith.constant 2 : index
    %c0_283 = arith.constant 0 : index
    %c0_284 = arith.constant 0 : index
    %335 = vector.load %arg10[%c2_282, %c0_283, %c0_284] : memref<16x3x16xbf16, #tpu.memory_space<vmem>>, vector<1x3x16xbf16>
    %336 = vector.shape_cast %335 : vector<1x3x16xbf16> to vector<3x16xbf16>
    %cst_285 = arith.constant dense<0.000000e+00> : vector<3x128xf32>
    %337 = tpu.matmul %336, %317, %cst_285 {dimension_numbers = #tpu.dot_dimension_numbers<[1], [0], [0], [1], [0, 0, 1, 1], [], []>} : vector<3x16xbf16>, vector<16x128xbf16>, vector<3x128xf32> -> vector<3x128xf32>
    %338 = arith.truncf %337 : vector<3x128xf32> to vector<3x128xbf16>
    %c2_286 = arith.constant 2 : index
    %c0_287 = arith.constant 0 : index
    %c0_288 = arith.constant 0 : index
    %339 = vector.load %arg9[%c2_286, %c0_287, %c0_288] : memref<16x128x512xbf16, #tpu.memory_space<vmem>>, vector<1x128x512xbf16>
    %340 = vector.shape_cast %339 : vector<1x128x512xbf16> to vector<128x512xbf16>
    %cst_289 = arith.constant dense<0.000000e+00> : vector<3x512xf32>
    %341 = tpu.matmul %338, %340, %cst_289 {dimension_numbers = #tpu.dot_dimension_numbers<[1], [0], [0], [1], [0, 0, 1, 1], [], []>} : vector<3x128xbf16>, vector<128x512xbf16>, vector<3x512xf32> -> vector<3x512xf32>
    %342 = arith.addf %334, %341 : vector<3x512xf32>
    %c3_290 = arith.constant 3 : index
    %c0_291 = arith.constant 0 : index
    %c0_292 = arith.constant 0 : index
    %343 = vector.load %arg10[%c3_290, %c0_291, %c0_292] : memref<16x3x16xbf16, #tpu.memory_space<vmem>>, vector<1x3x16xbf16>
    %344 = vector.shape_cast %343 : vector<1x3x16xbf16> to vector<3x16xbf16>
    %cst_293 = arith.constant dense<0.000000e+00> : vector<3x128xf32>
    %345 = tpu.matmul %344, %317, %cst_293 {dimension_numbers = #tpu.dot_dimension_numbers<[1], [0], [0], [1], [0, 0, 1, 1], [], []>} : vector<3x16xbf16>, vector<16x128xbf16>, vector<3x128xf32> -> vector<3x128xf32>
    %346 = arith.truncf %345 : vector<3x128xf32> to vector<3x128xbf16>
    %c3_294 = arith.constant 3 : index
    %c0_295 = arith.constant 0 : index
    %c0_296 = arith.constant 0 : index
    %347 = vector.load %arg9[%c3_294, %c0_295, %c0_296] : memref<16x128x512xbf16, #tpu.memory_space<vmem>>, vector<1x128x512xbf16>
    %348 = vector.shape_cast %347 : vector<1x128x512xbf16> to vector<128x512xbf16>
    %cst_297 = arith.constant dense<0.000000e+00> : vector<3x512xf32>
    %349 = tpu.matmul %346, %348, %cst_297 {dimension_numbers = #tpu.dot_dimension_numbers<[1], [0], [0], [1], [0, 0, 1, 1], [], []>} : vector<3x128xbf16>, vector<128x512xbf16>, vector<3x512xf32> -> vector<3x512xf32>
    %350 = arith.addf %342, %349 : vector<3x512xf32>
    %c4_298 = arith.constant 4 : index
    %c0_299 = arith.constant 0 : index
    %c0_300 = arith.constant 0 : index
    %351 = vector.load %arg10[%c4_298, %c0_299, %c0_300] : memref<16x3x16xbf16, #tpu.memory_space<vmem>>, vector<1x3x16xbf16>
    %352 = vector.shape_cast %351 : vector<1x3x16xbf16> to vector<3x16xbf16>
    %cst_301 = arith.constant dense<0.000000e+00> : vector<3x128xf32>
    %353 = tpu.matmul %352, %317, %cst_301 {dimension_numbers = #tpu.dot_dimension_numbers<[1], [0], [0], [1], [0, 0, 1, 1], [], []>} : vector<3x16xbf16>, vector<16x128xbf16>, vector<3x128xf32> -> vector<3x128xf32>
    %354 = arith.truncf %353 : vector<3x128xf32> to vector<3x128xbf16>
    %c4_302 = arith.constant 4 : index
    %c0_303 = arith.constant 0 : index
    %c0_304 = arith.constant 0 : index
    %355 = vector.load %arg9[%c4_302, %c0_303, %c0_304] : memref<16x128x512xbf16, #tpu.memory_space<vmem>>, vector<1x128x512xbf16>
    %356 = vector.shape_cast %355 : vector<1x128x512xbf16> to vector<128x512xbf16>
    %cst_305 = arith.constant dense<0.000000e+00> : vector<3x512xf32>
    %357 = tpu.matmul %354, %356, %cst_305 {dimension_numbers = #tpu.dot_dimension_numbers<[1], [0], [0], [1], [0, 0, 1, 1], [], []>} : vector<3x128xbf16>, vector<128x512xbf16>, vector<3x512xf32> -> vector<3x512xf32>
    %358 = arith.addf %350, %357 : vector<3x512xf32>
    %c5_306 = arith.constant 5 : index
    %c0_307 = arith.constant 0 : index
    %c0_308 = arith.constant 0 : index
    %359 = vector.load %arg10[%c5_306, %c0_307, %c0_308] : memref<16x3x16xbf16, #tpu.memory_space<vmem>>, vector<1x3x16xbf16>
    %360 = vector.shape_cast %359 : vector<1x3x16xbf16> to vector<3x16xbf16>
    %cst_309 = arith.constant dense<0.000000e+00> : vector<3x128xf32>
    %361 = tpu.matmul %360, %317, %cst_309 {dimension_numbers = #tpu.dot_dimension_numbers<[1], [0], [0], [1], [0, 0, 1, 1], [], []>} : vector<3x16xbf16>, vector<16x128xbf16>, vector<3x128xf32> -> vector<3x128xf32>
    %362 = arith.truncf %361 : vector<3x128xf32> to vector<3x128xbf16>
    %c5_310 = arith.constant 5 : index
    %c0_311 = arith.constant 0 : index
    %c0_312 = arith.constant 0 : index
    %363 = vector.load %arg9[%c5_310, %c0_311, %c0_312] : memref<16x128x512xbf16, #tpu.memory_space<vmem>>, vector<1x128x512xbf16>
    %364 = vector.shape_cast %363 : vector<1x128x512xbf16> to vector<128x512xbf16>
    %cst_313 = arith.constant dense<0.000000e+00> : vector<3x512xf32>
    %365 = tpu.matmul %362, %364, %cst_313 {dimension_numbers = #tpu.dot_dimension_numbers<[1], [0], [0], [1], [0, 0, 1, 1], [], []>} : vector<3x128xbf16>, vector<128x512xbf16>, vector<3x512xf32> -> vector<3x512xf32>
    %366 = arith.addf %358, %365 : vector<3x512xf32>
    %c6_314 = arith.constant 6 : index
    %c0_315 = arith.constant 0 : index
    %c0_316 = arith.constant 0 : index
    %367 = vector.load %arg10[%c6_314, %c0_315, %c0_316] : memref<16x3x16xbf16, #tpu.memory_space<vmem>>, vector<1x3x16xbf16>
    %368 = vector.shape_cast %367 : vector<1x3x16xbf16> to vector<3x16xbf16>
    %cst_317 = arith.constant dense<0.000000e+00> : vector<3x128xf32>
    %369 = tpu.matmul %368, %317, %cst_317 {dimension_numbers = #tpu.dot_dimension_numbers<[1], [0], [0], [1], [0, 0, 1, 1], [], []>} : vector<3x16xbf16>, vector<16x128xbf16>, vector<3x128xf32> -> vector<3x128xf32>
    %370 = arith.truncf %369 : vector<3x128xf32> to vector<3x128xbf16>
    %c6_318 = arith.constant 6 : index
    %c0_319 = arith.constant 0 : index
    %c0_320 = arith.constant 0 : index
    %371 = vector.load %arg9[%c6_318, %c0_319, %c0_320] : memref<16x128x512xbf16, #tpu.memory_space<vmem>>, vector<1x128x512xbf16>
    %372 = vector.shape_cast %371 : vector<1x128x512xbf16> to vector<128x512xbf16>
    %cst_321 = arith.constant dense<0.000000e+00> : vector<3x512xf32>
    %373 = tpu.matmul %370, %372, %cst_321 {dimension_numbers = #tpu.dot_dimension_numbers<[1], [0], [0], [1], [0, 0, 1, 1], [], []>} : vector<3x128xbf16>, vector<128x512xbf16>, vector<3x512xf32> -> vector<3x512xf32>
    %374 = arith.addf %366, %373 : vector<3x512xf32>
    %c7_322 = arith.constant 7 : index
    %c0_323 = arith.constant 0 : index
    %c0_324 = arith.constant 0 : index
    %375 = vector.load %arg10[%c7_322, %c0_323, %c0_324] : memref<16x3x16xbf16, #tpu.memory_space<vmem>>, vector<1x3x16xbf16>
    %376 = vector.shape_cast %375 : vector<1x3x16xbf16> to vector<3x16xbf16>
    %cst_325 = arith.constant dense<0.000000e+00> : vector<3x128xf32>
    %377 = tpu.matmul %376, %317, %cst_325 {dimension_numbers = #tpu.dot_dimension_numbers<[1], [0], [0], [1], [0, 0, 1, 1], [], []>} : vector<3x16xbf16>, vector<16x128xbf16>, vector<3x128xf32> -> vector<3x128xf32>
    %378 = arith.truncf %377 : vector<3x128xf32> to vector<3x128xbf16>
    %c7_326 = arith.constant 7 : index
    %c0_327 = arith.constant 0 : index
    %c0_328 = arith.constant 0 : index
    %379 = vector.load %arg9[%c7_326, %c0_327, %c0_328] : memref<16x128x512xbf16, #tpu.memory_space<vmem>>, vector<1x128x512xbf16>
    %380 = vector.shape_cast %379 : vector<1x128x512xbf16> to vector<128x512xbf16>
    %cst_329 = arith.constant dense<0.000000e+00> : vector<3x512xf32>
    %381 = tpu.matmul %378, %380, %cst_329 {dimension_numbers = #tpu.dot_dimension_numbers<[1], [0], [0], [1], [0, 0, 1, 1], [], []>} : vector<3x128xbf16>, vector<128x512xbf16>, vector<3x512xf32> -> vector<3x512xf32>
    %382 = arith.addf %374, %381 : vector<3x512xf32>
    %c8_330 = arith.constant 8 : index
    %c0_331 = arith.constant 0 : index
    %c0_332 = arith.constant 0 : index
    %383 = vector.load %arg10[%c8_330, %c0_331, %c0_332] : memref<16x3x16xbf16, #tpu.memory_space<vmem>>, vector<1x3x16xbf16>
    %384 = vector.shape_cast %383 : vector<1x3x16xbf16> to vector<3x16xbf16>
    %cst_333 = arith.constant dense<0.000000e+00> : vector<3x128xf32>
    %385 = tpu.matmul %384, %317, %cst_333 {dimension_numbers = #tpu.dot_dimension_numbers<[1], [0], [0], [1], [0, 0, 1, 1], [], []>} : vector<3x16xbf16>, vector<16x128xbf16>, vector<3x128xf32> -> vector<3x128xf32>
    %386 = arith.truncf %385 : vector<3x128xf32> to vector<3x128xbf16>
    %c8_334 = arith.constant 8 : index
    %c0_335 = arith.constant 0 : index
    %c0_336 = arith.constant 0 : index
    %387 = vector.load %arg9[%c8_334, %c0_335, %c0_336] : memref<16x128x512xbf16, #tpu.memory_space<vmem>>, vector<1x128x512xbf16>
    %388 = vector.shape_cast %387 : vector<1x128x512xbf16> to vector<128x512xbf16>
    %cst_337 = arith.constant dense<0.000000e+00> : vector<3x512xf32>
    %389 = tpu.matmul %386, %388, %cst_337 {dimension_numbers = #tpu.dot_dimension_numbers<[1], [0], [0], [1], [0, 0, 1, 1], [], []>} : vector<3x128xbf16>, vector<128x512xbf16>, vector<3x512xf32> -> vector<3x512xf32>
    %390 = arith.addf %382, %389 : vector<3x512xf32>
    %c9_338 = arith.constant 9 : index
    %c0_339 = arith.constant 0 : index
    %c0_340 = arith.constant 0 : index
    %391 = vector.load %arg10[%c9_338, %c0_339, %c0_340] : memref<16x3x16xbf16, #tpu.memory_space<vmem>>, vector<1x3x16xbf16>
    %392 = vector.shape_cast %391 : vector<1x3x16xbf16> to vector<3x16xbf16>
    %cst_341 = arith.constant dense<0.000000e+00> : vector<3x128xf32>
    %393 = tpu.matmul %392, %317, %cst_341 {dimension_numbers = #tpu.dot_dimension_numbers<[1], [0], [0], [1], [0, 0, 1, 1], [], []>} : vector<3x16xbf16>, vector<16x128xbf16>, vector<3x128xf32> -> vector<3x128xf32>
    %394 = arith.truncf %393 : vector<3x128xf32> to vector<3x128xbf16>
    %c9_342 = arith.constant 9 : index
    %c0_343 = arith.constant 0 : index
    %c0_344 = arith.constant 0 : index
    %395 = vector.load %arg9[%c9_342, %c0_343, %c0_344] : memref<16x128x512xbf16, #tpu.memory_space<vmem>>, vector<1x128x512xbf16>
    %396 = vector.shape_cast %395 : vector<1x128x512xbf16> to vector<128x512xbf16>
    %cst_345 = arith.constant dense<0.000000e+00> : vector<3x512xf32>
    %397 = tpu.matmul %394, %396, %cst_345 {dimension_numbers = #tpu.dot_dimension_numbers<[1], [0], [0], [1], [0, 0, 1, 1], [], []>} : vector<3x128xbf16>, vector<128x512xbf16>, vector<3x512xf32> -> vector<3x512xf32>
    %398 = arith.addf %390, %397 : vector<3x512xf32>
    %c10_346 = arith.constant 10 : index
    %c0_347 = arith.constant 0 : index
    %c0_348 = arith.constant 0 : index
    %399 = vector.load %arg10[%c10_346, %c0_347, %c0_348] : memref<16x3x16xbf16, #tpu.memory_space<vmem>>, vector<1x3x16xbf16>
    %400 = vector.shape_cast %399 : vector<1x3x16xbf16> to vector<3x16xbf16>
    %cst_349 = arith.constant dense<0.000000e+00> : vector<3x128xf32>
    %401 = tpu.matmul %400, %317, %cst_349 {dimension_numbers = #tpu.dot_dimension_numbers<[1], [0], [0], [1], [0, 0, 1, 1], [], []>} : vector<3x16xbf16>, vector<16x128xbf16>, vector<3x128xf32> -> vector<3x128xf32>
    %402 = arith.truncf %401 : vector<3x128xf32> to vector<3x128xbf16>
    %c10_350 = arith.constant 10 : index
    %c0_351 = arith.constant 0 : index
    %c0_352 = arith.constant 0 : index
    %403 = vector.load %arg9[%c10_350, %c0_351, %c0_352] : memref<16x128x512xbf16, #tpu.memory_space<vmem>>, vector<1x128x512xbf16>
    %404 = vector.shape_cast %403 : vector<1x128x512xbf16> to vector<128x512xbf16>
    %cst_353 = arith.constant dense<0.000000e+00> : vector<3x512xf32>
    %405 = tpu.matmul %402, %404, %cst_353 {dimension_numbers = #tpu.dot_dimension_numbers<[1], [0], [0], [1], [0, 0, 1, 1], [], []>} : vector<3x128xbf16>, vector<128x512xbf16>, vector<3x512xf32> -> vector<3x512xf32>
    %406 = arith.addf %398, %405 : vector<3x512xf32>
    %c11_354 = arith.constant 11 : index
    %c0_355 = arith.constant 0 : index
    %c0_356 = arith.constant 0 : index
    %407 = vector.load %arg10[%c11_354, %c0_355, %c0_356] : memref<16x3x16xbf16, #tpu.memory_space<vmem>>, vector<1x3x16xbf16>
    %408 = vector.shape_cast %407 : vector<1x3x16xbf16> to vector<3x16xbf16>
    %cst_357 = arith.constant dense<0.000000e+00> : vector<3x128xf32>
    %409 = tpu.matmul %408, %317, %cst_357 {dimension_numbers = #tpu.dot_dimension_numbers<[1], [0], [0], [1], [0, 0, 1, 1], [], []>} : vector<3x16xbf16>, vector<16x128xbf16>, vector<3x128xf32> -> vector<3x128xf32>
    %410 = arith.truncf %409 : vector<3x128xf32> to vector<3x128xbf16>
    %c11_358 = arith.constant 11 : index
    %c0_359 = arith.constant 0 : index
    %c0_360 = arith.constant 0 : index
    %411 = vector.load %arg9[%c11_358, %c0_359, %c0_360] : memref<16x128x512xbf16, #tpu.memory_space<vmem>>, vector<1x128x512xbf16>
    %412 = vector.shape_cast %411 : vector<1x128x512xbf16> to vector<128x512xbf16>
    %cst_361 = arith.constant dense<0.000000e+00> : vector<3x512xf32>
    %413 = tpu.matmul %410, %412, %cst_361 {dimension_numbers = #tpu.dot_dimension_numbers<[1], [0], [0], [1], [0, 0, 1, 1], [], []>} : vector<3x128xbf16>, vector<128x512xbf16>, vector<3x512xf32> -> vector<3x512xf32>
    %414 = arith.addf %406, %413 : vector<3x512xf32>
    %c12_362 = arith.constant 12 : index
    %c0_363 = arith.constant 0 : index
    %c0_364 = arith.constant 0 : index
    %415 = vector.load %arg10[%c12_362, %c0_363, %c0_364] : memref<16x3x16xbf16, #tpu.memory_space<vmem>>, vector<1x3x16xbf16>
    %416 = vector.shape_cast %415 : vector<1x3x16xbf16> to vector<3x16xbf16>
    %cst_365 = arith.constant dense<0.000000e+00> : vector<3x128xf32>
    %417 = tpu.matmul %416, %317, %cst_365 {dimension_numbers = #tpu.dot_dimension_numbers<[1], [0], [0], [1], [0, 0, 1, 1], [], []>} : vector<3x16xbf16>, vector<16x128xbf16>, vector<3x128xf32> -> vector<3x128xf32>
    %418 = arith.truncf %417 : vector<3x128xf32> to vector<3x128xbf16>
    %c12_366 = arith.constant 12 : index
    %c0_367 = arith.constant 0 : index
    %c0_368 = arith.constant 0 : index
    %419 = vector.load %arg9[%c12_366, %c0_367, %c0_368] : memref<16x128x512xbf16, #tpu.memory_space<vmem>>, vector<1x128x512xbf16>
    %420 = vector.shape_cast %419 : vector<1x128x512xbf16> to vector<128x512xbf16>
    %cst_369 = arith.constant dense<0.000000e+00> : vector<3x512xf32>
    %421 = tpu.matmul %418, %420, %cst_369 {dimension_numbers = #tpu.dot_dimension_numbers<[1], [0], [0], [1], [0, 0, 1, 1], [], []>} : vector<3x128xbf16>, vector<128x512xbf16>, vector<3x512xf32> -> vector<3x512xf32>
    %422 = arith.addf %414, %421 : vector<3x512xf32>
    %c13_370 = arith.constant 13 : index
    %c0_371 = arith.constant 0 : index
    %c0_372 = arith.constant 0 : index
    %423 = vector.load %arg10[%c13_370, %c0_371, %c0_372] : memref<16x3x16xbf16, #tpu.memory_space<vmem>>, vector<1x3x16xbf16>
    %424 = vector.shape_cast %423 : vector<1x3x16xbf16> to vector<3x16xbf16>
    %cst_373 = arith.constant dense<0.000000e+00> : vector<3x128xf32>
    %425 = tpu.matmul %424, %317, %cst_373 {dimension_numbers = #tpu.dot_dimension_numbers<[1], [0], [0], [1], [0, 0, 1, 1], [], []>} : vector<3x16xbf16>, vector<16x128xbf16>, vector<3x128xf32> -> vector<3x128xf32>
    %426 = arith.truncf %425 : vector<3x128xf32> to vector<3x128xbf16>
    %c13_374 = arith.constant 13 : index
    %c0_375 = arith.constant 0 : index
    %c0_376 = arith.constant 0 : index
    %427 = vector.load %arg9[%c13_374, %c0_375, %c0_376] : memref<16x128x512xbf16, #tpu.memory_space<vmem>>, vector<1x128x512xbf16>
    %428 = vector.shape_cast %427 : vector<1x128x512xbf16> to vector<128x512xbf16>
    %cst_377 = arith.constant dense<0.000000e+00> : vector<3x512xf32>
    %429 = tpu.matmul %426, %428, %cst_377 {dimension_numbers = #tpu.dot_dimension_numbers<[1], [0], [0], [1], [0, 0, 1, 1], [], []>} : vector<3x128xbf16>, vector<128x512xbf16>, vector<3x512xf32> -> vector<3x512xf32>
    %430 = arith.addf %422, %429 : vector<3x512xf32>
    %c14_378 = arith.constant 14 : index
    %c0_379 = arith.constant 0 : index
    %c0_380 = arith.constant 0 : index
    %431 = vector.load %arg10[%c14_378, %c0_379, %c0_380] : memref<16x3x16xbf16, #tpu.memory_space<vmem>>, vector<1x3x16xbf16>
    %432 = vector.shape_cast %431 : vector<1x3x16xbf16> to vector<3x16xbf16>
    %cst_381 = arith.constant dense<0.000000e+00> : vector<3x128xf32>
    %433 = tpu.matmul %432, %317, %cst_381 {dimension_numbers = #tpu.dot_dimension_numbers<[1], [0], [0], [1], [0, 0, 1, 1], [], []>} : vector<3x16xbf16>, vector<16x128xbf16>, vector<3x128xf32> -> vector<3x128xf32>
    %434 = arith.truncf %433 : vector<3x128xf32> to vector<3x128xbf16>
    %c14_382 = arith.constant 14 : index
    %c0_383 = arith.constant 0 : index
    %c0_384 = arith.constant 0 : index
    %435 = vector.load %arg9[%c14_382, %c0_383, %c0_384] : memref<16x128x512xbf16, #tpu.memory_space<vmem>>, vector<1x128x512xbf16>
    %436 = vector.shape_cast %435 : vector<1x128x512xbf16> to vector<128x512xbf16>
    %cst_385 = arith.constant dense<0.000000e+00> : vector<3x512xf32>
    %437 = tpu.matmul %434, %436, %cst_385 {dimension_numbers = #tpu.dot_dimension_numbers<[1], [0], [0], [1], [0, 0, 1, 1], [], []>} : vector<3x128xbf16>, vector<128x512xbf16>, vector<3x512xf32> -> vector<3x512xf32>
    %438 = arith.addf %430, %437 : vector<3x512xf32>
    %c15_386 = arith.constant 15 : index
    %c0_387 = arith.constant 0 : index
    %c0_388 = arith.constant 0 : index
    %439 = vector.load %arg10[%c15_386, %c0_387, %c0_388] : memref<16x3x16xbf16, #tpu.memory_space<vmem>>, vector<1x3x16xbf16>
    %440 = vector.shape_cast %439 : vector<1x3x16xbf16> to vector<3x16xbf16>
    %cst_389 = arith.constant dense<0.000000e+00> : vector<3x128xf32>
    %441 = tpu.matmul %440, %317, %cst_389 {dimension_numbers = #tpu.dot_dimension_numbers<[1], [0], [0], [1], [0, 0, 1, 1], [], []>} : vector<3x16xbf16>, vector<16x128xbf16>, vector<3x128xf32> -> vector<3x128xf32>
    %442 = arith.truncf %441 : vector<3x128xf32> to vector<3x128xbf16>
    %c15_390 = arith.constant 15 : index
    %c0_391 = arith.constant 0 : index
    %c0_392 = arith.constant 0 : index
    %443 = vector.load %arg9[%c15_390, %c0_391, %c0_392] : memref<16x128x512xbf16, #tpu.memory_space<vmem>>, vector<1x128x512xbf16>
    %444 = vector.shape_cast %443 : vector<1x128x512xbf16> to vector<128x512xbf16>
    %cst_393 = arith.constant dense<0.000000e+00> : vector<3x512xf32>
    %445 = tpu.matmul %442, %444, %cst_393 {dimension_numbers = #tpu.dot_dimension_numbers<[1], [0], [0], [1], [0, 0, 1, 1], [], []>} : vector<3x128xbf16>, vector<128x512xbf16>, vector<3x512xf32> -> vector<3x512xf32>
    %446 = arith.addf %438, %445 : vector<3x512xf32>
    %447 = math.tanh %446 : vector<3x512xf32>
    %448 = vector.extract_strided_slice %447 {offsets = [0, 0], sizes = [3, 256], strides = [1, 1]} : vector<3x512xf32> to vector<3x256xf32>
    %c0_394 = arith.constant 0 : index
    %c0_395 = arith.constant 0 : index
    %c0_396 = arith.constant 0 : index
    %449 = vector.load %arg11[%c0_394, %c0_395, %c0_396] : memref<2x3x256xf32, #tpu.memory_space<vmem>>, vector<1x3x256xf32>
    %450 = vector.shape_cast %449 : vector<1x3x256xf32> to vector<3x256xf32>
    %451 = vector.shape_cast %448 : vector<3x256xf32> to vector<1x3x256xf32>
    tpu.vector_store %arg11[%c0_394, %c0_395, %c0_396], %451 {strides = array<i32>} : memref<2x3x256xf32, #tpu.memory_space<vmem>>, vector<1x3x256xf32>,
    %452 = vector.extract_strided_slice %447 {offsets = [0, 256], sizes = [3, 256], strides = [1, 1]} : vector<3x512xf32> to vector<3x256xf32>
    %c1_397 = arith.constant 1 : index
    %c0_398 = arith.constant 0 : index
    %c0_399 = arith.constant 0 : index
    %453 = vector.load %arg11[%c1_397, %c0_398, %c0_399] : memref<2x3x256xf32, #tpu.memory_space<vmem>>, vector<1x3x256xf32>
    %454 = vector.shape_cast %453 : vector<1x3x256xf32> to vector<3x256xf32>
    %455 = vector.shape_cast %452 : vector<3x256xf32> to vector<1x3x256xf32>
    tpu.vector_store %arg11[%c1_397, %c0_398, %c0_399], %455 {strides = array<i32>} : memref<2x3x256xf32, #tpu.memory_space<vmem>>, vector<1x3x256xf32>,
    return
  }
}

</mosaic_0001>

<llo_original>
// kernel: dcgan_g_forward.1
$region0: #{dcgan_g_forward.1}
  #allocation0 [shape = 'u32[]', space=smem, size = 0x4, offset = 0x4, fixed_abs, tag = 'smem constant byte address 0x4 - core index']
  #allocation1 [shape = 'u32[72,128]{1,0:T(1,128)}', space=vmem, size = 0x9000, scoped, tag = 'internal scratch']
  %s0 = inlined_call_operand.vmem [shape: f32[8,2], index: 0, kind: input, shape index: {}]
  %s1 = inlined_call_operand.hbm [shape: bf16[16,2,32], index: 1, kind: input, shape index: {}]
  %s2 = inlined_call_operand.vmem [shape: bf16[16,32,8], index: 2, kind: input, shape index: {}]
  %s3 = inlined_call_operand.vmem [shape: f32[32,1], index: 3, kind: input, shape index: {}]
  %s4 = inlined_call_operand.vmem [shape: f32[32,1], index: 4, kind: input, shape index: {}]
  %s5 = inlined_call_operand.hbm [shape: bf16[16,32,128], index: 5, kind: input, shape index: {}]
  %s6 = inlined_call_operand.vmem [shape: bf16[16,16,32], index: 6, kind: input, shape index: {}]
  %s7 = inlined_call_operand.vmem [shape: f32[16,1], index: 7, kind: input, shape index: {}]
  %s8 = inlined_call_operand.vmem [shape: f32[16,1], index: 8, kind: input, shape index: {}]
  %s9 = inlined_call_operand.hbm [shape: bf16[16,128,512], index: 9, kind: input, shape index: {}]
  %s10 = inlined_call_operand.vmem [shape: bf16[16,3,16], index: 10, kind: input, shape index: {}]
  %s11 = inlined_call_operand.vmem [shape: f32[2,3,256], index: 11, kind: output, shape index: {}]
  %s12 = sld [smem:[#allocation0]]
  $region66: #{dcgan_g_forward.1} parent=0
    _
  %s14 = ssub.s32 1, %s12
  %s15 = scalar_select 0, %s14, %s12
  $region1: #{dcgan_g_forward.1} parent=0
    #allocation2 [shape = 'u8[8192]{0}', space=vmem, size = 0x2000, scoped, tag = 'input window, operand 1, single buffered']
    #allocation3 [shape = 's32[1]{0}', space=sflag, size = 0x4, scoped, tag = 'scoped memory for dcgan_g_forward.1']
    #allocation4 [shape = 'u8[131072]{0}', space=vmem, size = 0x20000, scoped, tag = 'input window, operand 5, single buffered']
    #allocation5 [shape = 's32[1]{0}', space=sflag, size = 0x4, scoped, tag = 'scoped memory for dcgan_g_forward.1']
    #allocation6 [shape = 'u8[2097152]{0}', space=vmem, size = 0x200000, scoped, tag = 'input window, operand 9, single buffered']
    %16 = vsyncpa [#allocation3], 0
    %17 = vsyncpa [#allocation5], 0
    // Predicated region
    $region2: #{dcgan_g_forward.1} parent=1 // pred_check
      _
    $region3: #{dcgan_g_forward.1} parent=1 // pred_check_branch
      %19 = sbr.rel (0) target = $region5
    $region4: #{dcgan_g_forward.1} parent=1 // pred_region
      _
    $region5: #{dcgan_g_forward.1} parent=1 // pred_fallthru
      _
    // Predicated region
    $region6: #{dcgan_g_forward.1} parent=1 // pred_check
      _
    $region7: #{dcgan_g_forward.1} parent=1 // pred_check_branch
      %21 = sbr.rel (0) target = $region9
    $region8: #{dcgan_g_forward.1} parent=1 // pred_region
      %23 = vsyncadd [#allocation3], 0
      %s24 = sshll.u32 %s1, 4
      %s25 = int_to_ptr.hbm [resolvable:$true] %s24
      %s26 = sshll.u32 [#allocation2], 4
      %s27 = int_to_ptr.vmem [resolvable:$true] %s26
      %32 = dma.hbm_to_vmem [thread:$0]  %s25, 256, %s27, [#allocation3], 16, 16, 1
    $region9: #{dcgan_g_forward.1} parent=1 // pred_fallthru
      _
    // Predicated region
    $region10: #{dcgan_g_forward.1} parent=1 // pred_check
      _
    $region11: #{dcgan_g_forward.1} parent=1 // pred_check_branch
      %34 = sbr.rel (0) target = $region13
    $region12: #{dcgan_g_forward.1} parent=1 // pred_region
      _
    $region13: #{dcgan_g_forward.1} parent=1 // pred_fallthru
      _
    // Predicated region
    $region14: #{dcgan_g_forward.1} parent=1 // pred_check
      _
    $region15: #{dcgan_g_forward.1} parent=1 // pred_check_branch
      %36 = sbr.rel (0) target = $region17
    $region16: #{dcgan_g_forward.1} parent=1 // pred_region
      _
    $region17: #{dcgan_g_forward.1} parent=1 // pred_fallthru
      _
    // Predicated region
    $region18: #{dcgan_g_forward.1} parent=1 // pred_check
      _
    $region19: #{dcgan_g_forward.1} parent=1 // pred_check_branch
      %38 = sbr.rel (0) target = $region21
    $region20: #{dcgan_g_forward.1} parent=1 // pred_region
      _
    $region21: #{dcgan_g_forward.1} parent=1 // pred_fallthru
      _
    // Predicated region
    $region22: #{dcgan_g_forward.1} parent=1 // pred_check
      _
    $region23: #{dcgan_g_forward.1} parent=1 // pred_check_branch
      %40 = sbr.rel (0) target = $region25
    $region24: #{dcgan_g_forward.1} parent=1 // pred_region
      %42 = vsyncadd [#allocation5], 0
      %s43 = sshll.u32 %s5, 4
      %s44 = int_to_ptr.hbm [resolvable:$true] %s43
      %s45 = sshll.u32 [#allocation4], 4
      %s46 = int_to_ptr.vmem [resolvable:$true] %s45
      %51 = dma.hbm_to_vmem [thread:$0]  %s44, 4096, %s46, [#allocation5], 64, 64, 4
    $region25: #{dcgan_g_forward.1} parent=1 // pred_fallthru
      _
    // Predicated region
    $region26: #{dcgan_g_forward.1} parent=1 // pred_check
      _
    $region27: #{dcgan_g_forward.1} parent=1 // pred_check_branch
      %53 = sbr.rel (0) target = $region29
    $region28: #{dcgan_g_forward.1} parent=1 // pred_region
      _
    $region29: #{dcgan_g_forward.1} parent=1 // pred_fallthru
      _
    // Predicated region
    $region30: #{dcgan_g_forward.1} parent=1 // pred_check
      _
    $region31: #{dcgan_g_forward.1} parent=1 // pred_check_branch
      %55 = sbr.rel (0) target = $region33
    $region32: #{dcgan_g_forward.1} parent=1 // pred_region
      _
    $region33: #{dcgan_g_forward.1} parent=1 // pred_fallthru
      _
    // Predicated region
    $region34: #{dcgan_g_forward.1} parent=1 // pred_check
      _
    $region35: #{dcgan_g_forward.1} parent=1 // pred_check_branch
      %57 = sbr.rel (0) target = $region37
    $region36: #{dcgan_g_forward.1} parent=1 // pred_region
      _
    $region37: #{dcgan_g_forward.1} parent=1 // pred_fallthru
      _
    // Predicated region
    $region38: #{dcgan_g_forward.1} parent=1 // pred_check
      _
    $region39: #{dcgan_g_forward.1} parent=1 // pred_check_branch
      %59 = sbr.rel (0) target = $region41
    $region40: #{dcgan_g_forward.1} parent=1 // pred_region
      %61 = vsyncadd [#allocation5], 0
      %s62 = sshll.u32 %s9, 4
      %s63 = int_to_ptr.hbm [resolvable:$true] %s62
      %s64 = sshll.u32 [#allocation6], 4
      %s65 = int_to_ptr.vmem [resolvable:$true] %s64
      %70 = dma.hbm_to_vmem [thread:$0]  %s63, 65536, %s65, [#allocation5], 256, 256, 16
    $region41: #{dcgan_g_forward.1} parent=1 // pred_fallthru
      _
    // Predicated region
    $region42: #{dcgan_g_forward.1} parent=1 // pred_check
      _
    $region43: #{dcgan_g_forward.1} parent=1 // pred_check_branch
      %72 = sbr.rel (0) target = $region45
    $region44: #{dcgan_g_forward.1} parent=1 // pred_region
      _
    $region45: #{dcgan_g_forward.1} parent=1 // pred_fallthru
      _
    // Predicated region
    $region46: #{dcgan_g_forward.1} parent=1 // pred_check
      _
    $region47: #{dcgan_g_forward.1} parent=1 // pred_check_branch
      %74 = sbr.rel (0) target = $region49
    $region48: #{dcgan_g_forward.1} parent=1 // pred_region
      %76 = dma.done [#allocation3], 256
    $region49: #{dcgan_g_forward.1} parent=1 // pred_fallthru
      _
    // Predicated region
    $region50: #{dcgan_g_forward.1} parent=1 // pred_check
      _
    $region51: #{dcgan_g_forward.1} parent=1 // pred_check_branch
      %78 = sbr.rel (0) target = $region53
    $region52: #{dcgan_g_forward.1} parent=1 // pred_region
      %80 = dma.done [#allocation5], 4096
    $region53: #{dcgan_g_forward.1} parent=1 // pred_fallthru
      _
    // Predicated region
    $region54: #{dcgan_g_forward.1} parent=1 // pred_check
      _
    $region55: #{dcgan_g_forward.1} parent=1 // pred_check_branch
      %82 = sbr.rel (0) target = $region57
    $region56: #{dcgan_g_forward.1} parent=1 // pred_region
      %84 = dma.done [#allocation5], 65536
    $region57: #{dcgan_g_forward.1} parent=1 // pred_fallthru
      _
    %v86 = vld [vmem:[%s0] sm:$0xff]
    %v87 = vpack.c.bf16 %v86, %v86
    %v88 = vld [vmem:[%s2] sm:$0xf]
    %v89 = vld [vmem:[%s2 + $0x4] sm:$0xf]
    %v90 = vld [vmem:[%s2 + $0x8] sm:$0xf]
    %v91 = vld [vmem:[%s2 + $0xc] sm:$0xf]
    %v96 = vunpack.c.l.b16 %v88
    %v97 = vunpack.c.l.b16 %v89
    %v98 = vunpack.c.l.b16 %v90
    %v99 = vunpack.c.l.b16 %v91
    %v100 = vpack.c.b16 %v97, %v96
    %v101 = vpack.c.b16 %v99, %v98
    %vm102 = vcmask 64512
    %v104 = vsel %vm102, %v100, 0
    %v107 = vsel %vm102, %v101, 0
    %vm109 = vcmask 1043456
    %v111 = vsel %vm109, %v87, 0
    %113 = vmatpush.bf16.msra.mxu0 0
    %114 = vmatpush.bf16.msra.mxu0 0
    %115 = vmatpush.bf16.msra.mxu0 0
    %116 = vmatpush.bf16.msra.mxu0 0
    %117 = vmatpush.bf16.msra.mxu0 0
    %118 = vmatpush.bf16.msra.mxu0 0
    %119 = vmatpush.bf16.msra.mxu0 0
    %120 = vmatpush.bf16.msra.mxu0 %v111
    %121 = vmatmul.bf16.gmra.mxu0 %v104
    %v122 = vpop.f32.mrf.mxu0
    %v123 = vadd.f32 0.0, %v122
    %v124 = vpop.f32.mrf.mxu0
    %v125 = vadd.f32 0.0, %v124
    %126 = vmatmul.bf16.gmra.mxu0 %v107
    %v127 = vpop.f32.mrf.mxu0
    %v128 = vadd.f32 0.0, %v127
    %v129 = vpop.f32.mrf.mxu0
    %v130 = vadd.f32 0.0, %v129
    %131 = vdwg.mxu0
    %v132 = vpack.c.bf16 %v125, %v123
    %v133 = vpack.c.bf16 %v130, %v128
    %v134 = vld [vmem:[#allocation2] sm:$0x1]
    %s135 = scalar_lea.vmem %s2, 16
    %v136 = vld [vmem:[%s135] sm:$0xf]
    %v137 = vld [vmem:[%s135 + $0x4] sm:$0xf]
    %v138 = vld [vmem:[%s135 + $0x8] sm:$0xf]
    %v139 = vld [vmem:[%s135 + $0xc] sm:$0xf]
    %v144 = vunpack.c.l.b16 %v136
    %v145 = vunpack.c.l.b16 %v137
    %v146 = vunpack.c.l.b16 %v138
    %v147 = vunpack.c.l.b16 %v139
    %v148 = vpack.c.b16 %v145, %v144
    %v149 = vpack.c.b16 %v147, %v146
    %v151 = vsel %vm102, %v148, 0
    %v154 = vsel %vm102, %v149, 0
    %156 = vmatpush.bf16.msra.mxu0 0
    %157 = vmatpush.bf16.msra.mxu0 0
    %158 = vmatpush.bf16.msra.mxu0 0
    %159 = vmatpush.bf16.msra.mxu0 0
    %160 = vmatpush.bf16.msra.mxu0 0
    %161 = vmatpush.bf16.msra.mxu0 0
    %162 = vmatpush.bf16.msra.mxu0 0
    %163 = vmatpush.bf16.msra.mxu0 %v111
    %164 = vmatmul.bf16.gmra.mxu0 %v151
    %v165 = vpop.f32.mrf.mxu0
    %v166 = vadd.f32 0.0, %v165
    %v167 = vpop.f32.mrf.mxu0
    %v168 = vadd.f32 0.0, %v167
    %169 = vmatmul.bf16.gmra.mxu0 %v154
    %v170 = vpop.f32.mrf.mxu0
    %v171 = vadd.f32 0.0, %v170
    %v172 = vpop.f32.mrf.mxu0
    %v173 = vadd.f32 0.0, %v172
    %174 = vdwg.mxu0
    %v175 = vpack.c.bf16 %v168, %v166
    %v176 = vpack.c.bf16 %v173, %v171
    %s177 = scalar_lea.vmem [#allocation2], 1
    %v178 = vld [vmem:[%s177] sm:$0x1]
    %vm179 = vcmask 15360
    %v181 = vsel %vm179, %v175, 0
    %v184 = vsel %vm179, %v176, 0
    %vm186 = vcmask 1040384
    %v188 = vsel %vm186, %v178, 0
    %190 = vmatpush.bf16.msra.mxu0 0
    %191 = vmatpush.bf16.msra.mxu0 0
    %192 = vmatpush.bf16.msra.mxu0 0
    %193 = vmatpush.bf16.msra.mxu0 0
    %194 = vmatpush.bf16.msra.mxu0 0
    %195 = vmatpush.bf16.msra.mxu0 0
    %196 = vmatpush.bf16.msra.mxu0 0
    %197 = vmatpush.bf16.msra.mxu0 %v188
    %198 = vmatmul.bf16.gmra.mxu0 %v181
    %v199 = vpop.f32.mrf.mxu0
    %v200 = vadd.f32 0.0, %v199
    %v201 = vpop.f32.mrf.mxu0
    %v202 = vadd.f32 0.0, %v201
    %203 = vmatmul.bf16.gmra.mxu0 %v184
    %v204 = vpop.f32.mrf.mxu0
    %v205 = vadd.f32 0.0, %v204
    %v206 = vpop.f32.mrf.mxu0
    %v207 = vadd.f32 0.0, %v206
    %208 = vdwg.mxu0
    %v210 = vsel %vm179, %v132, 0
    %v213 = vsel %vm179, %v133, 0
    %v216 = vsel %vm186, %v134, 0
    %218 = vmatpush.bf16.msra.mxu0 0
    %219 = vmatpush.bf16.msra.mxu0 0
    %220 = vmatpush.bf16.msra.mxu0 0
    %221 = vmatpush.bf16.msra.mxu0 0
    %222 = vmatpush.bf16.msra.mxu0 0
    %223 = vmatpush.bf16.msra.mxu0 0
    %224 = vmatpush.bf16.msra.mxu0 0
    %225 = vmatpush.bf16.msra.mxu0 %v216
    %226 = vmatmul.bf16.gmra.mxu0 %v210
    %v227 = vpop.f32.mrf.mxu0
    %v228 = vadd.f32 %v200, %v227
    %v229 = vpop.f32.mrf.mxu0
    %v230 = vadd.f32 %v202, %v229
    %231 = vmatmul.bf16.gmra.mxu0 %v213
    %v232 = vpop.f32.mrf.mxu0
    %v233 = vadd.f32 %v205, %v232
    %v234 = vpop.f32.mrf.mxu0
    %v235 = vadd.f32 %v207, %v234
    %236 = vdwg.mxu0
    %s237 = scalar_lea.vmem %s2, 32
    %v238 = vld [vmem:[%s237] sm:$0xf]
    %v239 = vld [vmem:[%s237 + $0x4] sm:$0xf]
    %v240 = vld [vmem:[%s237 + $0x8] sm:$0xf]
    %v241 = vld [vmem:[%s237 + $0xc] sm:$0xf]
    %v246 = vunpack.c.l.b16 %v238
    %v247 = vunpack.c.l.b16 %v239
    %v248 = vunpack.c.l.b16 %v240
    %v249 = vunpack.c.l.b16 %v241
    %v250 = vpack.c.b16 %v247, %v246
    %v251 = vpack.c.b16 %v249, %v248
    %v253 = vsel %vm102, %v250, 0
    %v256 = vsel %vm102, %v251, 0
    %258 = vmatpush.bf16.msra.mxu0 0
    %259 = vmatpush.bf16.msra.mxu0 0
    %260 = vmatpush.bf16.msra.mxu0 0
    %261 = vmatpush.bf16.msra.mxu0 0
    %262 = vmatpush.bf16.msra.mxu0 0
    %263 = vmatpush.bf16.msra.mxu0 0
    %264 = vmatpush.bf16.msra.mxu0 0
    %265 = vmatpush.bf16.msra.mxu0 %v111
    %266 = vmatmul.bf16.gmra.mxu0 %v253
    %v267 = vpop.f32.mrf.mxu0
    %v268 = vadd.f32 0.0, %v267
    %v269 = vpop.f32.mrf.mxu0
    %v270 = vadd.f32 0.0, %v269
    %271 = vmatmul.bf16.gmra.mxu0 %v256
    %v272 = vpop.f32.mrf.mxu0
    %v273 = vadd.f32 0.0, %v272
    %v274 = vpop.f32.mrf.mxu0
    %v275 = vadd.f32 0.0, %v274
    %276 = vdwg.mxu0
    %v277 = vpack.c.bf16 %v270, %v268
    %v278 = vpack.c.bf16 %v275, %v273
    %s279 = scalar_lea.vmem [#allocation2], 2
    %v280 = vld [vmem:[%s279] sm:$0x1]
    %v282 = vsel %vm179, %v277, 0
    %v285 = vsel %vm179, %v278, 0
    %v288 = vsel %vm186, %v280, 0
    %290 = vmatpush.bf16.msra.mxu0 0
    %291 = vmatpush.bf16.msra.mxu0 0
    %292 = vmatpush.bf16.msra.mxu0 0
    %293 = vmatpush.bf16.msra.mxu0 0
    %294 = vmatpush.bf16.msra.mxu0 0
    %295 = vmatpush.bf16.msra.mxu0 0
    %296 = vmatpush.bf16.msra.mxu0 0
    %297 = vmatpush.bf16.msra.mxu0 %v288
    %298 = vmatmul.bf16.gmra.mxu0 %v282
    %v299 = vpop.f32.mrf.mxu0
    %v300 = vadd.f32 0.0, %v299
    %v301 = vpop.f32.mrf.mxu0
    %v302 = vadd.f32 0.0, %v301
    %303 = vmatmul.bf16.gmra.mxu0 %v285
    %v304 = vpop.f32.mrf.mxu0
    %v305 = vadd.f32 0.0, %v304
    %v306 = vpop.f32.mrf.mxu0
    %v307 = vadd.f32 0.0, %v306
    %308 = vdwg.mxu0
    %v309 = vadd.f32 %v228, %v300
    %v310 = vadd.f32 %v230, %v302
    %v311 = vadd.f32 %v233, %v305
    %v312 = vadd.f32 %v235, %v307
    %s313 = scalar_lea.vmem %s2, 48
    %v314 = vld [vmem:[%s313] sm:$0xf]
    %v315 = vld [vmem:[%s313 + $0x4] sm:$0xf]
    %v316 = vld [vmem:[%s313 + $0x8] sm:$0xf]
    %v317 = vld [vmem:[%s313 + $0xc] sm:$0xf]
    %v322 = vunpack.c.l.b16 %v314
    %v323 = vunpack.c.l.b16 %v315
    %v324 = vunpack.c.l.b16 %v316
    %v325 = vunpack.c.l.b16 %v317
    %v326 = vpack.c.b16 %v323, %v322
    %v327 = vpack.c.b16 %v325, %v324
    %v329 = vsel %vm102, %v326, 0
    %v332 = vsel %vm102, %v327, 0
    %334 = vmatpush.bf16.msra.mxu0 0
    %335 = vmatpush.bf16.msra.mxu0 0
    %336 = vmatpush.bf16.msra.mxu0 0
    %337 = vmatpush.bf16.msra.mxu0 0
    %338 = vmatpush.bf16.msra.mxu0 0
    %339 = vmatpush.bf16.msra.mxu0 0
    %340 = vmatpush.bf16.msra.mxu0 0
    %341 = vmatpush.bf16.msra.mxu0 %v111
    %342 = vmatmul.bf16.gmra.mxu0 %v329
    %v343 = vpop.f32.mrf.mxu0
    %v344 = vadd.f32 0.0, %v343
    %v345 = vpop.f32.mrf.mxu0
    %v346 = vadd.f32 0.0, %v345
    %347 = vmatmul.bf16.gmra.mxu0 %v332
    %v348 = vpop.f32.mrf.mxu0
    %v349 = vadd.f32 0.0, %v348
    %v350 = vpop.f32.mrf.mxu0
    %v351 = vadd.f32 0.0, %v350
    %352 = vdwg.mxu0
    %v353 = vpack.c.bf16 %v346, %v344
    %v354 = vpack.c.bf16 %v351, %v349
    %s355 = scalar_lea.vmem [#allocation2], 3
    %v356 = vld [vmem:[%s355] sm:$0x1]
    %v358 = vsel %vm179, %v353, 0
    %v361 = vsel %vm179, %v354, 0
    %v364 = vsel %vm186, %v356, 0
    %366 = vmatpush.bf16.msra.mxu0 0
    %367 = vmatpush.bf16.msra.mxu0 0
    %368 = vmatpush.bf16.msra.mxu0 0
    %369 = vmatpush.bf16.msra.mxu0 0
    %370 = vmatpush.bf16.msra.mxu0 0
    %371 = vmatpush.bf16.msra.mxu0 0
    %372 = vmatpush.bf16.msra.mxu0 0
    %373 = vmatpush.bf16.msra.mxu0 %v364
    %374 = vmatmul.bf16.gmra.mxu0 %v358
    %v375 = vpop.f32.mrf.mxu0
    %v376 = vadd.f32 0.0, %v375
    %v377 = vpop.f32.mrf.mxu0
    %v378 = vadd.f32 0.0, %v377
    %379 = vmatmul.bf16.gmra.mxu0 %v361
    %v380 = vpop.f32.mrf.mxu0
    %v381 = vadd.f32 0.0, %v380
    %v382 = vpop.f32.mrf.mxu0
    %v383 = vadd.f32 0.0, %v382
    %384 = vdwg.mxu0
    %v385 = vadd.f32 %v309, %v376
    %v386 = vadd.f32 %v310, %v378
    %v387 = vadd.f32 %v311, %v381
    %v388 = vadd.f32 %v312, %v383
    %s389 = scalar_lea.vmem %s2, 64
    %v390 = vld [vmem:[%s389] sm:$0xf]
    %v391 = vld [vmem:[%s389 + $0x4] sm:$0xf]
    %v392 = vld [vmem:[%s389 + $0x8] sm:$0xf]
    %v393 = vld [vmem:[%s389 + $0xc] sm:$0xf]
    %v398 = vunpack.c.l.b16 %v390
    %v399 = vunpack.c.l.b16 %v391
    %v400 = vunpack.c.l.b16 %v392
    %v401 = vunpack.c.l.b16 %v393
    %v402 = vpack.c.b16 %v399, %v398
    %v403 = vpack.c.b16 %v401, %v400
    %v405 = vsel %vm102, %v402, 0
    %v408 = vsel %vm102, %v403, 0
    %410 = vmatpush.bf16.msra.mxu0 0
    %411 = vmatpush.bf16.msra.mxu0 0
    %412 = vmatpush.bf16.msra.mxu0 0
    %413 = vmatpush.bf16.msra.mxu0 0
    %414 = vmatpush.bf16.msra.mxu0 0
    %415 = vmatpush.bf16.msra.mxu0 0
    %416 = vmatpush.bf16.msra.mxu0 0
    %417 = vmatpush.bf16.msra.mxu0 %v111
    %418 = vmatmul.bf16.gmra.mxu0 %v405
    %v419 = vpop.f32.mrf.mxu0
    %v420 = vadd.f32 0.0, %v419
    %v421 = vpop.f32.mrf.mxu0
    %v422 = vadd.f32 0.0, %v421
    %423 = vmatmul.bf16.gmra.mxu0 %v408
    %v424 = vpop.f32.mrf.mxu0
    %v425 = vadd.f32 0.0, %v424
    %v426 = vpop.f32.mrf.mxu0
    %v427 = vadd.f32 0.0, %v426
    %428 = vdwg.mxu0
    %v429 = vpack.c.bf16 %v422, %v420
    %v430 = vpack.c.bf16 %v427, %v425
    %s431 = scalar_lea.vmem [#allocation2], 4
    %v432 = vld [vmem:[%s431] sm:$0x1]
    %v434 = vsel %vm179, %v429, 0
    %v437 = vsel %vm179, %v430, 0
    %v440 = vsel %vm186, %v432, 0
    %442 = vmatpush.bf16.msra.mxu0 0
    %443 = vmatpush.bf16.msra.mxu0 0
    %444 = vmatpush.bf16.msra.mxu0 0
    %445 = vmatpush.bf16.msra.mxu0 0
    %446 = vmatpush.bf16.msra.mxu0 0
    %447 = vmatpush.bf16.msra.mxu0 0
    %448 = vmatpush.bf16.msra.mxu0 0
    %449 = vmatpush.bf16.msra.mxu0 %v440
    %450 = vmatmul.bf16.gmra.mxu0 %v434
    %v451 = vpop.f32.mrf.mxu0
    %v452 = vadd.f32 0.0, %v451
    %v453 = vpop.f32.mrf.mxu0
    %v454 = vadd.f32 0.0, %v453
    %455 = vmatmul.bf16.gmra.mxu0 %v437
    %v456 = vpop.f32.mrf.mxu0
    %v457 = vadd.f32 0.0, %v456
    %v458 = vpop.f32.mrf.mxu0
    %v459 = vadd.f32 0.0, %v458
    %460 = vdwg.mxu0
    %v461 = vadd.f32 %v385, %v452
    %v462 = vadd.f32 %v386, %v454
    %v463 = vadd.f32 %v387, %v457
    %v464 = vadd.f32 %v388, %v459
    %s465 = scalar_lea.vmem %s2, 80
    %v466 = vld [vmem:[%s465] sm:$0xf]
    %v467 = vld [vmem:[%s465 + $0x4] sm:$0xf]
    %v468 = vld [vmem:[%s465 + $0x8] sm:$0xf]
    %v469 = vld [vmem:[%s465 + $0xc] sm:$0xf]
    %v474 = vunpack.c.l.b16 %v466
    %v475 = vunpack.c.l.b16 %v467
    %v476 = vunpack.c.l.b16 %v468
    %v477 = vunpack.c.l.b16 %v469
    %v478 = vpack.c.b16 %v475, %v474
    %v479 = vpack.c.b16 %v477, %v476
    %v481 = vsel %vm102, %v478, 0
    %v484 = vsel %vm102, %v479, 0
    %486 = vmatpush.bf16.msra.mxu0 0
    %487 = vmatpush.bf16.msra.mxu0 0
    %488 = vmatpush.bf16.msra.mxu0 0
    %489 = vmatpush.bf16.msra.mxu0 0
    %490 = vmatpush.bf16.msra.mxu0 0
    %491 = vmatpush.bf16.msra.mxu0 0
    %492 = vmatpush.bf16.msra.mxu0 0
    %493 = vmatpush.bf16.msra.mxu0 %v111
    %494 = vmatmul.bf16.gmra.mxu0 %v481
    %v495 = vpop.f32.mrf.mxu0
    %v496 = vadd.f32 0.0, %v495
    %v497 = vpop.f32.mrf.mxu0
    %v498 = vadd.f32 0.0, %v497
    %499 = vmatmul.bf16.gmra.mxu0 %v484
    %v500 = vpop.f32.mrf.mxu0
    %v501 = vadd.f32 0.0, %v500
    %v502 = vpop.f32.mrf.mxu0
    %v503 = vadd.f32 0.0, %v502
    %504 = vdwg.mxu0
    %v505 = vpack.c.bf16 %v498, %v496
    %v506 = vpack.c.bf16 %v503, %v501
    %s507 = scalar_lea.vmem [#allocation2], 5
    %v508 = vld [vmem:[%s507] sm:$0x1]
    %v510 = vsel %vm179, %v505, 0
    %v513 = vsel %vm179, %v506, 0
    %v516 = vsel %vm186, %v508, 0
    %518 = vmatpush.bf16.msra.mxu0 0
    %519 = vmatpush.bf16.msra.mxu0 0
    %520 = vmatpush.bf16.msra.mxu0 0
    %521 = vmatpush.bf16.msra.mxu0 0
    %522 = vmatpush.bf16.msra.mxu0 0
    %523 = vmatpush.bf16.msra.mxu0 0
    %524 = vmatpush.bf16.msra.mxu0 0
    %525 = vmatpush.bf16.msra.mxu0 %v516
    %526 = vmatmul.bf16.gmra.mxu0 %v510
    %v527 = vpop.f32.mrf.mxu0
    %v528 = vadd.f32 0.0, %v527
    %v529 = vpop.f32.mrf.mxu0
    %v530 = vadd.f32 0.0, %v529
    %531 = vmatmul.bf16.gmra.mxu0 %v513
    %v532 = vpop.f32.mrf.mxu0
    %v533 = vadd.f32 0.0, %v532
    %v534 = vpop.f32.mrf.mxu0
    %v535 = vadd.f32 0.0, %v534
    %536 = vdwg.mxu0
    %v537 = vadd.f32 %v461, %v528
    %v538 = vadd.f32 %v462, %v530
    %v539 = vadd.f32 %v463, %v533
    %v540 = vadd.f32 %v464, %v535
    %s541 = scalar_lea.vmem %s2, 96
    %v542 = vld [vmem:[%s541] sm:$0xf]
    %v543 = vld [vmem:[%s541 + $0x4] sm:$0xf]
    %v544 = vld [vmem:[%s541 + $0x8] sm:$0xf]
    %v545 = vld [vmem:[%s541 + $0xc] sm:$0xf]
    %v550 = vunpack.c.l.b16 %v542
    %v551 = vunpack.c.l.b16 %v543
    %v552 = vunpack.c.l.b16 %v544
    %v553 = vunpack.c.l.b16 %v545
    %v554 = vpack.c.b16 %v551, %v550
    %v555 = vpack.c.b16 %v553, %v552
    %v557 = vsel %vm102, %v554, 0
    %v560 = vsel %vm102, %v555, 0
    %562 = vmatpush.bf16.msra.mxu0 0
    %563 = vmatpush.bf16.msra.mxu0 0
    %564 = vmatpush.bf16.msra.mxu0 0
    %565 = vmatpush.bf16.msra.mxu0 0
    %566 = vmatpush.bf16.msra.mxu0 0
    %567 = vmatpush.bf16.msra.mxu0 0
    %568 = vmatpush.bf16.msra.mxu0 0
    %569 = vmatpush.bf16.msra.mxu0 %v111
    %570 = vmatmul.bf16.gmra.mxu0 %v557
    %v571 = vpop.f32.mrf.mxu0
    %v572 = vadd.f32 0.0, %v571
    %v573 = vpop.f32.mrf.mxu0
    %v574 = vadd.f32 0.0, %v573
    %575 = vmatmul.bf16.gmra.mxu0 %v560
    %v576 = vpop.f32.mrf.mxu0
    %v577 = vadd.f32 0.0, %v576
    %v578 = vpop.f32.mrf.mxu0
    %v579 = vadd.f32 0.0, %v578
    %580 = vdwg.mxu0
    %v581 = vpack.c.bf16 %v574, %v572
    %v582 = vpack.c.bf16 %v579, %v577
    %s583 = scalar_lea.vmem [#allocation2], 6
    %v584 = vld [vmem:[%s583] sm:$0x1]
    %v586 = vsel %vm179, %v581, 0
    %v589 = vsel %vm179, %v582, 0
    %v592 = vsel %vm186, %v584, 0
    %594 = vmatpush.bf16.msra.mxu0 0
    %595 = vmatpush.bf16.msra.mxu0 0
    %596 = vmatpush.bf16.msra.mxu0 0
    %597 = vmatpush.bf16.msra.mxu0 0
    %598 = vmatpush.bf16.msra.mxu0 0
    %599 = vmatpush.bf16.msra.mxu0 0
    %600 = vmatpush.bf16.msra.mxu0 0
    %601 = vmatpush.bf16.msra.mxu0 %v592
    %602 = vmatmul.bf16.gmra.mxu0 %v586
    %v603 = vpop.f32.mrf.mxu0
    %v604 = vadd.f32 0.0, %v603
    %v605 = vpop.f32.mrf.mxu0
    %v606 = vadd.f32 0.0, %v605
    %607 = vmatmul.bf16.gmra.mxu0 %v589
    %v608 = vpop.f32.mrf.mxu0
    %v609 = vadd.f32 0.0, %v608
    %v610 = vpop.f32.mrf.mxu0
    %v611 = vadd.f32 0.0, %v610
    %612 = vdwg.mxu0
    %v613 = vadd.f32 %v537, %v604
    %v614 = vadd.f32 %v538, %v606
    %v615 = vadd.f32 %v539, %v609
    %v616 = vadd.f32 %v540, %v611
    %s617 = scalar_lea.vmem %s2, 112
    %v618 = vld [vmem:[%s617] sm:$0xf]
    %v619 = vld [vmem:[%s617 + $0x4] sm:$0xf]
    %v620 = vld [vmem:[%s617 + $0x8] sm:$0xf]
    %v621 = vld [vmem:[%s617 + $0xc] sm:$0xf]
    %v626 = vunpack.c.l.b16 %v618
    %v627 = vunpack.c.l.b16 %v619
    %v628 = vunpack.c.l.b16 %v620
    %v629 = vunpack.c.l.b16 %v621
    %v630 = vpack.c.b16 %v627, %v626
    %v631 = vpack.c.b16 %v629, %v628
    %v633 = vsel %vm102, %v630, 0
    %v636 = vsel %vm102, %v631, 0
    %638 = vmatpush.bf16.msra.mxu0 0
    %639 = vmatpush.bf16.msra.mxu0 0
    %640 = vmatpush.bf16.msra.mxu0 0
    %641 = vmatpush.bf16.msra.mxu0 0
    %642 = vmatpush.bf16.msra.mxu0 0
    %643 = vmatpush.bf16.msra.mxu0 0
    %644 = vmatpush.bf16.msra.mxu0 0
    %645 = vmatpush.bf16.msra.mxu0 %v111
    %646 = vmatmul.bf16.gmra.mxu0 %v633
    %v647 = vpop.f32.mrf.mxu0
    %v648 = vadd.f32 0.0, %v647
    %v649 = vpop.f32.mrf.mxu0
    %v650 = vadd.f32 0.0, %v649
    %651 = vmatmul.bf16.gmra.mxu0 %v636
    %v652 = vpop.f32.mrf.mxu0
    %v653 = vadd.f32 0.0, %v652
    %v654 = vpop.f32.mrf.mxu0
    %v655 = vadd.f32 0.0, %v654
    %656 = vdwg.mxu0
    %v657 = vpack.c.bf16 %v650, %v648
    %v658 = vpack.c.bf16 %v655, %v653
    %s659 = scalar_lea.vmem [#allocation2], 7
    %v660 = vld [vmem:[%s659] sm:$0x1]
    %v662 = vsel %vm179, %v657, 0
    %v665 = vsel %vm179, %v658, 0
    %v668 = vsel %vm186, %v660, 0
    %670 = vmatpush.bf16.msra.mxu0 0
    %671 = vmatpush.bf16.msra.mxu0 0
    %672 = vmatpush.bf16.msra.mxu0 0
    %673 = vmatpush.bf16.msra.mxu0 0
    %674 = vmatpush.bf16.msra.mxu0 0
    %675 = vmatpush.bf16.msra.mxu0 0
    %676 = vmatpush.bf16.msra.mxu0 0
    %677 = vmatpush.bf16.msra.mxu0 %v668
    %678 = vmatmul.bf16.gmra.mxu0 %v662
    %v679 = vpop.f32.mrf.mxu0
    %v680 = vadd.f32 0.0, %v679
    %v681 = vpop.f32.mrf.mxu0
    %v682 = vadd.f32 0.0, %v681
    %683 = vmatmul.bf16.gmra.mxu0 %v665
    %v684 = vpop.f32.mrf.mxu0
    %v685 = vadd.f32 0.0, %v684
    %v686 = vpop.f32.mrf.mxu0
    %v687 = vadd.f32 0.0, %v686
    %688 = vdwg.mxu0
    %v689 = vadd.f32 %v613, %v680
    %v690 = vadd.f32 %v614, %v682
    %v691 = vadd.f32 %v615, %v685
    %v692 = vadd.f32 %v616, %v687
    %s693 = scalar_lea.vmem %s2, 128
    %v694 = vld [vmem:[%s693] sm:$0xf]
    %v695 = vld [vmem:[%s693 + $0x4] sm:$0xf]
    %v696 = vld [vmem:[%s693 + $0x8] sm:$0xf]
    %v697 = vld [vmem:[%s693 + $0xc] sm:$0xf]
    %v702 = vunpack.c.l.b16 %v694
    %v703 = vunpack.c.l.b16 %v695
    %v704 = vunpack.c.l.b16 %v696
    %v705 = vunpack.c.l.b16 %v697
    %v706 = vpack.c.b16 %v703, %v702
    %v707 = vpack.c.b16 %v705, %v704
    %v709 = vsel %vm102, %v706, 0
    %v712 = vsel %vm102, %v707, 0
    %714 = vmatpush.bf16.msra.mxu0 0
    %715 = vmatpush.bf16.msra.mxu0 0
    %716 = vmatpush.bf16.msra.mxu0 0
    %717 = vmatpush.bf16.msra.mxu0 0
    %718 = vmatpush.bf16.msra.mxu0 0
    %719 = vmatpush.bf16.msra.mxu0 0
    %720 = vmatpush.bf16.msra.mxu0 0
    %721 = vmatpush.bf16.msra.mxu0 %v111
    %722 = vmatmul.bf16.gmra.mxu0 %v709
    %v723 = vpop.f32.mrf.mxu0
    %v724 = vadd.f32 0.0, %v723
    %v725 = vpop.f32.mrf.mxu0
    %v726 = vadd.f32 0.0, %v725
    %727 = vmatmul.bf16.gmra.mxu0 %v712
    %v728 = vpop.f32.mrf.mxu0
    %v729 = vadd.f32 0.0, %v728
    %v730 = vpop.f32.mrf.mxu0
    %v731 = vadd.f32 0.0, %v730
    %732 = vdwg.mxu0
    %v733 = vpack.c.bf16 %v726, %v724
    %v734 = vpack.c.bf16 %v731, %v729
    %s735 = scalar_lea.vmem [#allocation2], 8
    %v736 = vld [vmem:[%s735] sm:$0x1]
    %v738 = vsel %vm179, %v733, 0
    %v741 = vsel %vm179, %v734, 0
    %v744 = vsel %vm186, %v736, 0
    %746 = vmatpush.bf16.msra.mxu0 0
    %747 = vmatpush.bf16.msra.mxu0 0
    %748 = vmatpush.bf16.msra.mxu0 0
    %749 = vmatpush.bf16.msra.mxu0 0
    %750 = vmatpush.bf16.msra.mxu0 0
    %751 = vmatpush.bf16.msra.mxu0 0
    %752 = vmatpush.bf16.msra.mxu0 0
    %753 = vmatpush.bf16.msra.mxu0 %v744
    %754 = vmatmul.bf16.gmra.mxu0 %v738
    %v755 = vpop.f32.mrf.mxu0
    %v756 = vadd.f32 0.0, %v755
    %v757 = vpop.f32.mrf.mxu0
    %v758 = vadd.f32 0.0, %v757
    %759 = vmatmul.bf16.gmra.mxu0 %v741
    %v760 = vpop.f32.mrf.mxu0
    %v761 = vadd.f32 0.0, %v760
    %v762 = vpop.f32.mrf.mxu0
    %v763 = vadd.f32 0.0, %v762
    %764 = vdwg.mxu0
    %v765 = vadd.f32 %v689, %v756
    %v766 = vadd.f32 %v690, %v758
    %v767 = vadd.f32 %v691, %v761
    %v768 = vadd.f32 %v692, %v763
    %s769 = scalar_lea.vmem %s2, 144
    %v770 = vld [vmem:[%s769] sm:$0xf]
    %v771 = vld [vmem:[%s769 + $0x4] sm:$0xf]
    %v772 = vld [vmem:[%s769 + $0x8] sm:$0xf]
    %v773 = vld [vmem:[%s769 + $0xc] sm:$0xf]
    %v778 = vunpack.c.l.b16 %v770
    %v779 = vunpack.c.l.b16 %v771
    %v780 = vunpack.c.l.b16 %v772
    %v781 = vunpack.c.l.b16 %v773
    %v782 = vpack.c.b16 %v779, %v778
    %v783 = vpack.c.b16 %v781, %v780
    %v785 = vsel %vm102, %v782, 0
    %v788 = vsel %vm102, %v783, 0
    %790 = vmatpush.bf16.msra.mxu0 0
    %791 = vmatpush.bf16.msra.mxu0 0
    %792 = vmatpush.bf16.msra.mxu0 0
    %793 = vmatpush.bf16.msra.mxu0 0
    %794 = vmatpush.bf16.msra.mxu0 0
    %795 = vmatpush.bf16.msra.mxu0 0
    %796 = vmatpush.bf16.msra.mxu0 0
    %797 = vmatpush.bf16.msra.mxu0 %v111
    %798 = vmatmul.bf16.gmra.mxu0 %v785
    %v799 = vpop.f32.mrf.mxu0
    %v800 = vadd.f32 0.0, %v799
    %v801 = vpop.f32.mrf.mxu0
    %v802 = vadd.f32 0.0, %v801
    %803 = vmatmul.bf16.gmra.mxu0 %v788
    %v804 = vpop.f32.mrf.mxu0
    %v805 = vadd.f32 0.0, %v804
    %v806 = vpop.f32.mrf.mxu0
    %v807 = vadd.f32 0.0, %v806
    %808 = vdwg.mxu0
    %v809 = vpack.c.bf16 %v802, %v800
    %v810 = vpack.c.bf16 %v807, %v805
    %s811 = scalar_lea.vmem [#allocation2], 9
    %v812 = vld [vmem:[%s811] sm:$0x1]
    %v814 = vsel %vm179, %v809, 0
    %v817 = vsel %vm179, %v810, 0
    %v820 = vsel %vm186, %v812, 0
    %822 = vmatpush.bf16.msra.mxu0 0
    %823 = vmatpush.bf16.msra.mxu0 0
    %824 = vmatpush.bf16.msra.mxu0 0
    %825 = vmatpush.bf16.msra.mxu0 0
    %826 = vmatpush.bf16.msra.mxu0 0
    %827 = vmatpush.bf16.msra.mxu0 0
    %828 = vmatpush.bf16.msra.mxu0 0
    %829 = vmatpush.bf16.msra.mxu0 %v820
    %830 = vmatmul.bf16.gmra.mxu0 %v814
    %v831 = vpop.f32.mrf.mxu0
    %v832 = vadd.f32 0.0, %v831
    %v833 = vpop.f32.mrf.mxu0
    %v834 = vadd.f32 0.0, %v833
    %835 = vmatmul.bf16.gmra.mxu0 %v817
    %v836 = vpop.f32.mrf.mxu0
    %v837 = vadd.f32 0.0, %v836
    %v838 = vpop.f32.mrf.mxu0
    %v839 = vadd.f32 0.0, %v838
    %840 = vdwg.mxu0
    %v841 = vadd.f32 %v765, %v832
    %v842 = vadd.f32 %v766, %v834
    %v843 = vadd.f32 %v767, %v837
    %v844 = vadd.f32 %v768, %v839
    %s845 = scalar_lea.vmem %s2, 160
    %v846 = vld [vmem:[%s845] sm:$0xf]
    %v847 = vld [vmem:[%s845 + $0x4] sm:$0xf]
    %v848 = vld [vmem:[%s845 + $0x8] sm:$0xf]
    %v849 = vld [vmem:[%s845 + $0xc] sm:$0xf]
    %v854 = vunpack.c.l.b16 %v846
    %v855 = vunpack.c.l.b16 %v847
    %v856 = vunpack.c.l.b16 %v848
    %v857 = vunpack.c.l.b16 %v849
    %v858 = vpack.c.b16 %v855, %v854
    %v859 = vpack.c.b16 %v857, %v856
    %v861 = vsel %vm102, %v858, 0
    %v864 = vsel %vm102, %v859, 0
    %866 = vmatpush.bf16.msra.mxu0 0
    %867 = vmatpush.bf16.msra.mxu0 0
    %868 = vmatpush.bf16.msra.mxu0 0
    %869 = vmatpush.bf16.msra.mxu0 0
    %870 = vmatpush.bf16.msra.mxu0 0
    %871 = vmatpush.bf16.msra.mxu0 0
    %872 = vmatpush.bf16.msra.mxu0 0
    %873 = vmatpush.bf16.msra.mxu0 %v111
    %874 = vmatmul.bf16.gmra.mxu0 %v861
    %v875 = vpop.f32.mrf.mxu0
    %v876 = vadd.f32 0.0, %v875
    %v877 = vpop.f32.mrf.mxu0
    %v878 = vadd.f32 0.0, %v877
    %879 = vmatmul.bf16.gmra.mxu0 %v864
    %v880 = vpop.f32.mrf.mxu0
    %v881 = vadd.f32 0.0, %v880
    %v882 = vpop.f32.mrf.mxu0
    %v883 = vadd.f32 0.0, %v882
    %884 = vdwg.mxu0
    %v885 = vpack.c.bf16 %v878, %v876
    %v886 = vpack.c.bf16 %v883, %v881
    %s887 = scalar_lea.vmem [#allocation2], 10
    %v888 = vld [vmem:[%s887] sm:$0x1]
    %v890 = vsel %vm179, %v885, 0
    %v893 = vsel %vm179, %v886, 0
    %v896 = vsel %vm186, %v888, 0
    %898 = vmatpush.bf16.msra.mxu0 0
    %899 = vmatpush.bf16.msra.mxu0 0
    %900 = vmatpush.bf16.msra.mxu0 0
    %901 = vmatpush.bf16.msra.mxu0 0
    %902 = vmatpush.bf16.msra.mxu0 0
    %903 = vmatpush.bf16.msra.mxu0 0
    %904 = vmatpush.bf16.msra.mxu0 0
    %905 = vmatpush.bf16.msra.mxu0 %v896
    %906 = vmatmul.bf16.gmra.mxu0 %v890
    %v907 = vpop.f32.mrf.mxu0
    %v908 = vadd.f32 0.0, %v907
    %v909 = vpop.f32.mrf.mxu0
    %v910 = vadd.f32 0.0, %v909
    %911 = vmatmul.bf16.gmra.mxu0 %v893
    %v912 = vpop.f32.mrf.mxu0
    %v913 = vadd.f32 0.0, %v912
    %v914 = vpop.f32.mrf.mxu0
    %v915 = vadd.f32 0.0, %v914
    %916 = vdwg.mxu0
    %v917 = vadd.f32 %v841, %v908
    %v918 = vadd.f32 %v842, %v910
    %v919 = vadd.f32 %v843, %v913
    %v920 = vadd.f32 %v844, %v915
    %s921 = scalar_lea.vmem %s2, 176
    %v922 = vld [vmem:[%s921] sm:$0xf]
    %v923 = vld [vmem:[%s921 + $0x4] sm:$0xf]
    %v924 = vld [vmem:[%s921 + $0x8] sm:$0xf]
    %v925 = vld [vmem:[%s921 + $0xc] sm:$0xf]
    %v930 = vunpack.c.l.b16 %v922
    %v931 = vunpack.c.l.b16 %v923
    %v932 = vunpack.c.l.b16 %v924
    %v933 = vunpack.c.l.b16 %v925
    %v934 = vpack.c.b16 %v931, %v930
    %v935 = vpack.c.b16 %v933, %v932
    %v937 = vsel %vm102, %v934, 0
    %v940 = vsel %vm102, %v935, 0
    %942 = vmatpush.bf16.msra.mxu0 0
    %943 = vmatpush.bf16.msra.mxu0 0
    %944 = vmatpush.bf16.msra.mxu0 0
    %945 = vmatpush.bf16.msra.mxu0 0
    %946 = vmatpush.bf16.msra.mxu0 0
    %947 = vmatpush.bf16.msra.mxu0 0
    %948 = vmatpush.bf16.msra.mxu0 0
    %949 = vmatpush.bf16.msra.mxu0 %v111
    %950 = vmatmul.bf16.gmra.mxu0 %v937
    %v951 = vpop.f32.mrf.mxu0
    %v952 = vadd.f32 0.0, %v951
    %v953 = vpop.f32.mrf.mxu0
    %v954 = vadd.f32 0.0, %v953
    %955 = vmatmul.bf16.gmra.mxu0 %v940
    %v956 = vpop.f32.mrf.mxu0
    %v957 = vadd.f32 0.0, %v956
    %v958 = vpop.f32.mrf.mxu0
    %v959 = vadd.f32 0.0, %v958
    %960 = vdwg.mxu0
    %v961 = vpack.c.bf16 %v954, %v952
    %v962 = vpack.c.bf16 %v959, %v957
    %s963 = scalar_lea.vmem [#allocation2], 11
    %v964 = vld [vmem:[%s963] sm:$0x1]
    %v966 = vsel %vm179, %v961, 0
    %v969 = vsel %vm179, %v962, 0
    %v972 = vsel %vm186, %v964, 0
    %974 = vmatpush.bf16.msra.mxu0 0
    %975 = vmatpush.bf16.msra.mxu0 0
    %976 = vmatpush.bf16.msra.mxu0 0
    %977 = vmatpush.bf16.msra.mxu0 0
    %978 = vmatpush.bf16.msra.mxu0 0
    %979 = vmatpush.bf16.msra.mxu0 0
    %980 = vmatpush.bf16.msra.mxu0 0
    %981 = vmatpush.bf16.msra.mxu0 %v972
    %982 = vmatmul.bf16.gmra.mxu0 %v966
    %v983 = vpop.f32.mrf.mxu0
    %v984 = vadd.f32 0.0, %v983
    %v985 = vpop.f32.mrf.mxu0
    %v986 = vadd.f32 0.0, %v985
    %987 = vmatmul.bf16.gmra.mxu0 %v969
    %v988 = vpop.f32.mrf.mxu0
    %v989 = vadd.f32 0.0, %v988
    %v990 = vpop.f32.mrf.mxu0
    %v991 = vadd.f32 0.0, %v990
    %992 = vdwg.mxu0
    %v993 = vadd.f32 %v917, %v984
    %v994 = vadd.f32 %v918, %v986
    %v995 = vadd.f32 %v919, %v989
    %v996 = vadd.f32 %v920, %v991
    %s997 = scalar_lea.vmem %s2, 192
    %v998 = vld [vmem:[%s997] sm:$0xf]
    %v999 = vld [vmem:[%s997 + $0x4] sm:$0xf]
    %v1000 = vld [vmem:[%s997 + $0x8] sm:$0xf]
    %v1001 = vld [vmem:[%s997 + $0xc] sm:$0xf]
    %v1006 = vunpack.c.l.b16 %v998
    %v1007 = vunpack.c.l.b16 %v999
    %v1008 = vunpack.c.l.b16 %v1000
    %v1009 = vunpack.c.l.b16 %v1001
    %v1010 = vpack.c.b16 %v1007, %v1006
    %v1011 = vpack.c.b16 %v1009, %v1008
    %v1013 = vsel %vm102, %v1010, 0
    %v1016 = vsel %vm102, %v1011, 0
    %1018 = vmatpush.bf16.msra.mxu0 0
    %1019 = vmatpush.bf16.msra.mxu0 0
    %1020 = vmatpush.bf16.msra.mxu0 0
    %1021 = vmatpush.bf16.msra.mxu0 0
    %1022 = vmatpush.bf16.msra.mxu0 0
    %1023 = vmatpush.bf16.msra.mxu0 0
    %1024 = vmatpush.bf16.msra.mxu0 0
    %1025 = vmatpush.bf16.msra.mxu0 %v111
    %1026 = vmatmul.bf16.gmra.mxu0 %v1013
    %v1027 = vpop.f32.mrf.mxu0
    %v1028 = vadd.f32 0.0, %v1027
    %v1029 = vpop.f32.mrf.mxu0
    %v1030 = vadd.f32 0.0, %v1029
    %1031 = vmatmul.bf16.gmra.mxu0 %v1016
    %v1032 = vpop.f32.mrf.mxu0
    %v1033 = vadd.f32 0.0, %v1032
    %v1034 = vpop.f32.mrf.mxu0
    %v1035 = vadd.f32 0.0, %v1034
    %1036 = vdwg.mxu0
    %v1037 = vpack.c.bf16 %v1030, %v1028
    %v1038 = vpack.c.bf16 %v1035, %v1033
    %s1039 = scalar_lea.vmem [#allocation2], 12
    %v1040 = vld [vmem:[%s1039] sm:$0x1]
    %v1042 = vsel %vm179, %v1037, 0
    %v1045 = vsel %vm179, %v1038, 0
    %v1048 = vsel %vm186, %v1040, 0
    %1050 = vmatpush.bf16.msra.mxu0 0
    %1051 = vmatpush.bf16.msra.mxu0 0
    %1052 = vmatpush.bf16.msra.mxu0 0
    %1053 = vmatpush.bf16.msra.mxu0 0
    %1054 = vmatpush.bf16.msra.mxu0 0
    %1055 = vmatpush.bf16.msra.mxu0 0
    %1056 = vmatpush.bf16.msra.mxu0 0
    %1057 = vmatpush.bf16.msra.mxu0 %v1048
    %1058 = vmatmul.bf16.gmra.mxu0 %v1042
    %v1059 = vpop.f32.mrf.mxu0
    %v1060 = vadd.f32 0.0, %v1059
    %v1061 = vpop.f32.mrf.mxu0
    %v1062 = vadd.f32 0.0, %v1061
    %1063 = vmatmul.bf16.gmra.mxu0 %v1045
    %v1064 = vpop.f32.mrf.mxu0
    %v1065 = vadd.f32 0.0, %v1064
    %v1066 = vpop.f32.mrf.mxu0
    %v1067 = vadd.f32 0.0, %v1066
    %1068 = vdwg.mxu0
    %v1069 = vadd.f32 %v993, %v1060
    %v1070 = vadd.f32 %v994, %v1062
    %v1071 = vadd.f32 %v995, %v1065
    %v1072 = vadd.f32 %v996, %v1067
    %s1073 = scalar_lea.vmem %s2, 208
    %v1074 = vld [vmem:[%s1073] sm:$0xf]
    %v1075 = vld [vmem:[%s1073 + $0x4] sm:$0xf]
    %v1076 = vld [vmem:[%s1073 + $0x8] sm:$0xf]
    %v1077 = vld [vmem:[%s1073 + $0xc] sm:$0xf]
    %v1082 = vunpack.c.l.b16 %v1074
    %v1083 = vunpack.c.l.b16 %v1075
    %v1084 = vunpack.c.l.b16 %v1076
    %v1085 = vunpack.c.l.b16 %v1077
    %v1086 = vpack.c.b16 %v1083, %v1082
    %v1087 = vpack.c.b16 %v1085, %v1084
    %v1089 = vsel %vm102, %v1086, 0
    %v1092 = vsel %vm102, %v1087, 0
    %1094 = vmatpush.bf16.msra.mxu0 0
    %1095 = vmatpush.bf16.msra.mxu0 0
    %1096 = vmatpush.bf16.msra.mxu0 0
    %1097 = vmatpush.bf16.msra.mxu0 0
    %1098 = vmatpush.bf16.msra.mxu0 0
    %1099 = vmatpush.bf16.msra.mxu0 0
    %1100 = vmatpush.bf16.msra.mxu0 0
    %1101 = vmatpush.bf16.msra.mxu0 %v111
    %1102 = vmatmul.bf16.gmra.mxu0 %v1089
    %v1103 = vpop.f32.mrf.mxu0
    %v1104 = vadd.f32 0.0, %v1103
    %v1105 = vpop.f32.mrf.mxu0
    %v1106 = vadd.f32 0.0, %v1105
    %1107 = vmatmul.bf16.gmra.mxu0 %v1092
    %v1108 = vpop.f32.mrf.mxu0
    %v1109 = vadd.f32 0.0, %v1108
    %v1110 = vpop.f32.mrf.mxu0
    %v1111 = vadd.f32 0.0, %v1110
    %1112 = vdwg.mxu0
    %v1113 = vpack.c.bf16 %v1106, %v1104
    %v1114 = vpack.c.bf16 %v1111, %v1109
    %s1115 = scalar_lea.vmem [#allocation2], 13
    %v1116 = vld [vmem:[%s1115] sm:$0x1]
    %v1118 = vsel %vm179, %v1113, 0
    %v1121 = vsel %vm179, %v1114, 0
    %v1124 = vsel %vm186, %v1116, 0
    %1126 = vmatpush.bf16.msra.mxu0 0
    %1127 = vmatpush.bf16.msra.mxu0 0
    %1128 = vmatpush.bf16.msra.mxu0 0
    %1129 = vmatpush.bf16.msra.mxu0 0
    %1130 = vmatpush.bf16.msra.mxu0 0
    %1131 = vmatpush.bf16.msra.mxu0 0
    %1132 = vmatpush.bf16.msra.mxu0 0
    %1133 = vmatpush.bf16.msra.mxu0 %v1124
    %1134 = vmatmul.bf16.gmra.mxu0 %v1118
    %v1135 = vpop.f32.mrf.mxu0
    %v1136 = vadd.f32 0.0, %v1135
    %v1137 = vpop.f32.mrf.mxu0
    %v1138 = vadd.f32 0.0, %v1137
    %1139 = vmatmul.bf16.gmra.mxu0 %v1121
    %v1140 = vpop.f32.mrf.mxu0
    %v1141 = vadd.f32 0.0, %v1140
    %v1142 = vpop.f32.mrf.mxu0
    %v1143 = vadd.f32 0.0, %v1142
    %1144 = vdwg.mxu0
    %v1145 = vadd.f32 %v1069, %v1136
    %v1146 = vadd.f32 %v1070, %v1138
    %v1147 = vadd.f32 %v1071, %v1141
    %v1148 = vadd.f32 %v1072, %v1143
    %s1149 = scalar_lea.vmem %s2, 224
    %v1150 = vld [vmem:[%s1149] sm:$0xf]
    %v1151 = vld [vmem:[%s1149 + $0x4] sm:$0xf]
    %v1152 = vld [vmem:[%s1149 + $0x8] sm:$0xf]
    %v1153 = vld [vmem:[%s1149 + $0xc] sm:$0xf]
    %v1158 = vunpack.c.l.b16 %v1150
    %v1159 = vunpack.c.l.b16 %v1151
    %v1160 = vunpack.c.l.b16 %v1152
    %v1161 = vunpack.c.l.b16 %v1153
    %v1162 = vpack.c.b16 %v1159, %v1158
    %v1163 = vpack.c.b16 %v1161, %v1160
    %v1165 = vsel %vm102, %v1162, 0
    %v1168 = vsel %vm102, %v1163, 0
    %1170 = vmatpush.bf16.msra.mxu0 0
    %1171 = vmatpush.bf16.msra.mxu0 0
    %1172 = vmatpush.bf16.msra.mxu0 0
    %1173 = vmatpush.bf16.msra.mxu0 0
    %1174 = vmatpush.bf16.msra.mxu0 0
    %1175 = vmatpush.bf16.msra.mxu0 0
    %1176 = vmatpush.bf16.msra.mxu0 0
    %1177 = vmatpush.bf16.msra.mxu0 %v111
    %1178 = vmatmul.bf16.gmra.mxu0 %v1165
    %v1179 = vpop.f32.mrf.mxu0
    %v1180 = vadd.f32 0.0, %v1179
    %v1181 = vpop.f32.mrf.mxu0
    %v1182 = vadd.f32 0.0, %v1181
    %1183 = vmatmul.bf16.gmra.mxu0 %v1168
    %v1184 = vpop.f32.mrf.mxu0
    %v1185 = vadd.f32 0.0, %v1184
    %v1186 = vpop.f32.mrf.mxu0
    %v1187 = vadd.f32 0.0, %v1186
    %1188 = vdwg.mxu0
    %v1189 = vpack.c.bf16 %v1182, %v1180
    %v1190 = vpack.c.bf16 %v1187, %v1185
    %s1191 = scalar_lea.vmem [#allocation2], 14
    %v1192 = vld [vmem:[%s1191] sm:$0x1]
    %v1194 = vsel %vm179, %v1189, 0
    %v1197 = vsel %vm179, %v1190, 0
    %v1200 = vsel %vm186, %v1192, 0
    %1202 = vmatpush.bf16.msra.mxu0 0
    %1203 = vmatpush.bf16.msra.mxu0 0
    %1204 = vmatpush.bf16.msra.mxu0 0
    %1205 = vmatpush.bf16.msra.mxu0 0
    %1206 = vmatpush.bf16.msra.mxu0 0
    %1207 = vmatpush.bf16.msra.mxu0 0
    %1208 = vmatpush.bf16.msra.mxu0 0
    %1209 = vmatpush.bf16.msra.mxu0 %v1200
    %1210 = vmatmul.bf16.gmra.mxu0 %v1194
    %v1211 = vpop.f32.mrf.mxu0
    %v1212 = vadd.f32 0.0, %v1211
    %v1213 = vpop.f32.mrf.mxu0
    %v1214 = vadd.f32 0.0, %v1213
    %1215 = vmatmul.bf16.gmra.mxu0 %v1197
    %v1216 = vpop.f32.mrf.mxu0
    %v1217 = vadd.f32 0.0, %v1216
    %v1218 = vpop.f32.mrf.mxu0
    %v1219 = vadd.f32 0.0, %v1218
    %1220 = vdwg.mxu0
    %v1221 = vadd.f32 %v1145, %v1212
    %v1222 = vadd.f32 %v1146, %v1214
    %v1223 = vadd.f32 %v1147, %v1217
    %v1224 = vadd.f32 %v1148, %v1219
    %s1225 = scalar_lea.vmem %s2, 240
    %v1226 = vld [vmem:[%s1225] sm:$0xf]
    %v1227 = vld [vmem:[%s1225 + $0x4] sm:$0xf]
    %v1228 = vld [vmem:[%s1225 + $0x8] sm:$0xf]
    %v1229 = vld [vmem:[%s1225 + $0xc] sm:$0xf]
    %v1234 = vunpack.c.l.b16 %v1226
    %v1235 = vunpack.c.l.b16 %v1227
    %v1236 = vunpack.c.l.b16 %v1228
    %v1237 = vunpack.c.l.b16 %v1229
    %v1238 = vpack.c.b16 %v1235, %v1234
    %v1239 = vpack.c.b16 %v1237, %v1236
    %v1241 = vsel %vm102, %v1238, 0
    %v1244 = vsel %vm102, %v1239, 0
    %1246 = vmatpush.bf16.msra.mxu0 0
    %1247 = vmatpush.bf16.msra.mxu0 0
    %1248 = vmatpush.bf16.msra.mxu0 0
    %1249 = vmatpush.bf16.msra.mxu0 0
    %1250 = vmatpush.bf16.msra.mxu0 0
    %1251 = vmatpush.bf16.msra.mxu0 0
    %1252 = vmatpush.bf16.msra.mxu0 0
    %1253 = vmatpush.bf16.msra.mxu0 %v111
    %1254 = vmatmul.bf16.gmra.mxu0 %v1241
    %v1255 = vpop.f32.mrf.mxu0
    %v1256 = vadd.f32 0.0, %v1255
    %v1257 = vpop.f32.mrf.mxu0
    %v1258 = vadd.f32 0.0, %v1257
    %1259 = vmatmul.bf16.gmra.mxu0 %v1244
    %v1260 = vpop.f32.mrf.mxu0
    %v1261 = vadd.f32 0.0, %v1260
    %v1262 = vpop.f32.mrf.mxu0
    %v1263 = vadd.f32 0.0, %v1262
    %1264 = vdwg.mxu0
    %v1265 = vpack.c.bf16 %v1258, %v1256
    %v1266 = vpack.c.bf16 %v1263, %v1261
    %s1267 = scalar_lea.vmem [#allocation2], 15
    %v1268 = vld [vmem:[%s1267] sm:$0x1]
    %v1270 = vsel %vm179, %v1265, 0
    %v1273 = vsel %vm179, %v1266, 0
    %v1276 = vsel %vm186, %v1268, 0
    %1278 = vmatpush.bf16.msra.mxu0 0
    %1279 = vmatpush.bf16.msra.mxu0 0
    %1280 = vmatpush.bf16.msra.mxu0 0
    %1281 = vmatpush.bf16.msra.mxu0 0
    %1282 = vmatpush.bf16.msra.mxu0 0
    %1283 = vmatpush.bf16.msra.mxu0 0
    %1284 = vmatpush.bf16.msra.mxu0 0
    %1285 = vmatpush.bf16.msra.mxu0 %v1276
    %1286 = vmatmul.bf16.gmra.mxu0 %v1270
    %v1287 = vpop.f32.mrf.mxu0
    %v1288 = vadd.f32 0.0, %v1287
    %v1289 = vpop.f32.mrf.mxu0
    %v1290 = vadd.f32 0.0, %v1289
    %1291 = vmatmul.bf16.gmra.mxu0 %v1273
    %v1292 = vpop.f32.mrf.mxu0
    %v1293 = vadd.f32 0.0, %v1292
    %v1294 = vpop.f32.mrf.mxu0
    %v1295 = vadd.f32 0.0, %v1294
    %1296 = vdwg.mxu0
    %v1297 = vadd.f32 %v1221, %v1288
    %v1298 = vadd.f32 %v1222, %v1290
    %v1299 = vadd.f32 %v1223, %v1293
    %v1300 = vadd.f32 %v1224, %v1295
    %vm1301 = vcmask 261120
    %v1302 = vsel %vm1301, %v1297, 0.0
    %1303 = vadd.xlane.f32.xlu0 %v1302
    %v1304 = vpop.xlane.xlu0 %1303
    %v1305 = vsel %vm1301, %v1298, 0.0
    %1306 = vadd.xlane.f32.xlu0 %v1305
    %v1307 = vpop.xlane.xlu0 %1306
    %v1308 = vsel %vm1301, %v1299, 0.0
    %1309 = vadd.xlane.f32.xlu0 %v1308
    %v1310 = vpop.xlane.xlu0 %1309
    %v1311 = vsel %vm1301, %v1300, 0.0
    %1312 = vadd.xlane.f32.xlu0 %v1311
    %v1313 = vpop.xlane.xlu0 %1312
    %v1314 = vmul.f32 %v1304, 0.03125
    %v1315 = vmul.f32 %v1307, 0.03125
    %v1316 = vmul.f32 %v1310, 0.03125
    %v1317 = vmul.f32 %v1313, 0.03125
    %v1318 = vmul.f32 %v1297, %v1297
    %v1319 = vmul.f32 %v1298, %v1298
    %v1320 = vmul.f32 %v1299, %v1299
    %v1321 = vmul.f32 %v1300, %v1300
    %v1322 = vsel %vm1301, %v1318, 0.0
    %1323 = vadd.xlane.f32.xlu0 %v1322
    %v1324 = vpop.xlane.xlu0 %1323
    %v1325 = vsel %vm1301, %v1319, 0.0
    %1326 = vadd.xlane.f32.xlu0 %v1325
    %v1327 = vpop.xlane.xlu0 %1326
    %v1328 = vsel %vm1301, %v1320, 0.0
    %1329 = vadd.xlane.f32.xlu0 %v1328
    %v1330 = vpop.xlane.xlu0 %1329
    %v1331 = vsel %vm1301, %v1321, 0.0
    %1332 = vadd.xlane.f32.xlu0 %v1331
    %v1333 = vpop.xlane.xlu0 %1332
    %v1334 = vmul.f32 %v1324, 0.03125
    %v1335 = vmul.f32 %v1327, 0.03125
    %v1336 = vmul.f32 %v1330, 0.03125
    %v1337 = vmul.f32 %v1333, 0.03125
    %v1338 = vmul.f32 %v1314, %v1314
    %v1339 = vmul.f32 %v1315, %v1315
    %v1340 = vmul.f32 %v1316, %v1316
    %v1341 = vmul.f32 %v1317, %v1317
    %v1342 = vsub.f32 %v1334, %v1338
    %v1343 = vsub.f32 %v1335, %v1339
    %v1344 = vsub.f32 %v1336, %v1340
    %v1345 = vsub.f32 %v1337, %v1341
    %v1346 = vmax.f32 %v1342, 0.0
    %v1347 = vmax.f32 %v1343, 0.0
    %v1348 = vmax.f32 %v1344, 0.0
    %v1349 = vmax.f32 %v1345, 0.0
    %v1350 = vsub.f32 %v1297, %v1314
    %v1351 = vsub.f32 %v1298, %v1315
    %v1352 = vsub.f32 %v1299, %v1316
    %v1353 = vsub.f32 %v1300, %v1317
    %v1354 = vadd.f32 %v1346, 1e-05
    %v1355 = vadd.f32 %v1347, 1e-05
    %v1356 = vadd.f32 %v1348, 1e-05
    %v1357 = vadd.f32 %v1349, 1e-05
    %v1358 = vrsqrt.pop %v1354
    %v1359 = vmul.f32 %v1358, %v1354
    %v1360 = vmul.f32 %v1359, %v1358
    %v1361 = vmul.f32 0.5, %v1360
    %v1362 = vsub.f32 1.5, %v1361
    %v1363 = vmul.f32 %v1358, %v1362
    %vm1364 = vweird.f32 %v1354
    %vm1365 = vweird.f32 %v1358
    %vm1366 = vmor %vm1364, %vm1365
    %v1367 = vsel %vm1366, %v1358, %v1363
    %v1368 = vrsqrt.pop %v1355
    %v1369 = vmul.f32 %v1368, %v1355
    %v1370 = vmul.f32 %v1369, %v1368
    %v1371 = vmul.f32 0.5, %v1370
    %v1372 = vsub.f32 1.5, %v1371
    %v1373 = vmul.f32 %v1368, %v1372
    %vm1374 = vweird.f32 %v1355
    %vm1375 = vweird.f32 %v1368
    %vm1376 = vmor %vm1374, %vm1375
    %v1377 = vsel %vm1376, %v1368, %v1373
    %v1378 = vrsqrt.pop %v1356
    %v1379 = vmul.f32 %v1378, %v1356
    %v1380 = vmul.f32 %v1379, %v1378
    %v1381 = vmul.f32 0.5, %v1380
    %v1382 = vsub.f32 1.5, %v1381
    %v1383 = vmul.f32 %v1378, %v1382
    %vm1384 = vweird.f32 %v1356
    %vm1385 = vweird.f32 %v1378
    %vm1386 = vmor %vm1384, %vm1385
    %v1387 = vsel %vm1386, %v1378, %v1383
    %v1388 = vrsqrt.pop %v1357
    %v1389 = vmul.f32 %v1388, %v1357
    %v1390 = vmul.f32 %v1389, %v1388
    %v1391 = vmul.f32 0.5, %v1390
    %v1392 = vsub.f32 1.5, %v1391
    %v1393 = vmul.f32 %v1388, %v1392
    %vm1394 = vweird.f32 %v1357
    %vm1395 = vweird.f32 %v1388
    %vm1396 = vmor %vm1394, %vm1395
    %v1397 = vsel %vm1396, %v1388, %v1393
    %v1398 = vmul.f32 %v1350, %v1367
    %v1399 = vmul.f32 %v1351, %v1377
    %v1400 = vmul.f32 %v1352, %v1387
    %v1401 = vmul.f32 %v1353, %v1397
    %v1402 = vld [vmem:[%s3] sm:$0xff]
    %v1403 = vld [vmem:[%s3 + $0x8] sm:$0xff]
    %v1404 = vld [vmem:[%s3 + $0x10] sm:$0xff]
    %v1405 = vld [vmem:[%s3 + $0x18] sm:$0xff]
    %1407 = vset.pattern.permute.xlu0 0
    %1408 = vperm.xlu0 %1407, %v1402
    %v1409 = vpop.permute.xlu0 %1408
    %1412 = vset.pattern.permute.xlu0 0
    %1413 = vperm.xlu0 %1412, %v1403
    %v1414 = vpop.permute.xlu0 %1413
    %1417 = vset.pattern.permute.xlu0 0
    %1418 = vperm.xlu0 %1417, %v1404
    %v1419 = vpop.permute.xlu0 %1418
    %1422 = vset.pattern.permute.xlu0 0
    %1423 = vperm.xlu0 %1422, %v1405
    %v1424 = vpop.permute.xlu0 %1423
    %v1426 = vmul.f32 %v1398, %v1409
    %v1427 = vmul.f32 %v1399, %v1414
    %v1428 = vmul.f32 %v1400, %v1419
    %v1429 = vmul.f32 %v1401, %v1424
    %v1430 = vld [vmem:[%s4] sm:$0xff]
    %v1431 = vld [vmem:[%s4 + $0x8] sm:$0xff]
    %v1432 = vld [vmem:[%s4 + $0x10] sm:$0xff]
    %v1433 = vld [vmem:[%s4 + $0x18] sm:$0xff]
    %1435 = vset.pattern.permute.xlu0 0
    %1436 = vperm.xlu0 %1435, %v1430
    %v1437 = vpop.permute.xlu0 %1436
    %1440 = vset.pattern.permute.xlu0 0
    %1441 = vperm.xlu0 %1440, %v1431
    %v1442 = vpop.permute.xlu0 %1441
    %1445 = vset.pattern.permute.xlu0 0
    %1446 = vperm.xlu0 %1445, %v1432
    %v1447 = vpop.permute.xlu0 %1446
    %1450 = vset.pattern.permute.xlu0 0
    %1451 = vperm.xlu0 %1450, %v1433
    %v1452 = vpop.permute.xlu0 %1451
    %v1454 = vadd.f32 %v1426, %v1437
    %v1455 = vadd.f32 %v1427, %v1442
    %v1456 = vadd.f32 %v1428, %v1447
    %v1457 = vadd.f32 %v1429, %v1452
    %v1458 = vmax.f32 %v1454, 0.0
    %v1459 = vmax.f32 %v1455, 0.0
    %v1460 = vmax.f32 %v1456, 0.0
    %v1461 = vmax.f32 %v1457, 0.0
    %v1462 = vpack.c.bf16 %v1459, %v1458
    %v1463 = vpack.c.bf16 %v1461, %v1460
    %v1464 = vld [vmem:[%s6] sm:$0xf]
    %v1465 = vld [vmem:[%s6 + $0x4] sm:$0xf]
    %v1468 = vunpack.c.l.b16 %v1464
    %v1469 = vunpack.c.l.b16 %v1465
    %v1470 = vpack.c.b16 %v1469, %v1468
    %v1472 = vsel %vm1301, %v1470, 0
    %1474 = vmatpush.bf16.msra.mxu0 0
    %1475 = vmatpush.bf16.msra.mxu0 0
    %1476 = vmatpush.bf16.msra.mxu0 0
    %1477 = vmatpush.bf16.msra.mxu0 0
    %1478 = vmatpush.bf16.msra.mxu0 0
    %1479 = vmatpush.bf16.msra.mxu0 0
    %1480 = vmatpush.bf16.msra.mxu0 %v1463
    %1481 = vmatpush.bf16.msra.mxu0 %v1462
    %1482 = vmatmul.bf16.gmra.mxu0 %v1472
    %v1483 = vpop.f32.mrf.mxu0
    %v1484 = vadd.f32 0.0, %v1483
    %v1485 = vpop.f32.mrf.mxu0
    %v1486 = vadd.f32 0.0, %v1485
    %1487 = vdwg.mxu0
    %v1488 = vpack.c.bf16 %v1486, %v1484
    %v1489 = vld [vmem:[#allocation4] sm:$0xf]
    %v1490 = vld [vmem:[#allocation4 + $0x4] sm:$0xf]
    %v1491 = vld [vmem:[#allocation4 + $0x8] sm:$0xf]
    %v1492 = vld [vmem:[#allocation4 + $0xc] sm:$0xf]
    %s1493 = scalar_lea.vmem %s6, 8
    %v1494 = vld [vmem:[%s1493] sm:$0xf]
    %v1495 = vld [vmem:[%s1493 + $0x4] sm:$0xf]
    %v1498 = vunpack.c.l.b16 %v1494
    %v1499 = vunpack.c.l.b16 %v1495
    %v1500 = vpack.c.b16 %v1499, %v1498
    %v1502 = vsel %vm1301, %v1500, 0
    %1504 = vmatpush.bf16.msra.mxu0 0
    %1505 = vmatpush.bf16.msra.mxu0 0
    %1506 = vmatpush.bf16.msra.mxu0 0
    %1507 = vmatpush.bf16.msra.mxu0 0
    %1508 = vmatpush.bf16.msra.mxu0 0
    %1509 = vmatpush.bf16.msra.mxu0 0
    %1510 = vmatpush.bf16.msra.mxu0 %v1463
    %1511 = vmatpush.bf16.msra.mxu0 %v1462
    %1512 = vmatmul.bf16.gmra.mxu0 %v1502
    %v1513 = vpop.f32.mrf.mxu0
    %v1514 = vadd.f32 0.0, %v1513
    %v1515 = vpop.f32.mrf.mxu0
    %v1516 = vadd.f32 0.0, %v1515
    %1517 = vdwg.mxu0
    %v1518 = vpack.c.bf16 %v1516, %v1514
    %s1519 = scalar_lea.vmem [#allocation4], 16
    %v1520 = vld [vmem:[%s1519] sm:$0xf]
    %v1521 = vld [vmem:[%s1519 + $0x4] sm:$0xf]
    %v1522 = vld [vmem:[%s1519 + $0x8] sm:$0xf]
    %v1523 = vld [vmem:[%s1519 + $0xc] sm:$0xf]
    %v1528 = vunpack.c.l.b16 %v1520
    %v1529 = vunpack.c.l.b16 %v1521
    %v1530 = vunpack.c.l.b16 %v1522
    %v1531 = vunpack.c.l.b16 %v1523
    %v1532 = vpack.c.b16 %v1529, %v1528
    %v1533 = vpack.c.b16 %v1531, %v1530
    %v1537 = vsel %vm1301, %v1518, 0
    %1539 = vmatpush.bf16.msra.mxu0 0
    %1540 = vmatpush.bf16.msra.mxu0 0
    %1541 = vmatpush.bf16.msra.mxu0 0
    %1542 = vmatpush.bf16.msra.mxu0 0
    %1543 = vmatpush.bf16.msra.mxu0 0
    %1544 = vmatpush.bf16.msra.mxu0 0
    %1545 = vmatpush.bf16.msra.mxu0 %v1533
    %1546 = vmatpush.bf16.msra.mxu0 %v1532
    %1547 = vmatmul.bf16.gmra.mxu0 %v1537
    %v1548 = vpop.f32.mrf.mxu0
    %v1549 = vadd.f32 0.0, %v1548
    %v1550 = vpop.f32.mrf.mxu0
    %v1551 = vadd.f32 0.0, %v1550
    %1552 = vdwg.mxu0
    %v1557 = vunpack.c.l.b16 %v1489
    %v1558 = vunpack.c.l.b16 %v1490
    %v1559 = vunpack.c.l.b16 %v1491
    %v1560 = vunpack.c.l.b16 %v1492
    %v1561 = vpack.c.b16 %v1558, %v1557
    %v1562 = vpack.c.b16 %v1560, %v1559
    %v1566 = vsel %vm1301, %v1488, 0
    %1568 = vmatpush.bf16.msra.mxu0 0
    %1569 = vmatpush.bf16.msra.mxu0 0
    %1570 = vmatpush.bf16.msra.mxu0 0
    %1571 = vmatpush.bf16.msra.mxu0 0
    %1572 = vmatpush.bf16.msra.mxu0 0
    %1573 = vmatpush.bf16.msra.mxu0 0
    %1574 = vmatpush.bf16.msra.mxu0 %v1562
    %1575 = vmatpush.bf16.msra.mxu0 %v1561
    %1576 = vmatmul.bf16.gmra.mxu0 %v1566
    %v1577 = vpop.f32.mrf.mxu0
    %v1578 = vadd.f32 %v1549, %v1577
    %v1579 = vpop.f32.mrf.mxu0
    %v1580 = vadd.f32 %v1551, %v1579
    %1581 = vdwg.mxu0
    %s1582 = scalar_lea.vmem %s6, 16
    %v1583 = vld [vmem:[%s1582] sm:$0xf]
    %v1584 = vld [vmem:[%s1582 + $0x4] sm:$0xf]
    %v1587 = vunpack.c.l.b16 %v1583
    %v1588 = vunpack.c.l.b16 %v1584
    %v1589 = vpack.c.b16 %v1588, %v1587
    %v1591 = vsel %vm1301, %v1589, 0
    %1593 = vmatpush.bf16.msra.mxu0 0
    %1594 = vmatpush.bf16.msra.mxu0 0
    %1595 = vmatpush.bf16.msra.mxu0 0
    %1596 = vmatpush.bf16.msra.mxu0 0
    %1597 = vmatpush.bf16.msra.mxu0 0
    %1598 = vmatpush.bf16.msra.mxu0 0
    %1599 = vmatpush.bf16.msra.mxu0 %v1463
    %1600 = vmatpush.bf16.msra.mxu0 %v1462
    %1601 = vmatmul.bf16.gmra.mxu0 %v1591
    %v1602 = vpop.f32.mrf.mxu0
    %v1603 = vadd.f32 0.0, %v1602
    %v1604 = vpop.f32.mrf.mxu0
    %v1605 = vadd.f32 0.0, %v1604
    %1606 = vdwg.mxu0
    %v1607 = vpack.c.bf16 %v1605, %v1603
    %s1608 = scalar_lea.vmem [#allocation4], 32
    %v1609 = vld [vmem:[%s1608] sm:$0xf]
    %v1610 = vld [vmem:[%s1608 + $0x4] sm:$0xf]
    %v1611 = vld [vmem:[%s1608 + $0x8] sm:$0xf]
    %v1612 = vld [vmem:[%s1608 + $0xc] sm:$0xf]
    %v1617 = vunpack.c.l.b16 %v1609
    %v1618 = vunpack.c.l.b16 %v1610
    %v1619 = vunpack.c.l.b16 %v1611
    %v1620 = vunpack.c.l.b16 %v1612
    %v1621 = vpack.c.b16 %v1618, %v1617
    %v1622 = vpack.c.b16 %v1620, %v1619
    %v1626 = vsel %vm1301, %v1607, 0
    %1628 = vmatpush.bf16.msra.mxu0 0
    %1629 = vmatpush.bf16.msra.mxu0 0
    %1630 = vmatpush.bf16.msra.mxu0 0
    %1631 = vmatpush.bf16.msra.mxu0 0
    %1632 = vmatpush.bf16.msra.mxu0 0
    %1633 = vmatpush.bf16.msra.mxu0 0
    %1634 = vmatpush.bf16.msra.mxu0 %v1622
    %1635 = vmatpush.bf16.msra.mxu0 %v1621
    %1636 = vmatmul.bf16.gmra.mxu0 %v1626
    %v1637 = vpop.f32.mrf.mxu0
    %v1638 = vadd.f32 0.0, %v1637
    %v1639 = vpop.f32.mrf.mxu0
    %v1640 = vadd.f32 0.0, %v1639
    %1641 = vdwg.mxu0
    %v1642 = vadd.f32 %v1578, %v1638
    %v1643 = vadd.f32 %v1580, %v1640
    %s1644 = scalar_lea.vmem %s6, 24
    %v1645 = vld [vmem:[%s1644] sm:$0xf]
    %v1646 = vld [vmem:[%s1644 + $0x4] sm:$0xf]
    %v1649 = vunpack.c.l.b16 %v1645
    %v1650 = vunpack.c.l.b16 %v1646
    %v1651 = vpack.c.b16 %v1650, %v1649
    %v1653 = vsel %vm1301, %v1651, 0
    %1655 = vmatpush.bf16.msra.mxu0 0
    %1656 = vmatpush.bf16.msra.mxu0 0
    %1657 = vmatpush.bf16.msra.mxu0 0
    %1658 = vmatpush.bf16.msra.mxu0 0
    %1659 = vmatpush.bf16.msra.mxu0 0
    %1660 = vmatpush.bf16.msra.mxu0 0
    %1661 = vmatpush.bf16.msra.mxu0 %v1463
    %1662 = vmatpush.bf16.msra.mxu0 %v1462
    %1663 = vmatmul.bf16.gmra.mxu0 %v1653
    %v1664 = vpop.f32.mrf.mxu0
    %v1665 = vadd.f32 0.0, %v1664
    %v1666 = vpop.f32.mrf.mxu0
    %v1667 = vadd.f32 0.0, %v1666
    %1668 = vdwg.mxu0
    %v1669 = vpack.c.bf16 %v1667, %v1665
    %s1670 = scalar_lea.vmem [#allocation4], 48
    %v1671 = vld [vmem:[%s1670] sm:$0xf]
    %v1672 = vld [vmem:[%s1670 + $0x4] sm:$0xf]
    %v1673 = vld [vmem:[%s1670 + $0x8] sm:$0xf]
    %v1674 = vld [vmem:[%s1670 + $0xc] sm:$0xf]
    %v1679 = vunpack.c.l.b16 %v1671
    %v1680 = vunpack.c.l.b16 %v1672
    %v1681 = vunpack.c.l.b16 %v1673
    %v1682 = vunpack.c.l.b16 %v1674
    %v1683 = vpack.c.b16 %v1680, %v1679
    %v1684 = vpack.c.b16 %v1682, %v1681
    %v1688 = vsel %vm1301, %v1669, 0
    %1690 = vmatpush.bf16.msra.mxu0 0
    %1691 = vmatpush.bf16.msra.mxu0 0
    %1692 = vmatpush.bf16.msra.mxu0 0
    %1693 = vmatpush.bf16.msra.mxu0 0
    %1694 = vmatpush.bf16.msra.mxu0 0
    %1695 = vmatpush.bf16.msra.mxu0 0
    %1696 = vmatpush.bf16.msra.mxu0 %v1684
    %1697 = vmatpush.bf16.msra.mxu0 %v1683
    %1698 = vmatmul.bf16.gmra.mxu0 %v1688
    %v1699 = vpop.f32.mrf.mxu0
    %v1700 = vadd.f32 0.0, %v1699
    %v1701 = vpop.f32.mrf.mxu0
    %v1702 = vadd.f32 0.0, %v1701
    %1703 = vdwg.mxu0
    %v1704 = vadd.f32 %v1642, %v1700
    %v1705 = vadd.f32 %v1643, %v1702
    %s1706 = scalar_lea.vmem %s6, 32
    %v1707 = vld [vmem:[%s1706] sm:$0xf]
    %v1708 = vld [vmem:[%s1706 + $0x4] sm:$0xf]
    %v1711 = vunpack.c.l.b16 %v1707
    %v1712 = vunpack.c.l.b16 %v1708
    %v1713 = vpack.c.b16 %v1712, %v1711
    %v1715 = vsel %vm1301, %v1713, 0
    %1717 = vmatpush.bf16.msra.mxu0 0
    %1718 = vmatpush.bf16.msra.mxu0 0
    %1719 = vmatpush.bf16.msra.mxu0 0
    %1720 = vmatpush.bf16.msra.mxu0 0
    %1721 = vmatpush.bf16.msra.mxu0 0
    %1722 = vmatpush.bf16.msra.mxu0 0
    %1723 = vmatpush.bf16.msra.mxu0 %v1463
    %1724 = vmatpush.bf16.msra.mxu0 %v1462
    %1725 = vmatmul.bf16.gmra.mxu0 %v1715
    %v1726 = vpop.f32.mrf.mxu0
    %v1727 = vadd.f32 0.0, %v1726
    %v1728 = vpop.f32.mrf.mxu0
    %v1729 = vadd.f32 0.0, %v1728
    %1730 = vdwg.mxu0
    %v1731 = vpack.c.bf16 %v1729, %v1727
    %s1732 = scalar_lea.vmem [#allocation4], 64
    %v1733 = vld [vmem:[%s1732] sm:$0xf]
    %v1734 = vld [vmem:[%s1732 + $0x4] sm:$0xf]
    %v1735 = vld [vmem:[%s1732 + $0x8] sm:$0xf]
    %v1736 = vld [vmem:[%s1732 + $0xc] sm:$0xf]
    %v1741 = vunpack.c.l.b16 %v1733
    %v1742 = vunpack.c.l.b16 %v1734
    %v1743 = vunpack.c.l.b16 %v1735
    %v1744 = vunpack.c.l.b16 %v1736
    %v1745 = vpack.c.b16 %v1742, %v1741
    %v1746 = vpack.c.b16 %v1744, %v1743
    %v1750 = vsel %vm1301, %v1731, 0
    %1752 = vmatpush.bf16.msra.mxu0 0
    %1753 = vmatpush.bf16.msra.mxu0 0
    %1754 = vmatpush.bf16.msra.mxu0 0
    %1755 = vmatpush.bf16.msra.mxu0 0
    %1756 = vmatpush.bf16.msra.mxu0 0
    %1757 = vmatpush.bf16.msra.mxu0 0
    %1758 = vmatpush.bf16.msra.mxu0 %v1746
    %1759 = vmatpush.bf16.msra.mxu0 %v1745
    %1760 = vmatmul.bf16.gmra.mxu0 %v1750
    %v1761 = vpop.f32.mrf.mxu0
    %v1762 = vadd.f32 0.0, %v1761
    %v1763 = vpop.f32.mrf.mxu0
    %v1764 = vadd.f32 0.0, %v1763
    %1765 = vdwg.mxu0
    %v1766 = vadd.f32 %v1704, %v1762
    %v1767 = vadd.f32 %v1705, %v1764
    %s1768 = scalar_lea.vmem %s6, 40
    %v1769 = vld [vmem:[%s1768] sm:$0xf]
    %v1770 = vld [vmem:[%s1768 + $0x4] sm:$0xf]
    %v1773 = vunpack.c.l.b16 %v1769
    %v1774 = vunpack.c.l.b16 %v1770
    %v1775 = vpack.c.b16 %v1774, %v1773
    %v1777 = vsel %vm1301, %v1775, 0
    %1779 = vmatpush.bf16.msra.mxu0 0
    %1780 = vmatpush.bf16.msra.mxu0 0
    %1781 = vmatpush.bf16.msra.mxu0 0
    %1782 = vmatpush.bf16.msra.mxu0 0
    %1783 = vmatpush.bf16.msra.mxu0 0
    %1784 = vmatpush.bf16.msra.mxu0 0
    %1785 = vmatpush.bf16.msra.mxu0 %v1463
    %1786 = vmatpush.bf16.msra.mxu0 %v1462
    %1787 = vmatmul.bf16.gmra.mxu0 %v1777
    %v1788 = vpop.f32.mrf.mxu0
    %v1789 = vadd.f32 0.0, %v1788
    %v1790 = vpop.f32.mrf.mxu0
    %v1791 = vadd.f32 0.0, %v1790
    %1792 = vdwg.mxu0
    %v1793 = vpack.c.bf16 %v1791, %v1789
    %s1794 = scalar_lea.vmem [#allocation4], 80
    %v1795 = vld [vmem:[%s1794] sm:$0xf]
    %v1796 = vld [vmem:[%s1794 + $0x4] sm:$0xf]
    %v1797 = vld [vmem:[%s1794 + $0x8] sm:$0xf]
    %v1798 = vld [vmem:[%s1794 + $0xc] sm:$0xf]
    %v1803 = vunpack.c.l.b16 %v1795
    %v1804 = vunpack.c.l.b16 %v1796
    %v1805 = vunpack.c.l.b16 %v1797
    %v1806 = vunpack.c.l.b16 %v1798
    %v1807 = vpack.c.b16 %v1804, %v1803
    %v1808 = vpack.c.b16 %v1806, %v1805
    %v1812 = vsel %vm1301, %v1793, 0
    %1814 = vmatpush.bf16.msra.mxu0 0
    %1815 = vmatpush.bf16.msra.mxu0 0
    %1816 = vmatpush.bf16.msra.mxu0 0
    %1817 = vmatpush.bf16.msra.mxu0 0
    %1818 = vmatpush.bf16.msra.mxu0 0
    %1819 = vmatpush.bf16.msra.mxu0 0
    %1820 = vmatpush.bf16.msra.mxu0 %v1808
    %1821 = vmatpush.bf16.msra.mxu0 %v1807
    %1822 = vmatmul.bf16.gmra.mxu0 %v1812
    %v1823 = vpop.f32.mrf.mxu0
    %v1824 = vadd.f32 0.0, %v1823
    %v1825 = vpop.f32.mrf.mxu0
    %v1826 = vadd.f32 0.0, %v1825
    %1827 = vdwg.mxu0
    %v1828 = vadd.f32 %v1766, %v1824
    %v1829 = vadd.f32 %v1767, %v1826
    %s1830 = scalar_lea.vmem %s6, 48
    %v1831 = vld [vmem:[%s1830] sm:$0xf]
    %v1832 = vld [vmem:[%s1830 + $0x4] sm:$0xf]
    %v1835 = vunpack.c.l.b16 %v1831
    %v1836 = vunpack.c.l.b16 %v1832
    %v1837 = vpack.c.b16 %v1836, %v1835
    %v1839 = vsel %vm1301, %v1837, 0
    %1841 = vmatpush.bf16.msra.mxu0 0
    %1842 = vmatpush.bf16.msra.mxu0 0
    %1843 = vmatpush.bf16.msra.mxu0 0
    %1844 = vmatpush.bf16.msra.mxu0 0
    %1845 = vmatpush.bf16.msra.mxu0 0
    %1846 = vmatpush.bf16.msra.mxu0 0
    %1847 = vmatpush.bf16.msra.mxu0 %v1463
    %1848 = vmatpush.bf16.msra.mxu0 %v1462
    %1849 = vmatmul.bf16.gmra.mxu0 %v1839
    %v1850 = vpop.f32.mrf.mxu0
    %v1851 = vadd.f32 0.0, %v1850
    %v1852 = vpop.f32.mrf.mxu0
    %v1853 = vadd.f32 0.0, %v1852
    %1854 = vdwg.mxu0
    %v1855 = vpack.c.bf16 %v1853, %v1851
    %s1856 = scalar_lea.vmem [#allocation4], 96
    %v1857 = vld [vmem:[%s1856] sm:$0xf]
    %v1858 = vld [vmem:[%s1856 + $0x4] sm:$0xf]
    %v1859 = vld [vmem:[%s1856 + $0x8] sm:$0xf]
    %v1860 = vld [vmem:[%s1856 + $0xc] sm:$0xf]
    %v1865 = vunpack.c.l.b16 %v1857
    %v1866 = vunpack.c.l.b16 %v1858
    %v1867 = vunpack.c.l.b16 %v1859
    %v1868 = vunpack.c.l.b16 %v1860
    %v1869 = vpack.c.b16 %v1866, %v1865
    %v1870 = vpack.c.b16 %v1868, %v1867
    %v1874 = vsel %vm1301, %v1855, 0
    %1876 = vmatpush.bf16.msra.mxu0 0
    %1877 = vmatpush.bf16.msra.mxu0 0
    %1878 = vmatpush.bf16.msra.mxu0 0
    %1879 = vmatpush.bf16.msra.mxu0 0
    %1880 = vmatpush.bf16.msra.mxu0 0
    %1881 = vmatpush.bf16.msra.mxu0 0
    %1882 = vmatpush.bf16.msra.mxu0 %v1870
    %1883 = vmatpush.bf16.msra.mxu0 %v1869
    %1884 = vmatmul.bf16.gmra.mxu0 %v1874
    %v1885 = vpop.f32.mrf.mxu0
    %v1886 = vadd.f32 0.0, %v1885
    %v1887 = vpop.f32.mrf.mxu0
    %v1888 = vadd.f32 0.0, %v1887
    %1889 = vdwg.mxu0
    %v1890 = vadd.f32 %v1828, %v1886
    %v1891 = vadd.f32 %v1829, %v1888
    %s1892 = scalar_lea.vmem %s6, 56
    %v1893 = vld [vmem:[%s1892] sm:$0xf]
    %v1894 = vld [vmem:[%s1892 + $0x4] sm:$0xf]
    %v1897 = vunpack.c.l.b16 %v1893
    %v1898 = vunpack.c.l.b16 %v1894
    %v1899 = vpack.c.b16 %v1898, %v1897
    %v1901 = vsel %vm1301, %v1899, 0
    %1903 = vmatpush.bf16.msra.mxu0 0
    %1904 = vmatpush.bf16.msra.mxu0 0
    %1905 = vmatpush.bf16.msra.mxu0 0
    %1906 = vmatpush.bf16.msra.mxu0 0
    %1907 = vmatpush.bf16.msra.mxu0 0
    %1908 = vmatpush.bf16.msra.mxu0 0
    %1909 = vmatpush.bf16.msra.mxu0 %v1463
    %1910 = vmatpush.bf16.msra.mxu0 %v1462
    %1911 = vmatmul.bf16.gmra.mxu0 %v1901
    %v1912 = vpop.f32.mrf.mxu0
    %v1913 = vadd.f32 0.0, %v1912
    %v1914 = vpop.f32.mrf.mxu0
    %v1915 = vadd.f32 0.0, %v1914
    %1916 = vdwg.mxu0
    %v1917 = vpack.c.bf16 %v1915, %v1913
    %s1918 = scalar_lea.vmem [#allocation4], 112
    %v1919 = vld [vmem:[%s1918] sm:$0xf]
    %v1920 = vld [vmem:[%s1918 + $0x4] sm:$0xf]
    %v1921 = vld [vmem:[%s1918 + $0x8] sm:$0xf]
    %v1922 = vld [vmem:[%s1918 + $0xc] sm:$0xf]
    %v1927 = vunpack.c.l.b16 %v1919
    %v1928 = vunpack.c.l.b16 %v1920
    %v1929 = vunpack.c.l.b16 %v1921
    %v1930 = vunpack.c.l.b16 %v1922
    %v1931 = vpack.c.b16 %v1928, %v1927
    %v1932 = vpack.c.b16 %v1930, %v1929
    %v1936 = vsel %vm1301, %v1917, 0
    %1938 = vmatpush.bf16.msra.mxu0 0
    %1939 = vmatpush.bf16.msra.mxu0 0
    %1940 = vmatpush.bf16.msra.mxu0 0
    %1941 = vmatpush.bf16.msra.mxu0 0
    %1942 = vmatpush.bf16.msra.mxu0 0
    %1943 = vmatpush.bf16.msra.mxu0 0
    %1944 = vmatpush.bf16.msra.mxu0 %v1932
    %1945 = vmatpush.bf16.msra.mxu0 %v1931
    %1946 = vmatmul.bf16.gmra.mxu0 %v1936
    %v1947 = vpop.f32.mrf.mxu0
    %v1948 = vadd.f32 0.0, %v1947
    %v1949 = vpop.f32.mrf.mxu0
    %v1950 = vadd.f32 0.0, %v1949
    %1951 = vdwg.mxu0
    %v1952 = vadd.f32 %v1890, %v1948
    %v1953 = vadd.f32 %v1891, %v1950
    %s1954 = scalar_lea.vmem %s6, 64
    %v1955 = vld [vmem:[%s1954] sm:$0xf]
    %v1956 = vld [vmem:[%s1954 + $0x4] sm:$0xf]
    %v1959 = vunpack.c.l.b16 %v1955
    %v1960 = vunpack.c.l.b16 %v1956
    %v1961 = vpack.c.b16 %v1960, %v1959
    %v1963 = vsel %vm1301, %v1961, 0
    %1965 = vmatpush.bf16.msra.mxu0 0
    %1966 = vmatpush.bf16.msra.mxu0 0
    %1967 = vmatpush.bf16.msra.mxu0 0
    %1968 = vmatpush.bf16.msra.mxu0 0
    %1969 = vmatpush.bf16.msra.mxu0 0
    %1970 = vmatpush.bf16.msra.mxu0 0
    %1971 = vmatpush.bf16.msra.mxu0 %v1463
    %1972 = vmatpush.bf16.msra.mxu0 %v1462
    %1973 = vmatmul.bf16.gmra.mxu0 %v1963
    %v1974 = vpop.f32.mrf.mxu0
    %v1975 = vadd.f32 0.0, %v1974
    %v1976 = vpop.f32.mrf.mxu0
    %v1977 = vadd.f32 0.0, %v1976
    %1978 = vdwg.mxu0
    %v1979 = vpack.c.bf16 %v1977, %v1975
    %s1980 = scalar_lea.vmem [#allocation4], 128
    %v1981 = vld [vmem:[%s1980] sm:$0xf]
    %v1982 = vld [vmem:[%s1980 + $0x4] sm:$0xf]
    %v1983 = vld [vmem:[%s1980 + $0x8] sm:$0xf]
    %v1984 = vld [vmem:[%s1980 + $0xc] sm:$0xf]
    %v1989 = vunpack.c.l.b16 %v1981
    %v1990 = vunpack.c.l.b16 %v1982
    %v1991 = vunpack.c.l.b16 %v1983
    %v1992 = vunpack.c.l.b16 %v1984
    %v1993 = vpack.c.b16 %v1990, %v1989
    %v1994 = vpack.c.b16 %v1992, %v1991
    %v1998 = vsel %vm1301, %v1979, 0
    %2000 = vmatpush.bf16.msra.mxu0 0
    %2001 = vmatpush.bf16.msra.mxu0 0
    %2002 = vmatpush.bf16.msra.mxu0 0
    %2003 = vmatpush.bf16.msra.mxu0 0
    %2004 = vmatpush.bf16.msra.mxu0 0
    %2005 = vmatpush.bf16.msra.mxu0 0
    %2006 = vmatpush.bf16.msra.mxu0 %v1994
    %2007 = vmatpush.bf16.msra.mxu0 %v1993
    %2008 = vmatmul.bf16.gmra.mxu0 %v1998
    %v2009 = vpop.f32.mrf.mxu0
    %v2010 = vadd.f32 0.0, %v2009
    %v2011 = vpop.f32.mrf.mxu0
    %v2012 = vadd.f32 0.0, %v2011
    %2013 = vdwg.mxu0
    %v2014 = vadd.f32 %v1952, %v2010
    %v2015 = vadd.f32 %v1953, %v2012
    %s2016 = scalar_lea.vmem %s6, 72
    %v2017 = vld [vmem:[%s2016] sm:$0xf]
    %v2018 = vld [vmem:[%s2016 + $0x4] sm:$0xf]
    %v2021 = vunpack.c.l.b16 %v2017
    %v2022 = vunpack.c.l.b16 %v2018
    %v2023 = vpack.c.b16 %v2022, %v2021
    %v2025 = vsel %vm1301, %v2023, 0
    %2027 = vmatpush.bf16.msra.mxu0 0
    %2028 = vmatpush.bf16.msra.mxu0 0
    %2029 = vmatpush.bf16.msra.mxu0 0
    %2030 = vmatpush.bf16.msra.mxu0 0
    %2031 = vmatpush.bf16.msra.mxu0 0
    %2032 = vmatpush.bf16.msra.mxu0 0
    %2033 = vmatpush.bf16.msra.mxu0 %v1463
    %2034 = vmatpush.bf16.msra.mxu0 %v1462
    %2035 = vmatmul.bf16.gmra.mxu0 %v2025
    %v2036 = vpop.f32.mrf.mxu0
    %v2037 = vadd.f32 0.0, %v2036
    %v2038 = vpop.f32.mrf.mxu0
    %v2039 = vadd.f32 0.0, %v2038
    %2040 = vdwg.mxu0
    %v2041 = vpack.c.bf16 %v2039, %v2037
    %s2042 = scalar_lea.vmem [#allocation4], 144
    %v2043 = vld [vmem:[%s2042] sm:$0xf]
    %v2044 = vld [vmem:[%s2042 + $0x4] sm:$0xf]
    %v2045 = vld [vmem:[%s2042 + $0x8] sm:$0xf]
    %v2046 = vld [vmem:[%s2042 + $0xc] sm:$0xf]
    %v2051 = vunpack.c.l.b16 %v2043
    %v2052 = vunpack.c.l.b16 %v2044
    %v2053 = vunpack.c.l.b16 %v2045
    %v2054 = vunpack.c.l.b16 %v2046
    %v2055 = vpack.c.b16 %v2052, %v2051
    %v2056 = vpack.c.b16 %v2054, %v2053
    %v2060 = vsel %vm1301, %v2041, 0
    %2062 = vmatpush.bf16.msra.mxu0 0
    %2063 = vmatpush.bf16.msra.mxu0 0
    %2064 = vmatpush.bf16.msra.mxu0 0
    %2065 = vmatpush.bf16.msra.mxu0 0
    %2066 = vmatpush.bf16.msra.mxu0 0
    %2067 = vmatpush.bf16.msra.mxu0 0
    %2068 = vmatpush.bf16.msra.mxu0 %v2056
    %2069 = vmatpush.bf16.msra.mxu0 %v2055
    %2070 = vmatmul.bf16.gmra.mxu0 %v2060
    %v2071 = vpop.f32.mrf.mxu0
    %v2072 = vadd.f32 0.0, %v2071
    %v2073 = vpop.f32.mrf.mxu0
    %v2074 = vadd.f32 0.0, %v2073
    %2075 = vdwg.mxu0
    %v2076 = vadd.f32 %v2014, %v2072
    %v2077 = vadd.f32 %v2015, %v2074
    %s2078 = scalar_lea.vmem %s6, 80
    %v2079 = vld [vmem:[%s2078] sm:$0xf]
    %v2080 = vld [vmem:[%s2078 + $0x4] sm:$0xf]
    %v2083 = vunpack.c.l.b16 %v2079
    %v2084 = vunpack.c.l.b16 %v2080
    %v2085 = vpack.c.b16 %v2084, %v2083
    %v2087 = vsel %vm1301, %v2085, 0
    %2089 = vmatpush.bf16.msra.mxu0 0
    %2090 = vmatpush.bf16.msra.mxu0 0
    %2091 = vmatpush.bf16.msra.mxu0 0
    %2092 = vmatpush.bf16.msra.mxu0 0
    %2093 = vmatpush.bf16.msra.mxu0 0
    %2094 = vmatpush.bf16.msra.mxu0 0
    %2095 = vmatpush.bf16.msra.mxu0 %v1463
    %2096 = vmatpush.bf16.msra.mxu0 %v1462
    %2097 = vmatmul.bf16.gmra.mxu0 %v2087
    %v2098 = vpop.f32.mrf.mxu0
    %v2099 = vadd.f32 0.0, %v2098
    %v2100 = vpop.f32.mrf.mxu0
    %v2101 = vadd.f32 0.0, %v2100
    %2102 = vdwg.mxu0
    %v2103 = vpack.c.bf16 %v2101, %v2099
    %s2104 = scalar_lea.vmem [#allocation4], 160
    %v2105 = vld [vmem:[%s2104] sm:$0xf]
    %v2106 = vld [vmem:[%s2104 + $0x4] sm:$0xf]
    %v2107 = vld [vmem:[%s2104 + $0x8] sm:$0xf]
    %v2108 = vld [vmem:[%s2104 + $0xc] sm:$0xf]
    %v2113 = vunpack.c.l.b16 %v2105
    %v2114 = vunpack.c.l.b16 %v2106
    %v2115 = vunpack.c.l.b16 %v2107
    %v2116 = vunpack.c.l.b16 %v2108
    %v2117 = vpack.c.b16 %v2114, %v2113
    %v2118 = vpack.c.b16 %v2116, %v2115
    %v2122 = vsel %vm1301, %v2103, 0
    %2124 = vmatpush.bf16.msra.mxu0 0
    %2125 = vmatpush.bf16.msra.mxu0 0
    %2126 = vmatpush.bf16.msra.mxu0 0
    %2127 = vmatpush.bf16.msra.mxu0 0
    %2128 = vmatpush.bf16.msra.mxu0 0
    %2129 = vmatpush.bf16.msra.mxu0 0
    %2130 = vmatpush.bf16.msra.mxu0 %v2118
    %2131 = vmatpush.bf16.msra.mxu0 %v2117
    %2132 = vmatmul.bf16.gmra.mxu0 %v2122
    %v2133 = vpop.f32.mrf.mxu0
    %v2134 = vadd.f32 0.0, %v2133
    %v2135 = vpop.f32.mrf.mxu0
    %v2136 = vadd.f32 0.0, %v2135
    %2137 = vdwg.mxu0
    %v2138 = vadd.f32 %v2076, %v2134
    %v2139 = vadd.f32 %v2077, %v2136
    %s2140 = scalar_lea.vmem %s6, 88
    %v2141 = vld [vmem:[%s2140] sm:$0xf]
    %v2142 = vld [vmem:[%s2140 + $0x4] sm:$0xf]
    %v2145 = vunpack.c.l.b16 %v2141
    %v2146 = vunpack.c.l.b16 %v2142
    %v2147 = vpack.c.b16 %v2146, %v2145
    %v2149 = vsel %vm1301, %v2147, 0
    %2151 = vmatpush.bf16.msra.mxu0 0
    %2152 = vmatpush.bf16.msra.mxu0 0
    %2153 = vmatpush.bf16.msra.mxu0 0
    %2154 = vmatpush.bf16.msra.mxu0 0
    %2155 = vmatpush.bf16.msra.mxu0 0
    %2156 = vmatpush.bf16.msra.mxu0 0
    %2157 = vmatpush.bf16.msra.mxu0 %v1463
    %2158 = vmatpush.bf16.msra.mxu0 %v1462
    %2159 = vmatmul.bf16.gmra.mxu0 %v2149
    %v2160 = vpop.f32.mrf.mxu0
    %v2161 = vadd.f32 0.0, %v2160
    %v2162 = vpop.f32.mrf.mxu0
    %v2163 = vadd.f32 0.0, %v2162
    %2164 = vdwg.mxu0
    %v2165 = vpack.c.bf16 %v2163, %v2161
    %s2166 = scalar_lea.vmem [#allocation4], 176
    %v2167 = vld [vmem:[%s2166] sm:$0xf]
    %v2168 = vld [vmem:[%s2166 + $0x4] sm:$0xf]
    %v2169 = vld [vmem:[%s2166 + $0x8] sm:$0xf]
    %v2170 = vld [vmem:[%s2166 + $0xc] sm:$0xf]
    %v2175 = vunpack.c.l.b16 %v2167
    %v2176 = vunpack.c.l.b16 %v2168
    %v2177 = vunpack.c.l.b16 %v2169
    %v2178 = vunpack.c.l.b16 %v2170
    %v2179 = vpack.c.b16 %v2176, %v2175
    %v2180 = vpack.c.b16 %v2178, %v2177
    %v2184 = vsel %vm1301, %v2165, 0
    %2186 = vmatpush.bf16.msra.mxu0 0
    %2187 = vmatpush.bf16.msra.mxu0 0
    %2188 = vmatpush.bf16.msra.mxu0 0
    %2189 = vmatpush.bf16.msra.mxu0 0
    %2190 = vmatpush.bf16.msra.mxu0 0
    %2191 = vmatpush.bf16.msra.mxu0 0
    %2192 = vmatpush.bf16.msra.mxu0 %v2180
    %2193 = vmatpush.bf16.msra.mxu0 %v2179
    %2194 = vmatmul.bf16.gmra.mxu0 %v2184
    %v2195 = vpop.f32.mrf.mxu0
    %v2196 = vadd.f32 0.0, %v2195
    %v2197 = vpop.f32.mrf.mxu0
    %v2198 = vadd.f32 0.0, %v2197
    %2199 = vdwg.mxu0
    %v2200 = vadd.f32 %v2138, %v2196
    %v2201 = vadd.f32 %v2139, %v2198
    %s2202 = scalar_lea.vmem %s6, 96
    %v2203 = vld [vmem:[%s2202] sm:$0xf]
    %v2204 = vld [vmem:[%s2202 + $0x4] sm:$0xf]
    %v2207 = vunpack.c.l.b16 %v2203
    %v2208 = vunpack.c.l.b16 %v2204
    %v2209 = vpack.c.b16 %v2208, %v2207
    %v2211 = vsel %vm1301, %v2209, 0
    %2213 = vmatpush.bf16.msra.mxu0 0
    %2214 = vmatpush.bf16.msra.mxu0 0
    %2215 = vmatpush.bf16.msra.mxu0 0
    %2216 = vmatpush.bf16.msra.mxu0 0
    %2217 = vmatpush.bf16.msra.mxu0 0
    %2218 = vmatpush.bf16.msra.mxu0 0
    %2219 = vmatpush.bf16.msra.mxu0 %v1463
    %2220 = vmatpush.bf16.msra.mxu0 %v1462
    %2221 = vmatmul.bf16.gmra.mxu0 %v2211
    %v2222 = vpop.f32.mrf.mxu0
    %v2223 = vadd.f32 0.0, %v2222
    %v2224 = vpop.f32.mrf.mxu0
    %v2225 = vadd.f32 0.0, %v2224
    %2226 = vdwg.mxu0
    %v2227 = vpack.c.bf16 %v2225, %v2223
    %s2228 = scalar_lea.vmem [#allocation4], 192
    %v2229 = vld [vmem:[%s2228] sm:$0xf]
    %v2230 = vld [vmem:[%s2228 + $0x4] sm:$0xf]
    %v2231 = vld [vmem:[%s2228 + $0x8] sm:$0xf]
    %v2232 = vld [vmem:[%s2228 + $0xc] sm:$0xf]
    %v2237 = vunpack.c.l.b16 %v2229
    %v2238 = vunpack.c.l.b16 %v2230
    %v2239 = vunpack.c.l.b16 %v2231
    %v2240 = vunpack.c.l.b16 %v2232
    %v2241 = vpack.c.b16 %v2238, %v2237
    %v2242 = vpack.c.b16 %v2240, %v2239
    %v2246 = vsel %vm1301, %v2227, 0
    %2248 = vmatpush.bf16.msra.mxu0 0
    %2249 = vmatpush.bf16.msra.mxu0 0
    %2250 = vmatpush.bf16.msra.mxu0 0
    %2251 = vmatpush.bf16.msra.mxu0 0
    %2252 = vmatpush.bf16.msra.mxu0 0
    %2253 = vmatpush.bf16.msra.mxu0 0
    %2254 = vmatpush.bf16.msra.mxu0 %v2242
    %2255 = vmatpush.bf16.msra.mxu0 %v2241
    %2256 = vmatmul.bf16.gmra.mxu0 %v2246
    %v2257 = vpop.f32.mrf.mxu0
    %v2258 = vadd.f32 0.0, %v2257
    %v2259 = vpop.f32.mrf.mxu0
    %v2260 = vadd.f32 0.0, %v2259
    %2261 = vdwg.mxu0
    %v2262 = vadd.f32 %v2200, %v2258
    %v2263 = vadd.f32 %v2201, %v2260
    %s2264 = scalar_lea.vmem %s6, 104
    %v2265 = vld [vmem:[%s2264] sm:$0xf]
    %v2266 = vld [vmem:[%s2264 + $0x4] sm:$0xf]
    %v2269 = vunpack.c.l.b16 %v2265
    %v2270 = vunpack.c.l.b16 %v2266
    %v2271 = vpack.c.b16 %v2270, %v2269
    %v2273 = vsel %vm1301, %v2271, 0
    %2275 = vmatpush.bf16.msra.mxu0 0
    %2276 = vmatpush.bf16.msra.mxu0 0
    %2277 = vmatpush.bf16.msra.mxu0 0
    %2278 = vmatpush.bf16.msra.mxu0 0
    %2279 = vmatpush.bf16.msra.mxu0 0
    %2280 = vmatpush.bf16.msra.mxu0 0
    %2281 = vmatpush.bf16.msra.mxu0 %v1463
    %2282 = vmatpush.bf16.msra.mxu0 %v1462
    %2283 = vmatmul.bf16.gmra.mxu0 %v2273
    %v2284 = vpop.f32.mrf.mxu0
    %v2285 = vadd.f32 0.0, %v2284
    %v2286 = vpop.f32.mrf.mxu0
    %v2287 = vadd.f32 0.0, %v2286
    %2288 = vdwg.mxu0
    %v2289 = vpack.c.bf16 %v2287, %v2285
    %s2290 = scalar_lea.vmem [#allocation4], 208
    %v2291 = vld [vmem:[%s2290] sm:$0xf]
    %v2292 = vld [vmem:[%s2290 + $0x4] sm:$0xf]
    %v2293 = vld [vmem:[%s2290 + $0x8] sm:$0xf]
    %v2294 = vld [vmem:[%s2290 + $0xc] sm:$0xf]
    %v2299 = vunpack.c.l.b16 %v2291
    %v2300 = vunpack.c.l.b16 %v2292
    %v2301 = vunpack.c.l.b16 %v2293
    %v2302 = vunpack.c.l.b16 %v2294
    %v2303 = vpack.c.b16 %v2300, %v2299
    %v2304 = vpack.c.b16 %v2302, %v2301
    %v2308 = vsel %vm1301, %v2289, 0
    %2310 = vmatpush.bf16.msra.mxu0 0
    %2311 = vmatpush.bf16.msra.mxu0 0
    %2312 = vmatpush.bf16.msra.mxu0 0
    %2313 = vmatpush.bf16.msra.mxu0 0
    %2314 = vmatpush.bf16.msra.mxu0 0
    %2315 = vmatpush.bf16.msra.mxu0 0
    %2316 = vmatpush.bf16.msra.mxu0 %v2304
    %2317 = vmatpush.bf16.msra.mxu0 %v2303
    %2318 = vmatmul.bf16.gmra.mxu0 %v2308
    %v2319 = vpop.f32.mrf.mxu0
    %v2320 = vadd.f32 0.0, %v2319
    %v2321 = vpop.f32.mrf.mxu0
    %v2322 = vadd.f32 0.0, %v2321
    %2323 = vdwg.mxu0
    %v2324 = vadd.f32 %v2262, %v2320
    %v2325 = vadd.f32 %v2263, %v2322
    %s2326 = scalar_lea.vmem %s6, 112
    %v2327 = vld [vmem:[%s2326] sm:$0xf]
    %v2328 = vld [vmem:[%s2326 + $0x4] sm:$0xf]
    %v2331 = vunpack.c.l.b16 %v2327
    %v2332 = vunpack.c.l.b16 %v2328
    %v2333 = vpack.c.b16 %v2332, %v2331
    %v2335 = vsel %vm1301, %v2333, 0
    %2337 = vmatpush.bf16.msra.mxu0 0
    %2338 = vmatpush.bf16.msra.mxu0 0
    %2339 = vmatpush.bf16.msra.mxu0 0
    %2340 = vmatpush.bf16.msra.mxu0 0
    %2341 = vmatpush.bf16.msra.mxu0 0
    %2342 = vmatpush.bf16.msra.mxu0 0
    %2343 = vmatpush.bf16.msra.mxu0 %v1463
    %2344 = vmatpush.bf16.msra.mxu0 %v1462
    %2345 = vmatmul.bf16.gmra.mxu0 %v2335
    %v2346 = vpop.f32.mrf.mxu0
    %v2347 = vadd.f32 0.0, %v2346
    %v2348 = vpop.f32.mrf.mxu0
    %v2349 = vadd.f32 0.0, %v2348
    %2350 = vdwg.mxu0
    %v2351 = vpack.c.bf16 %v2349, %v2347
    %s2352 = scalar_lea.vmem [#allocation4], 224
    %v2353 = vld [vmem:[%s2352] sm:$0xf]
    %v2354 = vld [vmem:[%s2352 + $0x4] sm:$0xf]
    %v2355 = vld [vmem:[%s2352 + $0x8] sm:$0xf]
    %v2356 = vld [vmem:[%s2352 + $0xc] sm:$0xf]
    %v2361 = vunpack.c.l.b16 %v2353
    %v2362 = vunpack.c.l.b16 %v2354
    %v2363 = vunpack.c.l.b16 %v2355
    %v2364 = vunpack.c.l.b16 %v2356
    %v2365 = vpack.c.b16 %v2362, %v2361
    %v2366 = vpack.c.b16 %v2364, %v2363
    %v2370 = vsel %vm1301, %v2351, 0
    %2372 = vmatpush.bf16.msra.mxu0 0
    %2373 = vmatpush.bf16.msra.mxu0 0
    %2374 = vmatpush.bf16.msra.mxu0 0
    %2375 = vmatpush.bf16.msra.mxu0 0
    %2376 = vmatpush.bf16.msra.mxu0 0
    %2377 = vmatpush.bf16.msra.mxu0 0
    %2378 = vmatpush.bf16.msra.mxu0 %v2366
    %2379 = vmatpush.bf16.msra.mxu0 %v2365
    %2380 = vmatmul.bf16.gmra.mxu0 %v2370
    %v2381 = vpop.f32.mrf.mxu0
    %v2382 = vadd.f32 0.0, %v2381
    %v2383 = vpop.f32.mrf.mxu0
    %v2384 = vadd.f32 0.0, %v2383
    %2385 = vdwg.mxu0
    %v2386 = vadd.f32 %v2324, %v2382
    %v2387 = vadd.f32 %v2325, %v2384
    %s2388 = scalar_lea.vmem %s6, 120
    %v2389 = vld [vmem:[%s2388] sm:$0xf]
    %v2390 = vld [vmem:[%s2388 + $0x4] sm:$0xf]
    %v2393 = vunpack.c.l.b16 %v2389
    %v2394 = vunpack.c.l.b16 %v2390
    %v2395 = vpack.c.b16 %v2394, %v2393
    %v2397 = vsel %vm1301, %v2395, 0
    %2399 = vmatpush.bf16.msra.mxu0 0
    %2400 = vmatpush.bf16.msra.mxu0 0
    %2401 = vmatpush.bf16.msra.mxu0 0
    %2402 = vmatpush.bf16.msra.mxu0 0
    %2403 = vmatpush.bf16.msra.mxu0 0
    %2404 = vmatpush.bf16.msra.mxu0 0
    %2405 = vmatpush.bf16.msra.mxu0 %v1463
    %2406 = vmatpush.bf16.msra.mxu0 %v1462
    %2407 = vmatmul.bf16.gmra.mxu0 %v2397
    %v2408 = vpop.f32.mrf.mxu0
    %v2409 = vadd.f32 0.0, %v2408
    %v2410 = vpop.f32.mrf.mxu0
    %v2411 = vadd.f32 0.0, %v2410
    %2412 = vdwg.mxu0
    %v2413 = vpack.c.bf16 %v2411, %v2409
    %s2414 = scalar_lea.vmem [#allocation4], 240
    %v2415 = vld [vmem:[%s2414] sm:$0xf]
    %v2416 = vld [vmem:[%s2414 + $0x4] sm:$0xf]
    %v2417 = vld [vmem:[%s2414 + $0x8] sm:$0xf]
    %v2418 = vld [vmem:[%s2414 + $0xc] sm:$0xf]
    %v2423 = vunpack.c.l.b16 %v2415
    %v2424 = vunpack.c.l.b16 %v2416
    %v2425 = vunpack.c.l.b16 %v2417
    %v2426 = vunpack.c.l.b16 %v2418
    %v2427 = vpack.c.b16 %v2424, %v2423
    %v2428 = vpack.c.b16 %v2426, %v2425
    %v2432 = vsel %vm1301, %v2413, 0
    %2434 = vmatpush.bf16.msra.mxu0 0
    %2435 = vmatpush.bf16.msra.mxu0 0
    %2436 = vmatpush.bf16.msra.mxu0 0
    %2437 = vmatpush.bf16.msra.mxu0 0
    %2438 = vmatpush.bf16.msra.mxu0 0
    %2439 = vmatpush.bf16.msra.mxu0 0
    %2440 = vmatpush.bf16.msra.mxu0 %v2428
    %2441 = vmatpush.bf16.msra.mxu0 %v2427
    %2442 = vmatmul.bf16.gmra.mxu0 %v2432
    %v2443 = vpop.f32.mrf.mxu0
    %v2444 = vadd.f32 0.0, %v2443
    %v2445 = vpop.f32.mrf.mxu0
    %v2446 = vadd.f32 0.0, %v2445
    %2447 = vdwg.mxu0
    %v2448 = vadd.f32 %v2386, %v2444
    %v2449 = vadd.f32 %v2387, %v2446
    %2450 = vadd.xlane.f32.xlu0 %v2448
    %v2451 = vpop.xlane.xlu0 %2450
    %2452 = vadd.xlane.f32.xlu0 %v2449
    %v2453 = vpop.xlane.xlu0 %2452
    %v2454 = vmul.f32 %v2451, 0.0078125
    %v2455 = vmul.f32 %v2453, 0.0078125
    %v2456 = vmul.f32 %v2448, %v2448
    %v2457 = vmul.f32 %v2449, %v2449
    %2458 = vadd.xlane.f32.xlu0 %v2456
    %v2459 = vpop.xlane.xlu0 %2458
    %2460 = vadd.xlane.f32.xlu0 %v2457
    %v2461 = vpop.xlane.xlu0 %2460
    %v2462 = vmul.f32 %v2459, 0.0078125
    %v2463 = vmul.f32 %v2461, 0.0078125
    %v2464 = vmul.f32 %v2454, %v2454
    %v2465 = vmul.f32 %v2455, %v2455
    %v2466 = vsub.f32 %v2462, %v2464
    %v2467 = vsub.f32 %v2463, %v2465
    %v2468 = vmax.f32 %v2466, 0.0
    %v2469 = vmax.f32 %v2467, 0.0
    %v2470 = vsub.f32 %v2448, %v2454
    %v2471 = vsub.f32 %v2449, %v2455
    %v2472 = vadd.f32 %v2468, 1e-05
    %v2473 = vadd.f32 %v2469, 1e-05
    %v2474 = vrsqrt.pop %v2472
    %v2475 = vmul.f32 %v2474, %v2472
    %v2476 = vmul.f32 %v2475, %v2474
    %v2477 = vmul.f32 0.5, %v2476
    %v2478 = vsub.f32 1.5, %v2477
    %v2479 = vmul.f32 %v2474, %v2478
    %vm2480 = vweird.f32 %v2472
    %vm2481 = vweird.f32 %v2474
    %vm2482 = vmor %vm2480, %vm2481
    %v2483 = vsel %vm2482, %v2474, %v2479
    %v2484 = vrsqrt.pop %v2473
    %v2485 = vmul.f32 %v2484, %v2473
    %v2486 = vmul.f32 %v2485, %v2484
    %v2487 = vmul.f32 0.5, %v2486
    %v2488 = vsub.f32 1.5, %v2487
    %v2489 = vmul.f32 %v2484, %v2488
    %vm2490 = vweird.f32 %v2473
    %vm2491 = vweird.f32 %v2484
    %vm2492 = vmor %vm2490, %vm2491
    %v2493 = vsel %vm2492, %v2484, %v2489
    %v2494 = vmul.f32 %v2470, %v2483
    %v2495 = vmul.f32 %v2471, %v2493
    %v2496 = vld [vmem:[%s7] sm:$0xff]
    %v2497 = vld [vmem:[%s7 + $0x8] sm:$0xff]
    %2499 = vset.pattern.permute.xlu0 0
    %2500 = vperm.xlu0 %2499, %v2496
    %v2501 = vpop.permute.xlu0 %2500
    %2504 = vset.pattern.permute.xlu0 0
    %2505 = vperm.xlu0 %2504, %v2497
    %v2506 = vpop.permute.xlu0 %2505
    %v2508 = vmul.f32 %v2494, %v2501
    %v2509 = vmul.f32 %v2495, %v2506
    %v2510 = vld [vmem:[%s8] sm:$0xff]
    %v2511 = vld [vmem:[%s8 + $0x8] sm:$0xff]
    %2513 = vset.pattern.permute.xlu0 0
    %2514 = vperm.xlu0 %2513, %v2510
    %v2515 = vpop.permute.xlu0 %2514
    %2518 = vset.pattern.permute.xlu0 0
    %2519 = vperm.xlu0 %2518, %v2511
    %v2520 = vpop.permute.xlu0 %2519
    %v2522 = vadd.f32 %v2508, %v2515
    %v2523 = vadd.f32 %v2509, %v2520
    %v2524 = vmax.f32 %v2522, 0.0
    %v2525 = vmax.f32 %v2523, 0.0
    %v2526 = vpack.c.bf16 %v2525, %v2524
    %v2527 = vld [vmem:[%s10] sm:$0x3]
    %vm2528 = vcmask 130048
    %v2530 = vsel %vm2528, %v2527, 0
    %2532 = vmatpush.bf16.msra.mxu0 0
    %2533 = vmatpush.bf16.msra.mxu0 0
    %2534 = vmatpush.bf16.msra.mxu0 0
    %2535 = vmatpush.bf16.msra.mxu0 0
    %2536 = vmatpush.bf16.msra.mxu0 0
    %2537 = vmatpush.bf16.msra.mxu0 0
    %2538 = vmatpush.bf16.msra.mxu0 0
    %2539 = vmatpush.bf16.msra.mxu0 %v2526
    %2540 = vmatmul.bf16.gmra.mxu0 %v2530
    %v2541 = vpop.f32.mrf.mxu0
    %v2542 = vadd.f32 0.0, %v2541
    %v2543 = vpop.f32.mrf.mxu0
    %2544 = vdwg.mxu0
    %v2545 = vpack.c.bf16 %v2542, %v2542
    %v2546 = vld [vmem:[#allocation6] sm:$0xff]
    %v2547 = vld [vmem:[#allocation6 + $0x8] sm:$0xff]
    %v2548 = vld [vmem:[#allocation6 + $0x10] sm:$0xff]
    %v2549 = vld [vmem:[#allocation6 + $0x18] sm:$0xff]
    %v2550 = vld [vmem:[#allocation6 + $0x20] sm:$0xff]
    %v2551 = vld [vmem:[#allocation6 + $0x28] sm:$0xff]
    %v2552 = vld [vmem:[#allocation6 + $0x30] sm:$0xff]
    %v2553 = vld [vmem:[#allocation6 + $0x38] sm:$0xff]
    %v2554 = vld [vmem:[#allocation6 + $0x40] sm:$0xff]
    %v2555 = vld [vmem:[#allocation6 + $0x48] sm:$0xff]
    %v2556 = vld [vmem:[#allocation6 + $0x50] sm:$0xff]
    %v2557 = vld [vmem:[#allocation6 + $0x58] sm:$0xff]
    %v2558 = vld [vmem:[#allocation6 + $0x60] sm:$0xff]
    %v2559 = vld [vmem:[#allocation6 + $0x68] sm:$0xff]
    %v2560 = vld [vmem:[#allocation6 + $0x70] sm:$0xff]
    %v2561 = vld [vmem:[#allocation6 + $0x78] sm:$0xff]
    %v2562 = vld [vmem:[#allocation6 + $0x80] sm:$0xff]
    %v2563 = vld [vmem:[#allocation6 + $0x88] sm:$0xff]
    %v2564 = vld [vmem:[#allocation6 + $0x90] sm:$0xff]
    %v2565 = vld [vmem:[#allocation6 + $0x98] sm:$0xff]
    %v2566 = vld [vmem:[#allocation6 + $0xa0] sm:$0xff]
    %v2567 = vld [vmem:[#allocation6 + $0xa8] sm:$0xff]
    %v2568 = vld [vmem:[#allocation6 + $0xb0] sm:$0xff]
    %v2569 = vld [vmem:[#allocation6 + $0xb8] sm:$0xff]
    %v2570 = vld [vmem:[#allocation6 + $0xc0] sm:$0xff]
    %v2571 = vld [vmem:[#allocation6 + $0xc8] sm:$0xff]
    %v2572 = vld [vmem:[#allocation6 + $0xd0] sm:$0xff]
    %v2573 = vld [vmem:[#allocation6 + $0xd8] sm:$0xff]
    %v2574 = vld [vmem:[#allocation6 + $0xe0] sm:$0xff]
    %v2575 = vld [vmem:[#allocation6 + $0xe8] sm:$0xff]
    %v2576 = vld [vmem:[#allocation6 + $0xf0] sm:$0xff]
    %v2577 = vld [vmem:[#allocation6 + $0xf8] sm:$0xff]
    %s2578 = scalar_lea.vmem %s10, 2
    %v2579 = vld [vmem:[%s2578] sm:$0x3]
    %v2581 = vsel %vm2528, %v2579, 0
    %2583 = vmatpush.bf16.msra.mxu0 0
    %2584 = vmatpush.bf16.msra.mxu0 0
    %2585 = vmatpush.bf16.msra.mxu0 0
    %2586 = vmatpush.bf16.msra.mxu0 0
    %2587 = vmatpush.bf16.msra.mxu0 0
    %2588 = vmatpush.bf16.msra.mxu0 0
    %2589 = vmatpush.bf16.msra.mxu0 0
    %2590 = vmatpush.bf16.msra.mxu0 %v2526
    %2591 = vmatmul.bf16.gmra.mxu0 %v2581
    %v2592 = vpop.f32.mrf.mxu0
    %v2593 = vadd.f32 0.0, %v2592
    %v2594 = vpop.f32.mrf.mxu0
    %2595 = vdwg.mxu0
    %v2596 = vpack.c.bf16 %v2593, %v2593
    %s2597 = scalar_lea.vmem [#allocation6], 256
    %v2598 = vld [vmem:[%s2597] sm:$0xff]
    %v2599 = vld [vmem:[%s2597 + $0x8] sm:$0xff]
    %v2600 = vld [vmem:[%s2597 + $0x10] sm:$0xff]
    %v2601 = vld [vmem:[%s2597 + $0x18] sm:$0xff]
    %v2602 = vld [vmem:[%s2597 + $0x20] sm:$0xff]
    %v2603 = vld [vmem:[%s2597 + $0x28] sm:$0xff]
    %v2604 = vld [vmem:[%s2597 + $0x30] sm:$0xff]
    %v2605 = vld [vmem:[%s2597 + $0x38] sm:$0xff]
    %v2606 = vld [vmem:[%s2597 + $0x40] sm:$0xff]
    %v2607 = vld [vmem:[%s2597 + $0x48] sm:$0xff]
    %v2608 = vld [vmem:[%s2597 + $0x50] sm:$0xff]
    %v2609 = vld [vmem:[%s2597 + $0x58] sm:$0xff]
    %v2610 = vld [vmem:[%s2597 + $0x60] sm:$0xff]
    %v2611 = vld [vmem:[%s2597 + $0x68] sm:$0xff]
    %v2612 = vld [vmem:[%s2597 + $0x70] sm:$0xff]
    %v2613 = vld [vmem:[%s2597 + $0x78] sm:$0xff]
    %v2614 = vld [vmem:[%s2597 + $0x80] sm:$0xff]
    %v2615 = vld [vmem:[%s2597 + $0x88] sm:$0xff]
    %v2616 = vld [vmem:[%s2597 + $0x90] sm:$0xff]
    %v2617 = vld [vmem:[%s2597 + $0x98] sm:$0xff]
    %v2618 = vld [vmem:[%s2597 + $0xa0] sm:$0xff]
    %v2619 = vld [vmem:[%s2597 + $0xa8] sm:$0xff]
    %v2620 = vld [vmem:[%s2597 + $0xb0] sm:$0xff]
    %v2621 = vld [vmem:[%s2597 + $0xb8] sm:$0xff]
    %v2622 = vld [vmem:[%s2597 + $0xc0] sm:$0xff]
    %v2623 = vld [vmem:[%s2597 + $0xc8] sm:$0xff]
    %v2624 = vld [vmem:[%s2597 + $0xd0] sm:$0xff]
    %v2625 = vld [vmem:[%s2597 + $0xd8] sm:$0xff]
    %v2626 = vld [vmem:[%s2597 + $0xe0] sm:$0xff]
    %v2627 = vld [vmem:[%s2597 + $0xe8] sm:$0xff]
    %v2628 = vld [vmem:[%s2597 + $0xf0] sm:$0xff]
    %v2629 = vld [vmem:[%s2597 + $0xf8] sm:$0xff]
    %v2662 = vunpack.c.l.b16 %v2598
    %v2663 = vunpack.c.h.b16 %v2598
    %v2664 = vunpack.c.l.b16 %v2599
    %v2665 = vunpack.c.h.b16 %v2599
    %v2666 = vunpack.c.l.b16 %v2600
    %v2667 = vunpack.c.h.b16 %v2600
    %v2668 = vunpack.c.l.b16 %v2601
    %v2669 = vunpack.c.h.b16 %v2601
    %v2670 = vunpack.c.l.b16 %v2602
    %v2671 = vunpack.c.h.b16 %v2602
    %v2672 = vunpack.c.l.b16 %v2603
    %v2673 = vunpack.c.h.b16 %v2603
    %v2674 = vunpack.c.l.b16 %v2604
    %v2675 = vunpack.c.h.b16 %v2604
    %v2676 = vunpack.c.l.b16 %v2605
    %v2677 = vunpack.c.h.b16 %v2605
    %v2678 = vunpack.c.l.b16 %v2606
    %v2679 = vunpack.c.h.b16 %v2606
    %v2680 = vunpack.c.l.b16 %v2607
    %v2681 = vunpack.c.h.b16 %v2607
    %v2682 = vunpack.c.l.b16 %v2608
    %v2683 = vunpack.c.h.b16 %v2608
    %v2684 = vunpack.c.l.b16 %v2609
    %v2685 = vunpack.c.h.b16 %v2609
    %v2686 = vunpack.c.l.b16 %v2610
    %v2687 = vunpack.c.h.b16 %v2610
    %v2688 = vunpack.c.l.b16 %v2611
    %v2689 = vunpack.c.h.b16 %v2611
    %v2690 = vunpack.c.l.b16 %v2612
    %v2691 = vunpack.c.h.b16 %v2612
    %v2692 = vunpack.c.l.b16 %v2613
    %v2693 = vunpack.c.h.b16 %v2613
    %v2694 = vunpack.c.l.b16 %v2614
    %v2695 = vunpack.c.h.b16 %v2614
    %v2696 = vunpack.c.l.b16 %v2615
    %v2697 = vunpack.c.h.b16 %v2615
    %v2698 = vunpack.c.l.b16 %v2616
    %v2699 = vunpack.c.h.b16 %v2616
    %v2700 = vunpack.c.l.b16 %v2617
    %v2701 = vunpack.c.h.b16 %v2617
    %v2702 = vunpack.c.l.b16 %v2618
    %v2703 = vunpack.c.h.b16 %v2618
    %v2704 = vunpack.c.l.b16 %v2619
    %v2705 = vunpack.c.h.b16 %v2619
    %v2706 = vunpack.c.l.b16 %v2620
    %v2707 = vunpack.c.h.b16 %v2620
    %v2708 = vunpack.c.l.b16 %v2621
    %v2709 = vunpack.c.h.b16 %v2621
    %v2710 = vunpack.c.l.b16 %v2622
    %v2711 = vunpack.c.h.b16 %v2622
    %v2712 = vunpack.c.l.b16 %v2623
    %v2713 = vunpack.c.h.b16 %v2623
    %v2714 = vunpack.c.l.b16 %v2624
    %v2715 = vunpack.c.h.b16 %v2624
    %v2716 = vunpack.c.l.b16 %v2625
    %v2717 = vunpack.c.h.b16 %v2625
    %v2718 = vunpack.c.l.b16 %v2626
    %v2719 = vunpack.c.h.b16 %v2626
    %v2720 = vunpack.c.l.b16 %v2627
    %v2721 = vunpack.c.h.b16 %v2627
    %v2722 = vunpack.c.l.b16 %v2628
    %v2723 = vunpack.c.h.b16 %v2628
    %v2724 = vunpack.c.l.b16 %v2629
    %v2725 = vunpack.c.h.b16 %v2629
    %v2726 = vpack.c.b16 %v2666, %v2662
    %v2727 = vpack.c.b16 %v2667, %v2663
    %v2728 = vpack.c.b16 %v2668, %v2664
    %v2729 = vpack.c.b16 %v2669, %v2665
    %v2730 = vpack.c.b16 %v2674, %v2670
    %v2731 = vpack.c.b16 %v2675, %v2671
    %v2732 = vpack.c.b16 %v2676, %v2672
    %v2733 = vpack.c.b16 %v2677, %v2673
    %v2734 = vpack.c.b16 %v2682, %v2678
    %v2735 = vpack.c.b16 %v2683, %v2679
    %v2736 = vpack.c.b16 %v2684, %v2680
    %v2737 = vpack.c.b16 %v2685, %v2681
    %v2738 = vpack.c.b16 %v2690, %v2686
    %v2739 = vpack.c.b16 %v2691, %v2687
    %v2740 = vpack.c.b16 %v2692, %v2688
    %v2741 = vpack.c.b16 %v2693, %v2689
    %v2742 = vpack.c.b16 %v2698, %v2694
    %v2743 = vpack.c.b16 %v2699, %v2695
    %v2744 = vpack.c.b16 %v2700, %v2696
    %v2745 = vpack.c.b16 %v2701, %v2697
    %v2746 = vpack.c.b16 %v2706, %v2702
    %v2747 = vpack.c.b16 %v2707, %v2703
    %v2748 = vpack.c.b16 %v2708, %v2704
    %v2749 = vpack.c.b16 %v2709, %v2705
    %v2750 = vpack.c.b16 %v2714, %v2710
    %v2751 = vpack.c.b16 %v2715, %v2711
    %v2752 = vpack.c.b16 %v2716, %v2712
    %v2753 = vpack.c.b16 %v2717, %v2713
    %v2754 = vpack.c.b16 %v2722, %v2718
    %v2755 = vpack.c.b16 %v2723, %v2719
    %v2756 = vpack.c.b16 %v2724, %v2720
    %v2757 = vpack.c.b16 %v2725, %v2721
    %2790 = vmatpush.bf16.msra.mxu0 %v2754
    %2791 = vmatpush.bf16.msra.mxu0 %v2750
    %2792 = vmatpush.bf16.msra.mxu0 %v2746
    %2793 = vmatpush.bf16.msra.mxu0 %v2742
    %2794 = vmatpush.bf16.msra.mxu0 %v2738
    %2795 = vmatpush.bf16.msra.mxu0 %v2734
    %2796 = vmatpush.bf16.msra.mxu0 %v2730
    %2797 = vmatpush.bf16.msra.mxu0 %v2726
    %2798 = vmatmul.bf16.gmra.mxu0 %v2596
    %v2799 = vpop.f32.mrf.mxu0
    %v2800 = vadd.f32 0.0, %v2799
    %v2801 = vpop.f32.mrf.mxu0
    %2802 = vdwg.mxu0
    %2803 = vmatpush.bf16.msra.mxu0 %v2755
    %2804 = vmatpush.bf16.msra.mxu0 %v2751
    %2805 = vmatpush.bf16.msra.mxu0 %v2747
    %2806 = vmatpush.bf16.msra.mxu0 %v2743
    %2807 = vmatpush.bf16.msra.mxu0 %v2739
    %2808 = vmatpush.bf16.msra.mxu0 %v2735
    %2809 = vmatpush.bf16.msra.mxu0 %v2731
    %2810 = vmatpush.bf16.msra.mxu0 %v2727
    %2811 = vmatmul.bf16.gmra.mxu0 %v2596
    %v2812 = vpop.f32.mrf.mxu0
    %v2813 = vadd.f32 0.0, %v2812
    %v2814 = vpop.f32.mrf.mxu0
    %2815 = vdwg.mxu0
    %2816 = vmatpush.bf16.msra.mxu0 %v2756
    %2817 = vmatpush.bf16.msra.mxu0 %v2752
    %2818 = vmatpush.bf16.msra.mxu0 %v2748
    %2819 = vmatpush.bf16.msra.mxu0 %v2744
    %2820 = vmatpush.bf16.msra.mxu0 %v2740
    %2821 = vmatpush.bf16.msra.mxu0 %v2736
    %2822 = vmatpush.bf16.msra.mxu0 %v2732
    %2823 = vmatpush.bf16.msra.mxu0 %v2728
    %2824 = vmatmul.bf16.gmra.mxu0 %v2596
    %v2825 = vpop.f32.mrf.mxu0
    %v2826 = vadd.f32 0.0, %v2825
    %v2827 = vpop.f32.mrf.mxu0
    %2828 = vdwg.mxu0
    %2829 = vmatpush.bf16.msra.mxu0 %v2757
    %2830 = vmatpush.bf16.msra.mxu0 %v2753
    %2831 = vmatpush.bf16.msra.mxu0 %v2749
    %2832 = vmatpush.bf16.msra.mxu0 %v2745
    %2833 = vmatpush.bf16.msra.mxu0 %v2741
    %2834 = vmatpush.bf16.msra.mxu0 %v2737
    %2835 = vmatpush.bf16.msra.mxu0 %v2733
    %2836 = vmatpush.bf16.msra.mxu0 %v2729
    %2837 = vmatmul.bf16.gmra.mxu0 %v2596
    %v2838 = vpop.f32.mrf.mxu0
    %v2839 = vadd.f32 0.0, %v2838
    %v2840 = vpop.f32.mrf.mxu0
    %2841 = vdwg.mxu0
    %v2874 = vunpack.c.l.b16 %v2546
    %v2875 = vunpack.c.h.b16 %v2546
    %v2876 = vunpack.c.l.b16 %v2547
    %v2877 = vunpack.c.h.b16 %v2547
    %v2878 = vunpack.c.l.b16 %v2548
    %v2879 = vunpack.c.h.b16 %v2548
    %v2880 = vunpack.c.l.b16 %v2549
    %v2881 = vunpack.c.h.b16 %v2549
    %v2882 = vunpack.c.l.b16 %v2550
    %v2883 = vunpack.c.h.b16 %v2550
    %v2884 = vunpack.c.l.b16 %v2551
    %v2885 = vunpack.c.h.b16 %v2551
    %v2886 = vunpack.c.l.b16 %v2552
    %v2887 = vunpack.c.h.b16 %v2552
    %v2888 = vunpack.c.l.b16 %v2553
    %v2889 = vunpack.c.h.b16 %v2553
    %v2890 = vunpack.c.l.b16 %v2554
    %v2891 = vunpack.c.h.b16 %v2554
    %v2892 = vunpack.c.l.b16 %v2555
    %v2893 = vunpack.c.h.b16 %v2555
    %v2894 = vunpack.c.l.b16 %v2556
    %v2895 = vunpack.c.h.b16 %v2556
    %v2896 = vunpack.c.l.b16 %v2557
    %v2897 = vunpack.c.h.b16 %v2557
    %v2898 = vunpack.c.l.b16 %v2558
    %v2899 = vunpack.c.h.b16 %v2558
    %v2900 = vunpack.c.l.b16 %v2559
    %v2901 = vunpack.c.h.b16 %v2559
    %v2902 = vunpack.c.l.b16 %v2560
    %v2903 = vunpack.c.h.b16 %v2560
    %v2904 = vunpack.c.l.b16 %v2561
    %v2905 = vunpack.c.h.b16 %v2561
    %v2906 = vunpack.c.l.b16 %v2562
    %v2907 = vunpack.c.h.b16 %v2562
    %v2908 = vunpack.c.l.b16 %v2563
    %v2909 = vunpack.c.h.b16 %v2563
    %v2910 = vunpack.c.l.b16 %v2564
    %v2911 = vunpack.c.h.b16 %v2564
    %v2912 = vunpack.c.l.b16 %v2565
    %v2913 = vunpack.c.h.b16 %v2565
    %v2914 = vunpack.c.l.b16 %v2566
    %v2915 = vunpack.c.h.b16 %v2566
    %v2916 = vunpack.c.l.b16 %v2567
    %v2917 = vunpack.c.h.b16 %v2567
    %v2918 = vunpack.c.l.b16 %v2568
    %v2919 = vunpack.c.h.b16 %v2568
    %v2920 = vunpack.c.l.b16 %v2569
    %v2921 = vunpack.c.h.b16 %v2569
    %v2922 = vunpack.c.l.b16 %v2570
    %v2923 = vunpack.c.h.b16 %v2570
    %v2924 = vunpack.c.l.b16 %v2571
    %v2925 = vunpack.c.h.b16 %v2571
    %v2926 = vunpack.c.l.b16 %v2572
    %v2927 = vunpack.c.h.b16 %v2572
    %v2928 = vunpack.c.l.b16 %v2573
    %v2929 = vunpack.c.h.b16 %v2573
    %v2930 = vunpack.c.l.b16 %v2574
    %v2931 = vunpack.c.h.b16 %v2574
    %v2932 = vunpack.c.l.b16 %v2575
    %v2933 = vunpack.c.h.b16 %v2575
    %v2934 = vunpack.c.l.b16 %v2576
    %v2935 = vunpack.c.h.b16 %v2576
    %v2936 = vunpack.c.l.b16 %v2577
    %v2937 = vunpack.c.h.b16 %v2577
    %v2938 = vpack.c.b16 %v2878, %v2874
    %v2939 = vpack.c.b16 %v2879, %v2875
    %v2940 = vpack.c.b16 %v2880, %v2876
    %v2941 = vpack.c.b16 %v2881, %v2877
    %v2942 = vpack.c.b16 %v2886, %v2882
    %v2943 = vpack.c.b16 %v2887, %v2883
    %v2944 = vpack.c.b16 %v2888, %v2884
    %v2945 = vpack.c.b16 %v2889, %v2885
    %v2946 = vpack.c.b16 %v2894, %v2890
    %v2947 = vpack.c.b16 %v2895, %v2891
    %v2948 = vpack.c.b16 %v2896, %v2892
    %v2949 = vpack.c.b16 %v2897, %v2893
    %v2950 = vpack.c.b16 %v2902, %v2898
    %v2951 = vpack.c.b16 %v2903, %v2899
    %v2952 = vpack.c.b16 %v2904, %v2900
    %v2953 = vpack.c.b16 %v2905, %v2901
    %v2954 = vpack.c.b16 %v2910, %v2906
    %v2955 = vpack.c.b16 %v2911, %v2907
    %v2956 = vpack.c.b16 %v2912, %v2908
    %v2957 = vpack.c.b16 %v2913, %v2909
    %v2958 = vpack.c.b16 %v2918, %v2914
    %v2959 = vpack.c.b16 %v2919, %v2915
    %v2960 = vpack.c.b16 %v2920, %v2916
    %v2961 = vpack.c.b16 %v2921, %v2917
    %v2962 = vpack.c.b16 %v2926, %v2922
    %v2963 = vpack.c.b16 %v2927, %v2923
    %v2964 = vpack.c.b16 %v2928, %v2924
    %v2965 = vpack.c.b16 %v2929, %v2925
    %v2966 = vpack.c.b16 %v2934, %v2930
    %v2967 = vpack.c.b16 %v2935, %v2931
    %v2968 = vpack.c.b16 %v2936, %v2932
    %v2969 = vpack.c.b16 %v2937, %v2933
    %3002 = vmatpush.bf16.msra.mxu0 %v2966
    %3003 = vmatpush.bf16.msra.mxu0 %v2962
    %3004 = vmatpush.bf16.msra.mxu0 %v2958
    %3005 = vmatpush.bf16.msra.mxu0 %v2954
    %3006 = vmatpush.bf16.msra.mxu0 %v2950
    %3007 = vmatpush.bf16.msra.mxu0 %v2946
    %3008 = vmatpush.bf16.msra.mxu0 %v2942
    %3009 = vmatpush.bf16.msra.mxu0 %v2938
    %3010 = vmatmul.bf16.gmra.mxu0 %v2545
    %v3011 = vpop.f32.mrf.mxu0
    %v3012 = vadd.f32 %v2800, %v3011
    %v3013 = vpop.f32.mrf.mxu0
    %3014 = vdwg.mxu0
    %3015 = vmatpush.bf16.msra.mxu0 %v2967
    %3016 = vmatpush.bf16.msra.mxu0 %v2963
    %3017 = vmatpush.bf16.msra.mxu0 %v2959
    %3018 = vmatpush.bf16.msra.mxu0 %v2955
    %3019 = vmatpush.bf16.msra.mxu0 %v2951
    %3020 = vmatpush.bf16.msra.mxu0 %v2947
    %3021 = vmatpush.bf16.msra.mxu0 %v2943
    %3022 = vmatpush.bf16.msra.mxu0 %v2939
    %3023 = vmatmul.bf16.gmra.mxu0 %v2545
    %v3024 = vpop.f32.mrf.mxu0
    %v3025 = vadd.f32 %v2813, %v3024
    %v3026 = vpop.f32.mrf.mxu0
    %3027 = vdwg.mxu0
    %3028 = vmatpush.bf16.msra.mxu0 %v2968
    %3029 = vmatpush.bf16.msra.mxu0 %v2964
    %3030 = vmatpush.bf16.msra.mxu0 %v2960
    %3031 = vmatpush.bf16.msra.mxu0 %v2956
    %3032 = vmatpush.bf16.msra.mxu0 %v2952
    %3033 = vmatpush.bf16.msra.mxu0 %v2948
    %3034 = vmatpush.bf16.msra.mxu0 %v2944
    %3035 = vmatpush.bf16.msra.mxu0 %v2940
    %3036 = vmatmul.bf16.gmra.mxu0 %v2545
    %v3037 = vpop.f32.mrf.mxu0
    %v3038 = vadd.f32 %v2826, %v3037
    %v3039 = vpop.f32.mrf.mxu0
    %3040 = vdwg.mxu0
    %3041 = vmatpush.bf16.msra.mxu0 %v2969
    %3042 = vmatpush.bf16.msra.mxu0 %v2965
    %3043 = vmatpush.bf16.msra.mxu0 %v2961
    %3044 = vmatpush.bf16.msra.mxu0 %v2957
    %3045 = vmatpush.bf16.msra.mxu0 %v2953
    %3046 = vmatpush.bf16.msra.mxu0 %v2949
    %3047 = vmatpush.bf16.msra.mxu0 %v2945
    %3048 = vmatpush.bf16.msra.mxu0 %v2941
    %3049 = vmatmul.bf16.gmra.mxu0 %v2545
    %v3050 = vpop.f32.mrf.mxu0
    %v3051 = vadd.f32 %v2839, %v3050
    %v3052 = vpop.f32.mrf.mxu0
    %3053 = vdwg.mxu0
    %s3054 = scalar_lea.vmem %s10, 4
    %v3055 = vld [vmem:[%s3054] sm:$0x3]
    %v3057 = vsel %vm2528, %v3055, 0
    %3059 = vmatpush.bf16.msra.mxu0 0
    %3060 = vmatpush.bf16.msra.mxu0 0
    %3061 = vmatpush.bf16.msra.mxu0 0
    %3062 = vmatpush.bf16.msra.mxu0 0
    %3063 = vmatpush.bf16.msra.mxu0 0
    %3064 = vmatpush.bf16.msra.mxu0 0
    %3065 = vmatpush.bf16.msra.mxu0 0
    %3066 = vmatpush.bf16.msra.mxu0 %v2526
    %3067 = vmatmul.bf16.gmra.mxu0 %v3057
    %v3068 = vpop.f32.mrf.mxu0
    %v3069 = vadd.f32 0.0, %v3068
    %v3070 = vpop.f32.mrf.mxu0
    %3071 = vdwg.mxu0
    %v3072 = vpack.c.bf16 %v3069, %v3069
    %s3073 = scalar_lea.vmem [#allocation6], 512
    %v3074 = vld [vmem:[%s3073] sm:$0xff]
    %v3075 = vld [vmem:[%s3073 + $0x8] sm:$0xff]
    %v3076 = vld [vmem:[%s3073 + $0x10] sm:$0xff]
    %v3077 = vld [vmem:[%s3073 + $0x18] sm:$0xff]
    %v3078 = vld [vmem:[%s3073 + $0x20] sm:$0xff]
    %v3079 = vld [vmem:[%s3073 + $0x28] sm:$0xff]
    %v3080 = vld [vmem:[%s3073 + $0x30] sm:$0xff]
    %v3081 = vld [vmem:[%s3073 + $0x38] sm:$0xff]
    %v3082 = vld [vmem:[%s3073 + $0x40] sm:$0xff]
    %v3083 = vld [vmem:[%s3073 + $0x48] sm:$0xff]
    %v3084 = vld [vmem:[%s3073 + $0x50] sm:$0xff]
    %v3085 = vld [vmem:[%s3073 + $0x58] sm:$0xff]
    %v3086 = vld [vmem:[%s3073 + $0x60] sm:$0xff]
    %v3087 = vld [vmem:[%s3073 + $0x68] sm:$0xff]
    %v3088 = vld [vmem:[%s3073 + $0x70] sm:$0xff]
    %v3089 = vld [vmem:[%s3073 + $0x78] sm:$0xff]
    %v3090 = vld [vmem:[%s3073 + $0x80] sm:$0xff]
    %v3091 = vld [vmem:[%s3073 + $0x88] sm:$0xff]
    %v3092 = vld [vmem:[%s3073 + $0x90] sm:$0xff]
    %v3093 = vld [vmem:[%s3073 + $0x98] sm:$0xff]
    %v3094 = vld [vmem:[%s3073 + $0xa0] sm:$0xff]
    %v3095 = vld [vmem:[%s3073 + $0xa8] sm:$0xff]
    %v3096 = vld [vmem:[%s3073 + $0xb0] sm:$0xff]
    %v3097 = vld [vmem:[%s3073 + $0xb8] sm:$0xff]
    %v3098 = vld [vmem:[%s3073 + $0xc0] sm:$0xff]
    %v3099 = vld [vmem:[%s3073 + $0xc8] sm:$0xff]
    %v3100 = vld [vmem:[%s3073 + $0xd0] sm:$0xff]
    %v3101 = vld [vmem:[%s3073 + $0xd8] sm:$0xff]
    %v3102 = vld [vmem:[%s3073 + $0xe0] sm:$0xff]
    %v3103 = vld [vmem:[%s3073 + $0xe8] sm:$0xff]
    %v3104 = vld [vmem:[%s3073 + $0xf0] sm:$0xff]
    %v3105 = vld [vmem:[%s3073 + $0xf8] sm:$0xff]
    %v3138 = vunpack.c.l.b16 %v3074
    %v3139 = vunpack.c.h.b16 %v3074
    %v3140 = vunpack.c.l.b16 %v3075
    %v3141 = vunpack.c.h.b16 %v3075
    %v3142 = vunpack.c.l.b16 %v3076
    %v3143 = vunpack.c.h.b16 %v3076
    %v3144 = vunpack.c.l.b16 %v3077
    %v3145 = vunpack.c.h.b16 %v3077
    %v3146 = vunpack.c.l.b16 %v3078
    %v3147 = vunpack.c.h.b16 %v3078
    %v3148 = vunpack.c.l.b16 %v3079
    %v3149 = vunpack.c.h.b16 %v3079
    %v3150 = vunpack.c.l.b16 %v3080
    %v3151 = vunpack.c.h.b16 %v3080
    %v3152 = vunpack.c.l.b16 %v3081
    %v3153 = vunpack.c.h.b16 %v3081
    %v3154 = vunpack.c.l.b16 %v3082
    %v3155 = vunpack.c.h.b16 %v3082
    %v3156 = vunpack.c.l.b16 %v3083
    %v3157 = vunpack.c.h.b16 %v3083
    %v3158 = vunpack.c.l.b16 %v3084
    %v3159 = vunpack.c.h.b16 %v3084
    %v3160 = vunpack.c.l.b16 %v3085
    %v3161 = vunpack.c.h.b16 %v3085
    %v3162 = vunpack.c.l.b16 %v3086
    %v3163 = vunpack.c.h.b16 %v3086
    %v3164 = vunpack.c.l.b16 %v3087
    %v3165 = vunpack.c.h.b16 %v3087
    %v3166 = vunpack.c.l.b16 %v3088
    %v3167 = vunpack.c.h.b16 %v3088
    %v3168 = vunpack.c.l.b16 %v3089
    %v3169 = vunpack.c.h.b16 %v3089
    %v3170 = vunpack.c.l.b16 %v3090
    %v3171 = vunpack.c.h.b16 %v3090
    %v3172 = vunpack.c.l.b16 %v3091
    %v3173 = vunpack.c.h.b16 %v3091
    %v3174 = vunpack.c.l.b16 %v3092
    %v3175 = vunpack.c.h.b16 %v3092
    %v3176 = vunpack.c.l.b16 %v3093
    %v3177 = vunpack.c.h.b16 %v3093
    %v3178 = vunpack.c.l.b16 %v3094
    %v3179 = vunpack.c.h.b16 %v3094
    %v3180 = vunpack.c.l.b16 %v3095
    %v3181 = vunpack.c.h.b16 %v3095
    %v3182 = vunpack.c.l.b16 %v3096
    %v3183 = vunpack.c.h.b16 %v3096
    %v3184 = vunpack.c.l.b16 %v3097
    %v3185 = vunpack.c.h.b16 %v3097
    %v3186 = vunpack.c.l.b16 %v3098
    %v3187 = vunpack.c.h.b16 %v3098
    %v3188 = vunpack.c.l.b16 %v3099
    %v3189 = vunpack.c.h.b16 %v3099
    %v3190 = vunpack.c.l.b16 %v3100
    %v3191 = vunpack.c.h.b16 %v3100
    %v3192 = vunpack.c.l.b16 %v3101
    %v3193 = vunpack.c.h.b16 %v3101
    %v3194 = vunpack.c.l.b16 %v3102
    %v3195 = vunpack.c.h.b16 %v3102
    %v3196 = vunpack.c.l.b16 %v3103
    %v3197 = vunpack.c.h.b16 %v3103
    %v3198 = vunpack.c.l.b16 %v3104
    %v3199 = vunpack.c.h.b16 %v3104
    %v3200 = vunpack.c.l.b16 %v3105
    %v3201 = vunpack.c.h.b16 %v3105
    %v3202 = vpack.c.b16 %v3142, %v3138
    %v3203 = vpack.c.b16 %v3143, %v3139
    %v3204 = vpack.c.b16 %v3144, %v3140
    %v3205 = vpack.c.b16 %v3145, %v3141
    %v3206 = vpack.c.b16 %v3150, %v3146
    %v3207 = vpack.c.b16 %v3151, %v3147
    %v3208 = vpack.c.b16 %v3152, %v3148
    %v3209 = vpack.c.b16 %v3153, %v3149
    %v3210 = vpack.c.b16 %v3158, %v3154
    %v3211 = vpack.c.b16 %v3159, %v3155
    %v3212 = vpack.c.b16 %v3160, %v3156
    %v3213 = vpack.c.b16 %v3161, %v3157
    %v3214 = vpack.c.b16 %v3166, %v3162
    %v3215 = vpack.c.b16 %v3167, %v3163
    %v3216 = vpack.c.b16 %v3168, %v3164
    %v3217 = vpack.c.b16 %v3169, %v3165
    %v3218 = vpack.c.b16 %v3174, %v3170
    %v3219 = vpack.c.b16 %v3175, %v3171
    %v3220 = vpack.c.b16 %v3176, %v3172
    %v3221 = vpack.c.b16 %v3177, %v3173
    %v3222 = vpack.c.b16 %v3182, %v3178
    %v3223 = vpack.c.b16 %v3183, %v3179
    %v3224 = vpack.c.b16 %v3184, %v3180
    %v3225 = vpack.c.b16 %v3185, %v3181
    %v3226 = vpack.c.b16 %v3190, %v3186
    %v3227 = vpack.c.b16 %v3191, %v3187
    %v3228 = vpack.c.b16 %v3192, %v3188
    %v3229 = vpack.c.b16 %v3193, %v3189
    %v3230 = vpack.c.b16 %v3198, %v3194
    %v3231 = vpack.c.b16 %v3199, %v3195
    %v3232 = vpack.c.b16 %v3200, %v3196
    %v3233 = vpack.c.b16 %v3201, %v3197
    %3266 = vmatpush.bf16.msra.mxu0 %v3230
    %3267 = vmatpush.bf16.msra.mxu0 %v3226
    %3268 = vmatpush.bf16.msra.mxu0 %v3222
    %3269 = vmatpush.bf16.msra.mxu0 %v3218
    %3270 = vmatpush.bf16.msra.mxu0 %v3214
    %3271 = vmatpush.bf16.msra.mxu0 %v3210
    %3272 = vmatpush.bf16.msra.mxu0 %v3206
    %3273 = vmatpush.bf16.msra.mxu0 %v3202
    %3274 = vmatmul.bf16.gmra.mxu0 %v3072
    %v3275 = vpop.f32.mrf.mxu0
    %v3276 = vadd.f32 0.0, %v3275
    %v3277 = vpop.f32.mrf.mxu0
    %3278 = vdwg.mxu0
    %3279 = vmatpush.bf16.msra.mxu0 %v3231
    %3280 = vmatpush.bf16.msra.mxu0 %v3227
    %3281 = vmatpush.bf16.msra.mxu0 %v3223
    %3282 = vmatpush.bf16.msra.mxu0 %v3219
    %3283 = vmatpush.bf16.msra.mxu0 %v3215
    %3284 = vmatpush.bf16.msra.mxu0 %v3211
    %3285 = vmatpush.bf16.msra.mxu0 %v3207
    %3286 = vmatpush.bf16.msra.mxu0 %v3203
    %3287 = vmatmul.bf16.gmra.mxu0 %v3072
    %v3288 = vpop.f32.mrf.mxu0
    %v3289 = vadd.f32 0.0, %v3288
    %v3290 = vpop.f32.mrf.mxu0
    %3291 = vdwg.mxu0
    %3292 = vmatpush.bf16.msra.mxu0 %v3232
    %3293 = vmatpush.bf16.msra.mxu0 %v3228
    %3294 = vmatpush.bf16.msra.mxu0 %v3224
    %3295 = vmatpush.bf16.msra.mxu0 %v3220
    %3296 = vmatpush.bf16.msra.mxu0 %v3216
    %3297 = vmatpush.bf16.msra.mxu0 %v3212
    %3298 = vmatpush.bf16.msra.mxu0 %v3208
    %3299 = vmatpush.bf16.msra.mxu0 %v3204
    %3300 = vmatmul.bf16.gmra.mxu0 %v3072
    %v3301 = vpop.f32.mrf.mxu0
    %v3302 = vadd.f32 0.0, %v3301
    %v3303 = vpop.f32.mrf.mxu0
    %3304 = vdwg.mxu0
    %3305 = vmatpush.bf16.msra.mxu0 %v3233
    %3306 = vmatpush.bf16.msra.mxu0 %v3229
    %3307 = vmatpush.bf16.msra.mxu0 %v3225
    %3308 = vmatpush.bf16.msra.mxu0 %v3221
    %3309 = vmatpush.bf16.msra.mxu0 %v3217
    %3310 = vmatpush.bf16.msra.mxu0 %v3213
    %3311 = vmatpush.bf16.msra.mxu0 %v3209
    %3312 = vmatpush.bf16.msra.mxu0 %v3205
    %3313 = vmatmul.bf16.gmra.mxu0 %v3072
    %v3314 = vpop.f32.mrf.mxu0
    %v3315 = vadd.f32 0.0, %v3314
    %v3316 = vpop.f32.mrf.mxu0
    %3317 = vdwg.mxu0
    %v3318 = vadd.f32 %v3012, %v3276
    %v3319 = vadd.f32 %v3025, %v3289
    %v3320 = vadd.f32 %v3038, %v3302
    %v3321 = vadd.f32 %v3051, %v3315
    %s3322 = scalar_lea.vmem %s10, 6
    %v3323 = vld [vmem:[%s3322] sm:$0x3]
    %v3325 = vsel %vm2528, %v3323, 0
    %3327 = vmatpush.bf16.msra.mxu0 0
    %3328 = vmatpush.bf16.msra.mxu0 0
    %3329 = vmatpush.bf16.msra.mxu0 0
    %3330 = vmatpush.bf16.msra.mxu0 0
    %3331 = vmatpush.bf16.msra.mxu0 0
    %3332 = vmatpush.bf16.msra.mxu0 0
    %3333 = vmatpush.bf16.msra.mxu0 0
    %3334 = vmatpush.bf16.msra.mxu0 %v2526
    %3335 = vmatmul.bf16.gmra.mxu0 %v3325
    %v3336 = vpop.f32.mrf.mxu0
    %v3337 = vadd.f32 0.0, %v3336
    %v3338 = vpop.f32.mrf.mxu0
    %3339 = vdwg.mxu0
    %v3340 = vpack.c.bf16 %v3337, %v3337
    %s3341 = scalar_lea.vmem [#allocation6], 768
    %v3342 = vld [vmem:[%s3341] sm:$0xff]
    %v3343 = vld [vmem:[%s3341 + $0x8] sm:$0xff]
    %v3344 = vld [vmem:[%s3341 + $0x10] sm:$0xff]
    %v3345 = vld [vmem:[%s3341 + $0x18] sm:$0xff]
    %v3346 = vld [vmem:[%s3341 + $0x20] sm:$0xff]
    %v3347 = vld [vmem:[%s3341 + $0x28] sm:$0xff]
    %v3348 = vld [vmem:[%s3341 + $0x30] sm:$0xff]
    %v3349 = vld [vmem:[%s3341 + $0x38] sm:$0xff]
    %v3350 = vld [vmem:[%s3341 + $0x40] sm:$0xff]
    %v3351 = vld [vmem:[%s3341 + $0x48] sm:$0xff]
    %v3352 = vld [vmem:[%s3341 + $0x50] sm:$0xff]
    %v3353 = vld [vmem:[%s3341 + $0x58] sm:$0xff]
    %v3354 = vld [vmem:[%s3341 + $0x60] sm:$0xff]
    %v3355 = vld [vmem:[%s3341 + $0x68] sm:$0xff]
    %v3356 = vld [vmem:[%s3341 + $0x70] sm:$0xff]
    %v3357 = vld [vmem:[%s3341 + $0x78] sm:$0xff]
    %v3358 = vld [vmem:[%s3341 + $0x80] sm:$0xff]
    %v3359 = vld [vmem:[%s3341 + $0x88] sm:$0xff]
    %v3360 = vld [vmem:[%s3341 + $0x90] sm:$0xff]
    %v3361 = vld [vmem:[%s3341 + $0x98] sm:$0xff]
    %v3362 = vld [vmem:[%s3341 + $0xa0] sm:$0xff]
    %v3363 = vld [vmem:[%s3341 + $0xa8] sm:$0xff]
    %v3364 = vld [vmem:[%s3341 + $0xb0] sm:$0xff]
    %v3365 = vld [vmem:[%s3341 + $0xb8] sm:$0xff]
    %v3366 = vld [vmem:[%s3341 + $0xc0] sm:$0xff]
    %v3367 = vld [vmem:[%s3341 + $0xc8] sm:$0xff]
    %v3368 = vld [vmem:[%s3341 + $0xd0] sm:$0xff]
    %v3369 = vld [vmem:[%s3341 + $0xd8] sm:$0xff]
    %v3370 = vld [vmem:[%s3341 + $0xe0] sm:$0xff]
    %v3371 = vld [vmem:[%s3341 + $0xe8] sm:$0xff]
    %v3372 = vld [vmem:[%s3341 + $0xf0] sm:$0xff]
    %v3373 = vld [vmem:[%s3341 + $0xf8] sm:$0xff]
    %v3406 = vunpack.c.l.b16 %v3342
    %v3407 = vunpack.c.h.b16 %v3342
    %v3408 = vunpack.c.l.b16 %v3343
    %v3409 = vunpack.c.h.b16 %v3343
    %v3410 = vunpack.c.l.b16 %v3344
    %v3411 = vunpack.c.h.b16 %v3344
    %v3412 = vunpack.c.l.b16 %v3345
    %v3413 = vunpack.c.h.b16 %v3345
    %v3414 = vunpack.c.l.b16 %v3346
    %v3415 = vunpack.c.h.b16 %v3346
    %v3416 = vunpack.c.l.b16 %v3347
    %v3417 = vunpack.c.h.b16 %v3347
    %v3418 = vunpack.c.l.b16 %v3348
    %v3419 = vunpack.c.h.b16 %v3348
    %v3420 = vunpack.c.l.b16 %v3349
    %v3421 = vunpack.c.h.b16 %v3349
    %v3422 = vunpack.c.l.b16 %v3350
    %v3423 = vunpack.c.h.b16 %v3350
    %v3424 = vunpack.c.l.b16 %v3351
    %v3425 = vunpack.c.h.b16 %v3351
    %v3426 = vunpack.c.l.b16 %v3352
    %v3427 = vunpack.c.h.b16 %v3352
    %v3428 = vunpack.c.l.b16 %v3353
    %v3429 = vunpack.c.h.b16 %v3353
    %v3430 = vunpack.c.l.b16 %v3354
    %v3431 = vunpack.c.h.b16 %v3354
    %v3432 = vunpack.c.l.b16 %v3355
    %v3433 = vunpack.c.h.b16 %v3355
    %v3434 = vunpack.c.l.b16 %v3356
    %v3435 = vunpack.c.h.b16 %v3356
    %v3436 = vunpack.c.l.b16 %v3357
    %v3437 = vunpack.c.h.b16 %v3357
    %v3438 = vunpack.c.l.b16 %v3358
    %v3439 = vunpack.c.h.b16 %v3358
    %v3440 = vunpack.c.l.b16 %v3359
    %v3441 = vunpack.c.h.b16 %v3359
    %v3442 = vunpack.c.l.b16 %v3360
    %v3443 = vunpack.c.h.b16 %v3360
    %v3444 = vunpack.c.l.b16 %v3361
    %v3445 = vunpack.c.h.b16 %v3361
    %v3446 = vunpack.c.l.b16 %v3362
    %v3447 = vunpack.c.h.b16 %v3362
    %v3448 = vunpack.c.l.b16 %v3363
    %v3449 = vunpack.c.h.b16 %v3363
    %v3450 = vunpack.c.l.b16 %v3364
    %v3451 = vunpack.c.h.b16 %v3364
    %v3452 = vunpack.c.l.b16 %v3365
    %v3453 = vunpack.c.h.b16 %v3365
    %v3454 = vunpack.c.l.b16 %v3366
    %v3455 = vunpack.c.h.b16 %v3366
    %v3456 = vunpack.c.l.b16 %v3367
    %v3457 = vunpack.c.h.b16 %v3367
    %v3458 = vunpack.c.l.b16 %v3368
    %v3459 = vunpack.c.h.b16 %v3368
    %v3460 = vunpack.c.l.b16 %v3369
    %v3461 = vunpack.c.h.b16 %v3369
    %v3462 = vunpack.c.l.b16 %v3370
    %v3463 = vunpack.c.h.b16 %v3370
    %v3464 = vunpack.c.l.b16 %v3371
    %v3465 = vunpack.c.h.b16 %v3371
    %v3466 = vunpack.c.l.b16 %v3372
    %v3467 = vunpack.c.h.b16 %v3372
    %v3468 = vunpack.c.l.b16 %v3373
    %v3469 = vunpack.c.h.b16 %v3373
    %v3470 = vpack.c.b16 %v3410, %v3406
    %v3471 = vpack.c.b16 %v3411, %v3407
    %v3472 = vpack.c.b16 %v3412, %v3408
    %v3473 = vpack.c.b16 %v3413, %v3409
    %v3474 = vpack.c.b16 %v3418, %v3414
    %v3475 = vpack.c.b16 %v3419, %v3415
    %v3476 = vpack.c.b16 %v3420, %v3416
    %v3477 = vpack.c.b16 %v3421, %v3417
    %v3478 = vpack.c.b16 %v3426, %v3422
    %v3479 = vpack.c.b16 %v3427, %v3423
    %v3480 = vpack.c.b16 %v3428, %v3424
    %v3481 = vpack.c.b16 %v3429, %v3425
    %v3482 = vpack.c.b16 %v3434, %v3430
    %v3483 = vpack.c.b16 %v3435, %v3431
    %v3484 = vpack.c.b16 %v3436, %v3432
    %v3485 = vpack.c.b16 %v3437, %v3433
    %v3486 = vpack.c.b16 %v3442, %v3438
    %v3487 = vpack.c.b16 %v3443, %v3439
    %v3488 = vpack.c.b16 %v3444, %v3440
    %v3489 = vpack.c.b16 %v3445, %v3441
    %v3490 = vpack.c.b16 %v3450, %v3446
    %v3491 = vpack.c.b16 %v3451, %v3447
    %v3492 = vpack.c.b16 %v3452, %v3448
    %v3493 = vpack.c.b16 %v3453, %v3449
    %v3494 = vpack.c.b16 %v3458, %v3454
    %v3495 = vpack.c.b16 %v3459, %v3455
    %v3496 = vpack.c.b16 %v3460, %v3456
    %v3497 = vpack.c.b16 %v3461, %v3457
    %v3498 = vpack.c.b16 %v3466, %v3462
    %v3499 = vpack.c.b16 %v3467, %v3463
    %v3500 = vpack.c.b16 %v3468, %v3464
    %v3501 = vpack.c.b16 %v3469, %v3465
    %3534 = vmatpush.bf16.msra.mxu0 %v3498
    %3535 = vmatpush.bf16.msra.mxu0 %v3494
    %3536 = vmatpush.bf16.msra.mxu0 %v3490
    %3537 = vmatpush.bf16.msra.mxu0 %v3486
    %3538 = vmatpush.bf16.msra.mxu0 %v3482
    %3539 = vmatpush.bf16.msra.mxu0 %v3478
    %3540 = vmatpush.bf16.msra.mxu0 %v3474
    %3541 = vmatpush.bf16.msra.mxu0 %v3470
    %3542 = vmatmul.bf16.gmra.mxu0 %v3340
    %v3543 = vpop.f32.mrf.mxu0
    %v3544 = vadd.f32 0.0, %v3543
    %v3545 = vpop.f32.mrf.mxu0
    %3546 = vdwg.mxu0
    %3547 = vmatpush.bf16.msra.mxu0 %v3499
    %3548 = vmatpush.bf16.msra.mxu0 %v3495
    %3549 = vmatpush.bf16.msra.mxu0 %v3491
    %3550 = vmatpush.bf16.msra.mxu0 %v3487
    %3551 = vmatpush.bf16.msra.mxu0 %v3483
    %3552 = vmatpush.bf16.msra.mxu0 %v3479
    %3553 = vmatpush.bf16.msra.mxu0 %v3475
    %3554 = vmatpush.bf16.msra.mxu0 %v3471
    %3555 = vmatmul.bf16.gmra.mxu0 %v3340
    %v3556 = vpop.f32.mrf.mxu0
    %v3557 = vadd.f32 0.0, %v3556
    %v3558 = vpop.f32.mrf.mxu0
    %3559 = vdwg.mxu0
    %3560 = vmatpush.bf16.msra.mxu0 %v3500
    %3561 = vmatpush.bf16.msra.mxu0 %v3496
    %3562 = vmatpush.bf16.msra.mxu0 %v3492
    %3563 = vmatpush.bf16.msra.mxu0 %v3488
    %3564 = vmatpush.bf16.msra.mxu0 %v3484
    %3565 = vmatpush.bf16.msra.mxu0 %v3480
    %3566 = vmatpush.bf16.msra.mxu0 %v3476
    %3567 = vmatpush.bf16.msra.mxu0 %v3472
    %3568 = vmatmul.bf16.gmra.mxu0 %v3340
    %v3569 = vpop.f32.mrf.mxu0
    %v3570 = vadd.f32 0.0, %v3569
    %v3571 = vpop.f32.mrf.mxu0
    %3572 = vdwg.mxu0
    %3573 = vmatpush.bf16.msra.mxu0 %v3501
    %3574 = vmatpush.bf16.msra.mxu0 %v3497
    %3575 = vmatpush.bf16.msra.mxu0 %v3493
    %3576 = vmatpush.bf16.msra.mxu0 %v3489
    %3577 = vmatpush.bf16.msra.mxu0 %v3485
    %3578 = vmatpush.bf16.msra.mxu0 %v3481
    %3579 = vmatpush.bf16.msra.mxu0 %v3477
    %3580 = vmatpush.bf16.msra.mxu0 %v3473
    %3581 = vmatmul.bf16.gmra.mxu0 %v3340
    %v3582 = vpop.f32.mrf.mxu0
    %v3583 = vadd.f32 0.0, %v3582
    %v3584 = vpop.f32.mrf.mxu0
    %3585 = vdwg.mxu0
    %v3586 = vadd.f32 %v3318, %v3544
    %v3587 = vadd.f32 %v3319, %v3557
    %v3588 = vadd.f32 %v3320, %v3570
    %v3589 = vadd.f32 %v3321, %v3583
    %s3590 = scalar_lea.vmem %s10, 8
    %v3591 = vld [vmem:[%s3590] sm:$0x3]
    %v3593 = vsel %vm2528, %v3591, 0
    %3595 = vmatpush.bf16.msra.mxu0 0
    %3596 = vmatpush.bf16.msra.mxu0 0
    %3597 = vmatpush.bf16.msra.mxu0 0
    %3598 = vmatpush.bf16.msra.mxu0 0
    %3599 = vmatpush.bf16.msra.mxu0 0
    %3600 = vmatpush.bf16.msra.mxu0 0
    %3601 = vmatpush.bf16.msra.mxu0 0
    %3602 = vmatpush.bf16.msra.mxu0 %v2526
    %3603 = vmatmul.bf16.gmra.mxu0 %v3593
    %v3604 = vpop.f32.mrf.mxu0
    %v3605 = vadd.f32 0.0, %v3604
    %v3606 = vpop.f32.mrf.mxu0
    %3607 = vdwg.mxu0
    %v3608 = vpack.c.bf16 %v3605, %v3605
    %s3609 = scalar_lea.vmem [#allocation6], 1024
    %v3610 = vld [vmem:[%s3609] sm:$0xff]
    %v3611 = vld [vmem:[%s3609 + $0x8] sm:$0xff]
    %v3612 = vld [vmem:[%s3609 + $0x10] sm:$0xff]
    %v3613 = vld [vmem:[%s3609 + $0x18] sm:$0xff]
    %v3614 = vld [vmem:[%s3609 + $0x20] sm:$0xff]
    %v3615 = vld [vmem:[%s3609 + $0x28] sm:$0xff]
    %v3616 = vld [vmem:[%s3609 + $0x30] sm:$0xff]
    %v3617 = vld [vmem:[%s3609 + $0x38] sm:$0xff]
    %v3618 = vld [vmem:[%s3609 + $0x40] sm:$0xff]
    %v3619 = vld [vmem:[%s3609 + $0x48] sm:$0xff]
    %v3620 = vld [vmem:[%s3609 + $0x50] sm:$0xff]
    %v3621 = vld [vmem:[%s3609 + $0x58] sm:$0xff]
    %v3622 = vld [vmem:[%s3609 + $0x60] sm:$0xff]
    %v3623 = vld [vmem:[%s3609 + $0x68] sm:$0xff]
    %v3624 = vld [vmem:[%s3609 + $0x70] sm:$0xff]
    %v3625 = vld [vmem:[%s3609 + $0x78] sm:$0xff]
    %v3626 = vld [vmem:[%s3609 + $0x80] sm:$0xff]
    %v3627 = vld [vmem:[%s3609 + $0x88] sm:$0xff]
    %v3628 = vld [vmem:[%s3609 + $0x90] sm:$0xff]
    %v3629 = vld [vmem:[%s3609 + $0x98] sm:$0xff]
    %v3630 = vld [vmem:[%s3609 + $0xa0] sm:$0xff]
    %v3631 = vld [vmem:[%s3609 + $0xa8] sm:$0xff]
    %v3632 = vld [vmem:[%s3609 + $0xb0] sm:$0xff]
    %v3633 = vld [vmem:[%s3609 + $0xb8] sm:$0xff]
    %v3634 = vld [vmem:[%s3609 + $0xc0] sm:$0xff]
    %v3635 = vld [vmem:[%s3609 + $0xc8] sm:$0xff]
    %v3636 = vld [vmem:[%s3609 + $0xd0] sm:$0xff]
    %v3637 = vld [vmem:[%s3609 + $0xd8] sm:$0xff]
    %v3638 = vld [vmem:[%s3609 + $0xe0] sm:$0xff]
    %v3639 = vld [vmem:[%s3609 + $0xe8] sm:$0xff]
    %v3640 = vld [vmem:[%s3609 + $0xf0] sm:$0xff]
    %v3641 = vld [vmem:[%s3609 + $0xf8] sm:$0xff]
    %v3674 = vunpack.c.l.b16 %v3610
    %v3675 = vunpack.c.h.b16 %v3610
    %v3676 = vunpack.c.l.b16 %v3611
    %v3677 = vunpack.c.h.b16 %v3611
    %v3678 = vunpack.c.l.b16 %v3612
    %v3679 = vunpack.c.h.b16 %v3612
    %v3680 = vunpack.c.l.b16 %v3613
    %v3681 = vunpack.c.h.b16 %v3613
    %v3682 = vunpack.c.l.b16 %v3614
    %v3683 = vunpack.c.h.b16 %v3614
    %v3684 = vunpack.c.l.b16 %v3615
    %v3685 = vunpack.c.h.b16 %v3615
    %v3686 = vunpack.c.l.b16 %v3616
    %v3687 = vunpack.c.h.b16 %v3616
    %v3688 = vunpack.c.l.b16 %v3617
    %v3689 = vunpack.c.h.b16 %v3617
    %v3690 = vunpack.c.l.b16 %v3618
    %v3691 = vunpack.c.h.b16 %v3618
    %v3692 = vunpack.c.l.b16 %v3619
    %v3693 = vunpack.c.h.b16 %v3619
    %v3694 = vunpack.c.l.b16 %v3620
    %v3695 = vunpack.c.h.b16 %v3620
    %v3696 = vunpack.c.l.b16 %v3621
    %v3697 = vunpack.c.h.b16 %v3621
    %v3698 = vunpack.c.l.b16 %v3622
    %v3699 = vunpack.c.h.b16 %v3622
    %v3700 = vunpack.c.l.b16 %v3623
    %v3701 = vunpack.c.h.b16 %v3623
    %v3702 = vunpack.c.l.b16 %v3624
    %v3703 = vunpack.c.h.b16 %v3624
    %v3704 = vunpack.c.l.b16 %v3625
    %v3705 = vunpack.c.h.b16 %v3625
    %v3706 = vunpack.c.l.b16 %v3626
    %v3707 = vunpack.c.h.b16 %v3626
    %v3708 = vunpack.c.l.b16 %v3627
    %v3709 = vunpack.c.h.b16 %v3627
    %v3710 = vunpack.c.l.b16 %v3628
    %v3711 = vunpack.c.h.b16 %v3628
    %v3712 = vunpack.c.l.b16 %v3629
    %v3713 = vunpack.c.h.b16 %v3629
    %v3714 = vunpack.c.l.b16 %v3630
    %v3715 = vunpack.c.h.b16 %v3630
    %v3716 = vunpack.c.l.b16 %v3631
    %v3717 = vunpack.c.h.b16 %v3631
    %v3718 = vunpack.c.l.b16 %v3632
    %v3719 = vunpack.c.h.b16 %v3632
    %v3720 = vunpack.c.l.b16 %v3633
    %v3721 = vunpack.c.h.b16 %v3633
    %v3722 = vunpack.c.l.b16 %v3634
    %v3723 = vunpack.c.h.b16 %v3634
    %v3724 = vunpack.c.l.b16 %v3635
    %v3725 = vunpack.c.h.b16 %v3635
    %v3726 = vunpack.c.l.b16 %v3636
    %v3727 = vunpack.c.h.b16 %v3636
    %v3728 = vunpack.c.l.b16 %v3637
    %v3729 = vunpack.c.h.b16 %v3637
    %v3730 = vunpack.c.l.b16 %v3638
    %v3731 = vunpack.c.h.b16 %v3638
    %v3732 = vunpack.c.l.b16 %v3639
    %v3733 = vunpack.c.h.b16 %v3639
    %v3734 = vunpack.c.l.b16 %v3640
    %v3735 = vunpack.c.h.b16 %v3640
    %v3736 = vunpack.c.l.b16 %v3641
    %v3737 = vunpack.c.h.b16 %v3641
    %v3738 = vpack.c.b16 %v3678, %v3674
    %v3739 = vpack.c.b16 %v3679, %v3675
    %v3740 = vpack.c.b16 %v3680, %v3676
    %v3741 = vpack.c.b16 %v3681, %v3677
    %v3742 = vpack.c.b16 %v3686, %v3682
    %v3743 = vpack.c.b16 %v3687, %v3683
    %v3744 = vpack.c.b16 %v3688, %v3684
    %v3745 = vpack.c.b16 %v3689, %v3685
    %v3746 = vpack.c.b16 %v3694, %v3690
    %v3747 = vpack.c.b16 %v3695, %v3691
    %v3748 = vpack.c.b16 %v3696, %v3692
    %v3749 = vpack.c.b16 %v3697, %v3693
    %v3750 = vpack.c.b16 %v3702, %v3698
    %v3751 = vpack.c.b16 %v3703, %v3699
    %v3752 = vpack.c.b16 %v3704, %v3700
    %v3753 = vpack.c.b16 %v3705, %v3701
    %v3754 = vpack.c.b16 %v3710, %v3706
    %v3755 = vpack.c.b16 %v3711, %v3707
    %v3756 = vpack.c.b16 %v3712, %v3708
    %v3757 = vpack.c.b16 %v3713, %v3709
    %v3758 = vpack.c.b16 %v3718, %v3714
    %v3759 = vpack.c.b16 %v3719, %v3715
    %v3760 = vpack.c.b16 %v3720, %v3716
    %v3761 = vpack.c.b16 %v3721, %v3717
    %v3762 = vpack.c.b16 %v3726, %v3722
    %v3763 = vpack.c.b16 %v3727, %v3723
    %v3764 = vpack.c.b16 %v3728, %v3724
    %v3765 = vpack.c.b16 %v3729, %v3725
    %v3766 = vpack.c.b16 %v3734, %v3730
    %v3767 = vpack.c.b16 %v3735, %v3731
    %v3768 = vpack.c.b16 %v3736, %v3732
    %v3769 = vpack.c.b16 %v3737, %v3733
    %3802 = vmatpush.bf16.msra.mxu0 %v3766
    %3803 = vmatpush.bf16.msra.mxu0 %v3762
    %3804 = vmatpush.bf16.msra.mxu0 %v3758
    %3805 = vmatpush.bf16.msra.mxu0 %v3754
    %3806 = vmatpush.bf16.msra.mxu0 %v3750
    %3807 = vmatpush.bf16.msra.mxu0 %v3746
    %3808 = vmatpush.bf16.msra.mxu0 %v3742
    %3809 = vmatpush.bf16.msra.mxu0 %v3738
    %3810 = vmatmul.bf16.gmra.mxu0 %v3608
    %v3811 = vpop.f32.mrf.mxu0
    %v3812 = vadd.f32 0.0, %v3811
    %v3813 = vpop.f32.mrf.mxu0
    %3814 = vdwg.mxu0
    %3815 = vmatpush.bf16.msra.mxu0 %v3767
    %3816 = vmatpush.bf16.msra.mxu0 %v3763
    %3817 = vmatpush.bf16.msra.mxu0 %v3759
    %3818 = vmatpush.bf16.msra.mxu0 %v3755
    %3819 = vmatpush.bf16.msra.mxu0 %v3751
    %3820 = vmatpush.bf16.msra.mxu0 %v3747
    %3821 = vmatpush.bf16.msra.mxu0 %v3743
    %3822 = vmatpush.bf16.msra.mxu0 %v3739
    %3823 = vmatmul.bf16.gmra.mxu0 %v3608
    %v3824 = vpop.f32.mrf.mxu0
    %v3825 = vadd.f32 0.0, %v3824
    %v3826 = vpop.f32.mrf.mxu0
    %3827 = vdwg.mxu0
    %3828 = vmatpush.bf16.msra.mxu0 %v3768
    %3829 = vmatpush.bf16.msra.mxu0 %v3764
    %3830 = vmatpush.bf16.msra.mxu0 %v3760
    %3831 = vmatpush.bf16.msra.mxu0 %v3756
    %3832 = vmatpush.bf16.msra.mxu0 %v3752
    %3833 = vmatpush.bf16.msra.mxu0 %v3748
    %3834 = vmatpush.bf16.msra.mxu0 %v3744
    %3835 = vmatpush.bf16.msra.mxu0 %v3740
    %3836 = vmatmul.bf16.gmra.mxu0 %v3608
    %v3837 = vpop.f32.mrf.mxu0
    %v3838 = vadd.f32 0.0, %v3837
    %v3839 = vpop.f32.mrf.mxu0
    %3840 = vdwg.mxu0
    %3841 = vmatpush.bf16.msra.mxu0 %v3769
    %3842 = vmatpush.bf16.msra.mxu0 %v3765
    %3843 = vmatpush.bf16.msra.mxu0 %v3761
    %3844 = vmatpush.bf16.msra.mxu0 %v3757
    %3845 = vmatpush.bf16.msra.mxu0 %v3753
    %3846 = vmatpush.bf16.msra.mxu0 %v3749
    %3847 = vmatpush.bf16.msra.mxu0 %v3745
    %3848 = vmatpush.bf16.msra.mxu0 %v3741
    %3849 = vmatmul.bf16.gmra.mxu0 %v3608
    %v3850 = vpop.f32.mrf.mxu0
    %v3851 = vadd.f32 0.0, %v3850
    %v3852 = vpop.f32.mrf.mxu0
    %3853 = vdwg.mxu0
    %v3854 = vadd.f32 %v3586, %v3812
    %v3855 = vadd.f32 %v3587, %v3825
    %v3856 = vadd.f32 %v3588, %v3838
    %v3857 = vadd.f32 %v3589, %v3851
    %s3858 = scalar_lea.vmem %s10, 10
    %v3859 = vld [vmem:[%s3858] sm:$0x3]
    %v3861 = vsel %vm2528, %v3859, 0
    %3863 = vmatpush.bf16.msra.mxu0 0
    %3864 = vmatpush.bf16.msra.mxu0 0
    %3865 = vmatpush.bf16.msra.mxu0 0
    %3866 = vmatpush.bf16.msra.mxu0 0
    %3867 = vmatpush.bf16.msra.mxu0 0
    %3868 = vmatpush.bf16.msra.mxu0 0
    %3869 = vmatpush.bf16.msra.mxu0 0
    %3870 = vmatpush.bf16.msra.mxu0 %v2526
    %3871 = vmatmul.bf16.gmra.mxu0 %v3861
    %v3872 = vpop.f32.mrf.mxu0
    %v3873 = vadd.f32 0.0, %v3872
    %v3874 = vpop.f32.mrf.mxu0
    %3875 = vdwg.mxu0
    %v3876 = vpack.c.bf16 %v3873, %v3873
    %s3877 = scalar_lea.vmem [#allocation6], 1280
    %v3878 = vld [vmem:[%s3877] sm:$0xff]
    %v3879 = vld [vmem:[%s3877 + $0x8] sm:$0xff]
    %v3880 = vld [vmem:[%s3877 + $0x10] sm:$0xff]
    %v3881 = vld [vmem:[%s3877 + $0x18] sm:$0xff]
    %v3882 = vld [vmem:[%s3877 + $0x20] sm:$0xff]
    %v3883 = vld [vmem:[%s3877 + $0x28] sm:$0xff]
    %v3884 = vld [vmem:[%s3877 + $0x30] sm:$0xff]
    %v3885 = vld [vmem:[%s3877 + $0x38] sm:$0xff]
    %v3886 = vld [vmem:[%s3877 + $0x40] sm:$0xff]
    %v3887 = vld [vmem:[%s3877 + $0x48] sm:$0xff]
    %v3888 = vld [vmem:[%s3877 + $0x50] sm:$0xff]
    %v3889 = vld [vmem:[%s3877 + $0x58] sm:$0xff]
    %v3890 = vld [vmem:[%s3877 + $0x60] sm:$0xff]
    %v3891 = vld [vmem:[%s3877 + $0x68] sm:$0xff]
    %v3892 = vld [vmem:[%s3877 + $0x70] sm:$0xff]
    %v3893 = vld [vmem:[%s3877 + $0x78] sm:$0xff]
    %v3894 = vld [vmem:[%s3877 + $0x80] sm:$0xff]
    %v3895 = vld [vmem:[%s3877 + $0x88] sm:$0xff]
    %v3896 = vld [vmem:[%s3877 + $0x90] sm:$0xff]
    %v3897 = vld [vmem:[%s3877 + $0x98] sm:$0xff]
    %v3898 = vld [vmem:[%s3877 + $0xa0] sm:$0xff]
    %v3899 = vld [vmem:[%s3877 + $0xa8] sm:$0xff]
    %v3900 = vld [vmem:[%s3877 + $0xb0] sm:$0xff]
    %v3901 = vld [vmem:[%s3877 + $0xb8] sm:$0xff]
    %v3902 = vld [vmem:[%s3877 + $0xc0] sm:$0xff]
    %v3903 = vld [vmem:[%s3877 + $0xc8] sm:$0xff]
    %v3904 = vld [vmem:[%s3877 + $0xd0] sm:$0xff]
    %v3905 = vld [vmem:[%s3877 + $0xd8] sm:$0xff]
    %v3906 = vld [vmem:[%s3877 + $0xe0] sm:$0xff]
    %v3907 = vld [vmem:[%s3877 + $0xe8] sm:$0xff]
    %v3908 = vld [vmem:[%s3877 + $0xf0] sm:$0xff]
    %v3909 = vld [vmem:[%s3877 + $0xf8] sm:$0xff]
    %v3942 = vunpack.c.l.b16 %v3878
    %v3943 = vunpack.c.h.b16 %v3878
    %v3944 = vunpack.c.l.b16 %v3879
    %v3945 = vunpack.c.h.b16 %v3879
    %v3946 = vunpack.c.l.b16 %v3880
    %v3947 = vunpack.c.h.b16 %v3880
    %v3948 = vunpack.c.l.b16 %v3881
    %v3949 = vunpack.c.h.b16 %v3881
    %v3950 = vunpack.c.l.b16 %v3882
    %v3951 = vunpack.c.h.b16 %v3882
    %v3952 = vunpack.c.l.b16 %v3883
    %v3953 = vunpack.c.h.b16 %v3883
    %v3954 = vunpack.c.l.b16 %v3884
    %v3955 = vunpack.c.h.b16 %v3884
    %v3956 = vunpack.c.l.b16 %v3885
    %v3957 = vunpack.c.h.b16 %v3885
    %v3958 = vunpack.c.l.b16 %v3886
    %v3959 = vunpack.c.h.b16 %v3886
    %v3960 = vunpack.c.l.b16 %v3887
    %v3961 = vunpack.c.h.b16 %v3887
    %v3962 = vunpack.c.l.b16 %v3888
    %v3963 = vunpack.c.h.b16 %v3888
    %v3964 = vunpack.c.l.b16 %v3889
    %v3965 = vunpack.c.h.b16 %v3889
    %v3966 = vunpack.c.l.b16 %v3890
    %v3967 = vunpack.c.h.b16 %v3890
    %v3968 = vunpack.c.l.b16 %v3891
    %v3969 = vunpack.c.h.b16 %v3891
    %v3970 = vunpack.c.l.b16 %v3892
    %v3971 = vunpack.c.h.b16 %v3892
    %v3972 = vunpack.c.l.b16 %v3893
    %v3973 = vunpack.c.h.b16 %v3893
    %v3974 = vunpack.c.l.b16 %v3894
    %v3975 = vunpack.c.h.b16 %v3894
    %v3976 = vunpack.c.l.b16 %v3895
    %v3977 = vunpack.c.h.b16 %v3895
    %v3978 = vunpack.c.l.b16 %v3896
    %v3979 = vunpack.c.h.b16 %v3896
    %v3980 = vunpack.c.l.b16 %v3897
    %v3981 = vunpack.c.h.b16 %v3897
    %v3982 = vunpack.c.l.b16 %v3898
    %v3983 = vunpack.c.h.b16 %v3898
    %v3984 = vunpack.c.l.b16 %v3899
    %v3985 = vunpack.c.h.b16 %v3899
    %v3986 = vunpack.c.l.b16 %v3900
    %v3987 = vunpack.c.h.b16 %v3900
    %v3988 = vunpack.c.l.b16 %v3901
    %v3989 = vunpack.c.h.b16 %v3901
    %v3990 = vunpack.c.l.b16 %v3902
    %v3991 = vunpack.c.h.b16 %v3902
    %v3992 = vunpack.c.l.b16 %v3903
    %v3993 = vunpack.c.h.b16 %v3903
    %v3994 = vunpack.c.l.b16 %v3904
    %v3995 = vunpack.c.h.b16 %v3904
    %v3996 = vunpack.c.l.b16 %v3905
    %v3997 = vunpack.c.h.b16 %v3905
    %v3998 = vunpack.c.l.b16 %v3906
    %v3999 = vunpack.c.h.b16 %v3906
    %v4000 = vunpack.c.l.b16 %v3907
    %v4001 = vunpack.c.h.b16 %v3907
    %v4002 = vunpack.c.l.b16 %v3908
    %v4003 = vunpack.c.h.b16 %v3908
    %v4004 = vunpack.c.l.b16 %v3909
    %v4005 = vunpack.c.h.b16 %v3909
    %v4006 = vpack.c.b16 %v3946, %v3942
    %v4007 = vpack.c.b16 %v3947, %v3943
    %v4008 = vpack.c.b16 %v3948, %v3944
    %v4009 = vpack.c.b16 %v3949, %v3945
    %v4010 = vpack.c.b16 %v3954, %v3950
    %v4011 = vpack.c.b16 %v3955, %v3951
    %v4012 = vpack.c.b16 %v3956, %v3952
    %v4013 = vpack.c.b16 %v3957, %v3953
    %v4014 = vpack.c.b16 %v3962, %v3958
    %v4015 = vpack.c.b16 %v3963, %v3959
    %v4016 = vpack.c.b16 %v3964, %v3960
    %v4017 = vpack.c.b16 %v3965, %v3961
    %v4018 = vpack.c.b16 %v3970, %v3966
    %v4019 = vpack.c.b16 %v3971, %v3967
    %v4020 = vpack.c.b16 %v3972, %v3968
    %v4021 = vpack.c.b16 %v3973, %v3969
    %v4022 = vpack.c.b16 %v3978, %v3974
    %v4023 = vpack.c.b16 %v3979, %v3975
    %v4024 = vpack.c.b16 %v3980, %v3976
    %v4025 = vpack.c.b16 %v3981, %v3977
    %v4026 = vpack.c.b16 %v3986, %v3982
    %v4027 = vpack.c.b16 %v3987, %v3983
    %v4028 = vpack.c.b16 %v3988, %v3984
    %v4029 = vpack.c.b16 %v3989, %v3985
    %v4030 = vpack.c.b16 %v3994, %v3990
    %v4031 = vpack.c.b16 %v3995, %v3991
    %v4032 = vpack.c.b16 %v3996, %v3992
    %v4033 = vpack.c.b16 %v3997, %v3993
    %v4034 = vpack.c.b16 %v4002, %v3998
    %v4035 = vpack.c.b16 %v4003, %v3999
    %v4036 = vpack.c.b16 %v4004, %v4000
    %v4037 = vpack.c.b16 %v4005, %v4001
    %4070 = vmatpush.bf16.msra.mxu0 %v4034
    %4071 = vmatpush.bf16.msra.mxu0 %v4030
    %4072 = vmatpush.bf16.msra.mxu0 %v4026
    %4073 = vmatpush.bf16.msra.mxu0 %v4022
    %4074 = vmatpush.bf16.msra.mxu0 %v4018
    %4075 = vmatpush.bf16.msra.mxu0 %v4014
    %4076 = vmatpush.bf16.msra.mxu0 %v4010
    %4077 = vmatpush.bf16.msra.mxu0 %v4006
    %4078 = vmatmul.bf16.gmra.mxu0 %v3876
    %v4079 = vpop.f32.mrf.mxu0
    %v4080 = vadd.f32 0.0, %v4079
    %v4081 = vpop.f32.mrf.mxu0
    %4082 = vdwg.mxu0
    %4083 = vmatpush.bf16.msra.mxu0 %v4035
    %4084 = vmatpush.bf16.msra.mxu0 %v4031
    %4085 = vmatpush.bf16.msra.mxu0 %v4027
    %4086 = vmatpush.bf16.msra.mxu0 %v4023
    %4087 = vmatpush.bf16.msra.mxu0 %v4019
    %4088 = vmatpush.bf16.msra.mxu0 %v4015
    %4089 = vmatpush.bf16.msra.mxu0 %v4011
    %4090 = vmatpush.bf16.msra.mxu0 %v4007
    %4091 = vmatmul.bf16.gmra.mxu0 %v3876
    %v4092 = vpop.f32.mrf.mxu0
    %v4093 = vadd.f32 0.0, %v4092
    %v4094 = vpop.f32.mrf.mxu0
    %4095 = vdwg.mxu0
    %4096 = vmatpush.bf16.msra.mxu0 %v4036
    %4097 = vmatpush.bf16.msra.mxu0 %v4032
    %4098 = vmatpush.bf16.msra.mxu0 %v4028
    %4099 = vmatpush.bf16.msra.mxu0 %v4024
    %4100 = vmatpush.bf16.msra.mxu0 %v4020
    %4101 = vmatpush.bf16.msra.mxu0 %v4016
    %4102 = vmatpush.bf16.msra.mxu0 %v4012
    %4103 = vmatpush.bf16.msra.mxu0 %v4008
    %4104 = vmatmul.bf16.gmra.mxu0 %v3876
    %v4105 = vpop.f32.mrf.mxu0
    %v4106 = vadd.f32 0.0, %v4105
    %v4107 = vpop.f32.mrf.mxu0
    %4108 = vdwg.mxu0
    %4109 = vmatpush.bf16.msra.mxu0 %v4037
    %4110 = vmatpush.bf16.msra.mxu0 %v4033
    %4111 = vmatpush.bf16.msra.mxu0 %v4029
    %4112 = vmatpush.bf16.msra.mxu0 %v4025
    %4113 = vmatpush.bf16.msra.mxu0 %v4021
    %4114 = vmatpush.bf16.msra.mxu0 %v4017
    %4115 = vmatpush.bf16.msra.mxu0 %v4013
    %4116 = vmatpush.bf16.msra.mxu0 %v4009
    %4117 = vmatmul.bf16.gmra.mxu0 %v3876
    %v4118 = vpop.f32.mrf.mxu0
    %v4119 = vadd.f32 0.0, %v4118
    %v4120 = vpop.f32.mrf.mxu0
    %4121 = vdwg.mxu0
    %v4122 = vadd.f32 %v3854, %v4080
    %v4123 = vadd.f32 %v3855, %v4093
    %v4124 = vadd.f32 %v3856, %v4106
    %v4125 = vadd.f32 %v3857, %v4119
    %s4126 = scalar_lea.vmem %s10, 12
    %v4127 = vld [vmem:[%s4126] sm:$0x3]
    %v4129 = vsel %vm2528, %v4127, 0
    %4131 = vmatpush.bf16.msra.mxu0 0
    %4132 = vmatpush.bf16.msra.mxu0 0
    %4133 = vmatpush.bf16.msra.mxu0 0
    %4134 = vmatpush.bf16.msra.mxu0 0
    %4135 = vmatpush.bf16.msra.mxu0 0
    %4136 = vmatpush.bf16.msra.mxu0 0
    %4137 = vmatpush.bf16.msra.mxu0 0
    %4138 = vmatpush.bf16.msra.mxu0 %v2526
    %4139 = vmatmul.bf16.gmra.mxu0 %v4129
    %v4140 = vpop.f32.mrf.mxu0
    %v4141 = vadd.f32 0.0, %v4140
    %v4142 = vpop.f32.mrf.mxu0
    %4143 = vdwg.mxu0
    %v4144 = vpack.c.bf16 %v4141, %v4141
    %s4145 = scalar_lea.vmem [#allocation6], 1536
    %v4146 = vld [vmem:[%s4145] sm:$0xff]
    %v4147 = vld [vmem:[%s4145 + $0x8] sm:$0xff]
    %v4148 = vld [vmem:[%s4145 + $0x10] sm:$0xff]
    %v4149 = vld [vmem:[%s4145 + $0x18] sm:$0xff]
    %v4150 = vld [vmem:[%s4145 + $0x20] sm:$0xff]
    %v4151 = vld [vmem:[%s4145 + $0x28] sm:$0xff]
    %v4152 = vld [vmem:[%s4145 + $0x30] sm:$0xff]
    %v4153 = vld [vmem:[%s4145 + $0x38] sm:$0xff]
    %v4154 = vld [vmem:[%s4145 + $0x40] sm:$0xff]
    %v4155 = vld [vmem:[%s4145 + $0x48] sm:$0xff]
    %v4156 = vld [vmem:[%s4145 + $0x50] sm:$0xff]
    %v4157 = vld [vmem:[%s4145 + $0x58] sm:$0xff]
    %v4158 = vld [vmem:[%s4145 + $0x60] sm:$0xff]
    %v4159 = vld [vmem:[%s4145 + $0x68] sm:$0xff]
    %v4160 = vld [vmem:[%s4145 + $0x70] sm:$0xff]
    %v4161 = vld [vmem:[%s4145 + $0x78] sm:$0xff]
    %v4162 = vld [vmem:[%s4145 + $0x80] sm:$0xff]
    %v4163 = vld [vmem:[%s4145 + $0x88] sm:$0xff]
    %v4164 = vld [vmem:[%s4145 + $0x90] sm:$0xff]
    %v4165 = vld [vmem:[%s4145 + $0x98] sm:$0xff]
    %v4166 = vld [vmem:[%s4145 + $0xa0] sm:$0xff]
    %v4167 = vld [vmem:[%s4145 + $0xa8] sm:$0xff]
    %v4168 = vld [vmem:[%s4145 + $0xb0] sm:$0xff]
    %v4169 = vld [vmem:[%s4145 + $0xb8] sm:$0xff]
    %v4170 = vld [vmem:[%s4145 + $0xc0] sm:$0xff]
    %v4171 = vld [vmem:[%s4145 + $0xc8] sm:$0xff]
    %v4172 = vld [vmem:[%s4145 + $0xd0] sm:$0xff]
    %v4173 = vld [vmem:[%s4145 + $0xd8] sm:$0xff]
    %v4174 = vld [vmem:[%s4145 + $0xe0] sm:$0xff]
    %v4175 = vld [vmem:[%s4145 + $0xe8] sm:$0xff]
    %v4176 = vld [vmem:[%s4145 + $0xf0] sm:$0xff]
    %v4177 = vld [vmem:[%s4145 + $0xf8] sm:$0xff]
    %v4210 = vunpack.c.l.b16 %v4146
    %v4211 = vunpack.c.h.b16 %v4146
    %v4212 = vunpack.c.l.b16 %v4147
    %v4213 = vunpack.c.h.b16 %v4147
    %v4214 = vunpack.c.l.b16 %v4148
    %v4215 = vunpack.c.h.b16 %v4148
    %v4216 = vunpack.c.l.b16 %v4149
    %v4217 = vunpack.c.h.b16 %v4149
    %v4218 = vunpack.c.l.b16 %v4150
    %v4219 = vunpack.c.h.b16 %v4150
    %v4220 = vunpack.c.l.b16 %v4151
    %v4221 = vunpack.c.h.b16 %v4151
    %v4222 = vunpack.c.l.b16 %v4152
    %v4223 = vunpack.c.h.b16 %v4152
    %v4224 = vunpack.c.l.b16 %v4153
    %v4225 = vunpack.c.h.b16 %v4153
    %v4226 = vunpack.c.l.b16 %v4154
    %v4227 = vunpack.c.h.b16 %v4154
    %v4228 = vunpack.c.l.b16 %v4155
    %v4229 = vunpack.c.h.b16 %v4155
    %v4230 = vunpack.c.l.b16 %v4156
    %v4231 = vunpack.c.h.b16 %v4156
    %v4232 = vunpack.c.l.b16 %v4157
    %v4233 = vunpack.c.h.b16 %v4157
    %v4234 = vunpack.c.l.b16 %v4158
    %v4235 = vunpack.c.h.b16 %v4158
    %v4236 = vunpack.c.l.b16 %v4159
    %v4237 = vunpack.c.h.b16 %v4159
    %v4238 = vunpack.c.l.b16 %v4160
    %v4239 = vunpack.c.h.b16 %v4160
    %v4240 = vunpack.c.l.b16 %v4161
    %v4241 = vunpack.c.h.b16 %v4161
    %v4242 = vunpack.c.l.b16 %v4162
    %v4243 = vunpack.c.h.b16 %v4162
    %v4244 = vunpack.c.l.b16 %v4163
    %v4245 = vunpack.c.h.b16 %v4163
    %v4246 = vunpack.c.l.b16 %v4164
    %v4247 = vunpack.c.h.b16 %v4164
    %v4248 = vunpack.c.l.b16 %v4165
    %v4249 = vunpack.c.h.b16 %v4165
    %v4250 = vunpack.c.l.b16 %v4166
    %v4251 = vunpack.c.h.b16 %v4166
    %v4252 = vunpack.c.l.b16 %v4167
    %v4253 = vunpack.c.h.b16 %v4167
    %v4254 = vunpack.c.l.b16 %v4168
    %v4255 = vunpack.c.h.b16 %v4168
    %v4256 = vunpack.c.l.b16 %v4169
    %v4257 = vunpack.c.h.b16 %v4169
    %v4258 = vunpack.c.l.b16 %v4170
    %v4259 = vunpack.c.h.b16 %v4170
    %v4260 = vunpack.c.l.b16 %v4171
    %v4261 = vunpack.c.h.b16 %v4171
    %v4262 = vunpack.c.l.b16 %v4172
    %v4263 = vunpack.c.h.b16 %v4172
    %v4264 = vunpack.c.l.b16 %v4173
    %v4265 = vunpack.c.h.b16 %v4173
    %v4266 = vunpack.c.l.b16 %v4174
    %v4267 = vunpack.c.h.b16 %v4174
    %v4268 = vunpack.c.l.b16 %v4175
    %v4269 = vunpack.c.h.b16 %v4175
    %v4270 = vunpack.c.l.b16 %v4176
    %v4271 = vunpack.c.h.b16 %v4176
    %v4272 = vunpack.c.l.b16 %v4177
    %v4273 = vunpack.c.h.b16 %v4177
    %v4274 = vpack.c.b16 %v4214, %v4210
    %v4275 = vpack.c.b16 %v4215, %v4211
    %v4276 = vpack.c.b16 %v4216, %v4212
    %v4277 = vpack.c.b16 %v4217, %v4213
    %v4278 = vpack.c.b16 %v4222, %v4218
    %v4279 = vpack.c.b16 %v4223, %v4219
    %v4280 = vpack.c.b16 %v4224, %v4220
    %v4281 = vpack.c.b16 %v4225, %v4221
    %v4282 = vpack.c.b16 %v4230, %v4226
    %v4283 = vpack.c.b16 %v4231, %v4227
    %v4284 = vpack.c.b16 %v4232, %v4228
    %v4285 = vpack.c.b16 %v4233, %v4229
    %v4286 = vpack.c.b16 %v4238, %v4234
    %v4287 = vpack.c.b16 %v4239, %v4235
    %v4288 = vpack.c.b16 %v4240, %v4236
    %v4289 = vpack.c.b16 %v4241, %v4237
    %v4290 = vpack.c.b16 %v4246, %v4242
    %v4291 = vpack.c.b16 %v4247, %v4243
    %v4292 = vpack.c.b16 %v4248, %v4244
    %v4293 = vpack.c.b16 %v4249, %v4245
    %v4294 = vpack.c.b16 %v4254, %v4250
    %v4295 = vpack.c.b16 %v4255, %v4251
    %v4296 = vpack.c.b16 %v4256, %v4252
    %v4297 = vpack.c.b16 %v4257, %v4253
    %v4298 = vpack.c.b16 %v4262, %v4258
    %v4299 = vpack.c.b16 %v4263, %v4259
    %v4300 = vpack.c.b16 %v4264, %v4260
    %v4301 = vpack.c.b16 %v4265, %v4261
    %v4302 = vpack.c.b16 %v4270, %v4266
    %v4303 = vpack.c.b16 %v4271, %v4267
    %v4304 = vpack.c.b16 %v4272, %v4268
    %v4305 = vpack.c.b16 %v4273, %v4269
    %4338 = vmatpush.bf16.msra.mxu0 %v4302
    %4339 = vmatpush.bf16.msra.mxu0 %v4298
    %4340 = vmatpush.bf16.msra.mxu0 %v4294
    %4341 = vmatpush.bf16.msra.mxu0 %v4290
    %4342 = vmatpush.bf16.msra.mxu0 %v4286
    %4343 = vmatpush.bf16.msra.mxu0 %v4282
    %4344 = vmatpush.bf16.msra.mxu0 %v4278
    %4345 = vmatpush.bf16.msra.mxu0 %v4274
    %4346 = vmatmul.bf16.gmra.mxu0 %v4144
    %v4347 = vpop.f32.mrf.mxu0
    %v4348 = vadd.f32 0.0, %v4347
    %v4349 = vpop.f32.mrf.mxu0
    %4350 = vdwg.mxu0
    %4351 = vmatpush.bf16.msra.mxu0 %v4303
    %4352 = vmatpush.bf16.msra.mxu0 %v4299
    %4353 = vmatpush.bf16.msra.mxu0 %v4295
    %4354 = vmatpush.bf16.msra.mxu0 %v4291
    %4355 = vmatpush.bf16.msra.mxu0 %v4287
    %4356 = vmatpush.bf16.msra.mxu0 %v4283
    %4357 = vmatpush.bf16.msra.mxu0 %v4279
    %4358 = vmatpush.bf16.msra.mxu0 %v4275
    %4359 = vmatmul.bf16.gmra.mxu0 %v4144
    %v4360 = vpop.f32.mrf.mxu0
    %v4361 = vadd.f32 0.0, %v4360
    %v4362 = vpop.f32.mrf.mxu0
    %4363 = vdwg.mxu0
    %4364 = vmatpush.bf16.msra.mxu0 %v4304
    %4365 = vmatpush.bf16.msra.mxu0 %v4300
    %4366 = vmatpush.bf16.msra.mxu0 %v4296
    %4367 = vmatpush.bf16.msra.mxu0 %v4292
    %4368 = vmatpush.bf16.msra.mxu0 %v4288
    %4369 = vmatpush.bf16.msra.mxu0 %v4284
    %4370 = vmatpush.bf16.msra.mxu0 %v4280
    %4371 = vmatpush.bf16.msra.mxu0 %v4276
    %4372 = vmatmul.bf16.gmra.mxu0 %v4144
    %v4373 = vpop.f32.mrf.mxu0
    %v4374 = vadd.f32 0.0, %v4373
    %v4375 = vpop.f32.mrf.mxu0
    %4376 = vdwg.mxu0
    %4377 = vmatpush.bf16.msra.mxu0 %v4305
    %4378 = vmatpush.bf16.msra.mxu0 %v4301
    %4379 = vmatpush.bf16.msra.mxu0 %v4297
    %4380 = vmatpush.bf16.msra.mxu0 %v4293
    %4381 = vmatpush.bf16.msra.mxu0 %v4289
    %4382 = vmatpush.bf16.msra.mxu0 %v4285
    %4383 = vmatpush.bf16.msra.mxu0 %v4281
    %4384 = vmatpush.bf16.msra.mxu0 %v4277
    %4385 = vmatmul.bf16.gmra.mxu0 %v4144
    %v4386 = vpop.f32.mrf.mxu0
    %v4387 = vadd.f32 0.0, %v4386
    %v4388 = vpop.f32.mrf.mxu0
    %4389 = vdwg.mxu0
    %v4390 = vadd.f32 %v4122, %v4348
    %v4391 = vadd.f32 %v4123, %v4361
    %v4392 = vadd.f32 %v4124, %v4374
    %v4393 = vadd.f32 %v4125, %v4387
    %s4394 = scalar_lea.vmem %s10, 14
    %v4395 = vld [vmem:[%s4394] sm:$0x3]
    %v4397 = vsel %vm2528, %v4395, 0
    %4399 = vmatpush.bf16.msra.mxu0 0
    %4400 = vmatpush.bf16.msra.mxu0 0
    %4401 = vmatpush.bf16.msra.mxu0 0
    %4402 = vmatpush.bf16.msra.mxu0 0
    %4403 = vmatpush.bf16.msra.mxu0 0
    %4404 = vmatpush.bf16.msra.mxu0 0
    %4405 = vmatpush.bf16.msra.mxu0 0
    %4406 = vmatpush.bf16.msra.mxu0 %v2526
    %4407 = vmatmul.bf16.gmra.mxu0 %v4397
    %v4408 = vpop.f32.mrf.mxu0
    %v4409 = vadd.f32 0.0, %v4408
    %v4410 = vpop.f32.mrf.mxu0
    %4411 = vdwg.mxu0
    %v4412 = vpack.c.bf16 %v4409, %v4409
    %s4413 = scalar_lea.vmem [#allocation6], 1792
    %v4414 = vld [vmem:[%s4413] sm:$0xff]
    %v4415 = vld [vmem:[%s4413 + $0x8] sm:$0xff]
    %v4416 = vld [vmem:[%s4413 + $0x10] sm:$0xff]
    %v4417 = vld [vmem:[%s4413 + $0x18] sm:$0xff]
    %v4418 = vld [vmem:[%s4413 + $0x20] sm:$0xff]
    %v4419 = vld [vmem:[%s4413 + $0x28] sm:$0xff]
    %v4420 = vld [vmem:[%s4413 + $0x30] sm:$0xff]
    %v4421 = vld [vmem:[%s4413 + $0x38] sm:$0xff]
    %v4422 = vld [vmem:[%s4413 + $0x40] sm:$0xff]
    %v4423 = vld [vmem:[%s4413 + $0x48] sm:$0xff]
    %v4424 = vld [vmem:[%s4413 + $0x50] sm:$0xff]
    %v4425 = vld [vmem:[%s4413 + $0x58] sm:$0xff]
    %v4426 = vld [vmem:[%s4413 + $0x60] sm:$0xff]
    %v4427 = vld [vmem:[%s4413 + $0x68] sm:$0xff]
    %v4428 = vld [vmem:[%s4413 + $0x70] sm:$0xff]
    %v4429 = vld [vmem:[%s4413 + $0x78] sm:$0xff]
    %v4430 = vld [vmem:[%s4413 + $0x80] sm:$0xff]
    %v4431 = vld [vmem:[%s4413 + $0x88] sm:$0xff]
    %v4432 = vld [vmem:[%s4413 + $0x90] sm:$0xff]
    %v4433 = vld [vmem:[%s4413 + $0x98] sm:$0xff]
    %v4434 = vld [vmem:[%s4413 + $0xa0] sm:$0xff]
    %v4435 = vld [vmem:[%s4413 + $0xa8] sm:$0xff]
    %v4436 = vld [vmem:[%s4413 + $0xb0] sm:$0xff]
    %v4437 = vld [vmem:[%s4413 + $0xb8] sm:$0xff]
    %v4438 = vld [vmem:[%s4413 + $0xc0] sm:$0xff]
    %v4439 = vld [vmem:[%s4413 + $0xc8] sm:$0xff]
    %v4440 = vld [vmem:[%s4413 + $0xd0] sm:$0xff]
    %v4441 = vld [vmem:[%s4413 + $0xd8] sm:$0xff]
    %v4442 = vld [vmem:[%s4413 + $0xe0] sm:$0xff]
    %v4443 = vld [vmem:[%s4413 + $0xe8] sm:$0xff]
    %v4444 = vld [vmem:[%s4413 + $0xf0] sm:$0xff]
    %v4445 = vld [vmem:[%s4413 + $0xf8] sm:$0xff]
    %v4478 = vunpack.c.l.b16 %v4414
    %v4479 = vunpack.c.h.b16 %v4414
    %v4480 = vunpack.c.l.b16 %v4415
    %v4481 = vunpack.c.h.b16 %v4415
    %v4482 = vunpack.c.l.b16 %v4416
    %v4483 = vunpack.c.h.b16 %v4416
    %v4484 = vunpack.c.l.b16 %v4417
    %v4485 = vunpack.c.h.b16 %v4417
    %v4486 = vunpack.c.l.b16 %v4418
    %v4487 = vunpack.c.h.b16 %v4418
    %v4488 = vunpack.c.l.b16 %v4419
    %v4489 = vunpack.c.h.b16 %v4419
    %v4490 = vunpack.c.l.b16 %v4420
    %v4491 = vunpack.c.h.b16 %v4420
    %v4492 = vunpack.c.l.b16 %v4421
    %v4493 = vunpack.c.h.b16 %v4421
    %v4494 = vunpack.c.l.b16 %v4422
    %v4495 = vunpack.c.h.b16 %v4422
    %v4496 = vunpack.c.l.b16 %v4423
    %v4497 = vunpack.c.h.b16 %v4423
    %v4498 = vunpack.c.l.b16 %v4424
    %v4499 = vunpack.c.h.b16 %v4424
    %v4500 = vunpack.c.l.b16 %v4425
    %v4501 = vunpack.c.h.b16 %v4425
    %v4502 = vunpack.c.l.b16 %v4426
    %v4503 = vunpack.c.h.b16 %v4426
    %v4504 = vunpack.c.l.b16 %v4427
    %v4505 = vunpack.c.h.b16 %v4427
    %v4506 = vunpack.c.l.b16 %v4428
    %v4507 = vunpack.c.h.b16 %v4428
    %v4508 = vunpack.c.l.b16 %v4429
    %v4509 = vunpack.c.h.b16 %v4429
    %v4510 = vunpack.c.l.b16 %v4430
    %v4511 = vunpack.c.h.b16 %v4430
    %v4512 = vunpack.c.l.b16 %v4431
    %v4513 = vunpack.c.h.b16 %v4431
    %v4514 = vunpack.c.l.b16 %v4432
    %v4515 = vunpack.c.h.b16 %v4432
    %v4516 = vunpack.c.l.b16 %v4433
    %v4517 = vunpack.c.h.b16 %v4433
    %v4518 = vunpack.c.l.b16 %v4434
    %v4519 = vunpack.c.h.b16 %v4434
    %v4520 = vunpack.c.l.b16 %v4435
    %v4521 = vunpack.c.h.b16 %v4435
    %v4522 = vunpack.c.l.b16 %v4436
    %v4523 = vunpack.c.h.b16 %v4436
    %v4524 = vunpack.c.l.b16 %v4437
    %v4525 = vunpack.c.h.b16 %v4437
    %v4526 = vunpack.c.l.b16 %v4438
    %v4527 = vunpack.c.h.b16 %v4438
    %v4528 = vunpack.c.l.b16 %v4439
    %v4529 = vunpack.c.h.b16 %v4439
    %v4530 = vunpack.c.l.b16 %v4440
    %v4531 = vunpack.c.h.b16 %v4440
    %v4532 = vunpack.c.l.b16 %v4441
    %v4533 = vunpack.c.h.b16 %v4441
    %v4534 = vunpack.c.l.b16 %v4442
    %v4535 = vunpack.c.h.b16 %v4442
    %v4536 = vunpack.c.l.b16 %v4443
    %v4537 = vunpack.c.h.b16 %v4443
    %v4538 = vunpack.c.l.b16 %v4444
    %v4539 = vunpack.c.h.b16 %v4444
    %v4540 = vunpack.c.l.b16 %v4445
    %v4541 = vunpack.c.h.b16 %v4445
    %v4542 = vpack.c.b16 %v4482, %v4478
    %v4543 = vpack.c.b16 %v4483, %v4479
    %v4544 = vpack.c.b16 %v4484, %v4480
    %v4545 = vpack.c.b16 %v4485, %v4481
    %v4546 = vpack.c.b16 %v4490, %v4486
    %v4547 = vpack.c.b16 %v4491, %v4487
    %v4548 = vpack.c.b16 %v4492, %v4488
    %v4549 = vpack.c.b16 %v4493, %v4489
    %v4550 = vpack.c.b16 %v4498, %v4494
    %v4551 = vpack.c.b16 %v4499, %v4495
    %v4552 = vpack.c.b16 %v4500, %v4496
    %v4553 = vpack.c.b16 %v4501, %v4497
    %v4554 = vpack.c.b16 %v4506, %v4502
    %v4555 = vpack.c.b16 %v4507, %v4503
    %v4556 = vpack.c.b16 %v4508, %v4504
    %v4557 = vpack.c.b16 %v4509, %v4505
    %v4558 = vpack.c.b16 %v4514, %v4510
    %v4559 = vpack.c.b16 %v4515, %v4511
    %v4560 = vpack.c.b16 %v4516, %v4512
    %v4561 = vpack.c.b16 %v4517, %v4513
    %v4562 = vpack.c.b16 %v4522, %v4518
    %v4563 = vpack.c.b16 %v4523, %v4519
    %v4564 = vpack.c.b16 %v4524, %v4520
    %v4565 = vpack.c.b16 %v4525, %v4521
    %v4566 = vpack.c.b16 %v4530, %v4526
    %v4567 = vpack.c.b16 %v4531, %v4527
    %v4568 = vpack.c.b16 %v4532, %v4528
    %v4569 = vpack.c.b16 %v4533, %v4529
    %v4570 = vpack.c.b16 %v4538, %v4534
    %v4571 = vpack.c.b16 %v4539, %v4535
    %v4572 = vpack.c.b16 %v4540, %v4536
    %v4573 = vpack.c.b16 %v4541, %v4537
    %4606 = vmatpush.bf16.msra.mxu0 %v4570
    %4607 = vmatpush.bf16.msra.mxu0 %v4566
    %4608 = vmatpush.bf16.msra.mxu0 %v4562
    %4609 = vmatpush.bf16.msra.mxu0 %v4558
    %4610 = vmatpush.bf16.msra.mxu0 %v4554
    %4611 = vmatpush.bf16.msra.mxu0 %v4550
    %4612 = vmatpush.bf16.msra.mxu0 %v4546
    %4613 = vmatpush.bf16.msra.mxu0 %v4542
    %4614 = vmatmul.bf16.gmra.mxu0 %v4412
    %v4615 = vpop.f32.mrf.mxu0
    %v4616 = vadd.f32 0.0, %v4615
    %v4617 = vpop.f32.mrf.mxu0
    %4618 = vdwg.mxu0
    %4619 = vmatpush.bf16.msra.mxu0 %v4571
    %4620 = vmatpush.bf16.msra.mxu0 %v4567
    %4621 = vmatpush.bf16.msra.mxu0 %v4563
    %4622 = vmatpush.bf16.msra.mxu0 %v4559
    %4623 = vmatpush.bf16.msra.mxu0 %v4555
    %4624 = vmatpush.bf16.msra.mxu0 %v4551
    %4625 = vmatpush.bf16.msra.mxu0 %v4547
    %4626 = vmatpush.bf16.msra.mxu0 %v4543
    %4627 = vmatmul.bf16.gmra.mxu0 %v4412
    %v4628 = vpop.f32.mrf.mxu0
    %v4629 = vadd.f32 0.0, %v4628
    %v4630 = vpop.f32.mrf.mxu0
    %4631 = vdwg.mxu0
    %4632 = vmatpush.bf16.msra.mxu0 %v4572
    %4633 = vmatpush.bf16.msra.mxu0 %v4568
    %4634 = vmatpush.bf16.msra.mxu0 %v4564
    %4635 = vmatpush.bf16.msra.mxu0 %v4560
    %4636 = vmatpush.bf16.msra.mxu0 %v4556
    %4637 = vmatpush.bf16.msra.mxu0 %v4552
    %4638 = vmatpush.bf16.msra.mxu0 %v4548
    %4639 = vmatpush.bf16.msra.mxu0 %v4544
    %4640 = vmatmul.bf16.gmra.mxu0 %v4412
    %v4641 = vpop.f32.mrf.mxu0
    %v4642 = vadd.f32 0.0, %v4641
    %v4643 = vpop.f32.mrf.mxu0
    %4644 = vdwg.mxu0
    %4645 = vmatpush.bf16.msra.mxu0 %v4573
    %4646 = vmatpush.bf16.msra.mxu0 %v4569
    %4647 = vmatpush.bf16.msra.mxu0 %v4565
    %4648 = vmatpush.bf16.msra.mxu0 %v4561
    %4649 = vmatpush.bf16.msra.mxu0 %v4557
    %4650 = vmatpush.bf16.msra.mxu0 %v4553
    %4651 = vmatpush.bf16.msra.mxu0 %v4549
    %4652 = vmatpush.bf16.msra.mxu0 %v4545
    %4653 = vmatmul.bf16.gmra.mxu0 %v4412
    %v4654 = vpop.f32.mrf.mxu0
    %v4655 = vadd.f32 0.0, %v4654
    %v4656 = vpop.f32.mrf.mxu0
    %4657 = vdwg.mxu0
    %v4658 = vadd.f32 %v4390, %v4616
    %v4659 = vadd.f32 %v4391, %v4629
    %v4660 = vadd.f32 %v4392, %v4642
    %v4661 = vadd.f32 %v4393, %v4655
    %s4662 = scalar_lea.vmem %s10, 16
    %v4663 = vld [vmem:[%s4662] sm:$0x3]
    %v4665 = vsel %vm2528, %v4663, 0
    %4667 = vmatpush.bf16.msra.mxu0 0
    %4668 = vmatpush.bf16.msra.mxu0 0
    %4669 = vmatpush.bf16.msra.mxu0 0
    %4670 = vmatpush.bf16.msra.mxu0 0
    %4671 = vmatpush.bf16.msra.mxu0 0
    %4672 = vmatpush.bf16.msra.mxu0 0
    %4673 = vmatpush.bf16.msra.mxu0 0
    %4674 = vmatpush.bf16.msra.mxu0 %v2526
    %4675 = vmatmul.bf16.gmra.mxu0 %v4665
    %v4676 = vpop.f32.mrf.mxu0
    %v4677 = vadd.f32 0.0, %v4676
    %v4678 = vpop.f32.mrf.mxu0
    %4679 = vdwg.mxu0
    %v4680 = vpack.c.bf16 %v4677, %v4677
    %s4681 = scalar_lea.vmem [#allocation6], 2048
    %v4682 = vld [vmem:[%s4681] sm:$0xff]
    %v4683 = vld [vmem:[%s4681 + $0x8] sm:$0xff]
    %v4684 = vld [vmem:[%s4681 + $0x10] sm:$0xff]
    %v4685 = vld [vmem:[%s4681 + $0x18] sm:$0xff]
    %v4686 = vld [vmem:[%s4681 + $0x20] sm:$0xff]
    %v4687 = vld [vmem:[%s4681 + $0x28] sm:$0xff]
    %v4688 = vld [vmem:[%s4681 + $0x30] sm:$0xff]
    %v4689 = vld [vmem:[%s4681 + $0x38] sm:$0xff]
    %v4690 = vld [vmem:[%s4681 + $0x40] sm:$0xff]
    %v4691 = vld [vmem:[%s4681 + $0x48] sm:$0xff]
    %v4692 = vld [vmem:[%s4681 + $0x50] sm:$0xff]
    %v4693 = vld [vmem:[%s4681 + $0x58] sm:$0xff]
    %v4694 = vld [vmem:[%s4681 + $0x60] sm:$0xff]
    %v4695 = vld [vmem:[%s4681 + $0x68] sm:$0xff]
    %v4696 = vld [vmem:[%s4681 + $0x70] sm:$0xff]
    %v4697 = vld [vmem:[%s4681 + $0x78] sm:$0xff]
    %v4698 = vld [vmem:[%s4681 + $0x80] sm:$0xff]
    %v4699 = vld [vmem:[%s4681 + $0x88] sm:$0xff]
    %v4700 = vld [vmem:[%s4681 + $0x90] sm:$0xff]
    %v4701 = vld [vmem:[%s4681 + $0x98] sm:$0xff]
    %v4702 = vld [vmem:[%s4681 + $0xa0] sm:$0xff]
    %v4703 = vld [vmem:[%s4681 + $0xa8] sm:$0xff]
    %v4704 = vld [vmem:[%s4681 + $0xb0] sm:$0xff]
    %v4705 = vld [vmem:[%s4681 + $0xb8] sm:$0xff]
    %v4706 = vld [vmem:[%s4681 + $0xc0] sm:$0xff]
    %v4707 = vld [vmem:[%s4681 + $0xc8] sm:$0xff]
    %v4708 = vld [vmem:[%s4681 + $0xd0] sm:$0xff]
    %v4709 = vld [vmem:[%s4681 + $0xd8] sm:$0xff]
    %v4710 = vld [vmem:[%s4681 + $0xe0] sm:$0xff]
    %v4711 = vld [vmem:[%s4681 + $0xe8] sm:$0xff]
    %v4712 = vld [vmem:[%s4681 + $0xf0] sm:$0xff]
    %v4713 = vld [vmem:[%s4681 + $0xf8] sm:$0xff]
    %v4746 = vunpack.c.l.b16 %v4682
    %v4747 = vunpack.c.h.b16 %v4682
    %v4748 = vunpack.c.l.b16 %v4683
    %v4749 = vunpack.c.h.b16 %v4683
    %v4750 = vunpack.c.l.b16 %v4684
    %v4751 = vunpack.c.h.b16 %v4684
    %v4752 = vunpack.c.l.b16 %v4685
    %v4753 = vunpack.c.h.b16 %v4685
    %v4754 = vunpack.c.l.b16 %v4686
    %v4755 = vunpack.c.h.b16 %v4686
    %v4756 = vunpack.c.l.b16 %v4687
    %v4757 = vunpack.c.h.b16 %v4687
    %v4758 = vunpack.c.l.b16 %v4688
    %v4759 = vunpack.c.h.b16 %v4688
    %v4760 = vunpack.c.l.b16 %v4689
    %v4761 = vunpack.c.h.b16 %v4689
    %v4762 = vunpack.c.l.b16 %v4690
    %v4763 = vunpack.c.h.b16 %v4690
    %v4764 = vunpack.c.l.b16 %v4691
    %v4765 = vunpack.c.h.b16 %v4691
    %v4766 = vunpack.c.l.b16 %v4692
    %v4767 = vunpack.c.h.b16 %v4692
    %v4768 = vunpack.c.l.b16 %v4693
    %v4769 = vunpack.c.h.b16 %v4693
    %v4770 = vunpack.c.l.b16 %v4694
    %v4771 = vunpack.c.h.b16 %v4694
    %v4772 = vunpack.c.l.b16 %v4695
    %v4773 = vunpack.c.h.b16 %v4695
    %v4774 = vunpack.c.l.b16 %v4696
    %v4775 = vunpack.c.h.b16 %v4696
    %v4776 = vunpack.c.l.b16 %v4697
    %v4777 = vunpack.c.h.b16 %v4697
    %v4778 = vunpack.c.l.b16 %v4698
    %v4779 = vunpack.c.h.b16 %v4698
    %v4780 = vunpack.c.l.b16 %v4699
    %v4781 = vunpack.c.h.b16 %v4699
    %v4782 = vunpack.c.l.b16 %v4700
    %v4783 = vunpack.c.h.b16 %v4700
    %v4784 = vunpack.c.l.b16 %v4701
    %v4785 = vunpack.c.h.b16 %v4701
    %v4786 = vunpack.c.l.b16 %v4702
    %v4787 = vunpack.c.h.b16 %v4702
    %v4788 = vunpack.c.l.b16 %v4703
    %v4789 = vunpack.c.h.b16 %v4703
    %v4790 = vunpack.c.l.b16 %v4704
    %v4791 = vunpack.c.h.b16 %v4704
    %v4792 = vunpack.c.l.b16 %v4705
    %v4793 = vunpack.c.h.b16 %v4705
    %v4794 = vunpack.c.l.b16 %v4706
    %v4795 = vunpack.c.h.b16 %v4706
    %v4796 = vunpack.c.l.b16 %v4707
    %v4797 = vunpack.c.h.b16 %v4707
    %v4798 = vunpack.c.l.b16 %v4708
    %v4799 = vunpack.c.h.b16 %v4708
    %v4800 = vunpack.c.l.b16 %v4709
    %v4801 = vunpack.c.h.b16 %v4709
    %v4802 = vunpack.c.l.b16 %v4710
    %v4803 = vunpack.c.h.b16 %v4710
    %v4804 = vunpack.c.l.b16 %v4711
    %v4805 = vunpack.c.h.b16 %v4711
    %v4806 = vunpack.c.l.b16 %v4712
    %v4807 = vunpack.c.h.b16 %v4712
    %v4808 = vunpack.c.l.b16 %v4713
    %v4809 = vunpack.c.h.b16 %v4713
    %v4810 = vpack.c.b16 %v4750, %v4746
    %v4811 = vpack.c.b16 %v4751, %v4747
    %v4812 = vpack.c.b16 %v4752, %v4748
    %v4813 = vpack.c.b16 %v4753, %v4749
    %v4814 = vpack.c.b16 %v4758, %v4754
    %v4815 = vpack.c.b16 %v4759, %v4755
    %v4816 = vpack.c.b16 %v4760, %v4756
    %v4817 = vpack.c.b16 %v4761, %v4757
    %v4818 = vpack.c.b16 %v4766, %v4762
    %v4819 = vpack.c.b16 %v4767, %v4763
    %v4820 = vpack.c.b16 %v4768, %v4764
    %v4821 = vpack.c.b16 %v4769, %v4765
    %v4822 = vpack.c.b16 %v4774, %v4770
    %v4823 = vpack.c.b16 %v4775, %v4771
    %v4824 = vpack.c.b16 %v4776, %v4772
    %v4825 = vpack.c.b16 %v4777, %v4773
    %v4826 = vpack.c.b16 %v4782, %v4778
    %v4827 = vpack.c.b16 %v4783, %v4779
    %v4828 = vpack.c.b16 %v4784, %v4780
    %v4829 = vpack.c.b16 %v4785, %v4781
    %v4830 = vpack.c.b16 %v4790, %v4786
    %v4831 = vpack.c.b16 %v4791, %v4787
    %v4832 = vpack.c.b16 %v4792, %v4788
    %v4833 = vpack.c.b16 %v4793, %v4789
    %v4834 = vpack.c.b16 %v4798, %v4794
    %v4835 = vpack.c.b16 %v4799, %v4795
    %v4836 = vpack.c.b16 %v4800, %v4796
    %v4837 = vpack.c.b16 %v4801, %v4797
    %v4838 = vpack.c.b16 %v4806, %v4802
    %v4839 = vpack.c.b16 %v4807, %v4803
    %v4840 = vpack.c.b16 %v4808, %v4804
    %v4841 = vpack.c.b16 %v4809, %v4805
    %4874 = vmatpush.bf16.msra.mxu0 %v4838
    %4875 = vmatpush.bf16.msra.mxu0 %v4834
    %4876 = vmatpush.bf16.msra.mxu0 %v4830
    %4877 = vmatpush.bf16.msra.mxu0 %v4826
    %4878 = vmatpush.bf16.msra.mxu0 %v4822
    %4879 = vmatpush.bf16.msra.mxu0 %v4818
    %4880 = vmatpush.bf16.msra.mxu0 %v4814
    %4881 = vmatpush.bf16.msra.mxu0 %v4810
    %4882 = vmatmul.bf16.gmra.mxu0 %v4680
    %v4883 = vpop.f32.mrf.mxu0
    %v4884 = vadd.f32 0.0, %v4883
    %v4885 = vpop.f32.mrf.mxu0
    %4886 = vdwg.mxu0
    %4887 = vmatpush.bf16.msra.mxu0 %v4839
    %4888 = vmatpush.bf16.msra.mxu0 %v4835
    %4889 = vmatpush.bf16.msra.mxu0 %v4831
    %4890 = vmatpush.bf16.msra.mxu0 %v4827
    %4891 = vmatpush.bf16.msra.mxu0 %v4823
    %4892 = vmatpush.bf16.msra.mxu0 %v4819
    %4893 = vmatpush.bf16.msra.mxu0 %v4815
    %4894 = vmatpush.bf16.msra.mxu0 %v4811
    %4895 = vmatmul.bf16.gmra.mxu0 %v4680
    %v4896 = vpop.f32.mrf.mxu0
    %v4897 = vadd.f32 0.0, %v4896
    %v4898 = vpop.f32.mrf.mxu0
    %4899 = vdwg.mxu0
    %4900 = vmatpush.bf16.msra.mxu0 %v4840
    %4901 = vmatpush.bf16.msra.mxu0 %v4836
    %4902 = vmatpush.bf16.msra.mxu0 %v4832
    %4903 = vmatpush.bf16.msra.mxu0 %v4828
    %4904 = vmatpush.bf16.msra.mxu0 %v4824
    %4905 = vmatpush.bf16.msra.mxu0 %v4820
    %4906 = vmatpush.bf16.msra.mxu0 %v4816
    %4907 = vmatpush.bf16.msra.mxu0 %v4812
    %4908 = vmatmul.bf16.gmra.mxu0 %v4680
    %v4909 = vpop.f32.mrf.mxu0
    %v4910 = vadd.f32 0.0, %v4909
    %v4911 = vpop.f32.mrf.mxu0
    %4912 = vdwg.mxu0
    %4913 = vmatpush.bf16.msra.mxu0 %v4841
    %4914 = vmatpush.bf16.msra.mxu0 %v4837
    %4915 = vmatpush.bf16.msra.mxu0 %v4833
    %4916 = vmatpush.bf16.msra.mxu0 %v4829
    %4917 = vmatpush.bf16.msra.mxu0 %v4825
    %4918 = vmatpush.bf16.msra.mxu0 %v4821
    %4919 = vmatpush.bf16.msra.mxu0 %v4817
    %4920 = vmatpush.bf16.msra.mxu0 %v4813
    %4921 = vmatmul.bf16.gmra.mxu0 %v4680
    %v4922 = vpop.f32.mrf.mxu0
    %v4923 = vadd.f32 0.0, %v4922
    %v4924 = vpop.f32.mrf.mxu0
    %4925 = vdwg.mxu0
    %v4926 = vadd.f32 %v4658, %v4884
    %v4927 = vadd.f32 %v4659, %v4897
    %v4928 = vadd.f32 %v4660, %v4910
    %v4929 = vadd.f32 %v4661, %v4923
    %s4930 = scalar_lea.vmem %s10, 18
    %v4931 = vld [vmem:[%s4930] sm:$0x3]
    %v4933 = vsel %vm2528, %v4931, 0
    %4935 = vmatpush.bf16.msra.mxu0 0
    %4936 = vmatpush.bf16.msra.mxu0 0
    %4937 = vmatpush.bf16.msra.mxu0 0
    %4938 = vmatpush.bf16.msra.mxu0 0
    %4939 = vmatpush.bf16.msra.mxu0 0
    %4940 = vmatpush.bf16.msra.mxu0 0
    %4941 = vmatpush.bf16.msra.mxu0 0
    %4942 = vmatpush.bf16.msra.mxu0 %v2526
    %4943 = vmatmul.bf16.gmra.mxu0 %v4933
    %v4944 = vpop.f32.mrf.mxu0
    %v4945 = vadd.f32 0.0, %v4944
    %v4946 = vpop.f32.mrf.mxu0
    %4947 = vdwg.mxu0
    %v4948 = vpack.c.bf16 %v4945, %v4945
    %s4949 = scalar_lea.vmem [#allocation6], 2304
    %v4950 = vld [vmem:[%s4949] sm:$0xff]
    %v4951 = vld [vmem:[%s4949 + $0x8] sm:$0xff]
    %v4952 = vld [vmem:[%s4949 + $0x10] sm:$0xff]
    %v4953 = vld [vmem:[%s4949 + $0x18] sm:$0xff]
    %v4954 = vld [vmem:[%s4949 + $0x20] sm:$0xff]
    %v4955 = vld [vmem:[%s4949 + $0x28] sm:$0xff]
    %v4956 = vld [vmem:[%s4949 + $0x30] sm:$0xff]
    %v4957 = vld [vmem:[%s4949 + $0x38] sm:$0xff]
    %v4958 = vld [vmem:[%s4949 + $0x40] sm:$0xff]
    %v4959 = vld [vmem:[%s4949 + $0x48] sm:$0xff]
    %v4960 = vld [vmem:[%s4949 + $0x50] sm:$0xff]
    %v4961 = vld [vmem:[%s4949 + $0x58] sm:$0xff]
    %v4962 = vld [vmem:[%s4949 + $0x60] sm:$0xff]
    %v4963 = vld [vmem:[%s4949 + $0x68] sm:$0xff]
    %v4964 = vld [vmem:[%s4949 + $0x70] sm:$0xff]
    %v4965 = vld [vmem:[%s4949 + $0x78] sm:$0xff]
    %v4966 = vld [vmem:[%s4949 + $0x80] sm:$0xff]
    %v4967 = vld [vmem:[%s4949 + $0x88] sm:$0xff]
    %v4968 = vld [vmem:[%s4949 + $0x90] sm:$0xff]
    %v4969 = vld [vmem:[%s4949 + $0x98] sm:$0xff]
    %v4970 = vld [vmem:[%s4949 + $0xa0] sm:$0xff]
    %v4971 = vld [vmem:[%s4949 + $0xa8] sm:$0xff]
    %v4972 = vld [vmem:[%s4949 + $0xb0] sm:$0xff]
    %v4973 = vld [vmem:[%s4949 + $0xb8] sm:$0xff]
    %v4974 = vld [vmem:[%s4949 + $0xc0] sm:$0xff]
    %v4975 = vld [vmem:[%s4949 + $0xc8] sm:$0xff]
    %v4976 = vld [vmem:[%s4949 + $0xd0] sm:$0xff]
    %v4977 = vld [vmem:[%s4949 + $0xd8] sm:$0xff]
    %v4978 = vld [vmem:[%s4949 + $0xe0] sm:$0xff]
    %v4979 = vld [vmem:[%s4949 + $0xe8] sm:$0xff]
    %v4980 = vld [vmem:[%s4949 + $0xf0] sm:$0xff]
    %v4981 = vld [vmem:[%s4949 + $0xf8] sm:$0xff]
    %v5014 = vunpack.c.l.b16 %v4950
    %v5015 = vunpack.c.h.b16 %v4950
    %v5016 = vunpack.c.l.b16 %v4951
    %v5017 = vunpack.c.h.b16 %v4951
    %v5018 = vunpack.c.l.b16 %v4952
    %v5019 = vunpack.c.h.b16 %v4952
    %v5020 = vunpack.c.l.b16 %v4953
    %v5021 = vunpack.c.h.b16 %v4953
    %v5022 = vunpack.c.l.b16 %v4954
    %v5023 = vunpack.c.h.b16 %v4954
    %v5024 = vunpack.c.l.b16 %v4955
    %v5025 = vunpack.c.h.b16 %v4955
    %v5026 = vunpack.c.l.b16 %v4956
    %v5027 = vunpack.c.h.b16 %v4956
    %v5028 = vunpack.c.l.b16 %v4957
    %v5029 = vunpack.c.h.b16 %v4957
    %v5030 = vunpack.c.l.b16 %v4958
    %v5031 = vunpack.c.h.b16 %v4958
    %v5032 = vunpack.c.l.b16 %v4959
    %v5033 = vunpack.c.h.b16 %v4959
    %v5034 = vunpack.c.l.b16 %v4960
    %v5035 = vunpack.c.h.b16 %v4960
    %v5036 = vunpack.c.l.b16 %v4961
    %v5037 = vunpack.c.h.b16 %v4961
    %v5038 = vunpack.c.l.b16 %v4962
    %v5039 = vunpack.c.h.b16 %v4962
    %v5040 = vunpack.c.l.b16 %v4963
    %v5041 = vunpack.c.h.b16 %v4963
    %v5042 = vunpack.c.l.b16 %v4964
    %v5043 = vunpack.c.h.b16 %v4964
    %v5044 = vunpack.c.l.b16 %v4965
    %v5045 = vunpack.c.h.b16 %v4965
    %v5046 = vunpack.c.l.b16 %v4966
    %v5047 = vunpack.c.h.b16 %v4966
    %v5048 = vunpack.c.l.b16 %v4967
    %v5049 = vunpack.c.h.b16 %v4967
    %v5050 = vunpack.c.l.b16 %v4968
    %v5051 = vunpack.c.h.b16 %v4968
    %v5052 = vunpack.c.l.b16 %v4969
    %v5053 = vunpack.c.h.b16 %v4969
    %v5054 = vunpack.c.l.b16 %v4970
    %v5055 = vunpack.c.h.b16 %v4970
    %v5056 = vunpack.c.l.b16 %v4971
    %v5057 = vunpack.c.h.b16 %v4971
    %v5058 = vunpack.c.l.b16 %v4972
    %v5059 = vunpack.c.h.b16 %v4972
    %v5060 = vunpack.c.l.b16 %v4973
    %v5061 = vunpack.c.h.b16 %v4973
    %v5062 = vunpack.c.l.b16 %v4974
    %v5063 = vunpack.c.h.b16 %v4974
    %v5064 = vunpack.c.l.b16 %v4975
    %v5065 = vunpack.c.h.b16 %v4975
    %v5066 = vunpack.c.l.b16 %v4976
    %v5067 = vunpack.c.h.b16 %v4976
    %v5068 = vunpack.c.l.b16 %v4977
    %v5069 = vunpack.c.h.b16 %v4977
    %v5070 = vunpack.c.l.b16 %v4978
    %v5071 = vunpack.c.h.b16 %v4978
    %v5072 = vunpack.c.l.b16 %v4979
    %v5073 = vunpack.c.h.b16 %v4979
    %v5074 = vunpack.c.l.b16 %v4980
    %v5075 = vunpack.c.h.b16 %v4980
    %v5076 = vunpack.c.l.b16 %v4981
    %v5077 = vunpack.c.h.b16 %v4981
    %v5078 = vpack.c.b16 %v5018, %v5014
    %v5079 = vpack.c.b16 %v5019, %v5015
    %v5080 = vpack.c.b16 %v5020, %v5016
    %v5081 = vpack.c.b16 %v5021, %v5017
    %v5082 = vpack.c.b16 %v5026, %v5022
    %v5083 = vpack.c.b16 %v5027, %v5023
    %v5084 = vpack.c.b16 %v5028, %v5024
    %v5085 = vpack.c.b16 %v5029, %v5025
    %v5086 = vpack.c.b16 %v5034, %v5030
    %v5087 = vpack.c.b16 %v5035, %v5031
    %v5088 = vpack.c.b16 %v5036, %v5032
    %v5089 = vpack.c.b16 %v5037, %v5033
    %v5090 = vpack.c.b16 %v5042, %v5038
    %v5091 = vpack.c.b16 %v5043, %v5039
    %v5092 = vpack.c.b16 %v5044, %v5040
    %v5093 = vpack.c.b16 %v5045, %v5041
    %v5094 = vpack.c.b16 %v5050, %v5046
    %v5095 = vpack.c.b16 %v5051, %v5047
    %v5096 = vpack.c.b16 %v5052, %v5048
    %v5097 = vpack.c.b16 %v5053, %v5049
    %v5098 = vpack.c.b16 %v5058, %v5054
    %v5099 = vpack.c.b16 %v5059, %v5055
    %v5100 = vpack.c.b16 %v5060, %v5056
    %v5101 = vpack.c.b16 %v5061, %v5057
    %v5102 = vpack.c.b16 %v5066, %v5062
    %v5103 = vpack.c.b16 %v5067, %v5063
    %v5104 = vpack.c.b16 %v5068, %v5064
    %v5105 = vpack.c.b16 %v5069, %v5065
    %v5106 = vpack.c.b16 %v5074, %v5070
    %v5107 = vpack.c.b16 %v5075, %v5071
    %v5108 = vpack.c.b16 %v5076, %v5072
    %v5109 = vpack.c.b16 %v5077, %v5073
    %5142 = vmatpush.bf16.msra.mxu0 %v5106
    %5143 = vmatpush.bf16.msra.mxu0 %v5102
    %5144 = vmatpush.bf16.msra.mxu0 %v5098
    %5145 = vmatpush.bf16.msra.mxu0 %v5094
    %5146 = vmatpush.bf16.msra.mxu0 %v5090
    %5147 = vmatpush.bf16.msra.mxu0 %v5086
    %5148 = vmatpush.bf16.msra.mxu0 %v5082
    %5149 = vmatpush.bf16.msra.mxu0 %v5078
    %5150 = vmatmul.bf16.gmra.mxu0 %v4948
    %v5151 = vpop.f32.mrf.mxu0
    %v5152 = vadd.f32 0.0, %v5151
    %v5153 = vpop.f32.mrf.mxu0
    %5154 = vdwg.mxu0
    %5155 = vmatpush.bf16.msra.mxu0 %v5107
    %5156 = vmatpush.bf16.msra.mxu0 %v5103
    %5157 = vmatpush.bf16.msra.mxu0 %v5099
    %5158 = vmatpush.bf16.msra.mxu0 %v5095
    %5159 = vmatpush.bf16.msra.mxu0 %v5091
    %5160 = vmatpush.bf16.msra.mxu0 %v5087
    %5161 = vmatpush.bf16.msra.mxu0 %v5083
    %5162 = vmatpush.bf16.msra.mxu0 %v5079
    %5163 = vmatmul.bf16.gmra.mxu0 %v4948
    %v5164 = vpop.f32.mrf.mxu0
    %v5165 = vadd.f32 0.0, %v5164
    %v5166 = vpop.f32.mrf.mxu0
    %5167 = vdwg.mxu0
    %5168 = vmatpush.bf16.msra.mxu0 %v5108
    %5169 = vmatpush.bf16.msra.mxu0 %v5104
    %5170 = vmatpush.bf16.msra.mxu0 %v5100
    %5171 = vmatpush.bf16.msra.mxu0 %v5096
    %5172 = vmatpush.bf16.msra.mxu0 %v5092
    %5173 = vmatpush.bf16.msra.mxu0 %v5088
    %5174 = vmatpush.bf16.msra.mxu0 %v5084
    %5175 = vmatpush.bf16.msra.mxu0 %v5080
    %5176 = vmatmul.bf16.gmra.mxu0 %v4948
    %v5177 = vpop.f32.mrf.mxu0
    %v5178 = vadd.f32 0.0, %v5177
    %v5179 = vpop.f32.mrf.mxu0
    %5180 = vdwg.mxu0
    %5181 = vmatpush.bf16.msra.mxu0 %v5109
    %5182 = vmatpush.bf16.msra.mxu0 %v5105
    %5183 = vmatpush.bf16.msra.mxu0 %v5101
    %5184 = vmatpush.bf16.msra.mxu0 %v5097
    %5185 = vmatpush.bf16.msra.mxu0 %v5093
    %5186 = vmatpush.bf16.msra.mxu0 %v5089
    %5187 = vmatpush.bf16.msra.mxu0 %v5085
    %5188 = vmatpush.bf16.msra.mxu0 %v5081
    %5189 = vmatmul.bf16.gmra.mxu0 %v4948
    %v5190 = vpop.f32.mrf.mxu0
    %v5191 = vadd.f32 0.0, %v5190
    %v5192 = vpop.f32.mrf.mxu0
    %5193 = vdwg.mxu0
    %v5194 = vadd.f32 %v4926, %v5152
    %v5195 = vadd.f32 %v4927, %v5165
    %v5196 = vadd.f32 %v4928, %v5178
    %v5197 = vadd.f32 %v4929, %v5191
    %s5198 = scalar_lea.vmem %s10, 20
    %v5199 = vld [vmem:[%s5198] sm:$0x3]
    %v5201 = vsel %vm2528, %v5199, 0
    %5203 = vmatpush.bf16.msra.mxu0 0
    %5204 = vmatpush.bf16.msra.mxu0 0
    %5205 = vmatpush.bf16.msra.mxu0 0
    %5206 = vmatpush.bf16.msra.mxu0 0
    %5207 = vmatpush.bf16.msra.mxu0 0
    %5208 = vmatpush.bf16.msra.mxu0 0
    %5209 = vmatpush.bf16.msra.mxu0 0
    %5210 = vmatpush.bf16.msra.mxu0 %v2526
    %5211 = vmatmul.bf16.gmra.mxu0 %v5201
    %v5212 = vpop.f32.mrf.mxu0
    %v5213 = vadd.f32 0.0, %v5212
    %v5214 = vpop.f32.mrf.mxu0
    %5215 = vdwg.mxu0
    %v5216 = vpack.c.bf16 %v5213, %v5213
    %s5217 = scalar_lea.vmem [#allocation6], 2560
    %v5218 = vld [vmem:[%s5217] sm:$0xff]
    %v5219 = vld [vmem:[%s5217 + $0x8] sm:$0xff]
    %v5220 = vld [vmem:[%s5217 + $0x10] sm:$0xff]
    %v5221 = vld [vmem:[%s5217 + $0x18] sm:$0xff]
    %v5222 = vld [vmem:[%s5217 + $0x20] sm:$0xff]
    %v5223 = vld [vmem:[%s5217 + $0x28] sm:$0xff]
    %v5224 = vld [vmem:[%s5217 + $0x30] sm:$0xff]
    %v5225 = vld [vmem:[%s5217 + $0x38] sm:$0xff]
    %v5226 = vld [vmem:[%s5217 + $0x40] sm:$0xff]
    %v5227 = vld [vmem:[%s5217 + $0x48] sm:$0xff]
    %v5228 = vld [vmem:[%s5217 + $0x50] sm:$0xff]
    %v5229 = vld [vmem:[%s5217 + $0x58] sm:$0xff]
    %v5230 = vld [vmem:[%s5217 + $0x60] sm:$0xff]
    %v5231 = vld [vmem:[%s5217 + $0x68] sm:$0xff]
    %v5232 = vld [vmem:[%s5217 + $0x70] sm:$0xff]
    %v5233 = vld [vmem:[%s5217 + $0x78] sm:$0xff]
    %v5234 = vld [vmem:[%s5217 + $0x80] sm:$0xff]
    %v5235 = vld [vmem:[%s5217 + $0x88] sm:$0xff]
    %v5236 = vld [vmem:[%s5217 + $0x90] sm:$0xff]
    %v5237 = vld [vmem:[%s5217 + $0x98] sm:$0xff]
    %v5238 = vld [vmem:[%s5217 + $0xa0] sm:$0xff]
    %v5239 = vld [vmem:[%s5217 + $0xa8] sm:$0xff]
    %v5240 = vld [vmem:[%s5217 + $0xb0] sm:$0xff]
    %v5241 = vld [vmem:[%s5217 + $0xb8] sm:$0xff]
    %v5242 = vld [vmem:[%s5217 + $0xc0] sm:$0xff]
    %v5243 = vld [vmem:[%s5217 + $0xc8] sm:$0xff]
    %v5244 = vld [vmem:[%s5217 + $0xd0] sm:$0xff]
    %v5245 = vld [vmem:[%s5217 + $0xd8] sm:$0xff]
    %v5246 = vld [vmem:[%s5217 + $0xe0] sm:$0xff]
    %v5247 = vld [vmem:[%s5217 + $0xe8] sm:$0xff]
    %v5248 = vld [vmem:[%s5217 + $0xf0] sm:$0xff]
    %v5249 = vld [vmem:[%s5217 + $0xf8] sm:$0xff]
    %v5282 = vunpack.c.l.b16 %v5218
    %v5283 = vunpack.c.h.b16 %v5218
    %v5284 = vunpack.c.l.b16 %v5219
    %v5285 = vunpack.c.h.b16 %v5219
    %v5286 = vunpack.c.l.b16 %v5220
    %v5287 = vunpack.c.h.b16 %v5220
    %v5288 = vunpack.c.l.b16 %v5221
    %v5289 = vunpack.c.h.b16 %v5221
    %v5290 = vunpack.c.l.b16 %v5222
    %v5291 = vunpack.c.h.b16 %v5222
    %v5292 = vunpack.c.l.b16 %v5223
    %v5293 = vunpack.c.h.b16 %v5223
    %v5294 = vunpack.c.l.b16 %v5224
    %v5295 = vunpack.c.h.b16 %v5224
    %v5296 = vunpack.c.l.b16 %v5225
    %v5297 = vunpack.c.h.b16 %v5225
    %v5298 = vunpack.c.l.b16 %v5226
    %v5299 = vunpack.c.h.b16 %v5226
    %v5300 = vunpack.c.l.b16 %v5227
    %v5301 = vunpack.c.h.b16 %v5227
    %v5302 = vunpack.c.l.b16 %v5228
    %v5303 = vunpack.c.h.b16 %v5228
    %v5304 = vunpack.c.l.b16 %v5229
    %v5305 = vunpack.c.h.b16 %v5229
    %v5306 = vunpack.c.l.b16 %v5230
    %v5307 = vunpack.c.h.b16 %v5230
    %v5308 = vunpack.c.l.b16 %v5231
    %v5309 = vunpack.c.h.b16 %v5231
    %v5310 = vunpack.c.l.b16 %v5232
    %v5311 = vunpack.c.h.b16 %v5232
    %v5312 = vunpack.c.l.b16 %v5233
    %v5313 = vunpack.c.h.b16 %v5233
    %v5314 = vunpack.c.l.b16 %v5234
    %v5315 = vunpack.c.h.b16 %v5234
    %v5316 = vunpack.c.l.b16 %v5235
    %v5317 = vunpack.c.h.b16 %v5235
    %v5318 = vunpack.c.l.b16 %v5236
    %v5319 = vunpack.c.h.b16 %v5236
    %v5320 = vunpack.c.l.b16 %v5237
    %v5321 = vunpack.c.h.b16 %v5237
    %v5322 = vunpack.c.l.b16 %v5238
    %v5323 = vunpack.c.h.b16 %v5238
    %v5324 = vunpack.c.l.b16 %v5239
    %v5325 = vunpack.c.h.b16 %v5239
    %v5326 = vunpack.c.l.b16 %v5240
    %v5327 = vunpack.c.h.b16 %v5240
    %v5328 = vunpack.c.l.b16 %v5241
    %v5329 = vunpack.c.h.b16 %v5241
    %v5330 = vunpack.c.l.b16 %v5242
    %v5331 = vunpack.c.h.b16 %v5242
    %v5332 = vunpack.c.l.b16 %v5243
    %v5333 = vunpack.c.h.b16 %v5243
    %v5334 = vunpack.c.l.b16 %v5244
    %v5335 = vunpack.c.h.b16 %v5244
    %v5336 = vunpack.c.l.b16 %v5245
    %v5337 = vunpack.c.h.b16 %v5245
    %v5338 = vunpack.c.l.b16 %v5246
    %v5339 = vunpack.c.h.b16 %v5246
    %v5340 = vunpack.c.l.b16 %v5247
    %v5341 = vunpack.c.h.b16 %v5247
    %v5342 = vunpack.c.l.b16 %v5248
    %v5343 = vunpack.c.h.b16 %v5248
    %v5344 = vunpack.c.l.b16 %v5249
    %v5345 = vunpack.c.h.b16 %v5249
    %v5346 = vpack.c.b16 %v5286, %v5282
    %v5347 = vpack.c.b16 %v5287, %v5283
    %v5348 = vpack.c.b16 %v5288, %v5284
    %v5349 = vpack.c.b16 %v5289, %v5285
    %v5350 = vpack.c.b16 %v5294, %v5290
    %v5351 = vpack.c.b16 %v5295, %v5291
    %v5352 = vpack.c.b16 %v5296, %v5292
    %v5353 = vpack.c.b16 %v5297, %v5293
    %v5354 = vpack.c.b16 %v5302, %v5298
    %v5355 = vpack.c.b16 %v5303, %v5299
    %v5356 = vpack.c.b16 %v5304, %v5300
    %v5357 = vpack.c.b16 %v5305, %v5301
    %v5358 = vpack.c.b16 %v5310, %v5306
    %v5359 = vpack.c.b16 %v5311, %v5307
    %v5360 = vpack.c.b16 %v5312, %v5308
    %v5361 = vpack.c.b16 %v5313, %v5309
    %v5362 = vpack.c.b16 %v5318, %v5314
    %v5363 = vpack.c.b16 %v5319, %v5315
    %v5364 = vpack.c.b16 %v5320, %v5316
    %v5365 = vpack.c.b16 %v5321, %v5317
    %v5366 = vpack.c.b16 %v5326, %v5322
    %v5367 = vpack.c.b16 %v5327, %v5323
    %v5368 = vpack.c.b16 %v5328, %v5324
    %v5369 = vpack.c.b16 %v5329, %v5325
    %v5370 = vpack.c.b16 %v5334, %v5330
    %v5371 = vpack.c.b16 %v5335, %v5331
    %v5372 = vpack.c.b16 %v5336, %v5332
    %v5373 = vpack.c.b16 %v5337, %v5333
    %v5374 = vpack.c.b16 %v5342, %v5338
    %v5375 = vpack.c.b16 %v5343, %v5339
    %v5376 = vpack.c.b16 %v5344, %v5340
    %v5377 = vpack.c.b16 %v5345, %v5341
    %5410 = vmatpush.bf16.msra.mxu0 %v5374
    %5411 = vmatpush.bf16.msra.mxu0 %v5370
    %5412 = vmatpush.bf16.msra.mxu0 %v5366
    %5413 = vmatpush.bf16.msra.mxu0 %v5362
    %5414 = vmatpush.bf16.msra.mxu0 %v5358
    %5415 = vmatpush.bf16.msra.mxu0 %v5354
    %5416 = vmatpush.bf16.msra.mxu0 %v5350
    %5417 = vmatpush.bf16.msra.mxu0 %v5346
    %5418 = vmatmul.bf16.gmra.mxu0 %v5216
    %v5419 = vpop.f32.mrf.mxu0
    %v5420 = vadd.f32 0.0, %v5419
    %v5421 = vpop.f32.mrf.mxu0
    %5422 = vdwg.mxu0
    %5423 = vmatpush.bf16.msra.mxu0 %v5375
    %5424 = vmatpush.bf16.msra.mxu0 %v5371
    %5425 = vmatpush.bf16.msra.mxu0 %v5367
    %5426 = vmatpush.bf16.msra.mxu0 %v5363
    %5427 = vmatpush.bf16.msra.mxu0 %v5359
    %5428 = vmatpush.bf16.msra.mxu0 %v5355
    %5429 = vmatpush.bf16.msra.mxu0 %v5351
    %5430 = vmatpush.bf16.msra.mxu0 %v5347
    %5431 = vmatmul.bf16.gmra.mxu0 %v5216
    %v5432 = vpop.f32.mrf.mxu0
    %v5433 = vadd.f32 0.0, %v5432
    %v5434 = vpop.f32.mrf.mxu0
    %5435 = vdwg.mxu0
    %5436 = vmatpush.bf16.msra.mxu0 %v5376
    %5437 = vmatpush.bf16.msra.mxu0 %v5372
    %5438 = vmatpush.bf16.msra.mxu0 %v5368
    %5439 = vmatpush.bf16.msra.mxu0 %v5364
    %5440 = vmatpush.bf16.msra.mxu0 %v5360
    %5441 = vmatpush.bf16.msra.mxu0 %v5356
    %5442 = vmatpush.bf16.msra.mxu0 %v5352
    %5443 = vmatpush.bf16.msra.mxu0 %v5348
    %5444 = vmatmul.bf16.gmra.mxu0 %v5216
    %v5445 = vpop.f32.mrf.mxu0
    %v5446 = vadd.f32 0.0, %v5445
    %v5447 = vpop.f32.mrf.mxu0
    %5448 = vdwg.mxu0
    %5449 = vmatpush.bf16.msra.mxu0 %v5377
    %5450 = vmatpush.bf16.msra.mxu0 %v5373
    %5451 = vmatpush.bf16.msra.mxu0 %v5369
    %5452 = vmatpush.bf16.msra.mxu0 %v5365
    %5453 = vmatpush.bf16.msra.mxu0 %v5361
    %5454 = vmatpush.bf16.msra.mxu0 %v5357
    %5455 = vmatpush.bf16.msra.mxu0 %v5353
    %5456 = vmatpush.bf16.msra.mxu0 %v5349
    %5457 = vmatmul.bf16.gmra.mxu0 %v5216
    %v5458 = vpop.f32.mrf.mxu0
    %v5459 = vadd.f32 0.0, %v5458
    %v5460 = vpop.f32.mrf.mxu0
    %5461 = vdwg.mxu0
    %v5462 = vadd.f32 %v5194, %v5420
    %v5463 = vadd.f32 %v5195, %v5433
    %v5464 = vadd.f32 %v5196, %v5446
    %v5465 = vadd.f32 %v5197, %v5459
    %s5466 = scalar_lea.vmem %s10, 22
    %v5467 = vld [vmem:[%s5466] sm:$0x3]
    %v5469 = vsel %vm2528, %v5467, 0
    %5471 = vmatpush.bf16.msra.mxu0 0
    %5472 = vmatpush.bf16.msra.mxu0 0
    %5473 = vmatpush.bf16.msra.mxu0 0
    %5474 = vmatpush.bf16.msra.mxu0 0
    %5475 = vmatpush.bf16.msra.mxu0 0
    %5476 = vmatpush.bf16.msra.mxu0 0
    %5477 = vmatpush.bf16.msra.mxu0 0
    %5478 = vmatpush.bf16.msra.mxu0 %v2526
    %5479 = vmatmul.bf16.gmra.mxu0 %v5469
    %v5480 = vpop.f32.mrf.mxu0
    %v5481 = vadd.f32 0.0, %v5480
    %v5482 = vpop.f32.mrf.mxu0
    %5483 = vdwg.mxu0
    %v5484 = vpack.c.bf16 %v5481, %v5481
    %s5485 = scalar_lea.vmem [#allocation6], 2816
    %v5486 = vld [vmem:[%s5485] sm:$0xff]
    %v5487 = vld [vmem:[%s5485 + $0x8] sm:$0xff]
    %v5488 = vld [vmem:[%s5485 + $0x10] sm:$0xff]
    %v5489 = vld [vmem:[%s5485 + $0x18] sm:$0xff]
    %v5490 = vld [vmem:[%s5485 + $0x20] sm:$0xff]
    %v5491 = vld [vmem:[%s5485 + $0x28] sm:$0xff]
    %v5492 = vld [vmem:[%s5485 + $0x30] sm:$0xff]
    %v5493 = vld [vmem:[%s5485 + $0x38] sm:$0xff]
    %v5494 = vld [vmem:[%s5485 + $0x40] sm:$0xff]
    %v5495 = vld [vmem:[%s5485 + $0x48] sm:$0xff]
    %v5496 = vld [vmem:[%s5485 + $0x50] sm:$0xff]
    %v5497 = vld [vmem:[%s5485 + $0x58] sm:$0xff]
    %v5498 = vld [vmem:[%s5485 + $0x60] sm:$0xff]
    %v5499 = vld [vmem:[%s5485 + $0x68] sm:$0xff]
    %v5500 = vld [vmem:[%s5485 + $0x70] sm:$0xff]
    %v5501 = vld [vmem:[%s5485 + $0x78] sm:$0xff]
    %v5502 = vld [vmem:[%s5485 + $0x80] sm:$0xff]
    %v5503 = vld [vmem:[%s5485 + $0x88] sm:$0xff]
    %v5504 = vld [vmem:[%s5485 + $0x90] sm:$0xff]
    %v5505 = vld [vmem:[%s5485 + $0x98] sm:$0xff]
    %v5506 = vld [vmem:[%s5485 + $0xa0] sm:$0xff]
    %v5507 = vld [vmem:[%s5485 + $0xa8] sm:$0xff]
    %v5508 = vld [vmem:[%s5485 + $0xb0] sm:$0xff]
    %v5509 = vld [vmem:[%s5485 + $0xb8] sm:$0xff]
    %v5510 = vld [vmem:[%s5485 + $0xc0] sm:$0xff]
    %v5511 = vld [vmem:[%s5485 + $0xc8] sm:$0xff]
    %v5512 = vld [vmem:[%s5485 + $0xd0] sm:$0xff]
    %v5513 = vld [vmem:[%s5485 + $0xd8] sm:$0xff]
    %v5514 = vld [vmem:[%s5485 + $0xe0] sm:$0xff]
    %v5515 = vld [vmem:[%s5485 + $0xe8] sm:$0xff]
    %v5516 = vld [vmem:[%s5485 + $0xf0] sm:$0xff]
    %v5517 = vld [vmem:[%s5485 + $0xf8] sm:$0xff]
    %v5550 = vunpack.c.l.b16 %v5486
    %v5551 = vunpack.c.h.b16 %v5486
    %v5552 = vunpack.c.l.b16 %v5487
    %v5553 = vunpack.c.h.b16 %v5487
    %v5554 = vunpack.c.l.b16 %v5488
    %v5555 = vunpack.c.h.b16 %v5488
    %v5556 = vunpack.c.l.b16 %v5489
    %v5557 = vunpack.c.h.b16 %v5489
    %v5558 = vunpack.c.l.b16 %v5490
    %v5559 = vunpack.c.h.b16 %v5490
    %v5560 = vunpack.c.l.b16 %v5491
    %v5561 = vunpack.c.h.b16 %v5491
    %v5562 = vunpack.c.l.b16 %v5492
    %v5563 = vunpack.c.h.b16 %v5492
    %v5564 = vunpack.c.l.b16 %v5493
    %v5565 = vunpack.c.h.b16 %v5493
    %v5566 = vunpack.c.l.b16 %v5494
    %v5567 = vunpack.c.h.b16 %v5494
    %v5568 = vunpack.c.l.b16 %v5495
    %v5569 = vunpack.c.h.b16 %v5495
    %v5570 = vunpack.c.l.b16 %v5496
    %v5571 = vunpack.c.h.b16 %v5496
    %v5572 = vunpack.c.l.b16 %v5497
    %v5573 = vunpack.c.h.b16 %v5497
    %v5574 = vunpack.c.l.b16 %v5498
    %v5575 = vunpack.c.h.b16 %v5498
    %v5576 = vunpack.c.l.b16 %v5499
    %v5577 = vunpack.c.h.b16 %v5499
    %v5578 = vunpack.c.l.b16 %v5500
    %v5579 = vunpack.c.h.b16 %v5500
    %v5580 = vunpack.c.l.b16 %v5501
    %v5581 = vunpack.c.h.b16 %v5501
    %v5582 = vunpack.c.l.b16 %v5502
    %v5583 = vunpack.c.h.b16 %v5502
    %v5584 = vunpack.c.l.b16 %v5503
    %v5585 = vunpack.c.h.b16 %v5503
    %v5586 = vunpack.c.l.b16 %v5504
    %v5587 = vunpack.c.h.b16 %v5504
    %v5588 = vunpack.c.l.b16 %v5505
    %v5589 = vunpack.c.h.b16 %v5505
    %v5590 = vunpack.c.l.b16 %v5506
    %v5591 = vunpack.c.h.b16 %v5506
    %v5592 = vunpack.c.l.b16 %v5507
    %v5593 = vunpack.c.h.b16 %v5507
    %v5594 = vunpack.c.l.b16 %v5508
    %v5595 = vunpack.c.h.b16 %v5508
    %v5596 = vunpack.c.l.b16 %v5509
    %v5597 = vunpack.c.h.b16 %v5509
    %v5598 = vunpack.c.l.b16 %v5510
    %v5599 = vunpack.c.h.b16 %v5510
    %v5600 = vunpack.c.l.b16 %v5511
    %v5601 = vunpack.c.h.b16 %v5511
    %v5602 = vunpack.c.l.b16 %v5512
    %v5603 = vunpack.c.h.b16 %v5512
    %v5604 = vunpack.c.l.b16 %v5513
    %v5605 = vunpack.c.h.b16 %v5513
    %v5606 = vunpack.c.l.b16 %v5514
    %v5607 = vunpack.c.h.b16 %v5514
    %v5608 = vunpack.c.l.b16 %v5515
    %v5609 = vunpack.c.h.b16 %v5515
    %v5610 = vunpack.c.l.b16 %v5516
    %v5611 = vunpack.c.h.b16 %v5516
    %v5612 = vunpack.c.l.b16 %v5517
    %v5613 = vunpack.c.h.b16 %v5517
    %v5614 = vpack.c.b16 %v5554, %v5550
    %v5615 = vpack.c.b16 %v5555, %v5551
    %v5616 = vpack.c.b16 %v5556, %v5552
    %v5617 = vpack.c.b16 %v5557, %v5553
    %v5618 = vpack.c.b16 %v5562, %v5558
    %v5619 = vpack.c.b16 %v5563, %v5559
    %v5620 = vpack.c.b16 %v5564, %v5560
    %v5621 = vpack.c.b16 %v5565, %v5561
    %v5622 = vpack.c.b16 %v5570, %v5566
    %v5623 = vpack.c.b16 %v5571, %v5567
    %v5624 = vpack.c.b16 %v5572, %v5568
    %v5625 = vpack.c.b16 %v5573, %v5569
    %v5626 = vpack.c.b16 %v5578, %v5574
    %v5627 = vpack.c.b16 %v5579, %v5575
    %v5628 = vpack.c.b16 %v5580, %v5576
    %v5629 = vpack.c.b16 %v5581, %v5577
    %v5630 = vpack.c.b16 %v5586, %v5582
    %v5631 = vpack.c.b16 %v5587, %v5583
    %v5632 = vpack.c.b16 %v5588, %v5584
    %v5633 = vpack.c.b16 %v5589, %v5585
    %v5634 = vpack.c.b16 %v5594, %v5590
    %v5635 = vpack.c.b16 %v5595, %v5591
    %v5636 = vpack.c.b16 %v5596, %v5592
    %v5637 = vpack.c.b16 %v5597, %v5593
    %v5638 = vpack.c.b16 %v5602, %v5598
    %v5639 = vpack.c.b16 %v5603, %v5599
    %v5640 = vpack.c.b16 %v5604, %v5600
    %v5641 = vpack.c.b16 %v5605, %v5601
    %v5642 = vpack.c.b16 %v5610, %v5606
    %v5643 = vpack.c.b16 %v5611, %v5607
    %v5644 = vpack.c.b16 %v5612, %v5608
    %v5645 = vpack.c.b16 %v5613, %v5609
    %5678 = vmatpush.bf16.msra.mxu0 %v5642
    %5679 = vmatpush.bf16.msra.mxu0 %v5638
    %5680 = vmatpush.bf16.msra.mxu0 %v5634
    %5681 = vmatpush.bf16.msra.mxu0 %v5630
    %5682 = vmatpush.bf16.msra.mxu0 %v5626
    %5683 = vmatpush.bf16.msra.mxu0 %v5622
    %5684 = vmatpush.bf16.msra.mxu0 %v5618
    %5685 = vmatpush.bf16.msra.mxu0 %v5614
    %5686 = vmatmul.bf16.gmra.mxu0 %v5484
    %v5687 = vpop.f32.mrf.mxu0
    %v5688 = vadd.f32 0.0, %v5687
    %v5689 = vpop.f32.mrf.mxu0
    %5690 = vdwg.mxu0
    %5691 = vmatpush.bf16.msra.mxu0 %v5643
    %5692 = vmatpush.bf16.msra.mxu0 %v5639
    %5693 = vmatpush.bf16.msra.mxu0 %v5635
    %5694 = vmatpush.bf16.msra.mxu0 %v5631
    %5695 = vmatpush.bf16.msra.mxu0 %v5627
    %5696 = vmatpush.bf16.msra.mxu0 %v5623
    %5697 = vmatpush.bf16.msra.mxu0 %v5619
    %5698 = vmatpush.bf16.msra.mxu0 %v5615
    %5699 = vmatmul.bf16.gmra.mxu0 %v5484
    %v5700 = vpop.f32.mrf.mxu0
    %v5701 = vadd.f32 0.0, %v5700
    %v5702 = vpop.f32.mrf.mxu0
    %5703 = vdwg.mxu0
    %5704 = vmatpush.bf16.msra.mxu0 %v5644
    %5705 = vmatpush.bf16.msra.mxu0 %v5640
    %5706 = vmatpush.bf16.msra.mxu0 %v5636
    %5707 = vmatpush.bf16.msra.mxu0 %v5632
    %5708 = vmatpush.bf16.msra.mxu0 %v5628
    %5709 = vmatpush.bf16.msra.mxu0 %v5624
    %5710 = vmatpush.bf16.msra.mxu0 %v5620
    %5711 = vmatpush.bf16.msra.mxu0 %v5616
    %5712 = vmatmul.bf16.gmra.mxu0 %v5484
    %v5713 = vpop.f32.mrf.mxu0
    %v5714 = vadd.f32 0.0, %v5713
    %v5715 = vpop.f32.mrf.mxu0
    %5716 = vdwg.mxu0
    %5717 = vmatpush.bf16.msra.mxu0 %v5645
    %5718 = vmatpush.bf16.msra.mxu0 %v5641
    %5719 = vmatpush.bf16.msra.mxu0 %v5637
    %5720 = vmatpush.bf16.msra.mxu0 %v5633
    %5721 = vmatpush.bf16.msra.mxu0 %v5629
    %5722 = vmatpush.bf16.msra.mxu0 %v5625
    %5723 = vmatpush.bf16.msra.mxu0 %v5621
    %5724 = vmatpush.bf16.msra.mxu0 %v5617
    %5725 = vmatmul.bf16.gmra.mxu0 %v5484
    %v5726 = vpop.f32.mrf.mxu0
    %v5727 = vadd.f32 0.0, %v5726
    %v5728 = vpop.f32.mrf.mxu0
    %5729 = vdwg.mxu0
    %v5730 = vadd.f32 %v5462, %v5688
    %v5731 = vadd.f32 %v5463, %v5701
    %v5732 = vadd.f32 %v5464, %v5714
    %v5733 = vadd.f32 %v5465, %v5727
    %s5734 = scalar_lea.vmem %s10, 24
    %v5735 = vld [vmem:[%s5734] sm:$0x3]
    %v5737 = vsel %vm2528, %v5735, 0
    %5739 = vmatpush.bf16.msra.mxu0 0
    %5740 = vmatpush.bf16.msra.mxu0 0
    %5741 = vmatpush.bf16.msra.mxu0 0
    %5742 = vmatpush.bf16.msra.mxu0 0
    %5743 = vmatpush.bf16.msra.mxu0 0
    %5744 = vmatpush.bf16.msra.mxu0 0
    %5745 = vmatpush.bf16.msra.mxu0 0
    %5746 = vmatpush.bf16.msra.mxu0 %v2526
    %5747 = vmatmul.bf16.gmra.mxu0 %v5737
    %v5748 = vpop.f32.mrf.mxu0
    %v5749 = vadd.f32 0.0, %v5748
    %v5750 = vpop.f32.mrf.mxu0
    %5751 = vdwg.mxu0
    %v5752 = vpack.c.bf16 %v5749, %v5749
    %s5753 = scalar_lea.vmem [#allocation6], 3072
    %v5754 = vld [vmem:[%s5753] sm:$0xff]
    %v5755 = vld [vmem:[%s5753 + $0x8] sm:$0xff]
    %v5756 = vld [vmem:[%s5753 + $0x10] sm:$0xff]
    %v5757 = vld [vmem:[%s5753 + $0x18] sm:$0xff]
    %v5758 = vld [vmem:[%s5753 + $0x20] sm:$0xff]
    %v5759 = vld [vmem:[%s5753 + $0x28] sm:$0xff]
    %v5760 = vld [vmem:[%s5753 + $0x30] sm:$0xff]
    %v5761 = vld [vmem:[%s5753 + $0x38] sm:$0xff]
    %v5762 = vld [vmem:[%s5753 + $0x40] sm:$0xff]
    %v5763 = vld [vmem:[%s5753 + $0x48] sm:$0xff]
    %v5764 = vld [vmem:[%s5753 + $0x50] sm:$0xff]
    %v5765 = vld [vmem:[%s5753 + $0x58] sm:$0xff]
    %v5766 = vld [vmem:[%s5753 + $0x60] sm:$0xff]
    %v5767 = vld [vmem:[%s5753 + $0x68] sm:$0xff]
    %v5768 = vld [vmem:[%s5753 + $0x70] sm:$0xff]
    %v5769 = vld [vmem:[%s5753 + $0x78] sm:$0xff]
    %v5770 = vld [vmem:[%s5753 + $0x80] sm:$0xff]
    %v5771 = vld [vmem:[%s5753 + $0x88] sm:$0xff]
    %v5772 = vld [vmem:[%s5753 + $0x90] sm:$0xff]
    %v5773 = vld [vmem:[%s5753 + $0x98] sm:$0xff]
    %v5774 = vld [vmem:[%s5753 + $0xa0] sm:$0xff]
    %v5775 = vld [vmem:[%s5753 + $0xa8] sm:$0xff]
    %v5776 = vld [vmem:[%s5753 + $0xb0] sm:$0xff]
    %v5777 = vld [vmem:[%s5753 + $0xb8] sm:$0xff]
    %v5778 = vld [vmem:[%s5753 + $0xc0] sm:$0xff]
    %v5779 = vld [vmem:[%s5753 + $0xc8] sm:$0xff]
    %v5780 = vld [vmem:[%s5753 + $0xd0] sm:$0xff]
    %v5781 = vld [vmem:[%s5753 + $0xd8] sm:$0xff]
    %v5782 = vld [vmem:[%s5753 + $0xe0] sm:$0xff]
    %v5783 = vld [vmem:[%s5753 + $0xe8] sm:$0xff]
    %v5784 = vld [vmem:[%s5753 + $0xf0] sm:$0xff]
    %v5785 = vld [vmem:[%s5753 + $0xf8] sm:$0xff]
    %v5818 = vunpack.c.l.b16 %v5754
    %v5819 = vunpack.c.h.b16 %v5754
    %v5820 = vunpack.c.l.b16 %v5755
    %v5821 = vunpack.c.h.b16 %v5755
    %v5822 = vunpack.c.l.b16 %v5756
    %v5823 = vunpack.c.h.b16 %v5756
    %v5824 = vunpack.c.l.b16 %v5757
    %v5825 = vunpack.c.h.b16 %v5757
    %v5826 = vunpack.c.l.b16 %v5758
    %v5827 = vunpack.c.h.b16 %v5758
    %v5828 = vunpack.c.l.b16 %v5759
    %v5829 = vunpack.c.h.b16 %v5759
    %v5830 = vunpack.c.l.b16 %v5760
    %v5831 = vunpack.c.h.b16 %v5760
    %v5832 = vunpack.c.l.b16 %v5761
    %v5833 = vunpack.c.h.b16 %v5761
    %v5834 = vunpack.c.l.b16 %v5762
    %v5835 = vunpack.c.h.b16 %v5762
    %v5836 = vunpack.c.l.b16 %v5763
    %v5837 = vunpack.c.h.b16 %v5763
    %v5838 = vunpack.c.l.b16 %v5764
    %v5839 = vunpack.c.h.b16 %v5764
    %v5840 = vunpack.c.l.b16 %v5765
    %v5841 = vunpack.c.h.b16 %v5765
    %v5842 = vunpack.c.l.b16 %v5766
    %v5843 = vunpack.c.h.b16 %v5766
    %v5844 = vunpack.c.l.b16 %v5767
    %v5845 = vunpack.c.h.b16 %v5767
    %v5846 = vunpack.c.l.b16 %v5768
    %v5847 = vunpack.c.h.b16 %v5768
    %v5848 = vunpack.c.l.b16 %v5769
    %v5849 = vunpack.c.h.b16 %v5769
    %v5850 = vunpack.c.l.b16 %v5770
    %v5851 = vunpack.c.h.b16 %v5770
    %v5852 = vunpack.c.l.b16 %v5771
    %v5853 = vunpack.c.h.b16 %v5771
    %v5854 = vunpack.c.l.b16 %v5772
    %v5855 = vunpack.c.h.b16 %v5772
    %v5856 = vunpack.c.l.b16 %v5773
    %v5857 = vunpack.c.h.b16 %v5773
    %v5858 = vunpack.c.l.b16 %v5774
    %v5859 = vunpack.c.h.b16 %v5774
    %v5860 = vunpack.c.l.b16 %v5775
    %v5861 = vunpack.c.h.b16 %v5775
    %v5862 = vunpack.c.l.b16 %v5776
    %v5863 = vunpack.c.h.b16 %v5776
    %v5864 = vunpack.c.l.b16 %v5777
    %v5865 = vunpack.c.h.b16 %v5777
    %v5866 = vunpack.c.l.b16 %v5778
    %v5867 = vunpack.c.h.b16 %v5778
    %v5868 = vunpack.c.l.b16 %v5779
    %v5869 = vunpack.c.h.b16 %v5779
    %v5870 = vunpack.c.l.b16 %v5780
    %v5871 = vunpack.c.h.b16 %v5780
    %v5872 = vunpack.c.l.b16 %v5781
    %v5873 = vunpack.c.h.b16 %v5781
    %v5874 = vunpack.c.l.b16 %v5782
    %v5875 = vunpack.c.h.b16 %v5782
    %v5876 = vunpack.c.l.b16 %v5783
    %v5877 = vunpack.c.h.b16 %v5783
    %v5878 = vunpack.c.l.b16 %v5784
    %v5879 = vunpack.c.h.b16 %v5784
    %v5880 = vunpack.c.l.b16 %v5785
    %v5881 = vunpack.c.h.b16 %v5785
    %v5882 = vpack.c.b16 %v5822, %v5818
    %v5883 = vpack.c.b16 %v5823, %v5819
    %v5884 = vpack.c.b16 %v5824, %v5820
    %v5885 = vpack.c.b16 %v5825, %v5821
    %v5886 = vpack.c.b16 %v5830, %v5826
    %v5887 = vpack.c.b16 %v5831, %v5827
    %v5888 = vpack.c.b16 %v5832, %v5828
    %v5889 = vpack.c.b16 %v5833, %v5829
    %v5890 = vpack.c.b16 %v5838, %v5834
    %v5891 = vpack.c.b16 %v5839, %v5835
    %v5892 = vpack.c.b16 %v5840, %v5836
    %v5893 = vpack.c.b16 %v5841, %v5837
    %v5894 = vpack.c.b16 %v5846, %v5842
    %v5895 = vpack.c.b16 %v5847, %v5843
    %v5896 = vpack.c.b16 %v5848, %v5844
    %v5897 = vpack.c.b16 %v5849, %v5845
    %v5898 = vpack.c.b16 %v5854, %v5850
    %v5899 = vpack.c.b16 %v5855, %v5851
    %v5900 = vpack.c.b16 %v5856, %v5852
    %v5901 = vpack.c.b16 %v5857, %v5853
    %v5902 = vpack.c.b16 %v5862, %v5858
    %v5903 = vpack.c.b16 %v5863, %v5859
    %v5904 = vpack.c.b16 %v5864, %v5860
    %v5905 = vpack.c.b16 %v5865, %v5861
    %v5906 = vpack.c.b16 %v5870, %v5866
    %v5907 = vpack.c.b16 %v5871, %v5867
    %v5908 = vpack.c.b16 %v5872, %v5868
    %v5909 = vpack.c.b16 %v5873, %v5869
    %v5910 = vpack.c.b16 %v5878, %v5874
    %v5911 = vpack.c.b16 %v5879, %v5875
    %v5912 = vpack.c.b16 %v5880, %v5876
    %v5913 = vpack.c.b16 %v5881, %v5877
    %5946 = vmatpush.bf16.msra.mxu0 %v5910
    %5947 = vmatpush.bf16.msra.mxu0 %v5906
    %5948 = vmatpush.bf16.msra.mxu0 %v5902
    %5949 = vmatpush.bf16.msra.mxu0 %v5898
    %5950 = vmatpush.bf16.msra.mxu0 %v5894
    %5951 = vmatpush.bf16.msra.mxu0 %v5890
    %5952 = vmatpush.bf16.msra.mxu0 %v5886
    %5953 = vmatpush.bf16.msra.mxu0 %v5882
    %5954 = vmatmul.bf16.gmra.mxu0 %v5752
    %v5955 = vpop.f32.mrf.mxu0
    %v5956 = vadd.f32 0.0, %v5955
    %v5957 = vpop.f32.mrf.mxu0
    %5958 = vdwg.mxu0
    %5959 = vmatpush.bf16.msra.mxu0 %v5911
    %5960 = vmatpush.bf16.msra.mxu0 %v5907
    %5961 = vmatpush.bf16.msra.mxu0 %v5903
    %5962 = vmatpush.bf16.msra.mxu0 %v5899
    %5963 = vmatpush.bf16.msra.mxu0 %v5895
    %5964 = vmatpush.bf16.msra.mxu0 %v5891
    %5965 = vmatpush.bf16.msra.mxu0 %v5887
    %5966 = vmatpush.bf16.msra.mxu0 %v5883
    %5967 = vmatmul.bf16.gmra.mxu0 %v5752
    %v5968 = vpop.f32.mrf.mxu0
    %v5969 = vadd.f32 0.0, %v5968
    %v5970 = vpop.f32.mrf.mxu0
    %5971 = vdwg.mxu0
    %5972 = vmatpush.bf16.msra.mxu0 %v5912
    %5973 = vmatpush.bf16.msra.mxu0 %v5908
    %5974 = vmatpush.bf16.msra.mxu0 %v5904
    %5975 = vmatpush.bf16.msra.mxu0 %v5900
    %5976 = vmatpush.bf16.msra.mxu0 %v5896
    %5977 = vmatpush.bf16.msra.mxu0 %v5892
    %5978 = vmatpush.bf16.msra.mxu0 %v5888
    %5979 = vmatpush.bf16.msra.mxu0 %v5884
    %5980 = vmatmul.bf16.gmra.mxu0 %v5752
    %v5981 = vpop.f32.mrf.mxu0
    %v5982 = vadd.f32 0.0, %v5981
    %v5983 = vpop.f32.mrf.mxu0
    %5984 = vdwg.mxu0
    %5985 = vmatpush.bf16.msra.mxu0 %v5913
    %5986 = vmatpush.bf16.msra.mxu0 %v5909
    %5987 = vmatpush.bf16.msra.mxu0 %v5905
    %5988 = vmatpush.bf16.msra.mxu0 %v5901
    %5989 = vmatpush.bf16.msra.mxu0 %v5897
    %5990 = vmatpush.bf16.msra.mxu0 %v5893
    %5991 = vmatpush.bf16.msra.mxu0 %v5889
    %5992 = vmatpush.bf16.msra.mxu0 %v5885
    %5993 = vmatmul.bf16.gmra.mxu0 %v5752
    %v5994 = vpop.f32.mrf.mxu0
    %v5995 = vadd.f32 0.0, %v5994
    %v5996 = vpop.f32.mrf.mxu0
    %5997 = vdwg.mxu0
    %v5998 = vadd.f32 %v5730, %v5956
    %v5999 = vadd.f32 %v5731, %v5969
    %v6000 = vadd.f32 %v5732, %v5982
    %v6001 = vadd.f32 %v5733, %v5995
    %s6002 = scalar_lea.vmem %s10, 26
    %v6003 = vld [vmem:[%s6002] sm:$0x3]
    %v6005 = vsel %vm2528, %v6003, 0
    %6007 = vmatpush.bf16.msra.mxu0 0
    %6008 = vmatpush.bf16.msra.mxu0 0
    %6009 = vmatpush.bf16.msra.mxu0 0
    %6010 = vmatpush.bf16.msra.mxu0 0
    %6011 = vmatpush.bf16.msra.mxu0 0
    %6012 = vmatpush.bf16.msra.mxu0 0
    %6013 = vmatpush.bf16.msra.mxu0 0
    %6014 = vmatpush.bf16.msra.mxu0 %v2526
    %6015 = vmatmul.bf16.gmra.mxu0 %v6005
    %v6016 = vpop.f32.mrf.mxu0
    %v6017 = vadd.f32 0.0, %v6016
    %v6018 = vpop.f32.mrf.mxu0
    %6019 = vdwg.mxu0
    %v6020 = vpack.c.bf16 %v6017, %v6017
    %s6021 = scalar_lea.vmem [#allocation6], 3328
    %v6022 = vld [vmem:[%s6021] sm:$0xff]
    %v6023 = vld [vmem:[%s6021 + $0x8] sm:$0xff]
    %v6024 = vld [vmem:[%s6021 + $0x10] sm:$0xff]
    %v6025 = vld [vmem:[%s6021 + $0x18] sm:$0xff]
    %v6026 = vld [vmem:[%s6021 + $0x20] sm:$0xff]
    %v6027 = vld [vmem:[%s6021 + $0x28] sm:$0xff]
    %v6028 = vld [vmem:[%s6021 + $0x30] sm:$0xff]
    %v6029 = vld [vmem:[%s6021 + $0x38] sm:$0xff]
    %v6030 = vld [vmem:[%s6021 + $0x40] sm:$0xff]
    %v6031 = vld [vmem:[%s6021 + $0x48] sm:$0xff]
    %v6032 = vld [vmem:[%s6021 + $0x50] sm:$0xff]
    %v6033 = vld [vmem:[%s6021 + $0x58] sm:$0xff]
    %v6034 = vld [vmem:[%s6021 + $0x60] sm:$0xff]
    %v6035 = vld [vmem:[%s6021 + $0x68] sm:$0xff]
    %v6036 = vld [vmem:[%s6021 + $0x70] sm:$0xff]
    %v6037 = vld [vmem:[%s6021 + $0x78] sm:$0xff]
    %v6038 = vld [vmem:[%s6021 + $0x80] sm:$0xff]
    %v6039 = vld [vmem:[%s6021 + $0x88] sm:$0xff]
    %v6040 = vld [vmem:[%s6021 + $0x90] sm:$0xff]
    %v6041 = vld [vmem:[%s6021 + $0x98] sm:$0xff]
    %v6042 = vld [vmem:[%s6021 + $0xa0] sm:$0xff]
    %v6043 = vld [vmem:[%s6021 + $0xa8] sm:$0xff]
    %v6044 = vld [vmem:[%s6021 + $0xb0] sm:$0xff]
    %v6045 = vld [vmem:[%s6021 + $0xb8] sm:$0xff]
    %v6046 = vld [vmem:[%s6021 + $0xc0] sm:$0xff]
    %v6047 = vld [vmem:[%s6021 + $0xc8] sm:$0xff]
    %v6048 = vld [vmem:[%s6021 + $0xd0] sm:$0xff]
    %v6049 = vld [vmem:[%s6021 + $0xd8] sm:$0xff]
    %v6050 = vld [vmem:[%s6021 + $0xe0] sm:$0xff]
    %v6051 = vld [vmem:[%s6021 + $0xe8] sm:$0xff]
    %v6052 = vld [vmem:[%s6021 + $0xf0] sm:$0xff]
    %v6053 = vld [vmem:[%s6021 + $0xf8] sm:$0xff]
    %v6086 = vunpack.c.l.b16 %v6022
    %v6087 = vunpack.c.h.b16 %v6022
    %v6088 = vunpack.c.l.b16 %v6023
    %v6089 = vunpack.c.h.b16 %v6023
    %v6090 = vunpack.c.l.b16 %v6024
    %v6091 = vunpack.c.h.b16 %v6024
    %v6092 = vunpack.c.l.b16 %v6025
    %v6093 = vunpack.c.h.b16 %v6025
    %v6094 = vunpack.c.l.b16 %v6026
    %v6095 = vunpack.c.h.b16 %v6026
    %v6096 = vunpack.c.l.b16 %v6027
    %v6097 = vunpack.c.h.b16 %v6027
    %v6098 = vunpack.c.l.b16 %v6028
    %v6099 = vunpack.c.h.b16 %v6028
    %v6100 = vunpack.c.l.b16 %v6029
    %v6101 = vunpack.c.h.b16 %v6029
    %v6102 = vunpack.c.l.b16 %v6030
    %v6103 = vunpack.c.h.b16 %v6030
    %v6104 = vunpack.c.l.b16 %v6031
    %v6105 = vunpack.c.h.b16 %v6031
    %v6106 = vunpack.c.l.b16 %v6032
    %v6107 = vunpack.c.h.b16 %v6032
    %v6108 = vunpack.c.l.b16 %v6033
    %v6109 = vunpack.c.h.b16 %v6033
    %v6110 = vunpack.c.l.b16 %v6034
    %v6111 = vunpack.c.h.b16 %v6034
    %v6112 = vunpack.c.l.b16 %v6035
    %v6113 = vunpack.c.h.b16 %v6035
    %v6114 = vunpack.c.l.b16 %v6036
    %v6115 = vunpack.c.h.b16 %v6036
    %v6116 = vunpack.c.l.b16 %v6037
    %v6117 = vunpack.c.h.b16 %v6037
    %v6118 = vunpack.c.l.b16 %v6038
    %v6119 = vunpack.c.h.b16 %v6038
    %v6120 = vunpack.c.l.b16 %v6039
    %v6121 = vunpack.c.h.b16 %v6039
    %v6122 = vunpack.c.l.b16 %v6040
    %v6123 = vunpack.c.h.b16 %v6040
    %v6124 = vunpack.c.l.b16 %v6041
    %v6125 = vunpack.c.h.b16 %v6041
    %v6126 = vunpack.c.l.b16 %v6042
    %v6127 = vunpack.c.h.b16 %v6042
    %v6128 = vunpack.c.l.b16 %v6043
    %v6129 = vunpack.c.h.b16 %v6043
    %v6130 = vunpack.c.l.b16 %v6044
    %v6131 = vunpack.c.h.b16 %v6044
    %v6132 = vunpack.c.l.b16 %v6045
    %v6133 = vunpack.c.h.b16 %v6045
    %v6134 = vunpack.c.l.b16 %v6046
    %v6135 = vunpack.c.h.b16 %v6046
    %v6136 = vunpack.c.l.b16 %v6047
    %v6137 = vunpack.c.h.b16 %v6047
    %v6138 = vunpack.c.l.b16 %v6048
    %v6139 = vunpack.c.h.b16 %v6048
    %v6140 = vunpack.c.l.b16 %v6049
    %v6141 = vunpack.c.h.b16 %v6049
    %v6142 = vunpack.c.l.b16 %v6050
    %v6143 = vunpack.c.h.b16 %v6050
    %v6144 = vunpack.c.l.b16 %v6051
    %v6145 = vunpack.c.h.b16 %v6051
    %v6146 = vunpack.c.l.b16 %v6052
    %v6147 = vunpack.c.h.b16 %v6052
    %v6148 = vunpack.c.l.b16 %v6053
    %v6149 = vunpack.c.h.b16 %v6053
    %v6150 = vpack.c.b16 %v6090, %v6086
    %v6151 = vpack.c.b16 %v6091, %v6087
    %v6152 = vpack.c.b16 %v6092, %v6088
    %v6153 = vpack.c.b16 %v6093, %v6089
    %v6154 = vpack.c.b16 %v6098, %v6094
    %v6155 = vpack.c.b16 %v6099, %v6095
    %v6156 = vpack.c.b16 %v6100, %v6096
    %v6157 = vpack.c.b16 %v6101, %v6097
    %v6158 = vpack.c.b16 %v6106, %v6102
    %v6159 = vpack.c.b16 %v6107, %v6103
    %v6160 = vpack.c.b16 %v6108, %v6104
    %v6161 = vpack.c.b16 %v6109, %v6105
    %v6162 = vpack.c.b16 %v6114, %v6110
    %v6163 = vpack.c.b16 %v6115, %v6111
    %v6164 = vpack.c.b16 %v6116, %v6112
    %v6165 = vpack.c.b16 %v6117, %v6113
    %v6166 = vpack.c.b16 %v6122, %v6118
    %v6167 = vpack.c.b16 %v6123, %v6119
    %v6168 = vpack.c.b16 %v6124, %v6120
    %v6169 = vpack.c.b16 %v6125, %v6121
    %v6170 = vpack.c.b16 %v6130, %v6126
    %v6171 = vpack.c.b16 %v6131, %v6127
    %v6172 = vpack.c.b16 %v6132, %v6128
    %v6173 = vpack.c.b16 %v6133, %v6129
    %v6174 = vpack.c.b16 %v6138, %v6134
    %v6175 = vpack.c.b16 %v6139, %v6135
    %v6176 = vpack.c.b16 %v6140, %v6136
    %v6177 = vpack.c.b16 %v6141, %v6137
    %v6178 = vpack.c.b16 %v6146, %v6142
    %v6179 = vpack.c.b16 %v6147, %v6143
    %v6180 = vpack.c.b16 %v6148, %v6144
    %v6181 = vpack.c.b16 %v6149, %v6145
    %6214 = vmatpush.bf16.msra.mxu0 %v6178
    %6215 = vmatpush.bf16.msra.mxu0 %v6174
    %6216 = vmatpush.bf16.msra.mxu0 %v6170
    %6217 = vmatpush.bf16.msra.mxu0 %v6166
    %6218 = vmatpush.bf16.msra.mxu0 %v6162
    %6219 = vmatpush.bf16.msra.mxu0 %v6158
    %6220 = vmatpush.bf16.msra.mxu0 %v6154
    %6221 = vmatpush.bf16.msra.mxu0 %v6150
    %6222 = vmatmul.bf16.gmra.mxu0 %v6020
    %v6223 = vpop.f32.mrf.mxu0
    %v6224 = vadd.f32 0.0, %v6223
    %v6225 = vpop.f32.mrf.mxu0
    %6226 = vdwg.mxu0
    %6227 = vmatpush.bf16.msra.mxu0 %v6179
    %6228 = vmatpush.bf16.msra.mxu0 %v6175
    %6229 = vmatpush.bf16.msra.mxu0 %v6171
    %6230 = vmatpush.bf16.msra.mxu0 %v6167
    %6231 = vmatpush.bf16.msra.mxu0 %v6163
    %6232 = vmatpush.bf16.msra.mxu0 %v6159
    %6233 = vmatpush.bf16.msra.mxu0 %v6155
    %6234 = vmatpush.bf16.msra.mxu0 %v6151
    %6235 = vmatmul.bf16.gmra.mxu0 %v6020
    %v6236 = vpop.f32.mrf.mxu0
    %v6237 = vadd.f32 0.0, %v6236
    %v6238 = vpop.f32.mrf.mxu0
    %6239 = vdwg.mxu0
    %6240 = vmatpush.bf16.msra.mxu0 %v6180
    %6241 = vmatpush.bf16.msra.mxu0 %v6176
    %6242 = vmatpush.bf16.msra.mxu0 %v6172
    %6243 = vmatpush.bf16.msra.mxu0 %v6168
    %6244 = vmatpush.bf16.msra.mxu0 %v6164
    %6245 = vmatpush.bf16.msra.mxu0 %v6160
    %6246 = vmatpush.bf16.msra.mxu0 %v6156
    %6247 = vmatpush.bf16.msra.mxu0 %v6152
    %6248 = vmatmul.bf16.gmra.mxu0 %v6020
    %v6249 = vpop.f32.mrf.mxu0
    %v6250 = vadd.f32 0.0, %v6249
    %v6251 = vpop.f32.mrf.mxu0
    %6252 = vdwg.mxu0
    %6253 = vmatpush.bf16.msra.mxu0 %v6181
    %6254 = vmatpush.bf16.msra.mxu0 %v6177
    %6255 = vmatpush.bf16.msra.mxu0 %v6173
    %6256 = vmatpush.bf16.msra.mxu0 %v6169
    %6257 = vmatpush.bf16.msra.mxu0 %v6165
    %6258 = vmatpush.bf16.msra.mxu0 %v6161
    %6259 = vmatpush.bf16.msra.mxu0 %v6157
    %6260 = vmatpush.bf16.msra.mxu0 %v6153
    %6261 = vmatmul.bf16.gmra.mxu0 %v6020
    %v6262 = vpop.f32.mrf.mxu0
    %v6263 = vadd.f32 0.0, %v6262
    %v6264 = vpop.f32.mrf.mxu0
    %6265 = vdwg.mxu0
    %v6266 = vadd.f32 %v5998, %v6224
    %v6267 = vadd.f32 %v5999, %v6237
    %v6268 = vadd.f32 %v6000, %v6250
    %v6269 = vadd.f32 %v6001, %v6263
    %s6270 = scalar_lea.vmem %s10, 28
    %v6271 = vld [vmem:[%s6270] sm:$0x3]
    %v6273 = vsel %vm2528, %v6271, 0
    %6275 = vmatpush.bf16.msra.mxu0 0
    %6276 = vmatpush.bf16.msra.mxu0 0
    %6277 = vmatpush.bf16.msra.mxu0 0
    %6278 = vmatpush.bf16.msra.mxu0 0
    %6279 = vmatpush.bf16.msra.mxu0 0
    %6280 = vmatpush.bf16.msra.mxu0 0
    %6281 = vmatpush.bf16.msra.mxu0 0
    %6282 = vmatpush.bf16.msra.mxu0 %v2526
    %6283 = vmatmul.bf16.gmra.mxu0 %v6273
    %v6284 = vpop.f32.mrf.mxu0
    %v6285 = vadd.f32 0.0, %v6284
    %v6286 = vpop.f32.mrf.mxu0
    %6287 = vdwg.mxu0
    %v6288 = vpack.c.bf16 %v6285, %v6285
    %s6289 = scalar_lea.vmem [#allocation6], 3584
    %v6290 = vld [vmem:[%s6289] sm:$0xff]
    %v6291 = vld [vmem:[%s6289 + $0x8] sm:$0xff]
    %v6292 = vld [vmem:[%s6289 + $0x10] sm:$0xff]
    %v6293 = vld [vmem:[%s6289 + $0x18] sm:$0xff]
    %v6294 = vld [vmem:[%s6289 + $0x20] sm:$0xff]
    %v6295 = vld [vmem:[%s6289 + $0x28] sm:$0xff]
    %v6296 = vld [vmem:[%s6289 + $0x30] sm:$0xff]
    %v6297 = vld [vmem:[%s6289 + $0x38] sm:$0xff]
    %v6298 = vld [vmem:[%s6289 + $0x40] sm:$0xff]
    %v6299 = vld [vmem:[%s6289 + $0x48] sm:$0xff]
    %v6300 = vld [vmem:[%s6289 + $0x50] sm:$0xff]
    %v6301 = vld [vmem:[%s6289 + $0x58] sm:$0xff]
    %v6302 = vld [vmem:[%s6289 + $0x60] sm:$0xff]
    %v6303 = vld [vmem:[%s6289 + $0x68] sm:$0xff]
    %v6304 = vld [vmem:[%s6289 + $0x70] sm:$0xff]
    %v6305 = vld [vmem:[%s6289 + $0x78] sm:$0xff]
    %v6306 = vld [vmem:[%s6289 + $0x80] sm:$0xff]
    %v6307 = vld [vmem:[%s6289 + $0x88] sm:$0xff]
    %v6308 = vld [vmem:[%s6289 + $0x90] sm:$0xff]
    %v6309 = vld [vmem:[%s6289 + $0x98] sm:$0xff]
    %v6310 = vld [vmem:[%s6289 + $0xa0] sm:$0xff]
    %v6311 = vld [vmem:[%s6289 + $0xa8] sm:$0xff]
    %v6312 = vld [vmem:[%s6289 + $0xb0] sm:$0xff]
    %v6313 = vld [vmem:[%s6289 + $0xb8] sm:$0xff]
    %v6314 = vld [vmem:[%s6289 + $0xc0] sm:$0xff]
    %v6315 = vld [vmem:[%s6289 + $0xc8] sm:$0xff]
    %v6316 = vld [vmem:[%s6289 + $0xd0] sm:$0xff]
    %v6317 = vld [vmem:[%s6289 + $0xd8] sm:$0xff]
    %v6318 = vld [vmem:[%s6289 + $0xe0] sm:$0xff]
    %v6319 = vld [vmem:[%s6289 + $0xe8] sm:$0xff]
    %v6320 = vld [vmem:[%s6289 + $0xf0] sm:$0xff]
    %v6321 = vld [vmem:[%s6289 + $0xf8] sm:$0xff]
    %v6354 = vunpack.c.l.b16 %v6290
    %v6355 = vunpack.c.h.b16 %v6290
    %v6356 = vunpack.c.l.b16 %v6291
    %v6357 = vunpack.c.h.b16 %v6291
    %v6358 = vunpack.c.l.b16 %v6292
    %v6359 = vunpack.c.h.b16 %v6292
    %v6360 = vunpack.c.l.b16 %v6293
    %v6361 = vunpack.c.h.b16 %v6293
    %v6362 = vunpack.c.l.b16 %v6294
    %v6363 = vunpack.c.h.b16 %v6294
    %v6364 = vunpack.c.l.b16 %v6295
    %v6365 = vunpack.c.h.b16 %v6295
    %v6366 = vunpack.c.l.b16 %v6296
    %v6367 = vunpack.c.h.b16 %v6296
    %v6368 = vunpack.c.l.b16 %v6297
    %v6369 = vunpack.c.h.b16 %v6297
    %v6370 = vunpack.c.l.b16 %v6298
    %v6371 = vunpack.c.h.b16 %v6298
    %v6372 = vunpack.c.l.b16 %v6299
    %v6373 = vunpack.c.h.b16 %v6299
    %v6374 = vunpack.c.l.b16 %v6300
    %v6375 = vunpack.c.h.b16 %v6300
    %v6376 = vunpack.c.l.b16 %v6301
    %v6377 = vunpack.c.h.b16 %v6301
    %v6378 = vunpack.c.l.b16 %v6302
    %v6379 = vunpack.c.h.b16 %v6302
    %v6380 = vunpack.c.l.b16 %v6303
    %v6381 = vunpack.c.h.b16 %v6303
    %v6382 = vunpack.c.l.b16 %v6304
    %v6383 = vunpack.c.h.b16 %v6304
    %v6384 = vunpack.c.l.b16 %v6305
    %v6385 = vunpack.c.h.b16 %v6305
    %v6386 = vunpack.c.l.b16 %v6306
    %v6387 = vunpack.c.h.b16 %v6306
    %v6388 = vunpack.c.l.b16 %v6307
    %v6389 = vunpack.c.h.b16 %v6307
    %v6390 = vunpack.c.l.b16 %v6308
    %v6391 = vunpack.c.h.b16 %v6308
    %v6392 = vunpack.c.l.b16 %v6309
    %v6393 = vunpack.c.h.b16 %v6309
    %v6394 = vunpack.c.l.b16 %v6310
    %v6395 = vunpack.c.h.b16 %v6310
    %v6396 = vunpack.c.l.b16 %v6311
    %v6397 = vunpack.c.h.b16 %v6311
    %v6398 = vunpack.c.l.b16 %v6312
    %v6399 = vunpack.c.h.b16 %v6312
    %v6400 = vunpack.c.l.b16 %v6313
    %v6401 = vunpack.c.h.b16 %v6313
    %v6402 = vunpack.c.l.b16 %v6314
    %v6403 = vunpack.c.h.b16 %v6314
    %v6404 = vunpack.c.l.b16 %v6315
    %v6405 = vunpack.c.h.b16 %v6315
    %v6406 = vunpack.c.l.b16 %v6316
    %v6407 = vunpack.c.h.b16 %v6316
    %v6408 = vunpack.c.l.b16 %v6317
    %v6409 = vunpack.c.h.b16 %v6317
    %v6410 = vunpack.c.l.b16 %v6318
    %v6411 = vunpack.c.h.b16 %v6318
    %v6412 = vunpack.c.l.b16 %v6319
    %v6413 = vunpack.c.h.b16 %v6319
    %v6414 = vunpack.c.l.b16 %v6320
    %v6415 = vunpack.c.h.b16 %v6320
    %v6416 = vunpack.c.l.b16 %v6321
    %v6417 = vunpack.c.h.b16 %v6321
    %v6418 = vpack.c.b16 %v6358, %v6354
    %v6419 = vpack.c.b16 %v6359, %v6355
    %v6420 = vpack.c.b16 %v6360, %v6356
    %v6421 = vpack.c.b16 %v6361, %v6357
    %v6422 = vpack.c.b16 %v6366, %v6362
    %v6423 = vpack.c.b16 %v6367, %v6363
    %v6424 = vpack.c.b16 %v6368, %v6364
    %v6425 = vpack.c.b16 %v6369, %v6365
    %v6426 = vpack.c.b16 %v6374, %v6370
    %v6427 = vpack.c.b16 %v6375, %v6371
    %v6428 = vpack.c.b16 %v6376, %v6372
    %v6429 = vpack.c.b16 %v6377, %v6373
    %v6430 = vpack.c.b16 %v6382, %v6378
    %v6431 = vpack.c.b16 %v6383, %v6379
    %v6432 = vpack.c.b16 %v6384, %v6380
    %v6433 = vpack.c.b16 %v6385, %v6381
    %v6434 = vpack.c.b16 %v6390, %v6386
    %v6435 = vpack.c.b16 %v6391, %v6387
    %v6436 = vpack.c.b16 %v6392, %v6388
    %v6437 = vpack.c.b16 %v6393, %v6389
    %v6438 = vpack.c.b16 %v6398, %v6394
    %v6439 = vpack.c.b16 %v6399, %v6395
    %v6440 = vpack.c.b16 %v6400, %v6396
    %v6441 = vpack.c.b16 %v6401, %v6397
    %v6442 = vpack.c.b16 %v6406, %v6402
    %v6443 = vpack.c.b16 %v6407, %v6403
    %v6444 = vpack.c.b16 %v6408, %v6404
    %v6445 = vpack.c.b16 %v6409, %v6405
    %v6446 = vpack.c.b16 %v6414, %v6410
    %v6447 = vpack.c.b16 %v6415, %v6411
    %v6448 = vpack.c.b16 %v6416, %v6412
    %v6449 = vpack.c.b16 %v6417, %v6413
    %6482 = vmatpush.bf16.msra.mxu0 %v6446
    %6483 = vmatpush.bf16.msra.mxu0 %v6442
    %6484 = vmatpush.bf16.msra.mxu0 %v6438
    %6485 = vmatpush.bf16.msra.mxu0 %v6434
    %6486 = vmatpush.bf16.msra.mxu0 %v6430
    %6487 = vmatpush.bf16.msra.mxu0 %v6426
    %6488 = vmatpush.bf16.msra.mxu0 %v6422
    %6489 = vmatpush.bf16.msra.mxu0 %v6418
    %6490 = vmatmul.bf16.gmra.mxu0 %v6288
    %v6491 = vpop.f32.mrf.mxu0
    %v6492 = vadd.f32 0.0, %v6491
    %v6493 = vpop.f32.mrf.mxu0
    %6494 = vdwg.mxu0
    %6495 = vmatpush.bf16.msra.mxu0 %v6447
    %6496 = vmatpush.bf16.msra.mxu0 %v6443
    %6497 = vmatpush.bf16.msra.mxu0 %v6439
    %6498 = vmatpush.bf16.msra.mxu0 %v6435
    %6499 = vmatpush.bf16.msra.mxu0 %v6431
    %6500 = vmatpush.bf16.msra.mxu0 %v6427
    %6501 = vmatpush.bf16.msra.mxu0 %v6423
    %6502 = vmatpush.bf16.msra.mxu0 %v6419
    %6503 = vmatmul.bf16.gmra.mxu0 %v6288
    %v6504 = vpop.f32.mrf.mxu0
    %v6505 = vadd.f32 0.0, %v6504
    %v6506 = vpop.f32.mrf.mxu0
    %6507 = vdwg.mxu0
    %6508 = vmatpush.bf16.msra.mxu0 %v6448
    %6509 = vmatpush.bf16.msra.mxu0 %v6444
    %6510 = vmatpush.bf16.msra.mxu0 %v6440
    %6511 = vmatpush.bf16.msra.mxu0 %v6436
    %6512 = vmatpush.bf16.msra.mxu0 %v6432
    %6513 = vmatpush.bf16.msra.mxu0 %v6428
    %6514 = vmatpush.bf16.msra.mxu0 %v6424
    %6515 = vmatpush.bf16.msra.mxu0 %v6420
    %6516 = vmatmul.bf16.gmra.mxu0 %v6288
    %v6517 = vpop.f32.mrf.mxu0
    %v6518 = vadd.f32 0.0, %v6517
    %v6519 = vpop.f32.mrf.mxu0
    %6520 = vdwg.mxu0
    %6521 = vmatpush.bf16.msra.mxu0 %v6449
    %6522 = vmatpush.bf16.msra.mxu0 %v6445
    %6523 = vmatpush.bf16.msra.mxu0 %v6441
    %6524 = vmatpush.bf16.msra.mxu0 %v6437
    %6525 = vmatpush.bf16.msra.mxu0 %v6433
    %6526 = vmatpush.bf16.msra.mxu0 %v6429
    %6527 = vmatpush.bf16.msra.mxu0 %v6425
    %6528 = vmatpush.bf16.msra.mxu0 %v6421
    %6529 = vmatmul.bf16.gmra.mxu0 %v6288
    %v6530 = vpop.f32.mrf.mxu0
    %v6531 = vadd.f32 0.0, %v6530
    %v6532 = vpop.f32.mrf.mxu0
    %6533 = vdwg.mxu0
    %v6534 = vadd.f32 %v6266, %v6492
    %v6535 = vadd.f32 %v6267, %v6505
    %v6536 = vadd.f32 %v6268, %v6518
    %v6537 = vadd.f32 %v6269, %v6531
    %s6538 = scalar_lea.vmem %s10, 30
    %v6539 = vld [vmem:[%s6538] sm:$0x3]
    %v6541 = vsel %vm2528, %v6539, 0
    %6543 = vmatpush.bf16.msra.mxu0 0
    %6544 = vmatpush.bf16.msra.mxu0 0
    %6545 = vmatpush.bf16.msra.mxu0 0
    %6546 = vmatpush.bf16.msra.mxu0 0
    %6547 = vmatpush.bf16.msra.mxu0 0
    %6548 = vmatpush.bf16.msra.mxu0 0
    %6549 = vmatpush.bf16.msra.mxu0 0
    %6550 = vmatpush.bf16.msra.mxu0 %v2526
    %6551 = vmatmul.bf16.gmra.mxu0 %v6541
    %v6552 = vpop.f32.mrf.mxu0
    %v6553 = vadd.f32 0.0, %v6552
    %v6554 = vpop.f32.mrf.mxu0
    %6555 = vdwg.mxu0
    %v6556 = vpack.c.bf16 %v6553, %v6553
    %s6557 = scalar_lea.vmem [#allocation6], 3840
    %v6558 = vld [vmem:[%s6557] sm:$0xff]
    %v6559 = vld [vmem:[%s6557 + $0x8] sm:$0xff]
    %v6560 = vld [vmem:[%s6557 + $0x10] sm:$0xff]
    %v6561 = vld [vmem:[%s6557 + $0x18] sm:$0xff]
    %v6562 = vld [vmem:[%s6557 + $0x20] sm:$0xff]
    %v6563 = vld [vmem:[%s6557 + $0x28] sm:$0xff]
    %v6564 = vld [vmem:[%s6557 + $0x30] sm:$0xff]
    %v6565 = vld [vmem:[%s6557 + $0x38] sm:$0xff]
    %v6566 = vld [vmem:[%s6557 + $0x40] sm:$0xff]
    %v6567 = vld [vmem:[%s6557 + $0x48] sm:$0xff]
    %v6568 = vld [vmem:[%s6557 + $0x50] sm:$0xff]
    %v6569 = vld [vmem:[%s6557 + $0x58] sm:$0xff]
    %v6570 = vld [vmem:[%s6557 + $0x60] sm:$0xff]
    %v6571 = vld [vmem:[%s6557 + $0x68] sm:$0xff]
    %v6572 = vld [vmem:[%s6557 + $0x70] sm:$0xff]
    %v6573 = vld [vmem:[%s6557 + $0x78] sm:$0xff]
    %v6574 = vld [vmem:[%s6557 + $0x80] sm:$0xff]
    %v6575 = vld [vmem:[%s6557 + $0x88] sm:$0xff]
    %v6576 = vld [vmem:[%s6557 + $0x90] sm:$0xff]
    %v6577 = vld [vmem:[%s6557 + $0x98] sm:$0xff]
    %v6578 = vld [vmem:[%s6557 + $0xa0] sm:$0xff]
    %v6579 = vld [vmem:[%s6557 + $0xa8] sm:$0xff]
    %v6580 = vld [vmem:[%s6557 + $0xb0] sm:$0xff]
    %v6581 = vld [vmem:[%s6557 + $0xb8] sm:$0xff]
    %v6582 = vld [vmem:[%s6557 + $0xc0] sm:$0xff]
    %v6583 = vld [vmem:[%s6557 + $0xc8] sm:$0xff]
    %v6584 = vld [vmem:[%s6557 + $0xd0] sm:$0xff]
    %v6585 = vld [vmem:[%s6557 + $0xd8] sm:$0xff]
    %v6586 = vld [vmem:[%s6557 + $0xe0] sm:$0xff]
    %v6587 = vld [vmem:[%s6557 + $0xe8] sm:$0xff]
    %v6588 = vld [vmem:[%s6557 + $0xf0] sm:$0xff]
    %v6589 = vld [vmem:[%s6557 + $0xf8] sm:$0xff]
    %v6622 = vunpack.c.l.b16 %v6558
    %v6623 = vunpack.c.h.b16 %v6558
    %v6624 = vunpack.c.l.b16 %v6559
    %v6625 = vunpack.c.h.b16 %v6559
    %v6626 = vunpack.c.l.b16 %v6560
    %v6627 = vunpack.c.h.b16 %v6560
    %v6628 = vunpack.c.l.b16 %v6561
    %v6629 = vunpack.c.h.b16 %v6561
    %v6630 = vunpack.c.l.b16 %v6562
    %v6631 = vunpack.c.h.b16 %v6562
    %v6632 = vunpack.c.l.b16 %v6563
    %v6633 = vunpack.c.h.b16 %v6563
    %v6634 = vunpack.c.l.b16 %v6564
    %v6635 = vunpack.c.h.b16 %v6564
    %v6636 = vunpack.c.l.b16 %v6565
    %v6637 = vunpack.c.h.b16 %v6565
    %v6638 = vunpack.c.l.b16 %v6566
    %v6639 = vunpack.c.h.b16 %v6566
    %v6640 = vunpack.c.l.b16 %v6567
    %v6641 = vunpack.c.h.b16 %v6567
    %v6642 = vunpack.c.l.b16 %v6568
    %v6643 = vunpack.c.h.b16 %v6568
    %v6644 = vunpack.c.l.b16 %v6569
    %v6645 = vunpack.c.h.b16 %v6569
    %v6646 = vunpack.c.l.b16 %v6570
    %v6647 = vunpack.c.h.b16 %v6570
    %v6648 = vunpack.c.l.b16 %v6571
    %v6649 = vunpack.c.h.b16 %v6571
    %v6650 = vunpack.c.l.b16 %v6572
    %v6651 = vunpack.c.h.b16 %v6572
    %v6652 = vunpack.c.l.b16 %v6573
    %v6653 = vunpack.c.h.b16 %v6573
    %v6654 = vunpack.c.l.b16 %v6574
    %v6655 = vunpack.c.h.b16 %v6574
    %v6656 = vunpack.c.l.b16 %v6575
    %v6657 = vunpack.c.h.b16 %v6575
    %v6658 = vunpack.c.l.b16 %v6576
    %v6659 = vunpack.c.h.b16 %v6576
    %v6660 = vunpack.c.l.b16 %v6577
    %v6661 = vunpack.c.h.b16 %v6577
    %v6662 = vunpack.c.l.b16 %v6578
    %v6663 = vunpack.c.h.b16 %v6578
    %v6664 = vunpack.c.l.b16 %v6579
    %v6665 = vunpack.c.h.b16 %v6579
    %v6666 = vunpack.c.l.b16 %v6580
    %v6667 = vunpack.c.h.b16 %v6580
    %v6668 = vunpack.c.l.b16 %v6581
    %v6669 = vunpack.c.h.b16 %v6581
    %v6670 = vunpack.c.l.b16 %v6582
    %v6671 = vunpack.c.h.b16 %v6582
    %v6672 = vunpack.c.l.b16 %v6583
    %v6673 = vunpack.c.h.b16 %v6583
    %v6674 = vunpack.c.l.b16 %v6584
    %v6675 = vunpack.c.h.b16 %v6584
    %v6676 = vunpack.c.l.b16 %v6585
    %v6677 = vunpack.c.h.b16 %v6585
    %v6678 = vunpack.c.l.b16 %v6586
    %v6679 = vunpack.c.h.b16 %v6586
    %v6680 = vunpack.c.l.b16 %v6587
    %v6681 = vunpack.c.h.b16 %v6587
    %v6682 = vunpack.c.l.b16 %v6588
    %v6683 = vunpack.c.h.b16 %v6588
    %v6684 = vunpack.c.l.b16 %v6589
    %v6685 = vunpack.c.h.b16 %v6589
    %v6686 = vpack.c.b16 %v6626, %v6622
    %v6687 = vpack.c.b16 %v6627, %v6623
    %v6688 = vpack.c.b16 %v6628, %v6624
    %v6689 = vpack.c.b16 %v6629, %v6625
    %v6690 = vpack.c.b16 %v6634, %v6630
    %v6691 = vpack.c.b16 %v6635, %v6631
    %v6692 = vpack.c.b16 %v6636, %v6632
    %v6693 = vpack.c.b16 %v6637, %v6633
    %v6694 = vpack.c.b16 %v6642, %v6638
    %v6695 = vpack.c.b16 %v6643, %v6639
    %v6696 = vpack.c.b16 %v6644, %v6640
    %v6697 = vpack.c.b16 %v6645, %v6641
    %v6698 = vpack.c.b16 %v6650, %v6646
    %v6699 = vpack.c.b16 %v6651, %v6647
    %v6700 = vpack.c.b16 %v6652, %v6648
    %v6701 = vpack.c.b16 %v6653, %v6649
    %v6702 = vpack.c.b16 %v6658, %v6654
    %v6703 = vpack.c.b16 %v6659, %v6655
    %v6704 = vpack.c.b16 %v6660, %v6656
    %v6705 = vpack.c.b16 %v6661, %v6657
    %v6706 = vpack.c.b16 %v6666, %v6662
    %v6707 = vpack.c.b16 %v6667, %v6663
    %v6708 = vpack.c.b16 %v6668, %v6664
    %v6709 = vpack.c.b16 %v6669, %v6665
    %v6710 = vpack.c.b16 %v6674, %v6670
    %v6711 = vpack.c.b16 %v6675, %v6671
    %v6712 = vpack.c.b16 %v6676, %v6672
    %v6713 = vpack.c.b16 %v6677, %v6673
    %v6714 = vpack.c.b16 %v6682, %v6678
    %v6715 = vpack.c.b16 %v6683, %v6679
    %v6716 = vpack.c.b16 %v6684, %v6680
    %v6717 = vpack.c.b16 %v6685, %v6681
    %6750 = vmatpush.bf16.msra.mxu0 %v6714
    %6751 = vmatpush.bf16.msra.mxu0 %v6710
    %6752 = vmatpush.bf16.msra.mxu0 %v6706
    %6753 = vmatpush.bf16.msra.mxu0 %v6702
    %6754 = vmatpush.bf16.msra.mxu0 %v6698
    %6755 = vmatpush.bf16.msra.mxu0 %v6694
    %6756 = vmatpush.bf16.msra.mxu0 %v6690
    %6757 = vmatpush.bf16.msra.mxu0 %v6686
    %6758 = vmatmul.bf16.gmra.mxu0 %v6556
    %v6759 = vpop.f32.mrf.mxu0
    %v6760 = vadd.f32 0.0, %v6759
    %v6761 = vpop.f32.mrf.mxu0
    %6762 = vdwg.mxu0
    %6763 = vmatpush.bf16.msra.mxu0 %v6715
    %6764 = vmatpush.bf16.msra.mxu0 %v6711
    %6765 = vmatpush.bf16.msra.mxu0 %v6707
    %6766 = vmatpush.bf16.msra.mxu0 %v6703
    %6767 = vmatpush.bf16.msra.mxu0 %v6699
    %6768 = vmatpush.bf16.msra.mxu0 %v6695
    %6769 = vmatpush.bf16.msra.mxu0 %v6691
    %6770 = vmatpush.bf16.msra.mxu0 %v6687
    %6771 = vmatmul.bf16.gmra.mxu0 %v6556
    %v6772 = vpop.f32.mrf.mxu0
    %v6773 = vadd.f32 0.0, %v6772
    %v6774 = vpop.f32.mrf.mxu0
    %6775 = vdwg.mxu0
    %6776 = vmatpush.bf16.msra.mxu0 %v6716
    %6777 = vmatpush.bf16.msra.mxu0 %v6712
    %6778 = vmatpush.bf16.msra.mxu0 %v6708
    %6779 = vmatpush.bf16.msra.mxu0 %v6704
    %6780 = vmatpush.bf16.msra.mxu0 %v6700
    %6781 = vmatpush.bf16.msra.mxu0 %v6696
    %6782 = vmatpush.bf16.msra.mxu0 %v6692
    %6783 = vmatpush.bf16.msra.mxu0 %v6688
    %6784 = vmatmul.bf16.gmra.mxu0 %v6556
    %v6785 = vpop.f32.mrf.mxu0
    %v6786 = vadd.f32 0.0, %v6785
    %v6787 = vpop.f32.mrf.mxu0
    %6788 = vdwg.mxu0
    %6789 = vmatpush.bf16.msra.mxu0 %v6717
    %6790 = vmatpush.bf16.msra.mxu0 %v6713
    %6791 = vmatpush.bf16.msra.mxu0 %v6709
    %6792 = vmatpush.bf16.msra.mxu0 %v6705
    %6793 = vmatpush.bf16.msra.mxu0 %v6701
    %6794 = vmatpush.bf16.msra.mxu0 %v6697
    %6795 = vmatpush.bf16.msra.mxu0 %v6693
    %6796 = vmatpush.bf16.msra.mxu0 %v6689
    %6797 = vmatmul.bf16.gmra.mxu0 %v6556
    %v6798 = vpop.f32.mrf.mxu0
    %v6799 = vadd.f32 0.0, %v6798
    %v6800 = vpop.f32.mrf.mxu0
    %6801 = vdwg.mxu0
    %v6802 = vadd.f32 %v6534, %v6760
    %v6803 = vadd.f32 %v6535, %v6773
    %v6804 = vadd.f32 %v6536, %v6786
    %v6805 = vadd.f32 %v6537, %v6799
    %v6806 = vtanh.pop %v6802
    %v6807 = vtanh.pop %v6803
    %v6808 = vtanh.pop %v6804
    %v6809 = vtanh.pop %v6805
    %v6812 = vrot.slane %v6807, 4
    %v6813 = vsel %vm109, %v6806, %v6812
    %6815 = vst [vmem:[%s11] sm:$0x77] %v6813
    %v6818 = vrot.slane %v6809, 4
    %v6819 = vsel %vm109, %v6808, %v6818
    %s6821 = scalar_lea.vmem %s11, 8
    %6822 = vst [vmem:[%s6821] sm:$0x77] %v6819
    // Predicated region
    $region58: #{dcgan_g_forward.1} parent=1 // pred_check
      _
    $region59: #{dcgan_g_forward.1} parent=1 // pred_check_branch
      %6824 = sbr.rel (0) target = $region61
    $region60: #{dcgan_g_forward.1} parent=1 // pred_region
      _
    $region61: #{dcgan_g_forward.1} parent=1 // pred_fallthru
      _
    // Predicated region
    $region62: #{dcgan_g_forward.1} parent=1 // pred_check
      _
    $region63: #{dcgan_g_forward.1} parent=1 // pred_check_branch
      %6826 = sbr.rel (0) target = $region65
    $region64: #{dcgan_g_forward.1} parent=1 // pred_region
      _
    $region65: #{dcgan_g_forward.1} parent=1 // pred_fallthru
      _
    %6827 = vsyncpa [#allocation3], 1
    %6828 = vsyncpa [#allocation5], 1

</llo_original>
